<compile_context>
chip_gen: v7x
topology: tpu7x:2x2x1
jax: 0.10.0
libtpu: 0.0.40
codegen_flags: <defaults>
</compile_context>

<pallas_src>
import functools

import jax
import jax.numpy as jnp
from jax.experimental import pallas as pl
from jax.experimental.pallas import tpu as pltpu

# ----------------------------------------------------------------------------
# Architecture constants (scaled-down EfficientNet-B1-style backbone).
# TODO(synk): real module loads pretrained efficientnet-b1 (23 MBConv blocks,
# 1280-d head); a deterministic 3-block backbone is used here, but the
# Net-level semantics (features -> cat with v -> Linear(..., 2)) are
# reproduced exactly and effnet._fc.out_features is kept at 1000.
# ----------------------------------------------------------------------------
STEM_CH = 16
HEAD_CH = 128
EFFNET_FC_OUT = 1000
BLOCK_CFGS = (
    dict(cin=16, cout=16, expand=1, stride=1, k=3),
    dict(cin=16, cout=24, expand=6, stride=2, k=3),
    dict(cin=24, cout=40, expand=6, stride=2, k=3),
)
BN_EPS = 1e-3

VMEM = pl.BlockSpec(memory_space=pltpu.MemorySpace.VMEM)


# ----------------------------------------------------------------------------
# Kernels
# ----------------------------------------------------------------------------
def _apply_act(x, act):
    if act == "swish":
        return x * jax.nn.sigmoid(x)
    if act == "sigmoid":
        return jax.nn.sigmoid(x)
    return x


def _matmul_kernel(a_ref, w_ref, b_ref, o_ref, *, act):
    # (M, K) @ (K, N) + bias, bf16 operands, f32 accumulate.
    acc = jnp.dot(a_ref[...].astype(jnp.bfloat16), w_ref[...],
                  preferred_element_type=jnp.float32)
    o_ref[...] = _apply_act(acc + b_ref[...], act)


def _conv_sp_kernel(ph_ref, w_ref, b_ref, o_ref, *, k, stride, Ho, Wo, act):
    # Small-Cin spatial conv (stem): in-kernel tap gather + VPU outer-product
    # accumulation (Cin is tiny, MXU contraction would be wasted).
    # ph_ref: (stride*stride, B, Hq, Wq, Cin) f32
    # w_ref : (k*k*Cin, 1, Cout) f32 ; b_ref: (1, Cout) f32
    # o_ref : (B, Ho, Wo, Cout) f32
    cin = ph_ref.shape[-1]
    acc = None
    for ky in range(k):
        for kx in range(k):
            pi = (ky % stride) * stride + (kx % stride)
            dy, dx = ky // stride, kx // stride
            tap = ph_ref[pi, :, dy:dy + Ho, dx:dx + Wo, :]        # (B,Ho,Wo,Cin)
            for ci in range(cin):
                term = tap[:, :, :, ci:ci + 1] * w_ref[(ky * k + kx) * cin + ci]
                acc = term if acc is None else acc + term
    o_ref[...] = _apply_act(acc + b_ref[...], act)


def _dwconv_gap_kernel(ph_ref, w_ref, b_ref, o_ref, gap_ref, *, k, stride, Ho, Wo):
    # Depthwise conv (k*k VPU FMAs on in-kernel taps) + swish, fused with the
    # global average pool that feeds squeeze-excite.
    # ph_ref: (stride*stride, B, Hq, Wq, C) f32
    # w_ref : (k*k, 1, C) f32 ; b_ref: (1, C) f32
    # o_ref : (B, Ho, Wo, C) f32 ; gap_ref: (B, C) f32
    acc = None
    for ky in range(k):
        for kx in range(k):
            pi = (ky % stride) * stride + (kx % stride)
            dy, dx = ky // stride, kx // stride
            tap = ph_ref[pi, :, dy:dy + Ho, dx:dx + Wo, :]        # (B,Ho,Wo,C)
            term = tap * w_ref[ky * k + kx]
            acc = term if acc is None else acc + term
    h = acc + b_ref[...]
    h = h * jax.nn.sigmoid(h)                                     # swish
    o_ref[...] = h
    gap_ref[...] = jnp.mean(h, axis=(1, 2))


def _se_proj_kernel(h_ref, gap_ref, w1_ref, b1_ref, w2_ref, b2_ref,
                    wp_ref, bp_ref, *rest, nbatch, has_res):
    # Fused MBConv tail: SE MLP -> sigmoid scale -> projection matmul (+res).
    # h_ref: (B, HW, Cmid) f32 ; gap_ref: (B, Cmid) f32
    if has_res:
        res_ref, o_ref = rest
    else:
        (o_ref,) = rest
    s = jnp.dot(gap_ref[...].astype(jnp.bfloat16), w1_ref[...],
                preferred_element_type=jnp.float32) + b1_ref[...]
    s = s * jax.nn.sigmoid(s)                                     # swish
    s = jnp.dot(s.astype(jnp.bfloat16), w2_ref[...],
                preferred_element_type=jnp.float32) + b2_ref[...]
    s = jax.nn.sigmoid(s)                                         # (B, Cmid)
    for bb in range(nbatch):
        hb = h_ref[bb] * s[bb:bb + 1, :]                          # (HW, Cmid)
        yb = jnp.dot(hb.astype(jnp.bfloat16), wp_ref[...],
                     preferred_element_type=jnp.float32) + bp_ref[...]
        if has_res:
            yb = yb + res_ref[bb]
        o_ref[bb] = yb


def _head_fc_kernel(x_ref, wh_ref, bh_ref, v_ref, wf_ref, wv_ref, bt_ref,
                    o_ref, *, nbatch):
    # Fused: head 1x1 conv + swish -> GAP -> folded (_fc o cat(v) o Net.fc).
    # x_ref: (B, HW, Cin) f32 ; wh: (Cin, HEAD) bf16 ; wf: (HEAD, 2) bf16
    feats = []
    for bb in range(nbatch):
        y = jnp.dot(x_ref[bb].astype(jnp.bfloat16), wh_ref[...],
                    preferred_element_type=jnp.float32) + bh_ref[...]
        y = y * jax.nn.sigmoid(y)                                 # swish
        feats.append(jnp.mean(y, axis=0, keepdims=True))          # (1, HEAD)
    feat = jnp.concatenate(feats, axis=0)                         # (B, HEAD)
    o_ref[...] = (
        jnp.dot(feat.astype(jnp.bfloat16), wf_ref[...],
                preferred_element_type=jnp.float32)
        + jnp.dot(v_ref[...].astype(jnp.bfloat16), wv_ref[...],
                  preferred_element_type=jnp.float32)
        + bt_ref[...]
    )


# ----------------------------------------------------------------------------
# Kernel wrappers
# ----------------------------------------------------------------------------
def matmul_bias_act(a, w, b, act="none", bm=512):
    """(M, K) @ (K, N) + bias (+act). Whole-M in one call when it fits; only
    for large M is a 'parallel' row grid used (shards across v7x's 2 TCs)."""
    M, K = a.shape
    N = w.shape[1]
    if M <= bm:
        return pl.pallas_call(
            functools.partial(_matmul_kernel, act=act),
            out_shape=jax.ShapeDtypeStruct((M, N), jnp.float32),
            in_specs=[VMEM, VMEM, VMEM],
            out_specs=VMEM,
        )(a, w, b)
    Mp = -(-M // bm) * bm
    a_p = a if Mp == M else jnp.pad(a, ((0, Mp - M), (0, 0)))
    out = pl.pallas_call(
        functools.partial(_matmul_kernel, act=act),
        out_shape=jax.ShapeDtypeStruct((Mp, N), jnp.float32),
        grid=(Mp // bm,),
        in_specs=[pl.BlockSpec((bm, K), lambda i: (i, 0)),
                  pl.BlockSpec((K, N), lambda i: (0, 0)),
                  pl.BlockSpec((1, N), lambda i: (0, 0))],
        out_specs=pl.BlockSpec((bm, N), lambda i: (i, 0)),
        compiler_params=pltpu.CompilerParams(
            dimension_semantics=("parallel",)),
    )(a_p, w, b)
    return out if Mp == M else out[:M]


def _same_pads(size, k, s):
    out = -(-size // s)
    total = max((out - 1) * s + k - size, 0)
    return total // 2, total - total // 2


def _pad_and_phase(x, k, stride):
    """SAME-pad (matches Conv2dStaticSamePadding) and split into stride*stride
    phases so in-kernel taps are unit-stride static slices."""
    B, H, W, C = x.shape
    pt, pb = _same_pads(H, k, stride)
    pw0, pw1 = _same_pads(W, k, stride)
    xp = jnp.pad(x, ((0, 0), (pt, pb), (pw0, pw1), (0, 0)))
    Ho, Wo = -(-H // stride), -(-W // stride)
    if stride == 1:
        return xp[None], Ho, Wo
    Hp, Wp = xp.shape[1], xp.shape[2]
    hq = max(-(-Hp // stride) * stride, stride * (Ho + (k - 1) // stride))
    wq = max(-(-Wp // stride) * stride, stride * (Wo + (k - 1) // stride))
    xp = jnp.pad(xp, ((0, 0), (0, hq - Hp), (0, wq - Wp), (0, 0)))
    phases = [xp[:, p::stride, q::stride, :]
              for p in range(stride) for q in range(stride)]
    return jnp.stack(phases, axis=0), Ho, Wo


def conv2d_spatial(x, w, b, k, stride, act):
    B = x.shape[0]
    cout = w.shape[-1]
    ph, Ho, Wo = _pad_and_phase(x, k, stride)
    return pl.pallas_call(
        functools.partial(_conv_sp_kernel, k=k, stride=stride, Ho=Ho, Wo=Wo, act=act),
        out_shape=jax.ShapeDtypeStruct((B, Ho, Wo, cout), jnp.float32),
        in_specs=[VMEM, VMEM, VMEM],
        out_specs=VMEM,
    )(ph, w, b)


def dwconv_gap(x, w, b, k, stride):
    B, H, W, C = x.shape
    ph, Ho, Wo = _pad_and_phase(x, k, stride)
    out, pooled = pl.pallas_call(
        functools.partial(_dwconv_gap_kernel, k=k, stride=stride, Ho=Ho, Wo=Wo),
        out_shape=(jax.ShapeDtypeStruct((B, Ho, Wo, C), jnp.float32),
                   jax.ShapeDtypeStruct((B, C), jnp.float32)),
        in_specs=[VMEM, VMEM, VMEM],
        out_specs=(VMEM, VMEM),
    )(ph, w, b)
    return out, pooled


def se_proj(h3, pooled, w1, b1, w2, b2, wp, bp, res):
    B, HW, _ = h3.shape
    cout = wp.shape[1]
    has_res = res is not None
    args = [h3, pooled, w1, b1, w2, b2, wp, bp] + ([res] if has_res else [])
    return pl.pallas_call(
        functools.partial(_se_proj_kernel, nbatch=B, has_res=has_res),
        out_shape=jax.ShapeDtypeStruct((B, HW, cout), jnp.float32),
        in_specs=[VMEM] * len(args),
        out_specs=VMEM,
    )(*args)


def head_fc(x3, v, wh, bh, wf, wv, bt):
    B = x3.shape[0]
    return pl.pallas_call(
        functools.partial(_head_fc_kernel, nbatch=B),
        out_shape=jax.ShapeDtypeStruct((B, 2), jnp.float32),
        in_specs=[VMEM] * 7,
        out_specs=VMEM,
    )(x3, wh, bh, v, wf, wv, bt)


# ----------------------------------------------------------------------------
# Parameters (deterministic synthetic init; BN folded; weights in kernel layout)
# ----------------------------------------------------------------------------
class _KeyGen:
    def __init__(self, key):
        self.key = key

    def __call__(self):
        self.key, k = jax.random.split(self.key)
        return k


def _fold_bn(kg, w, cout):
    gamma = 1.0 + 0.1 * jax.random.normal(kg(), (cout,))
    beta = 0.1 * jax.random.normal(kg(), (cout,))
    mean = 0.1 * jax.random.normal(kg(), (cout,))
    var = jnp.abs(jax.random.normal(kg(), (cout,))) + 1.0
    scale = gamma / jnp.sqrt(var + BN_EPS)
    return w * scale, beta - mean * scale


def _conv_bn(kg, k, cin, cout):
    w = jax.random.normal(kg(), (k, k, cin, cout)) / jnp.sqrt(float(k * k * cin))
    return _fold_bn(kg, w, cout)


def _dw_bn(kg, k, c):
    w = jax.random.normal(kg(), (k, k, c)) / jnp.sqrt(float(k * k))
    return _fold_bn(kg, w, c)


def _dense(kg, cin, cout):
    w = jax.random.normal(kg(), (cin, cout)) / jnp.sqrt(float(cin))
    b = 0.1 * jax.random.normal(kg(), (cout,))
    return w, b


def make_params(key, in_channels, conditional_dim):
    kg = _KeyGen(key)
    p = {}

    # Stem 3x3/s2 conv (BN folded) — VPU layout (k*k*Cin, 1, Cout), f32.
    w, b = _conv_bn(kg, 3, in_channels, STEM_CH)
    p["stem_w"] = w.reshape(9 * in_channels, 1, STEM_CH).astype(jnp.float32)
    p["stem_b"] = b.reshape(1, STEM_CH)

    blocks = []
    for cfg in BLOCK_CFGS:
        cin, cout, expand, k = cfg["cin"], cfg["cout"], cfg["expand"], cfg["k"]
        cmid = cin * expand
        se_ch = max(1, cin // 4)
        blk = {}
        if expand != 1:
            w, b = _conv_bn(kg, 1, cin, cmid)
            blk["exp_w"] = w.reshape(cin, cmid).astype(jnp.bfloat16)
            blk["exp_b"] = b.reshape(1, cmid)
        w, b = _dw_bn(kg, k, cmid)
        blk["dw_w"] = w.reshape(k * k, 1, cmid).astype(jnp.float32)
        blk["dw_b"] = b.reshape(1, cmid)
        w, b = _dense(kg, cmid, se_ch)
        blk["se1_w"], blk["se1_b"] = w.astype(jnp.bfloat16), b.reshape(1, se_ch)
        w, b = _dense(kg, se_ch, cmid)
        blk["se2_w"], blk["se2_b"] = w.astype(jnp.bfloat16), b.reshape(1, cmid)
        w, b = _conv_bn(kg, 1, cmid, cout)
        blk["proj_w"] = w.reshape(cmid, cout).astype(jnp.bfloat16)
        blk["proj_b"] = b.reshape(1, cout)
        blocks.append(blk)
    p["blocks"] = blocks

    w, b = _conv_bn(kg, 1, BLOCK_CFGS[-1]["cout"], HEAD_CH)
    p["head_w"] = w.reshape(BLOCK_CFGS[-1]["cout"], HEAD_CH).astype(jnp.bfloat16)
    p["head_b"] = b.reshape(1, HEAD_CH)

    fc_w, fc_b = _dense(kg, HEAD_CH, EFFNET_FC_OUT)                 # effnet._fc
    net_w, net_b = _dense(kg, EFFNET_FC_OUT + conditional_dim, 2)   # Net.fc
    # TODO(synk): dropout before effnet._fc is identity at inference and both
    # FCs are affine, so the 128->1000 / cat(v) / 1008->2 chain is folded
    # exactly into 128->2 (+ cond->2); the 1000-wide weight is never streamed.
    p["fc_feat_w"] = (fc_w @ net_w[:EFFNET_FC_OUT]).astype(jnp.bfloat16)
    p["fc_v_w"] = net_w[EFFNET_FC_OUT:].astype(jnp.bfloat16)
    p["fc_b"] = (fc_b @ net_w[:EFFNET_FC_OUT] + net_b).reshape(1, 2)
    return p


# ----------------------------------------------------------------------------
# Forward pass
# ----------------------------------------------------------------------------
def _mbconv(cfg, blk, x):
    B, H, W, cin = x.shape
    inp = x
    h = x
    if cfg["expand"] != 1:
        rows = matmul_bias_act(h.reshape(B * H * W, cin),
                               blk["exp_w"], blk["exp_b"], act="swish")
        h = rows.reshape(B, H, W, rows.shape[-1])
    # Depthwise conv + swish, fused with the SE global-average pool.
    h4, pooled = dwconv_gap(h, blk["dw_w"], blk["dw_b"],
                            k=cfg["k"], stride=cfg["stride"])
    _, Ho, Wo, cmid = h4.shape
    has_res = cfg["stride"] == 1 and cfg["cin"] == cfg["cout"]
    # TODO(synk): drop_connect on the skip path is identity at inference.
    res = inp.reshape(B, H * W, cin) if has_res else None
    out = se_proj(h4.reshape(B, Ho * Wo, cmid), pooled,
                  blk["se1_w"], blk["se1_b"], blk["se2_w"], blk["se2_b"],
                  blk["proj_w"], blk["proj_b"], res)
    return out.reshape(B, Ho, Wo, cfg["cout"])


def net_forward(params, x_nchw, v):
    x = jnp.transpose(x_nchw, (0, 2, 3, 1)).astype(jnp.float32)   # NCHW -> NHWC
    x = conv2d_spatial(x, params["stem_w"], params["stem_b"],
                       k=3, stride=2, act="swish")
    for cfg, blk in zip(BLOCK_CFGS, params["blocks"]):
        x = _mbconv(cfg, blk, x)
    B, H, W, C = x.shape
    return head_fc(x.reshape(B, H * W, C), v.astype(jnp.float32),
                   params["head_w"], params["head_b"],
                   params["fc_feat_w"], params["fc_v_w"], params["fc_b"])


# ----------------------------------------------------------------------------
if __name__ == "__main__":
    B, IN_CH, S, COND = 2, 4, 16, 8
    root = jax.random.PRNGKey(0)
    k_param, k_x, k_v = jax.random.split(root, 3)

    params = make_params(k_param, IN_CH, COND)
    x = jax.random.normal(k_x, (B, IN_CH, S, S), dtype=jnp.float32)
    v = jax.random.normal(k_v, (B, COND), dtype=jnp.float32)

    out = jax.jit(net_forward)(params, x, v)
    out = jax.block_until_ready(out)

    assert out.shape == (B, 2), out.shape
    assert bool(jnp.all(jnp.isfinite(out)))
    print("KERNEL_OK")
</pallas_src>

<mosaic_0001>
module attributes {stable_mosaic.version = 11 : i64} {
  func.func @_conv_sp_kernel(%arg0: memref<4x2x9x9x4xf32, #tpu.memory_space<vmem>>, %arg1: memref<36x1x16xf32, #tpu.memory_space<vmem>>, %arg2: memref<1x16xf32, #tpu.memory_space<vmem>>, %arg3: memref<2x8x8x16xf32, #tpu.memory_space<vmem>>) attributes {dimension_semantics = [], scalar_prefetch = 0 : i64, scratch_operands = 0 : i64, tpu.core_type = #tpu.core_type<tc>} {
    %c0 = arith.constant 0 : index
    %c0_0 = arith.constant 0 : index
    %c0_1 = arith.constant 0 : index
    %c0_2 = arith.constant 0 : index
    %c0_3 = arith.constant 0 : index
    %0 = vector.load %arg0[%c0, %c0_0, %c0_1, %c0_2, %c0_3] : memref<4x2x9x9x4xf32, #tpu.memory_space<vmem>>, vector<1x2x8x8x4xf32>
    %1 = vector.shape_cast %0 : vector<1x2x8x8x4xf32> to vector<2x8x8x4xf32>
    %2 = vector.extract_strided_slice %1 {offsets = [0, 0, 0, 0], sizes = [2, 8, 8, 1], strides = [1, 1, 1, 1]} : vector<2x8x8x4xf32> to vector<2x8x8x1xf32>
    %c0_4 = arith.constant 0 : index
    %c0_5 = arith.constant 0 : index
    %c0_6 = arith.constant 0 : index
    %3 = vector.load %arg1[%c0_4, %c0_5, %c0_6] : memref<36x1x16xf32, #tpu.memory_space<vmem>>, vector<1x1x16xf32>
    %4 = vector.shape_cast %3 : vector<1x1x16xf32> to vector<1x16xf32>
    %5 = vector.shape_cast %4 : vector<1x16xf32> to vector<1x1x1x16xf32>
    %6 = vector.broadcast %2 : vector<2x8x8x1xf32> to vector<2x8x8x16xf32>
    %7 = vector.broadcast %5 : vector<1x1x1x16xf32> to vector<2x8x8x16xf32>
    %8 = arith.mulf %6, %7 : vector<2x8x8x16xf32>
    %9 = vector.extract_strided_slice %1 {offsets = [0, 0, 0, 1], sizes = [2, 8, 8, 1], strides = [1, 1, 1, 1]} : vector<2x8x8x4xf32> to vector<2x8x8x1xf32>
    %c1 = arith.constant 1 : index
    %c0_7 = arith.constant 0 : index
    %c0_8 = arith.constant 0 : index
    %10 = vector.load %arg1[%c1, %c0_7, %c0_8] : memref<36x1x16xf32, #tpu.memory_space<vmem>>, vector<1x1x16xf32>
    %11 = vector.shape_cast %10 : vector<1x1x16xf32> to vector<1x16xf32>
    %12 = vector.shape_cast %11 : vector<1x16xf32> to vector<1x1x1x16xf32>
    %13 = vector.broadcast %9 : vector<2x8x8x1xf32> to vector<2x8x8x16xf32>
    %14 = vector.broadcast %12 : vector<1x1x1x16xf32> to vector<2x8x8x16xf32>
    %15 = arith.mulf %13, %14 : vector<2x8x8x16xf32>
    %16 = arith.addf %8, %15 : vector<2x8x8x16xf32>
    %17 = vector.extract_strided_slice %1 {offsets = [0, 0, 0, 2], sizes = [2, 8, 8, 1], strides = [1, 1, 1, 1]} : vector<2x8x8x4xf32> to vector<2x8x8x1xf32>
    %c2 = arith.constant 2 : index
    %c0_9 = arith.constant 0 : index
    %c0_10 = arith.constant 0 : index
    %18 = vector.load %arg1[%c2, %c0_9, %c0_10] : memref<36x1x16xf32, #tpu.memory_space<vmem>>, vector<1x1x16xf32>
    %19 = vector.shape_cast %18 : vector<1x1x16xf32> to vector<1x16xf32>
    %20 = vector.shape_cast %19 : vector<1x16xf32> to vector<1x1x1x16xf32>
    %21 = vector.broadcast %17 : vector<2x8x8x1xf32> to vector<2x8x8x16xf32>
    %22 = vector.broadcast %20 : vector<1x1x1x16xf32> to vector<2x8x8x16xf32>
    %23 = arith.mulf %21, %22 : vector<2x8x8x16xf32>
    %24 = arith.addf %16, %23 : vector<2x8x8x16xf32>
    %25 = vector.extract_strided_slice %1 {offsets = [0, 0, 0, 3], sizes = [2, 8, 8, 1], strides = [1, 1, 1, 1]} : vector<2x8x8x4xf32> to vector<2x8x8x1xf32>
    %c3 = arith.constant 3 : index
    %c0_11 = arith.constant 0 : index
    %c0_12 = arith.constant 0 : index
    %26 = vector.load %arg1[%c3, %c0_11, %c0_12] : memref<36x1x16xf32, #tpu.memory_space<vmem>>, vector<1x1x16xf32>
    %27 = vector.shape_cast %26 : vector<1x1x16xf32> to vector<1x16xf32>
    %28 = vector.shape_cast %27 : vector<1x16xf32> to vector<1x1x1x16xf32>
    %29 = vector.broadcast %25 : vector<2x8x8x1xf32> to vector<2x8x8x16xf32>
    %30 = vector.broadcast %28 : vector<1x1x1x16xf32> to vector<2x8x8x16xf32>
    %31 = arith.mulf %29, %30 : vector<2x8x8x16xf32>
    %32 = arith.addf %24, %31 : vector<2x8x8x16xf32>
    %c1_13 = arith.constant 1 : index
    %c0_14 = arith.constant 0 : index
    %c0_15 = arith.constant 0 : index
    %c0_16 = arith.constant 0 : index
    %c0_17 = arith.constant 0 : index
    %33 = vector.load %arg0[%c1_13, %c0_14, %c0_15, %c0_16, %c0_17] : memref<4x2x9x9x4xf32, #tpu.memory_space<vmem>>, vector<1x2x8x8x4xf32>
    %34 = vector.shape_cast %33 : vector<1x2x8x8x4xf32> to vector<2x8x8x4xf32>
    %35 = vector.extract_strided_slice %34 {offsets = [0, 0, 0, 0], sizes = [2, 8, 8, 1], strides = [1, 1, 1, 1]} : vector<2x8x8x4xf32> to vector<2x8x8x1xf32>
    %c4 = arith.constant 4 : index
    %c0_18 = arith.constant 0 : index
    %c0_19 = arith.constant 0 : index
    %36 = vector.load %arg1[%c4, %c0_18, %c0_19] : memref<36x1x16xf32, #tpu.memory_space<vmem>>, vector<1x1x16xf32>
    %37 = vector.shape_cast %36 : vector<1x1x16xf32> to vector<1x16xf32>
    %38 = vector.shape_cast %37 : vector<1x16xf32> to vector<1x1x1x16xf32>
    %39 = vector.broadcast %35 : vector<2x8x8x1xf32> to vector<2x8x8x16xf32>
    %40 = vector.broadcast %38 : vector<1x1x1x16xf32> to vector<2x8x8x16xf32>
    %41 = arith.mulf %39, %40 : vector<2x8x8x16xf32>
    %42 = arith.addf %32, %41 : vector<2x8x8x16xf32>
    %43 = vector.extract_strided_slice %34 {offsets = [0, 0, 0, 1], sizes = [2, 8, 8, 1], strides = [1, 1, 1, 1]} : vector<2x8x8x4xf32> to vector<2x8x8x1xf32>
    %c5 = arith.constant 5 : index
    %c0_20 = arith.constant 0 : index
    %c0_21 = arith.constant 0 : index
    %44 = vector.load %arg1[%c5, %c0_20, %c0_21] : memref<36x1x16xf32, #tpu.memory_space<vmem>>, vector<1x1x16xf32>
    %45 = vector.shape_cast %44 : vector<1x1x16xf32> to vector<1x16xf32>
    %46 = vector.shape_cast %45 : vector<1x16xf32> to vector<1x1x1x16xf32>
    %47 = vector.broadcast %43 : vector<2x8x8x1xf32> to vector<2x8x8x16xf32>
    %48 = vector.broadcast %46 : vector<1x1x1x16xf32> to vector<2x8x8x16xf32>
    %49 = arith.mulf %47, %48 : vector<2x8x8x16xf32>
    %50 = arith.addf %42, %49 : vector<2x8x8x16xf32>
    %51 = vector.extract_strided_slice %34 {offsets = [0, 0, 0, 2], sizes = [2, 8, 8, 1], strides = [1, 1, 1, 1]} : vector<2x8x8x4xf32> to vector<2x8x8x1xf32>
    %c6 = arith.constant 6 : index
    %c0_22 = arith.constant 0 : index
    %c0_23 = arith.constant 0 : index
    %52 = vector.load %arg1[%c6, %c0_22, %c0_23] : memref<36x1x16xf32, #tpu.memory_space<vmem>>, vector<1x1x16xf32>
    %53 = vector.shape_cast %52 : vector<1x1x16xf32> to vector<1x16xf32>
    %54 = vector.shape_cast %53 : vector<1x16xf32> to vector<1x1x1x16xf32>
    %55 = vector.broadcast %51 : vector<2x8x8x1xf32> to vector<2x8x8x16xf32>
    %56 = vector.broadcast %54 : vector<1x1x1x16xf32> to vector<2x8x8x16xf32>
    %57 = arith.mulf %55, %56 : vector<2x8x8x16xf32>
    %58 = arith.addf %50, %57 : vector<2x8x8x16xf32>
    %59 = vector.extract_strided_slice %34 {offsets = [0, 0, 0, 3], sizes = [2, 8, 8, 1], strides = [1, 1, 1, 1]} : vector<2x8x8x4xf32> to vector<2x8x8x1xf32>
    %c7 = arith.constant 7 : index
    %c0_24 = arith.constant 0 : index
    %c0_25 = arith.constant 0 : index
    %60 = vector.load %arg1[%c7, %c0_24, %c0_25] : memref<36x1x16xf32, #tpu.memory_space<vmem>>, vector<1x1x16xf32>
    %61 = vector.shape_cast %60 : vector<1x1x16xf32> to vector<1x16xf32>
    %62 = vector.shape_cast %61 : vector<1x16xf32> to vector<1x1x1x16xf32>
    %63 = vector.broadcast %59 : vector<2x8x8x1xf32> to vector<2x8x8x16xf32>
    %64 = vector.broadcast %62 : vector<1x1x1x16xf32> to vector<2x8x8x16xf32>
    %65 = arith.mulf %63, %64 : vector<2x8x8x16xf32>
    %66 = arith.addf %58, %65 : vector<2x8x8x16xf32>
    %c0_26 = arith.constant 0 : index
    %c0_27 = arith.constant 0 : index
    %c0_28 = arith.constant 0 : index
    %c1_29 = arith.constant 1 : index
    %c0_30 = arith.constant 0 : index
    %67 = vector.load %arg0[%c0_26, %c0_27, %c0_28, %c1_29, %c0_30] : memref<4x2x9x9x4xf32, #tpu.memory_space<vmem>>, vector<1x2x8x8x4xf32>
    %68 = vector.shape_cast %67 : vector<1x2x8x8x4xf32> to vector<2x8x8x4xf32>
    %69 = vector.extract_strided_slice %68 {offsets = [0, 0, 0, 0], sizes = [2, 8, 8, 1], strides = [1, 1, 1, 1]} : vector<2x8x8x4xf32> to vector<2x8x8x1xf32>
    %c8 = arith.constant 8 : index
    %c0_31 = arith.constant 0 : index
    %c0_32 = arith.constant 0 : index
    %70 = vector.load %arg1[%c8, %c0_31, %c0_32] : memref<36x1x16xf32, #tpu.memory_space<vmem>>, vector<1x1x16xf32>
    %71 = vector.shape_cast %70 : vector<1x1x16xf32> to vector<1x16xf32>
    %72 = vector.shape_cast %71 : vector<1x16xf32> to vector<1x1x1x16xf32>
    %73 = vector.broadcast %69 : vector<2x8x8x1xf32> to vector<2x8x8x16xf32>
    %74 = vector.broadcast %72 : vector<1x1x1x16xf32> to vector<2x8x8x16xf32>
    %75 = arith.mulf %73, %74 : vector<2x8x8x16xf32>
    %76 = arith.addf %66, %75 : vector<2x8x8x16xf32>
    %77 = vector.extract_strided_slice %68 {offsets = [0, 0, 0, 1], sizes = [2, 8, 8, 1], strides = [1, 1, 1, 1]} : vector<2x8x8x4xf32> to vector<2x8x8x1xf32>
    %c9 = arith.constant 9 : index
    %c0_33 = arith.constant 0 : index
    %c0_34 = arith.constant 0 : index
    %78 = vector.load %arg1[%c9, %c0_33, %c0_34] : memref<36x1x16xf32, #tpu.memory_space<vmem>>, vector<1x1x16xf32>
    %79 = vector.shape_cast %78 : vector<1x1x16xf32> to vector<1x16xf32>
    %80 = vector.shape_cast %79 : vector<1x16xf32> to vector<1x1x1x16xf32>
    %81 = vector.broadcast %77 : vector<2x8x8x1xf32> to vector<2x8x8x16xf32>
    %82 = vector.broadcast %80 : vector<1x1x1x16xf32> to vector<2x8x8x16xf32>
    %83 = arith.mulf %81, %82 : vector<2x8x8x16xf32>
    %84 = arith.addf %76, %83 : vector<2x8x8x16xf32>
    %85 = vector.extract_strided_slice %68 {offsets = [0, 0, 0, 2], sizes = [2, 8, 8, 1], strides = [1, 1, 1, 1]} : vector<2x8x8x4xf32> to vector<2x8x8x1xf32>
    %c10 = arith.constant 10 : index
    %c0_35 = arith.constant 0 : index
    %c0_36 = arith.constant 0 : index
    %86 = vector.load %arg1[%c10, %c0_35, %c0_36] : memref<36x1x16xf32, #tpu.memory_space<vmem>>, vector<1x1x16xf32>
    %87 = vector.shape_cast %86 : vector<1x1x16xf32> to vector<1x16xf32>
    %88 = vector.shape_cast %87 : vector<1x16xf32> to vector<1x1x1x16xf32>
    %89 = vector.broadcast %85 : vector<2x8x8x1xf32> to vector<2x8x8x16xf32>
    %90 = vector.broadcast %88 : vector<1x1x1x16xf32> to vector<2x8x8x16xf32>
    %91 = arith.mulf %89, %90 : vector<2x8x8x16xf32>
    %92 = arith.addf %84, %91 : vector<2x8x8x16xf32>
    %93 = vector.extract_strided_slice %68 {offsets = [0, 0, 0, 3], sizes = [2, 8, 8, 1], strides = [1, 1, 1, 1]} : vector<2x8x8x4xf32> to vector<2x8x8x1xf32>
    %c11 = arith.constant 11 : index
    %c0_37 = arith.constant 0 : index
    %c0_38 = arith.constant 0 : index
    %94 = vector.load %arg1[%c11, %c0_37, %c0_38] : memref<36x1x16xf32, #tpu.memory_space<vmem>>, vector<1x1x16xf32>
    %95 = vector.shape_cast %94 : vector<1x1x16xf32> to vector<1x16xf32>
    %96 = vector.shape_cast %95 : vector<1x16xf32> to vector<1x1x1x16xf32>
    %97 = vector.broadcast %93 : vector<2x8x8x1xf32> to vector<2x8x8x16xf32>
    %98 = vector.broadcast %96 : vector<1x1x1x16xf32> to vector<2x8x8x16xf32>
    %99 = arith.mulf %97, %98 : vector<2x8x8x16xf32>
    %100 = arith.addf %92, %99 : vector<2x8x8x16xf32>
    %c2_39 = arith.constant 2 : index
    %c0_40 = arith.constant 0 : index
    %c0_41 = arith.constant 0 : index
    %c0_42 = arith.constant 0 : index
    %c0_43 = arith.constant 0 : index
    %101 = vector.load %arg0[%c2_39, %c0_40, %c0_41, %c0_42, %c0_43] : memref<4x2x9x9x4xf32, #tpu.memory_space<vmem>>, vector<1x2x8x8x4xf32>
    %102 = vector.shape_cast %101 : vector<1x2x8x8x4xf32> to vector<2x8x8x4xf32>
    %103 = vector.extract_strided_slice %102 {offsets = [0, 0, 0, 0], sizes = [2, 8, 8, 1], strides = [1, 1, 1, 1]} : vector<2x8x8x4xf32> to vector<2x8x8x1xf32>
    %c12 = arith.constant 12 : index
    %c0_44 = arith.constant 0 : index
    %c0_45 = arith.constant 0 : index
    %104 = vector.load %arg1[%c12, %c0_44, %c0_45] : memref<36x1x16xf32, #tpu.memory_space<vmem>>, vector<1x1x16xf32>
    %105 = vector.shape_cast %104 : vector<1x1x16xf32> to vector<1x16xf32>
    %106 = vector.shape_cast %105 : vector<1x16xf32> to vector<1x1x1x16xf32>
    %107 = vector.broadcast %103 : vector<2x8x8x1xf32> to vector<2x8x8x16xf32>
    %108 = vector.broadcast %106 : vector<1x1x1x16xf32> to vector<2x8x8x16xf32>
    %109 = arith.mulf %107, %108 : vector<2x8x8x16xf32>
    %110 = arith.addf %100, %109 : vector<2x8x8x16xf32>
    %111 = vector.extract_strided_slice %102 {offsets = [0, 0, 0, 1], sizes = [2, 8, 8, 1], strides = [1, 1, 1, 1]} : vector<2x8x8x4xf32> to vector<2x8x8x1xf32>
    %c13 = arith.constant 13 : index
    %c0_46 = arith.constant 0 : index
    %c0_47 = arith.constant 0 : index
    %112 = vector.load %arg1[%c13, %c0_46, %c0_47] : memref<36x1x16xf32, #tpu.memory_space<vmem>>, vector<1x1x16xf32>
    %113 = vector.shape_cast %112 : vector<1x1x16xf32> to vector<1x16xf32>
    %114 = vector.shape_cast %113 : vector<1x16xf32> to vector<1x1x1x16xf32>
    %115 = vector.broadcast %111 : vector<2x8x8x1xf32> to vector<2x8x8x16xf32>
    %116 = vector.broadcast %114 : vector<1x1x1x16xf32> to vector<2x8x8x16xf32>
    %117 = arith.mulf %115, %116 : vector<2x8x8x16xf32>
    %118 = arith.addf %110, %117 : vector<2x8x8x16xf32>
    %119 = vector.extract_strided_slice %102 {offsets = [0, 0, 0, 2], sizes = [2, 8, 8, 1], strides = [1, 1, 1, 1]} : vector<2x8x8x4xf32> to vector<2x8x8x1xf32>
    %c14 = arith.constant 14 : index
    %c0_48 = arith.constant 0 : index
    %c0_49 = arith.constant 0 : index
    %120 = vector.load %arg1[%c14, %c0_48, %c0_49] : memref<36x1x16xf32, #tpu.memory_space<vmem>>, vector<1x1x16xf32>
    %121 = vector.shape_cast %120 : vector<1x1x16xf32> to vector<1x16xf32>
    %122 = vector.shape_cast %121 : vector<1x16xf32> to vector<1x1x1x16xf32>
    %123 = vector.broadcast %119 : vector<2x8x8x1xf32> to vector<2x8x8x16xf32>
    %124 = vector.broadcast %122 : vector<1x1x1x16xf32> to vector<2x8x8x16xf32>
    %125 = arith.mulf %123, %124 : vector<2x8x8x16xf32>
    %126 = arith.addf %118, %125 : vector<2x8x8x16xf32>
    %127 = vector.extract_strided_slice %102 {offsets = [0, 0, 0, 3], sizes = [2, 8, 8, 1], strides = [1, 1, 1, 1]} : vector<2x8x8x4xf32> to vector<2x8x8x1xf32>
    %c15 = arith.constant 15 : index
    %c0_50 = arith.constant 0 : index
    %c0_51 = arith.constant 0 : index
    %128 = vector.load %arg1[%c15, %c0_50, %c0_51] : memref<36x1x16xf32, #tpu.memory_space<vmem>>, vector<1x1x16xf32>
    %129 = vector.shape_cast %128 : vector<1x1x16xf32> to vector<1x16xf32>
    %130 = vector.shape_cast %129 : vector<1x16xf32> to vector<1x1x1x16xf32>
    %131 = vector.broadcast %127 : vector<2x8x8x1xf32> to vector<2x8x8x16xf32>
    %132 = vector.broadcast %130 : vector<1x1x1x16xf32> to vector<2x8x8x16xf32>
    %133 = arith.mulf %131, %132 : vector<2x8x8x16xf32>
    %134 = arith.addf %126, %133 : vector<2x8x8x16xf32>
    %c3_52 = arith.constant 3 : index
    %c0_53 = arith.constant 0 : index
    %c0_54 = arith.constant 0 : index
    %c0_55 = arith.constant 0 : index
    %c0_56 = arith.constant 0 : index
    %135 = vector.load %arg0[%c3_52, %c0_53, %c0_54, %c0_55, %c0_56] : memref<4x2x9x9x4xf32, #tpu.memory_space<vmem>>, vector<1x2x8x8x4xf32>
    %136 = vector.shape_cast %135 : vector<1x2x8x8x4xf32> to vector<2x8x8x4xf32>
    %137 = vector.extract_strided_slice %136 {offsets = [0, 0, 0, 0], sizes = [2, 8, 8, 1], strides = [1, 1, 1, 1]} : vector<2x8x8x4xf32> to vector<2x8x8x1xf32>
    %c16 = arith.constant 16 : index
    %c0_57 = arith.constant 0 : index
    %c0_58 = arith.constant 0 : index
    %138 = vector.load %arg1[%c16, %c0_57, %c0_58] : memref<36x1x16xf32, #tpu.memory_space<vmem>>, vector<1x1x16xf32>
    %139 = vector.shape_cast %138 : vector<1x1x16xf32> to vector<1x16xf32>
    %140 = vector.shape_cast %139 : vector<1x16xf32> to vector<1x1x1x16xf32>
    %141 = vector.broadcast %137 : vector<2x8x8x1xf32> to vector<2x8x8x16xf32>
    %142 = vector.broadcast %140 : vector<1x1x1x16xf32> to vector<2x8x8x16xf32>
    %143 = arith.mulf %141, %142 : vector<2x8x8x16xf32>
    %144 = arith.addf %134, %143 : vector<2x8x8x16xf32>
    %145 = vector.extract_strided_slice %136 {offsets = [0, 0, 0, 1], sizes = [2, 8, 8, 1], strides = [1, 1, 1, 1]} : vector<2x8x8x4xf32> to vector<2x8x8x1xf32>
    %c17 = arith.constant 17 : index
    %c0_59 = arith.constant 0 : index
    %c0_60 = arith.constant 0 : index
    %146 = vector.load %arg1[%c17, %c0_59, %c0_60] : memref<36x1x16xf32, #tpu.memory_space<vmem>>, vector<1x1x16xf32>
    %147 = vector.shape_cast %146 : vector<1x1x16xf32> to vector<1x16xf32>
    %148 = vector.shape_cast %147 : vector<1x16xf32> to vector<1x1x1x16xf32>
    %149 = vector.broadcast %145 : vector<2x8x8x1xf32> to vector<2x8x8x16xf32>
    %150 = vector.broadcast %148 : vector<1x1x1x16xf32> to vector<2x8x8x16xf32>
    %151 = arith.mulf %149, %150 : vector<2x8x8x16xf32>
    %152 = arith.addf %144, %151 : vector<2x8x8x16xf32>
    %153 = vector.extract_strided_slice %136 {offsets = [0, 0, 0, 2], sizes = [2, 8, 8, 1], strides = [1, 1, 1, 1]} : vector<2x8x8x4xf32> to vector<2x8x8x1xf32>
    %c18 = arith.constant 18 : index
    %c0_61 = arith.constant 0 : index
    %c0_62 = arith.constant 0 : index
    %154 = vector.load %arg1[%c18, %c0_61, %c0_62] : memref<36x1x16xf32, #tpu.memory_space<vmem>>, vector<1x1x16xf32>
    %155 = vector.shape_cast %154 : vector<1x1x16xf32> to vector<1x16xf32>
    %156 = vector.shape_cast %155 : vector<1x16xf32> to vector<1x1x1x16xf32>
    %157 = vector.broadcast %153 : vector<2x8x8x1xf32> to vector<2x8x8x16xf32>
    %158 = vector.broadcast %156 : vector<1x1x1x16xf32> to vector<2x8x8x16xf32>
    %159 = arith.mulf %157, %158 : vector<2x8x8x16xf32>
    %160 = arith.addf %152, %159 : vector<2x8x8x16xf32>
    %161 = vector.extract_strided_slice %136 {offsets = [0, 0, 0, 3], sizes = [2, 8, 8, 1], strides = [1, 1, 1, 1]} : vector<2x8x8x4xf32> to vector<2x8x8x1xf32>
    %c19 = arith.constant 19 : index
    %c0_63 = arith.constant 0 : index
    %c0_64 = arith.constant 0 : index
    %162 = vector.load %arg1[%c19, %c0_63, %c0_64] : memref<36x1x16xf32, #tpu.memory_space<vmem>>, vector<1x1x16xf32>
    %163 = vector.shape_cast %162 : vector<1x1x16xf32> to vector<1x16xf32>
    %164 = vector.shape_cast %163 : vector<1x16xf32> to vector<1x1x1x16xf32>
    %165 = vector.broadcast %161 : vector<2x8x8x1xf32> to vector<2x8x8x16xf32>
    %166 = vector.broadcast %164 : vector<1x1x1x16xf32> to vector<2x8x8x16xf32>
    %167 = arith.mulf %165, %166 : vector<2x8x8x16xf32>
    %168 = arith.addf %160, %167 : vector<2x8x8x16xf32>
    %c2_65 = arith.constant 2 : index
    %c0_66 = arith.constant 0 : index
    %c0_67 = arith.constant 0 : index
    %c1_68 = arith.constant 1 : index
    %c0_69 = arith.constant 0 : index
    %169 = vector.load %arg0[%c2_65, %c0_66, %c0_67, %c1_68, %c0_69] : memref<4x2x9x9x4xf32, #tpu.memory_space<vmem>>, vector<1x2x8x8x4xf32>
    %170 = vector.shape_cast %169 : vector<1x2x8x8x4xf32> to vector<2x8x8x4xf32>
    %171 = vector.extract_strided_slice %170 {offsets = [0, 0, 0, 0], sizes = [2, 8, 8, 1], strides = [1, 1, 1, 1]} : vector<2x8x8x4xf32> to vector<2x8x8x1xf32>
    %c20 = arith.constant 20 : index
    %c0_70 = arith.constant 0 : index
    %c0_71 = arith.constant 0 : index
    %172 = vector.load %arg1[%c20, %c0_70, %c0_71] : memref<36x1x16xf32, #tpu.memory_space<vmem>>, vector<1x1x16xf32>
    %173 = vector.shape_cast %172 : vector<1x1x16xf32> to vector<1x16xf32>
    %174 = vector.shape_cast %173 : vector<1x16xf32> to vector<1x1x1x16xf32>
    %175 = vector.broadcast %171 : vector<2x8x8x1xf32> to vector<2x8x8x16xf32>
    %176 = vector.broadcast %174 : vector<1x1x1x16xf32> to vector<2x8x8x16xf32>
    %177 = arith.mulf %175, %176 : vector<2x8x8x16xf32>
    %178 = arith.addf %168, %177 : vector<2x8x8x16xf32>
    %179 = vector.extract_strided_slice %170 {offsets = [0, 0, 0, 1], sizes = [2, 8, 8, 1], strides = [1, 1, 1, 1]} : vector<2x8x8x4xf32> to vector<2x8x8x1xf32>
    %c21 = arith.constant 21 : index
    %c0_72 = arith.constant 0 : index
    %c0_73 = arith.constant 0 : index
    %180 = vector.load %arg1[%c21, %c0_72, %c0_73] : memref<36x1x16xf32, #tpu.memory_space<vmem>>, vector<1x1x16xf32>
    %181 = vector.shape_cast %180 : vector<1x1x16xf32> to vector<1x16xf32>
    %182 = vector.shape_cast %181 : vector<1x16xf32> to vector<1x1x1x16xf32>
    %183 = vector.broadcast %179 : vector<2x8x8x1xf32> to vector<2x8x8x16xf32>
    %184 = vector.broadcast %182 : vector<1x1x1x16xf32> to vector<2x8x8x16xf32>
    %185 = arith.mulf %183, %184 : vector<2x8x8x16xf32>
    %186 = arith.addf %178, %185 : vector<2x8x8x16xf32>
    %187 = vector.extract_strided_slice %170 {offsets = [0, 0, 0, 2], sizes = [2, 8, 8, 1], strides = [1, 1, 1, 1]} : vector<2x8x8x4xf32> to vector<2x8x8x1xf32>
    %c22 = arith.constant 22 : index
    %c0_74 = arith.constant 0 : index
    %c0_75 = arith.constant 0 : index
    %188 = vector.load %arg1[%c22, %c0_74, %c0_75] : memref<36x1x16xf32, #tpu.memory_space<vmem>>, vector<1x1x16xf32>
    %189 = vector.shape_cast %188 : vector<1x1x16xf32> to vector<1x16xf32>
    %190 = vector.shape_cast %189 : vector<1x16xf32> to vector<1x1x1x16xf32>
    %191 = vector.broadcast %187 : vector<2x8x8x1xf32> to vector<2x8x8x16xf32>
    %192 = vector.broadcast %190 : vector<1x1x1x16xf32> to vector<2x8x8x16xf32>
    %193 = arith.mulf %191, %192 : vector<2x8x8x16xf32>
    %194 = arith.addf %186, %193 : vector<2x8x8x16xf32>
    %195 = vector.extract_strided_slice %170 {offsets = [0, 0, 0, 3], sizes = [2, 8, 8, 1], strides = [1, 1, 1, 1]} : vector<2x8x8x4xf32> to vector<2x8x8x1xf32>
    %c23 = arith.constant 23 : index
    %c0_76 = arith.constant 0 : index
    %c0_77 = arith.constant 0 : index
    %196 = vector.load %arg1[%c23, %c0_76, %c0_77] : memref<36x1x16xf32, #tpu.memory_space<vmem>>, vector<1x1x16xf32>
    %197 = vector.shape_cast %196 : vector<1x1x16xf32> to vector<1x16xf32>
    %198 = vector.shape_cast %197 : vector<1x16xf32> to vector<1x1x1x16xf32>
    %199 = vector.broadcast %195 : vector<2x8x8x1xf32> to vector<2x8x8x16xf32>
    %200 = vector.broadcast %198 : vector<1x1x1x16xf32> to vector<2x8x8x16xf32>
    %201 = arith.mulf %199, %200 : vector<2x8x8x16xf32>
    %202 = arith.addf %194, %201 : vector<2x8x8x16xf32>
    %c0_78 = arith.constant 0 : index
    %c0_79 = arith.constant 0 : index
    %c1_80 = arith.constant 1 : index
    %c0_81 = arith.constant 0 : index
    %c0_82 = arith.constant 0 : index
    %203 = vector.load %arg0[%c0_78, %c0_79, %c1_80, %c0_81, %c0_82] : memref<4x2x9x9x4xf32, #tpu.memory_space<vmem>>, vector<1x2x8x8x4xf32>
    %204 = vector.shape_cast %203 : vector<1x2x8x8x4xf32> to vector<2x8x8x4xf32>
    %205 = vector.extract_strided_slice %204 {offsets = [0, 0, 0, 0], sizes = [2, 8, 8, 1], strides = [1, 1, 1, 1]} : vector<2x8x8x4xf32> to vector<2x8x8x1xf32>
    %c24 = arith.constant 24 : index
    %c0_83 = arith.constant 0 : index
    %c0_84 = arith.constant 0 : index
    %206 = vector.load %arg1[%c24, %c0_83, %c0_84] : memref<36x1x16xf32, #tpu.memory_space<vmem>>, vector<1x1x16xf32>
    %207 = vector.shape_cast %206 : vector<1x1x16xf32> to vector<1x16xf32>
    %208 = vector.shape_cast %207 : vector<1x16xf32> to vector<1x1x1x16xf32>
    %209 = vector.broadcast %205 : vector<2x8x8x1xf32> to vector<2x8x8x16xf32>
    %210 = vector.broadcast %208 : vector<1x1x1x16xf32> to vector<2x8x8x16xf32>
    %211 = arith.mulf %209, %210 : vector<2x8x8x16xf32>
    %212 = arith.addf %202, %211 : vector<2x8x8x16xf32>
    %213 = vector.extract_strided_slice %204 {offsets = [0, 0, 0, 1], sizes = [2, 8, 8, 1], strides = [1, 1, 1, 1]} : vector<2x8x8x4xf32> to vector<2x8x8x1xf32>
    %c25 = arith.constant 25 : index
    %c0_85 = arith.constant 0 : index
    %c0_86 = arith.constant 0 : index
    %214 = vector.load %arg1[%c25, %c0_85, %c0_86] : memref<36x1x16xf32, #tpu.memory_space<vmem>>, vector<1x1x16xf32>
    %215 = vector.shape_cast %214 : vector<1x1x16xf32> to vector<1x16xf32>
    %216 = vector.shape_cast %215 : vector<1x16xf32> to vector<1x1x1x16xf32>
    %217 = vector.broadcast %213 : vector<2x8x8x1xf32> to vector<2x8x8x16xf32>
    %218 = vector.broadcast %216 : vector<1x1x1x16xf32> to vector<2x8x8x16xf32>
    %219 = arith.mulf %217, %218 : vector<2x8x8x16xf32>
    %220 = arith.addf %212, %219 : vector<2x8x8x16xf32>
    %221 = vector.extract_strided_slice %204 {offsets = [0, 0, 0, 2], sizes = [2, 8, 8, 1], strides = [1, 1, 1, 1]} : vector<2x8x8x4xf32> to vector<2x8x8x1xf32>
    %c26 = arith.constant 26 : index
    %c0_87 = arith.constant 0 : index
    %c0_88 = arith.constant 0 : index
    %222 = vector.load %arg1[%c26, %c0_87, %c0_88] : memref<36x1x16xf32, #tpu.memory_space<vmem>>, vector<1x1x16xf32>
    %223 = vector.shape_cast %222 : vector<1x1x16xf32> to vector<1x16xf32>
    %224 = vector.shape_cast %223 : vector<1x16xf32> to vector<1x1x1x16xf32>
    %225 = vector.broadcast %221 : vector<2x8x8x1xf32> to vector<2x8x8x16xf32>
    %226 = vector.broadcast %224 : vector<1x1x1x16xf32> to vector<2x8x8x16xf32>
    %227 = arith.mulf %225, %226 : vector<2x8x8x16xf32>
    %228 = arith.addf %220, %227 : vector<2x8x8x16xf32>
    %229 = vector.extract_strided_slice %204 {offsets = [0, 0, 0, 3], sizes = [2, 8, 8, 1], strides = [1, 1, 1, 1]} : vector<2x8x8x4xf32> to vector<2x8x8x1xf32>
    %c27 = arith.constant 27 : index
    %c0_89 = arith.constant 0 : index
    %c0_90 = arith.constant 0 : index
    %230 = vector.load %arg1[%c27, %c0_89, %c0_90] : memref<36x1x16xf32, #tpu.memory_space<vmem>>, vector<1x1x16xf32>
    %231 = vector.shape_cast %230 : vector<1x1x16xf32> to vector<1x16xf32>
    %232 = vector.shape_cast %231 : vector<1x16xf32> to vector<1x1x1x16xf32>
    %233 = vector.broadcast %229 : vector<2x8x8x1xf32> to vector<2x8x8x16xf32>
    %234 = vector.broadcast %232 : vector<1x1x1x16xf32> to vector<2x8x8x16xf32>
    %235 = arith.mulf %233, %234 : vector<2x8x8x16xf32>
    %236 = arith.addf %228, %235 : vector<2x8x8x16xf32>
    %c1_91 = arith.constant 1 : index
    %c0_92 = arith.constant 0 : index
    %c1_93 = arith.constant 1 : index
    %c0_94 = arith.constant 0 : index
    %c0_95 = arith.constant 0 : index
    %237 = vector.load %arg0[%c1_91, %c0_92, %c1_93, %c0_94, %c0_95] : memref<4x2x9x9x4xf32, #tpu.memory_space<vmem>>, vector<1x2x8x8x4xf32>
    %238 = vector.shape_cast %237 : vector<1x2x8x8x4xf32> to vector<2x8x8x4xf32>
    %239 = vector.extract_strided_slice %238 {offsets = [0, 0, 0, 0], sizes = [2, 8, 8, 1], strides = [1, 1, 1, 1]} : vector<2x8x8x4xf32> to vector<2x8x8x1xf32>
    %c28 = arith.constant 28 : index
    %c0_96 = arith.constant 0 : index
    %c0_97 = arith.constant 0 : index
    %240 = vector.load %arg1[%c28, %c0_96, %c0_97] : memref<36x1x16xf32, #tpu.memory_space<vmem>>, vector<1x1x16xf32>
    %241 = vector.shape_cast %240 : vector<1x1x16xf32> to vector<1x16xf32>
    %242 = vector.shape_cast %241 : vector<1x16xf32> to vector<1x1x1x16xf32>
    %243 = vector.broadcast %239 : vector<2x8x8x1xf32> to vector<2x8x8x16xf32>
    %244 = vector.broadcast %242 : vector<1x1x1x16xf32> to vector<2x8x8x16xf32>
    %245 = arith.mulf %243, %244 : vector<2x8x8x16xf32>
    %246 = arith.addf %236, %245 : vector<2x8x8x16xf32>
    %247 = vector.extract_strided_slice %238 {offsets = [0, 0, 0, 1], sizes = [2, 8, 8, 1], strides = [1, 1, 1, 1]} : vector<2x8x8x4xf32> to vector<2x8x8x1xf32>
    %c29 = arith.constant 29 : index
    %c0_98 = arith.constant 0 : index
    %c0_99 = arith.constant 0 : index
    %248 = vector.load %arg1[%c29, %c0_98, %c0_99] : memref<36x1x16xf32, #tpu.memory_space<vmem>>, vector<1x1x16xf32>
    %249 = vector.shape_cast %248 : vector<1x1x16xf32> to vector<1x16xf32>
    %250 = vector.shape_cast %249 : vector<1x16xf32> to vector<1x1x1x16xf32>
    %251 = vector.broadcast %247 : vector<2x8x8x1xf32> to vector<2x8x8x16xf32>
    %252 = vector.broadcast %250 : vector<1x1x1x16xf32> to vector<2x8x8x16xf32>
    %253 = arith.mulf %251, %252 : vector<2x8x8x16xf32>
    %254 = arith.addf %246, %253 : vector<2x8x8x16xf32>
    %255 = vector.extract_strided_slice %238 {offsets = [0, 0, 0, 2], sizes = [2, 8, 8, 1], strides = [1, 1, 1, 1]} : vector<2x8x8x4xf32> to vector<2x8x8x1xf32>
    %c30 = arith.constant 30 : index
    %c0_100 = arith.constant 0 : index
    %c0_101 = arith.constant 0 : index
    %256 = vector.load %arg1[%c30, %c0_100, %c0_101] : memref<36x1x16xf32, #tpu.memory_space<vmem>>, vector<1x1x16xf32>
    %257 = vector.shape_cast %256 : vector<1x1x16xf32> to vector<1x16xf32>
    %258 = vector.shape_cast %257 : vector<1x16xf32> to vector<1x1x1x16xf32>
    %259 = vector.broadcast %255 : vector<2x8x8x1xf32> to vector<2x8x8x16xf32>
    %260 = vector.broadcast %258 : vector<1x1x1x16xf32> to vector<2x8x8x16xf32>
    %261 = arith.mulf %259, %260 : vector<2x8x8x16xf32>
    %262 = arith.addf %254, %261 : vector<2x8x8x16xf32>
    %263 = vector.extract_strided_slice %238 {offsets = [0, 0, 0, 3], sizes = [2, 8, 8, 1], strides = [1, 1, 1, 1]} : vector<2x8x8x4xf32> to vector<2x8x8x1xf32>
    %c31 = arith.constant 31 : index
    %c0_102 = arith.constant 0 : index
    %c0_103 = arith.constant 0 : index
    %264 = vector.load %arg1[%c31, %c0_102, %c0_103] : memref<36x1x16xf32, #tpu.memory_space<vmem>>, vector<1x1x16xf32>
    %265 = vector.shape_cast %264 : vector<1x1x16xf32> to vector<1x16xf32>
    %266 = vector.shape_cast %265 : vector<1x16xf32> to vector<1x1x1x16xf32>
    %267 = vector.broadcast %263 : vector<2x8x8x1xf32> to vector<2x8x8x16xf32>
    %268 = vector.broadcast %266 : vector<1x1x1x16xf32> to vector<2x8x8x16xf32>
    %269 = arith.mulf %267, %268 : vector<2x8x8x16xf32>
    %270 = arith.addf %262, %269 : vector<2x8x8x16xf32>
    %c0_104 = arith.constant 0 : index
    %c0_105 = arith.constant 0 : index
    %c1_106 = arith.constant 1 : index
    %c1_107 = arith.constant 1 : index
    %c0_108 = arith.constant 0 : index
    %271 = vector.load %arg0[%c0_104, %c0_105, %c1_106, %c1_107, %c0_108] : memref<4x2x9x9x4xf32, #tpu.memory_space<vmem>>, vector<1x2x8x8x4xf32>
    %272 = vector.shape_cast %271 : vector<1x2x8x8x4xf32> to vector<2x8x8x4xf32>
    %273 = vector.extract_strided_slice %272 {offsets = [0, 0, 0, 0], sizes = [2, 8, 8, 1], strides = [1, 1, 1, 1]} : vector<2x8x8x4xf32> to vector<2x8x8x1xf32>
    %c32 = arith.constant 32 : index
    %c0_109 = arith.constant 0 : index
    %c0_110 = arith.constant 0 : index
    %274 = vector.load %arg1[%c32, %c0_109, %c0_110] : memref<36x1x16xf32, #tpu.memory_space<vmem>>, vector<1x1x16xf32>
    %275 = vector.shape_cast %274 : vector<1x1x16xf32> to vector<1x16xf32>
    %276 = vector.shape_cast %275 : vector<1x16xf32> to vector<1x1x1x16xf32>
    %277 = vector.broadcast %273 : vector<2x8x8x1xf32> to vector<2x8x8x16xf32>
    %278 = vector.broadcast %276 : vector<1x1x1x16xf32> to vector<2x8x8x16xf32>
    %279 = arith.mulf %277, %278 : vector<2x8x8x16xf32>
    %280 = arith.addf %270, %279 : vector<2x8x8x16xf32>
    %281 = vector.extract_strided_slice %272 {offsets = [0, 0, 0, 1], sizes = [2, 8, 8, 1], strides = [1, 1, 1, 1]} : vector<2x8x8x4xf32> to vector<2x8x8x1xf32>
    %c33 = arith.constant 33 : index
    %c0_111 = arith.constant 0 : index
    %c0_112 = arith.constant 0 : index
    %282 = vector.load %arg1[%c33, %c0_111, %c0_112] : memref<36x1x16xf32, #tpu.memory_space<vmem>>, vector<1x1x16xf32>
    %283 = vector.shape_cast %282 : vector<1x1x16xf32> to vector<1x16xf32>
    %284 = vector.shape_cast %283 : vector<1x16xf32> to vector<1x1x1x16xf32>
    %285 = vector.broadcast %281 : vector<2x8x8x1xf32> to vector<2x8x8x16xf32>
    %286 = vector.broadcast %284 : vector<1x1x1x16xf32> to vector<2x8x8x16xf32>
    %287 = arith.mulf %285, %286 : vector<2x8x8x16xf32>
    %288 = arith.addf %280, %287 : vector<2x8x8x16xf32>
    %289 = vector.extract_strided_slice %272 {offsets = [0, 0, 0, 2], sizes = [2, 8, 8, 1], strides = [1, 1, 1, 1]} : vector<2x8x8x4xf32> to vector<2x8x8x1xf32>
    %c34 = arith.constant 34 : index
    %c0_113 = arith.constant 0 : index
    %c0_114 = arith.constant 0 : index
    %290 = vector.load %arg1[%c34, %c0_113, %c0_114] : memref<36x1x16xf32, #tpu.memory_space<vmem>>, vector<1x1x16xf32>
    %291 = vector.shape_cast %290 : vector<1x1x16xf32> to vector<1x16xf32>
    %292 = vector.shape_cast %291 : vector<1x16xf32> to vector<1x1x1x16xf32>
    %293 = vector.broadcast %289 : vector<2x8x8x1xf32> to vector<2x8x8x16xf32>
    %294 = vector.broadcast %292 : vector<1x1x1x16xf32> to vector<2x8x8x16xf32>
    %295 = arith.mulf %293, %294 : vector<2x8x8x16xf32>
    %296 = arith.addf %288, %295 : vector<2x8x8x16xf32>
    %297 = vector.extract_strided_slice %272 {offsets = [0, 0, 0, 3], sizes = [2, 8, 8, 1], strides = [1, 1, 1, 1]} : vector<2x8x8x4xf32> to vector<2x8x8x1xf32>
    %c35 = arith.constant 35 : index
    %c0_115 = arith.constant 0 : index
    %c0_116 = arith.constant 0 : index
    %298 = vector.load %arg1[%c35, %c0_115, %c0_116] : memref<36x1x16xf32, #tpu.memory_space<vmem>>, vector<1x1x16xf32>
    %299 = vector.shape_cast %298 : vector<1x1x16xf32> to vector<1x16xf32>
    %300 = vector.shape_cast %299 : vector<1x16xf32> to vector<1x1x1x16xf32>
    %301 = vector.broadcast %297 : vector<2x8x8x1xf32> to vector<2x8x8x16xf32>
    %302 = vector.broadcast %300 : vector<1x1x1x16xf32> to vector<2x8x8x16xf32>
    %303 = arith.mulf %301, %302 : vector<2x8x8x16xf32>
    %304 = arith.addf %296, %303 : vector<2x8x8x16xf32>
    %c0_117 = arith.constant 0 : index
    %c0_118 = arith.constant 0 : index
    %305 = vector.load %arg2[%c0_117, %c0_118] : memref<1x16xf32, #tpu.memory_space<vmem>>, vector<1x16xf32>
    %306 = vector.shape_cast %305 : vector<1x16xf32> to vector<1x1x1x16xf32>
    %307 = vector.broadcast %306 : vector<1x1x1x16xf32> to vector<2x8x8x16xf32>
    %308 = arith.addf %304, %307 : vector<2x8x8x16xf32>
    %309 = arith.negf %308 : vector<2x8x8x16xf32>
    %310 = math.exp %309 : vector<2x8x8x16xf32>
    %cst = arith.constant 1.000000e+00 : f32
    %311 = vector.broadcast %cst : f32 to vector<2x8x8x16xf32>
    %312 = arith.addf %311, %310 : vector<2x8x8x16xf32>
    %313 = arith.divf %311, %312 : vector<2x8x8x16xf32>
    %314 = arith.mulf %308, %313 : vector<2x8x8x16xf32>
    %c0_119 = arith.constant 0 : index
    %c0_120 = arith.constant 0 : index
    %c0_121 = arith.constant 0 : index
    %c0_122 = arith.constant 0 : index
    %315 = vector.load %arg3[%c0_119, %c0_120, %c0_121, %c0_122] : memref<2x8x8x16xf32, #tpu.memory_space<vmem>>, vector<2x8x8x16xf32>
    tpu.vector_store %arg3[%c0_119, %c0_120, %c0_121, %c0_122], %314 {strides = array<i32>} : memref<2x8x8x16xf32, #tpu.memory_space<vmem>>, vector<2x8x8x16xf32>,
    return
  }
}

module attributes {stable_mosaic.version = 11 : i64} {
  func.func @_dwconv_gap_kernel(%arg0: memref<1x2x10x10x16xf32, #tpu.memory_space<vmem>>, %arg1: memref<9x1x16xf32, #tpu.memory_space<vmem>>, %arg2: memref<1x16xf32, #tpu.memory_space<vmem>>, %arg3: memref<2x8x8x16xf32, #tpu.memory_space<vmem>>, %arg4: memref<2x16xf32, #tpu.memory_space<vmem>>) attributes {dimension_semantics = [], scalar_prefetch = 0 : i64, scratch_operands = 0 : i64, tpu.core_type = #tpu.core_type<tc>} {
    %c0 = arith.constant 0 : index
    %c0_0 = arith.constant 0 : index
    %c0_1 = arith.constant 0 : index
    %c0_2 = arith.constant 0 : index
    %c0_3 = arith.constant 0 : index
    %0 = vector.load %arg0[%c0, %c0_0, %c0_1, %c0_2, %c0_3] : memref<1x2x10x10x16xf32, #tpu.memory_space<vmem>>, vector<1x2x8x8x16xf32>
    %1 = vector.shape_cast %0 : vector<1x2x8x8x16xf32> to vector<2x8x8x16xf32>
    %c0_4 = arith.constant 0 : index
    %c0_5 = arith.constant 0 : index
    %c0_6 = arith.constant 0 : index
    %2 = vector.load %arg1[%c0_4, %c0_5, %c0_6] : memref<9x1x16xf32, #tpu.memory_space<vmem>>, vector<1x1x16xf32>
    %3 = vector.shape_cast %2 : vector<1x1x16xf32> to vector<1x16xf32>
    %4 = vector.shape_cast %3 : vector<1x16xf32> to vector<1x1x1x16xf32>
    %5 = vector.broadcast %4 : vector<1x1x1x16xf32> to vector<2x8x8x16xf32>
    %6 = arith.mulf %1, %5 : vector<2x8x8x16xf32>
    %c0_7 = arith.constant 0 : index
    %c0_8 = arith.constant 0 : index
    %c0_9 = arith.constant 0 : index
    %c1 = arith.constant 1 : index
    %c0_10 = arith.constant 0 : index
    %7 = vector.load %arg0[%c0_7, %c0_8, %c0_9, %c1, %c0_10] : memref<1x2x10x10x16xf32, #tpu.memory_space<vmem>>, vector<1x2x8x8x16xf32>
    %8 = vector.shape_cast %7 : vector<1x2x8x8x16xf32> to vector<2x8x8x16xf32>
    %c1_11 = arith.constant 1 : index
    %c0_12 = arith.constant 0 : index
    %c0_13 = arith.constant 0 : index
    %9 = vector.load %arg1[%c1_11, %c0_12, %c0_13] : memref<9x1x16xf32, #tpu.memory_space<vmem>>, vector<1x1x16xf32>
    %10 = vector.shape_cast %9 : vector<1x1x16xf32> to vector<1x16xf32>
    %11 = vector.shape_cast %10 : vector<1x16xf32> to vector<1x1x1x16xf32>
    %12 = vector.broadcast %11 : vector<1x1x1x16xf32> to vector<2x8x8x16xf32>
    %13 = arith.mulf %8, %12 : vector<2x8x8x16xf32>
    %14 = arith.addf %6, %13 : vector<2x8x8x16xf32>
    %c0_14 = arith.constant 0 : index
    %c0_15 = arith.constant 0 : index
    %c0_16 = arith.constant 0 : index
    %c2 = arith.constant 2 : index
    %c0_17 = arith.constant 0 : index
    %15 = vector.load %arg0[%c0_14, %c0_15, %c0_16, %c2, %c0_17] : memref<1x2x10x10x16xf32, #tpu.memory_space<vmem>>, vector<1x2x8x8x16xf32>
    %16 = vector.shape_cast %15 : vector<1x2x8x8x16xf32> to vector<2x8x8x16xf32>
    %c2_18 = arith.constant 2 : index
    %c0_19 = arith.constant 0 : index
    %c0_20 = arith.constant 0 : index
    %17 = vector.load %arg1[%c2_18, %c0_19, %c0_20] : memref<9x1x16xf32, #tpu.memory_space<vmem>>, vector<1x1x16xf32>
    %18 = vector.shape_cast %17 : vector<1x1x16xf32> to vector<1x16xf32>
    %19 = vector.shape_cast %18 : vector<1x16xf32> to vector<1x1x1x16xf32>
    %20 = vector.broadcast %19 : vector<1x1x1x16xf32> to vector<2x8x8x16xf32>
    %21 = arith.mulf %16, %20 : vector<2x8x8x16xf32>
    %22 = arith.addf %14, %21 : vector<2x8x8x16xf32>
    %c0_21 = arith.constant 0 : index
    %c0_22 = arith.constant 0 : index
    %c1_23 = arith.constant 1 : index
    %c0_24 = arith.constant 0 : index
    %c0_25 = arith.constant 0 : index
    %23 = vector.load %arg0[%c0_21, %c0_22, %c1_23, %c0_24, %c0_25] : memref<1x2x10x10x16xf32, #tpu.memory_space<vmem>>, vector<1x2x8x8x16xf32>
    %24 = vector.shape_cast %23 : vector<1x2x8x8x16xf32> to vector<2x8x8x16xf32>
    %c3 = arith.constant 3 : index
    %c0_26 = arith.constant 0 : index
    %c0_27 = arith.constant 0 : index
    %25 = vector.load %arg1[%c3, %c0_26, %c0_27] : memref<9x1x16xf32, #tpu.memory_space<vmem>>, vector<1x1x16xf32>
    %26 = vector.shape_cast %25 : vector<1x1x16xf32> to vector<1x16xf32>
    %27 = vector.shape_cast %26 : vector<1x16xf32> to vector<1x1x1x16xf32>
    %28 = vector.broadcast %27 : vector<1x1x1x16xf32> to vector<2x8x8x16xf32>
    %29 = arith.mulf %24, %28 : vector<2x8x8x16xf32>
    %30 = arith.addf %22, %29 : vector<2x8x8x16xf32>
    %c0_28 = arith.constant 0 : index
    %c0_29 = arith.constant 0 : index
    %c1_30 = arith.constant 1 : index
    %c1_31 = arith.constant 1 : index
    %c0_32 = arith.constant 0 : index
    %31 = vector.load %arg0[%c0_28, %c0_29, %c1_30, %c1_31, %c0_32] : memref<1x2x10x10x16xf32, #tpu.memory_space<vmem>>, vector<1x2x8x8x16xf32>
    %32 = vector.shape_cast %31 : vector<1x2x8x8x16xf32> to vector<2x8x8x16xf32>
    %c4 = arith.constant 4 : index
    %c0_33 = arith.constant 0 : index
    %c0_34 = arith.constant 0 : index
    %33 = vector.load %arg1[%c4, %c0_33, %c0_34] : memref<9x1x16xf32, #tpu.memory_space<vmem>>, vector<1x1x16xf32>
    %34 = vector.shape_cast %33 : vector<1x1x16xf32> to vector<1x16xf32>
    %35 = vector.shape_cast %34 : vector<1x16xf32> to vector<1x1x1x16xf32>
    %36 = vector.broadcast %35 : vector<1x1x1x16xf32> to vector<2x8x8x16xf32>
    %37 = arith.mulf %32, %36 : vector<2x8x8x16xf32>
    %38 = arith.addf %30, %37 : vector<2x8x8x16xf32>
    %c0_35 = arith.constant 0 : index
    %c0_36 = arith.constant 0 : index
    %c1_37 = arith.constant 1 : index
    %c2_38 = arith.constant 2 : index
    %c0_39 = arith.constant 0 : index
    %39 = vector.load %arg0[%c0_35, %c0_36, %c1_37, %c2_38, %c0_39] : memref<1x2x10x10x16xf32, #tpu.memory_space<vmem>>, vector<1x2x8x8x16xf32>
    %40 = vector.shape_cast %39 : vector<1x2x8x8x16xf32> to vector<2x8x8x16xf32>
    %c5 = arith.constant 5 : index
    %c0_40 = arith.constant 0 : index
    %c0_41 = arith.constant 0 : index
    %41 = vector.load %arg1[%c5, %c0_40, %c0_41] : memref<9x1x16xf32, #tpu.memory_space<vmem>>, vector<1x1x16xf32>
    %42 = vector.shape_cast %41 : vector<1x1x16xf32> to vector<1x16xf32>
    %43 = vector.shape_cast %42 : vector<1x16xf32> to vector<1x1x1x16xf32>
    %44 = vector.broadcast %43 : vector<1x1x1x16xf32> to vector<2x8x8x16xf32>
    %45 = arith.mulf %40, %44 : vector<2x8x8x16xf32>
    %46 = arith.addf %38, %45 : vector<2x8x8x16xf32>
    %c0_42 = arith.constant 0 : index
    %c0_43 = arith.constant 0 : index
    %c2_44 = arith.constant 2 : index
    %c0_45 = arith.constant 0 : index
    %c0_46 = arith.constant 0 : index
    %47 = vector.load %arg0[%c0_42, %c0_43, %c2_44, %c0_45, %c0_46] : memref<1x2x10x10x16xf32, #tpu.memory_space<vmem>>, vector<1x2x8x8x16xf32>
    %48 = vector.shape_cast %47 : vector<1x2x8x8x16xf32> to vector<2x8x8x16xf32>
    %c6 = arith.constant 6 : index
    %c0_47 = arith.constant 0 : index
    %c0_48 = arith.constant 0 : index
    %49 = vector.load %arg1[%c6, %c0_47, %c0_48] : memref<9x1x16xf32, #tpu.memory_space<vmem>>, vector<1x1x16xf32>
    %50 = vector.shape_cast %49 : vector<1x1x16xf32> to vector<1x16xf32>
    %51 = vector.shape_cast %50 : vector<1x16xf32> to vector<1x1x1x16xf32>
    %52 = vector.broadcast %51 : vector<1x1x1x16xf32> to vector<2x8x8x16xf32>
    %53 = arith.mulf %48, %52 : vector<2x8x8x16xf32>
    %54 = arith.addf %46, %53 : vector<2x8x8x16xf32>
    %c0_49 = arith.constant 0 : index
    %c0_50 = arith.constant 0 : index
    %c2_51 = arith.constant 2 : index
    %c1_52 = arith.constant 1 : index
    %c0_53 = arith.constant 0 : index
    %55 = vector.load %arg0[%c0_49, %c0_50, %c2_51, %c1_52, %c0_53] : memref<1x2x10x10x16xf32, #tpu.memory_space<vmem>>, vector<1x2x8x8x16xf32>
    %56 = vector.shape_cast %55 : vector<1x2x8x8x16xf32> to vector<2x8x8x16xf32>
    %c7 = arith.constant 7 : index
    %c0_54 = arith.constant 0 : index
    %c0_55 = arith.constant 0 : index
    %57 = vector.load %arg1[%c7, %c0_54, %c0_55] : memref<9x1x16xf32, #tpu.memory_space<vmem>>, vector<1x1x16xf32>
    %58 = vector.shape_cast %57 : vector<1x1x16xf32> to vector<1x16xf32>
    %59 = vector.shape_cast %58 : vector<1x16xf32> to vector<1x1x1x16xf32>
    %60 = vector.broadcast %59 : vector<1x1x1x16xf32> to vector<2x8x8x16xf32>
    %61 = arith.mulf %56, %60 : vector<2x8x8x16xf32>
    %62 = arith.addf %54, %61 : vector<2x8x8x16xf32>
    %c0_56 = arith.constant 0 : index
    %c0_57 = arith.constant 0 : index
    %c2_58 = arith.constant 2 : index
    %c2_59 = arith.constant 2 : index
    %c0_60 = arith.constant 0 : index
    %63 = vector.load %arg0[%c0_56, %c0_57, %c2_58, %c2_59, %c0_60] : memref<1x2x10x10x16xf32, #tpu.memory_space<vmem>>, vector<1x2x8x8x16xf32>
    %64 = vector.shape_cast %63 : vector<1x2x8x8x16xf32> to vector<2x8x8x16xf32>
    %c8 = arith.constant 8 : index
    %c0_61 = arith.constant 0 : index
    %c0_62 = arith.constant 0 : index
    %65 = vector.load %arg1[%c8, %c0_61, %c0_62] : memref<9x1x16xf32, #tpu.memory_space<vmem>>, vector<1x1x16xf32>
    %66 = vector.shape_cast %65 : vector<1x1x16xf32> to vector<1x16xf32>
    %67 = vector.shape_cast %66 : vector<1x16xf32> to vector<1x1x1x16xf32>
    %68 = vector.broadcast %67 : vector<1x1x1x16xf32> to vector<2x8x8x16xf32>
    %69 = arith.mulf %64, %68 : vector<2x8x8x16xf32>
    %70 = arith.addf %62, %69 : vector<2x8x8x16xf32>
    %c0_63 = arith.constant 0 : index
    %c0_64 = arith.constant 0 : index
    %71 = vector.load %arg2[%c0_63, %c0_64] : memref<1x16xf32, #tpu.memory_space<vmem>>, vector<1x16xf32>
    %72 = vector.shape_cast %71 : vector<1x16xf32> to vector<1x1x1x16xf32>
    %73 = vector.broadcast %72 : vector<1x1x1x16xf32> to vector<2x8x8x16xf32>
    %74 = arith.addf %70, %73 : vector<2x8x8x16xf32>
    %75 = arith.negf %74 : vector<2x8x8x16xf32>
    %76 = math.exp %75 : vector<2x8x8x16xf32>
    %cst = arith.constant 1.000000e+00 : f32
    %77 = vector.broadcast %cst : f32 to vector<2x8x8x16xf32>
    %78 = arith.addf %77, %76 : vector<2x8x8x16xf32>
    %79 = arith.divf %77, %78 : vector<2x8x8x16xf32>
    %80 = arith.mulf %74, %79 : vector<2x8x8x16xf32>
    %c0_65 = arith.constant 0 : index
    %c0_66 = arith.constant 0 : index
    %c0_67 = arith.constant 0 : index
    %c0_68 = arith.constant 0 : index
    %81 = vector.load %arg3[%c0_65, %c0_66, %c0_67, %c0_68] : memref<2x8x8x16xf32, #tpu.memory_space<vmem>>, vector<2x8x8x16xf32>
    tpu.vector_store %arg3[%c0_65, %c0_66, %c0_67, %c0_68], %80 {strides = array<i32>} : memref<2x8x8x16xf32, #tpu.memory_space<vmem>>, vector<2x8x8x16xf32>,
    %cst_69 = arith.constant dense<0.000000e+00> : vector<2x16xf32>
    %82 = vector.multi_reduction <add>, %80, %cst_69 [1, 2] : vector<2x8x8x16xf32> to vector<2x16xf32>
    %cst_70 = arith.constant 6.400000e+01 : f32
    %83 = vector.broadcast %cst_70 : f32 to vector<2x16xf32>
    %84 = arith.divf %82, %83 : vector<2x16xf32>
    %c0_71 = arith.constant 0 : index
    %c0_72 = arith.constant 0 : index
    %85 = vector.load %arg4[%c0_71, %c0_72] : memref<2x16xf32, #tpu.memory_space<vmem>>, vector<2x16xf32>
    tpu.vector_store %arg4[%c0_71, %c0_72], %84 {strides = array<i32>} : memref<2x16xf32, #tpu.memory_space<vmem>>, vector<2x16xf32>,
    return
  }
}

module attributes {stable_mosaic.version = 11 : i64} {
  func.func @_se_proj_kernel(%arg0: memref<2x64x16xf32, #tpu.memory_space<vmem>>, %arg1: memref<2x16xf32, #tpu.memory_space<vmem>>, %arg2: memref<16x4xbf16, #tpu.memory_space<vmem>>, %arg3: memref<1x4xf32, #tpu.memory_space<vmem>>, %arg4: memref<4x16xbf16, #tpu.memory_space<vmem>>, %arg5: memref<1x16xf32, #tpu.memory_space<vmem>>, %arg6: memref<16x16xbf16, #tpu.memory_space<vmem>>, %arg7: memref<1x16xf32, #tpu.memory_space<vmem>>, %arg8: memref<2x64x16xf32, #tpu.memory_space<vmem>>, %arg9: memref<2x64x16xf32, #tpu.memory_space<vmem>>) attributes {dimension_semantics = [], scalar_prefetch = 0 : i64, scratch_operands = 0 : i64, tpu.core_type = #tpu.core_type<tc>} {
    %c0 = arith.constant 0 : index
    %c0_0 = arith.constant 0 : index
    %0 = vector.load %arg1[%c0, %c0_0] : memref<2x16xf32, #tpu.memory_space<vmem>>, vector<2x16xf32>
    %1 = arith.truncf %0 : vector<2x16xf32> to vector<2x16xbf16>
    %c0_1 = arith.constant 0 : index
    %c0_2 = arith.constant 0 : index
    %2 = vector.load %arg2[%c0_1, %c0_2] : memref<16x4xbf16, #tpu.memory_space<vmem>>, vector<16x4xbf16>
    %cst = arith.constant dense<0.000000e+00> : vector<2x4xf32>
    %3 = tpu.matmul %1, %2, %cst {dimension_numbers = #tpu.dot_dimension_numbers<[1], [0], [0], [1], [0, 0, 1, 1], [], []>} : vector<2x16xbf16>, vector<16x4xbf16>, vector<2x4xf32> -> vector<2x4xf32>
    %c0_3 = arith.constant 0 : index
    %c0_4 = arith.constant 0 : index
    %4 = vector.load %arg3[%c0_3, %c0_4] : memref<1x4xf32, #tpu.memory_space<vmem>>, vector<1x4xf32>
    %5 = vector.broadcast %4 : vector<1x4xf32> to vector<2x4xf32>
    %6 = arith.addf %3, %5 : vector<2x4xf32>
    %7 = arith.negf %6 : vector<2x4xf32>
    %8 = math.exp %7 : vector<2x4xf32>
    %cst_5 = arith.constant 1.000000e+00 : f32
    %9 = vector.broadcast %cst_5 : f32 to vector<2x4xf32>
    %10 = arith.addf %9, %8 : vector<2x4xf32>
    %11 = arith.divf %9, %10 : vector<2x4xf32>
    %12 = arith.mulf %6, %11 : vector<2x4xf32>
    %13 = arith.truncf %12 : vector<2x4xf32> to vector<2x4xbf16>
    %c0_6 = arith.constant 0 : index
    %c0_7 = arith.constant 0 : index
    %14 = vector.load %arg4[%c0_6, %c0_7] : memref<4x16xbf16, #tpu.memory_space<vmem>>, vector<4x16xbf16>
    %cst_8 = arith.constant dense<0.000000e+00> : vector<2x16xf32>
    %15 = tpu.matmul %13, %14, %cst_8 {dimension_numbers = #tpu.dot_dimension_numbers<[1], [0], [0], [1], [0, 0, 1, 1], [], []>} : vector<2x4xbf16>, vector<4x16xbf16>, vector<2x16xf32> -> vector<2x16xf32>
    %c0_9 = arith.constant 0 : index
    %c0_10 = arith.constant 0 : index
    %16 = vector.load %arg5[%c0_9, %c0_10] : memref<1x16xf32, #tpu.memory_space<vmem>>, vector<1x16xf32>
    %17 = vector.broadcast %16 : vector<1x16xf32> to vector<2x16xf32>
    %18 = arith.addf %15, %17 : vector<2x16xf32>
    %19 = arith.negf %18 : vector<2x16xf32>
    %20 = math.exp %19 : vector<2x16xf32>
    %cst_11 = arith.constant 1.000000e+00 : f32
    %21 = vector.broadcast %cst_11 : f32 to vector<2x16xf32>
    %22 = arith.addf %21, %20 : vector<2x16xf32>
    %23 = arith.divf %21, %22 : vector<2x16xf32>
    %c0_12 = arith.constant 0 : index
    %c0_13 = arith.constant 0 : index
    %c0_14 = arith.constant 0 : index
    %24 = vector.load %arg0[%c0_12, %c0_13, %c0_14] : memref<2x64x16xf32, #tpu.memory_space<vmem>>, vector<1x64x16xf32>
    %25 = vector.shape_cast %24 : vector<1x64x16xf32> to vector<64x16xf32>
    %26 = vector.extract_strided_slice %23 {offsets = [0, 0], sizes = [1, 16], strides = [1, 1]} : vector<2x16xf32> to vector<1x16xf32>
    %27 = vector.broadcast %26 : vector<1x16xf32> to vector<64x16xf32>
    %28 = arith.mulf %25, %27 : vector<64x16xf32>
    %29 = arith.truncf %28 : vector<64x16xf32> to vector<64x16xbf16>
    %c0_15 = arith.constant 0 : index
    %c0_16 = arith.constant 0 : index
    %30 = vector.load %arg6[%c0_15, %c0_16] : memref<16x16xbf16, #tpu.memory_space<vmem>>, vector<16x16xbf16>
    %cst_17 = arith.constant dense<0.000000e+00> : vector<64x16xf32>
    %31 = tpu.matmul %29, %30, %cst_17 {dimension_numbers = #tpu.dot_dimension_numbers<[1], [0], [0], [1], [0, 0, 1, 1], [], []>} : vector<64x16xbf16>, vector<16x16xbf16>, vector<64x16xf32> -> vector<64x16xf32>
    %c0_18 = arith.constant 0 : index
    %c0_19 = arith.constant 0 : index
    %32 = vector.load %arg7[%c0_18, %c0_19] : memref<1x16xf32, #tpu.memory_space<vmem>>, vector<1x16xf32>
    %33 = vector.broadcast %32 : vector<1x16xf32> to vector<64x16xf32>
    %34 = arith.addf %31, %33 : vector<64x16xf32>
    %c0_20 = arith.constant 0 : index
    %c0_21 = arith.constant 0 : index
    %c0_22 = arith.constant 0 : index
    %35 = vector.load %arg8[%c0_20, %c0_21, %c0_22] : memref<2x64x16xf32, #tpu.memory_space<vmem>>, vector<1x64x16xf32>
    %36 = vector.shape_cast %35 : vector<1x64x16xf32> to vector<64x16xf32>
    %37 = arith.addf %34, %36 : vector<64x16xf32>
    %c0_23 = arith.constant 0 : index
    %c0_24 = arith.constant 0 : index
    %c0_25 = arith.constant 0 : index
    %38 = vector.load %arg9[%c0_23, %c0_24, %c0_25] : memref<2x64x16xf32, #tpu.memory_space<vmem>>, vector<1x64x16xf32>
    %39 = vector.shape_cast %38 : vector<1x64x16xf32> to vector<64x16xf32>
    %40 = vector.shape_cast %37 : vector<64x16xf32> to vector<1x64x16xf32>
    tpu.vector_store %arg9[%c0_23, %c0_24, %c0_25], %40 {strides = array<i32>} : memref<2x64x16xf32, #tpu.memory_space<vmem>>, vector<1x64x16xf32>,
    %c1 = arith.constant 1 : index
    %c0_26 = arith.constant 0 : index
    %c0_27 = arith.constant 0 : index
    %41 = vector.load %arg0[%c1, %c0_26, %c0_27] : memref<2x64x16xf32, #tpu.memory_space<vmem>>, vector<1x64x16xf32>
    %42 = vector.shape_cast %41 : vector<1x64x16xf32> to vector<64x16xf32>
    %43 = vector.extract_strided_slice %23 {offsets = [1, 0], sizes = [1, 16], strides = [1, 1]} : vector<2x16xf32> to vector<1x16xf32>
    %44 = vector.broadcast %43 : vector<1x16xf32> to vector<64x16xf32>
    %45 = arith.mulf %42, %44 : vector<64x16xf32>
    %46 = arith.truncf %45 : vector<64x16xf32> to vector<64x16xbf16>
    %c0_28 = arith.constant 0 : index
    %c0_29 = arith.constant 0 : index
    %47 = vector.load %arg6[%c0_28, %c0_29] : memref<16x16xbf16, #tpu.memory_space<vmem>>, vector<16x16xbf16>
    %cst_30 = arith.constant dense<0.000000e+00> : vector<64x16xf32>
    %48 = tpu.matmul %46, %47, %cst_30 {dimension_numbers = #tpu.dot_dimension_numbers<[1], [0], [0], [1], [0, 0, 1, 1], [], []>} : vector<64x16xbf16>, vector<16x16xbf16>, vector<64x16xf32> -> vector<64x16xf32>
    %c0_31 = arith.constant 0 : index
    %c0_32 = arith.constant 0 : index
    %49 = vector.load %arg7[%c0_31, %c0_32] : memref<1x16xf32, #tpu.memory_space<vmem>>, vector<1x16xf32>
    %50 = vector.broadcast %49 : vector<1x16xf32> to vector<64x16xf32>
    %51 = arith.addf %48, %50 : vector<64x16xf32>
    %c1_33 = arith.constant 1 : index
    %c0_34 = arith.constant 0 : index
    %c0_35 = arith.constant 0 : index
    %52 = vector.load %arg8[%c1_33, %c0_34, %c0_35] : memref<2x64x16xf32, #tpu.memory_space<vmem>>, vector<1x64x16xf32>
    %53 = vector.shape_cast %52 : vector<1x64x16xf32> to vector<64x16xf32>
    %54 = arith.addf %51, %53 : vector<64x16xf32>
    %c1_36 = arith.constant 1 : index
    %c0_37 = arith.constant 0 : index
    %c0_38 = arith.constant 0 : index
    %55 = vector.load %arg9[%c1_36, %c0_37, %c0_38] : memref<2x64x16xf32, #tpu.memory_space<vmem>>, vector<1x64x16xf32>
    %56 = vector.shape_cast %55 : vector<1x64x16xf32> to vector<64x16xf32>
    %57 = vector.shape_cast %54 : vector<64x16xf32> to vector<1x64x16xf32>
    tpu.vector_store %arg9[%c1_36, %c0_37, %c0_38], %57 {strides = array<i32>} : memref<2x64x16xf32, #tpu.memory_space<vmem>>, vector<1x64x16xf32>,
    return
  }
}

module attributes {stable_mosaic.version = 11 : i64} {
  func.func @_matmul_kernel(%arg0: memref<128x16xf32, #tpu.memory_space<vmem>>, %arg1: memref<16x96xbf16, #tpu.memory_space<vmem>>, %arg2: memref<1x96xf32, #tpu.memory_space<vmem>>, %arg3: memref<128x96xf32, #tpu.memory_space<vmem>>) attributes {dimension_semantics = [], scalar_prefetch = 0 : i64, scratch_operands = 0 : i64, tpu.core_type = #tpu.core_type<tc>} {
    %c0 = arith.constant 0 : index
    %c0_0 = arith.constant 0 : index
    %0 = vector.load %arg0[%c0, %c0_0] : memref<128x16xf32, #tpu.memory_space<vmem>>, vector<128x16xf32>
    %1 = arith.truncf %0 : vector<128x16xf32> to vector<128x16xbf16>
    %c0_1 = arith.constant 0 : index
    %c0_2 = arith.constant 0 : index
    %2 = vector.load %arg1[%c0_1, %c0_2] : memref<16x96xbf16, #tpu.memory_space<vmem>>, vector<16x96xbf16>
    %cst = arith.constant dense<0.000000e+00> : vector<128x96xf32>
    %3 = tpu.matmul %1, %2, %cst {dimension_numbers = #tpu.dot_dimension_numbers<[1], [0], [0], [1], [0, 0, 1, 1], [], []>} : vector<128x16xbf16>, vector<16x96xbf16>, vector<128x96xf32> -> vector<128x96xf32>
    %c0_3 = arith.constant 0 : index
    %c0_4 = arith.constant 0 : index
    %4 = vector.load %arg2[%c0_3, %c0_4] : memref<1x96xf32, #tpu.memory_space<vmem>>, vector<1x96xf32>
    %5 = vector.broadcast %4 : vector<1x96xf32> to vector<128x96xf32>
    %6 = arith.addf %3, %5 : vector<128x96xf32>
    %7 = arith.negf %6 : vector<128x96xf32>
    %8 = math.exp %7 : vector<128x96xf32>
    %cst_5 = arith.constant 1.000000e+00 : f32
    %9 = vector.broadcast %cst_5 : f32 to vector<128x96xf32>
    %10 = arith.addf %9, %8 : vector<128x96xf32>
    %11 = arith.divf %9, %10 : vector<128x96xf32>
    %12 = arith.mulf %6, %11 : vector<128x96xf32>
    %c0_6 = arith.constant 0 : index
    %c0_7 = arith.constant 0 : index
    %13 = vector.load %arg3[%c0_6, %c0_7] : memref<128x96xf32, #tpu.memory_space<vmem>>, vector<128x96xf32>
    tpu.vector_store %arg3[%c0_6, %c0_7], %12 {strides = array<i32>} : memref<128x96xf32, #tpu.memory_space<vmem>>, vector<128x96xf32>,
    return
  }
}

module attributes {stable_mosaic.version = 11 : i64} {
  func.func @_dwconv_gap_kernel(%arg0: memref<4x2x5x5x96xf32, #tpu.memory_space<vmem>>, %arg1: memref<9x1x96xf32, #tpu.memory_space<vmem>>, %arg2: memref<1x96xf32, #tpu.memory_space<vmem>>, %arg3: memref<2x4x4x96xf32, #tpu.memory_space<vmem>>, %arg4: memref<2x96xf32, #tpu.memory_space<vmem>>) attributes {dimension_semantics = [], scalar_prefetch = 0 : i64, scratch_operands = 0 : i64, tpu.core_type = #tpu.core_type<tc>} {
    %c0 = arith.constant 0 : index
    %c0_0 = arith.constant 0 : index
    %c0_1 = arith.constant 0 : index
    %c0_2 = arith.constant 0 : index
    %c0_3 = arith.constant 0 : index
    %0 = vector.load %arg0[%c0, %c0_0, %c0_1, %c0_2, %c0_3] : memref<4x2x5x5x96xf32, #tpu.memory_space<vmem>>, vector<1x2x4x4x96xf32>
    %1 = vector.shape_cast %0 : vector<1x2x4x4x96xf32> to vector<2x4x4x96xf32>
    %c0_4 = arith.constant 0 : index
    %c0_5 = arith.constant 0 : index
    %c0_6 = arith.constant 0 : index
    %2 = vector.load %arg1[%c0_4, %c0_5, %c0_6] : memref<9x1x96xf32, #tpu.memory_space<vmem>>, vector<1x1x96xf32>
    %3 = vector.shape_cast %2 : vector<1x1x96xf32> to vector<1x96xf32>
    %4 = vector.shape_cast %3 : vector<1x96xf32> to vector<1x1x1x96xf32>
    %5 = vector.broadcast %4 : vector<1x1x1x96xf32> to vector<2x4x4x96xf32>
    %6 = arith.mulf %1, %5 : vector<2x4x4x96xf32>
    %c1 = arith.constant 1 : index
    %c0_7 = arith.constant 0 : index
    %c0_8 = arith.constant 0 : index
    %c0_9 = arith.constant 0 : index
    %c0_10 = arith.constant 0 : index
    %7 = vector.load %arg0[%c1, %c0_7, %c0_8, %c0_9, %c0_10] : memref<4x2x5x5x96xf32, #tpu.memory_space<vmem>>, vector<1x2x4x4x96xf32>
    %8 = vector.shape_cast %7 : vector<1x2x4x4x96xf32> to vector<2x4x4x96xf32>
    %c1_11 = arith.constant 1 : index
    %c0_12 = arith.constant 0 : index
    %c0_13 = arith.constant 0 : index
    %9 = vector.load %arg1[%c1_11, %c0_12, %c0_13] : memref<9x1x96xf32, #tpu.memory_space<vmem>>, vector<1x1x96xf32>
    %10 = vector.shape_cast %9 : vector<1x1x96xf32> to vector<1x96xf32>
    %11 = vector.shape_cast %10 : vector<1x96xf32> to vector<1x1x1x96xf32>
    %12 = vector.broadcast %11 : vector<1x1x1x96xf32> to vector<2x4x4x96xf32>
    %13 = arith.mulf %8, %12 : vector<2x4x4x96xf32>
    %14 = arith.addf %6, %13 : vector<2x4x4x96xf32>
    %c0_14 = arith.constant 0 : index
    %c0_15 = arith.constant 0 : index
    %c0_16 = arith.constant 0 : index
    %c1_17 = arith.constant 1 : index
    %c0_18 = arith.constant 0 : index
    %15 = vector.load %arg0[%c0_14, %c0_15, %c0_16, %c1_17, %c0_18] : memref<4x2x5x5x96xf32, #tpu.memory_space<vmem>>, vector<1x2x4x4x96xf32>
    %16 = vector.shape_cast %15 : vector<1x2x4x4x96xf32> to vector<2x4x4x96xf32>
    %c2 = arith.constant 2 : index
    %c0_19 = arith.constant 0 : index
    %c0_20 = arith.constant 0 : index
    %17 = vector.load %arg1[%c2, %c0_19, %c0_20] : memref<9x1x96xf32, #tpu.memory_space<vmem>>, vector<1x1x96xf32>
    %18 = vector.shape_cast %17 : vector<1x1x96xf32> to vector<1x96xf32>
    %19 = vector.shape_cast %18 : vector<1x96xf32> to vector<1x1x1x96xf32>
    %20 = vector.broadcast %19 : vector<1x1x1x96xf32> to vector<2x4x4x96xf32>
    %21 = arith.mulf %16, %20 : vector<2x4x4x96xf32>
    %22 = arith.addf %14, %21 : vector<2x4x4x96xf32>
    %c2_21 = arith.constant 2 : index
    %c0_22 = arith.constant 0 : index
    %c0_23 = arith.constant 0 : index
    %c0_24 = arith.constant 0 : index
    %c0_25 = arith.constant 0 : index
    %23 = vector.load %arg0[%c2_21, %c0_22, %c0_23, %c0_24, %c0_25] : memref<4x2x5x5x96xf32, #tpu.memory_space<vmem>>, vector<1x2x4x4x96xf32>
    %24 = vector.shape_cast %23 : vector<1x2x4x4x96xf32> to vector<2x4x4x96xf32>
    %c3 = arith.constant 3 : index
    %c0_26 = arith.constant 0 : index
    %c0_27 = arith.constant 0 : index
    %25 = vector.load %arg1[%c3, %c0_26, %c0_27] : memref<9x1x96xf32, #tpu.memory_space<vmem>>, vector<1x1x96xf32>
    %26 = vector.shape_cast %25 : vector<1x1x96xf32> to vector<1x96xf32>
    %27 = vector.shape_cast %26 : vector<1x96xf32> to vector<1x1x1x96xf32>
    %28 = vector.broadcast %27 : vector<1x1x1x96xf32> to vector<2x4x4x96xf32>
    %29 = arith.mulf %24, %28 : vector<2x4x4x96xf32>
    %30 = arith.addf %22, %29 : vector<2x4x4x96xf32>
    %c3_28 = arith.constant 3 : index
    %c0_29 = arith.constant 0 : index
    %c0_30 = arith.constant 0 : index
    %c0_31 = arith.constant 0 : index
    %c0_32 = arith.constant 0 : index
    %31 = vector.load %arg0[%c3_28, %c0_29, %c0_30, %c0_31, %c0_32] : memref<4x2x5x5x96xf32, #tpu.memory_space<vmem>>, vector<1x2x4x4x96xf32>
    %32 = vector.shape_cast %31 : vector<1x2x4x4x96xf32> to vector<2x4x4x96xf32>
    %c4 = arith.constant 4 : index
    %c0_33 = arith.constant 0 : index
    %c0_34 = arith.constant 0 : index
    %33 = vector.load %arg1[%c4, %c0_33, %c0_34] : memref<9x1x96xf32, #tpu.memory_space<vmem>>, vector<1x1x96xf32>
    %34 = vector.shape_cast %33 : vector<1x1x96xf32> to vector<1x96xf32>
    %35 = vector.shape_cast %34 : vector<1x96xf32> to vector<1x1x1x96xf32>
    %36 = vector.broadcast %35 : vector<1x1x1x96xf32> to vector<2x4x4x96xf32>
    %37 = arith.mulf %32, %36 : vector<2x4x4x96xf32>
    %38 = arith.addf %30, %37 : vector<2x4x4x96xf32>
    %c2_35 = arith.constant 2 : index
    %c0_36 = arith.constant 0 : index
    %c0_37 = arith.constant 0 : index
    %c1_38 = arith.constant 1 : index
    %c0_39 = arith.constant 0 : index
    %39 = vector.load %arg0[%c2_35, %c0_36, %c0_37, %c1_38, %c0_39] : memref<4x2x5x5x96xf32, #tpu.memory_space<vmem>>, vector<1x2x4x4x96xf32>
    %40 = vector.shape_cast %39 : vector<1x2x4x4x96xf32> to vector<2x4x4x96xf32>
    %c5 = arith.constant 5 : index
    %c0_40 = arith.constant 0 : index
    %c0_41 = arith.constant 0 : index
    %41 = vector.load %arg1[%c5, %c0_40, %c0_41] : memref<9x1x96xf32, #tpu.memory_space<vmem>>, vector<1x1x96xf32>
    %42 = vector.shape_cast %41 : vector<1x1x96xf32> to vector<1x96xf32>
    %43 = vector.shape_cast %42 : vector<1x96xf32> to vector<1x1x1x96xf32>
    %44 = vector.broadcast %43 : vector<1x1x1x96xf32> to vector<2x4x4x96xf32>
    %45 = arith.mulf %40, %44 : vector<2x4x4x96xf32>
    %46 = arith.addf %38, %45 : vector<2x4x4x96xf32>
    %c0_42 = arith.constant 0 : index
    %c0_43 = arith.constant 0 : index
    %c1_44 = arith.constant 1 : index
    %c0_45 = arith.constant 0 : index
    %c0_46 = arith.constant 0 : index
    %47 = vector.load %arg0[%c0_42, %c0_43, %c1_44, %c0_45, %c0_46] : memref<4x2x5x5x96xf32, #tpu.memory_space<vmem>>, vector<1x2x4x4x96xf32>
    %48 = vector.shape_cast %47 : vector<1x2x4x4x96xf32> to vector<2x4x4x96xf32>
    %c6 = arith.constant 6 : index
    %c0_47 = arith.constant 0 : index
    %c0_48 = arith.constant 0 : index
    %49 = vector.load %arg1[%c6, %c0_47, %c0_48] : memref<9x1x96xf32, #tpu.memory_space<vmem>>, vector<1x1x96xf32>
    %50 = vector.shape_cast %49 : vector<1x1x96xf32> to vector<1x96xf32>
    %51 = vector.shape_cast %50 : vector<1x96xf32> to vector<1x1x1x96xf32>
    %52 = vector.broadcast %51 : vector<1x1x1x96xf32> to vector<2x4x4x96xf32>
    %53 = arith.mulf %48, %52 : vector<2x4x4x96xf32>
    %54 = arith.addf %46, %53 : vector<2x4x4x96xf32>
    %c1_49 = arith.constant 1 : index
    %c0_50 = arith.constant 0 : index
    %c1_51 = arith.constant 1 : index
    %c0_52 = arith.constant 0 : index
    %c0_53 = arith.constant 0 : index
    %55 = vector.load %arg0[%c1_49, %c0_50, %c1_51, %c0_52, %c0_53] : memref<4x2x5x5x96xf32, #tpu.memory_space<vmem>>, vector<1x2x4x4x96xf32>
    %56 = vector.shape_cast %55 : vector<1x2x4x4x96xf32> to vector<2x4x4x96xf32>
    %c7 = arith.constant 7 : index
    %c0_54 = arith.constant 0 : index
    %c0_55 = arith.constant 0 : index
    %57 = vector.load %arg1[%c7, %c0_54, %c0_55] : memref<9x1x96xf32, #tpu.memory_space<vmem>>, vector<1x1x96xf32>
    %58 = vector.shape_cast %57 : vector<1x1x96xf32> to vector<1x96xf32>
    %59 = vector.shape_cast %58 : vector<1x96xf32> to vector<1x1x1x96xf32>
    %60 = vector.broadcast %59 : vector<1x1x1x96xf32> to vector<2x4x4x96xf32>
    %61 = arith.mulf %56, %60 : vector<2x4x4x96xf32>
    %62 = arith.addf %54, %61 : vector<2x4x4x96xf32>
    %c0_56 = arith.constant 0 : index
    %c0_57 = arith.constant 0 : index
    %c1_58 = arith.constant 1 : index
    %c1_59 = arith.constant 1 : index
    %c0_60 = arith.constant 0 : index
    %63 = vector.load %arg0[%c0_56, %c0_57, %c1_58, %c1_59, %c0_60] : memref<4x2x5x5x96xf32, #tpu.memory_space<vmem>>, vector<1x2x4x4x96xf32>
    %64 = vector.shape_cast %63 : vector<1x2x4x4x96xf32> to vector<2x4x4x96xf32>
    %c8 = arith.constant 8 : index
    %c0_61 = arith.constant 0 : index
    %c0_62 = arith.constant 0 : index
    %65 = vector.load %arg1[%c8, %c0_61, %c0_62] : memref<9x1x96xf32, #tpu.memory_space<vmem>>, vector<1x1x96xf32>
    %66 = vector.shape_cast %65 : vector<1x1x96xf32> to vector<1x96xf32>
    %67 = vector.shape_cast %66 : vector<1x96xf32> to vector<1x1x1x96xf32>
    %68 = vector.broadcast %67 : vector<1x1x1x96xf32> to vector<2x4x4x96xf32>
    %69 = arith.mulf %64, %68 : vector<2x4x4x96xf32>
    %70 = arith.addf %62, %69 : vector<2x4x4x96xf32>
    %c0_63 = arith.constant 0 : index
    %c0_64 = arith.constant 0 : index
    %71 = vector.load %arg2[%c0_63, %c0_64] : memref<1x96xf32, #tpu.memory_space<vmem>>, vector<1x96xf32>
    %72 = vector.shape_cast %71 : vector<1x96xf32> to vector<1x1x1x96xf32>
    %73 = vector.broadcast %72 : vector<1x1x1x96xf32> to vector<2x4x4x96xf32>
    %74 = arith.addf %70, %73 : vector<2x4x4x96xf32>
    %75 = arith.negf %74 : vector<2x4x4x96xf32>
    %76 = math.exp %75 : vector<2x4x4x96xf32>
    %cst = arith.constant 1.000000e+00 : f32
    %77 = vector.broadcast %cst : f32 to vector<2x4x4x96xf32>
    %78 = arith.addf %77, %76 : vector<2x4x4x96xf32>
    %79 = arith.divf %77, %78 : vector<2x4x4x96xf32>
    %80 = arith.mulf %74, %79 : vector<2x4x4x96xf32>
    %c0_65 = arith.constant 0 : index
    %c0_66 = arith.constant 0 : index
    %c0_67 = arith.constant 0 : index
    %c0_68 = arith.constant 0 : index
    %81 = vector.load %arg3[%c0_65, %c0_66, %c0_67, %c0_68] : memref<2x4x4x96xf32, #tpu.memory_space<vmem>>, vector<2x4x4x96xf32>
    tpu.vector_store %arg3[%c0_65, %c0_66, %c0_67, %c0_68], %80 {strides = array<i32>} : memref<2x4x4x96xf32, #tpu.memory_space<vmem>>, vector<2x4x4x96xf32>,
    %cst_69 = arith.constant dense<0.000000e+00> : vector<2x96xf32>
    %82 = vector.multi_reduction <add>, %80, %cst_69 [1, 2] : vector<2x4x4x96xf32> to vector<2x96xf32>
    %cst_70 = arith.constant 1.600000e+01 : f32
    %83 = vector.broadcast %cst_70 : f32 to vector<2x96xf32>
    %84 = arith.divf %82, %83 : vector<2x96xf32>
    %c0_71 = arith.constant 0 : index
    %c0_72 = arith.constant 0 : index
    %85 = vector.load %arg4[%c0_71, %c0_72] : memref<2x96xf32, #tpu.memory_space<vmem>>, vector<2x96xf32>
    tpu.vector_store %arg4[%c0_71, %c0_72], %84 {strides = array<i32>} : memref<2x96xf32, #tpu.memory_space<vmem>>, vector<2x96xf32>,
    return
  }
}

module attributes {stable_mosaic.version = 11 : i64} {
  func.func @_matmul_kernel(%arg0: memref<32x24xf32, #tpu.memory_space<vmem>>, %arg1: memref<24x144xbf16, #tpu.memory_space<vmem>>, %arg2: memref<1x144xf32, #tpu.memory_space<vmem>>, %arg3: memref<32x144xf32, #tpu.memory_space<vmem>>) attributes {dimension_semantics = [], scalar_prefetch = 0 : i64, scratch_operands = 0 : i64, tpu.core_type = #tpu.core_type<tc>} {
    %c0 = arith.constant 0 : index
    %c0_0 = arith.constant 0 : index
    %0 = vector.load %arg0[%c0, %c0_0] : memref<32x24xf32, #tpu.memory_space<vmem>>, vector<32x24xf32>
    %1 = arith.truncf %0 : vector<32x24xf32> to vector<32x24xbf16>
    %c0_1 = arith.constant 0 : index
    %c0_2 = arith.constant 0 : index
    %2 = vector.load %arg1[%c0_1, %c0_2] : memref<24x144xbf16, #tpu.memory_space<vmem>>, vector<24x144xbf16>
    %cst = arith.constant dense<0.000000e+00> : vector<32x144xf32>
    %3 = tpu.matmul %1, %2, %cst {dimension_numbers = #tpu.dot_dimension_numbers<[1], [0], [0], [1], [0, 0, 1, 1], [], []>} : vector<32x24xbf16>, vector<24x144xbf16>, vector<32x144xf32> -> vector<32x144xf32>
    %c0_3 = arith.constant 0 : index
    %c0_4 = arith.constant 0 : index
    %4 = vector.load %arg2[%c0_3, %c0_4] : memref<1x144xf32, #tpu.memory_space<vmem>>, vector<1x144xf32>
    %5 = vector.broadcast %4 : vector<1x144xf32> to vector<32x144xf32>
    %6 = arith.addf %3, %5 : vector<32x144xf32>
    %7 = arith.negf %6 : vector<32x144xf32>
    %8 = math.exp %7 : vector<32x144xf32>
    %cst_5 = arith.constant 1.000000e+00 : f32
    %9 = vector.broadcast %cst_5 : f32 to vector<32x144xf32>
    %10 = arith.addf %9, %8 : vector<32x144xf32>
    %11 = arith.divf %9, %10 : vector<32x144xf32>
    %12 = arith.mulf %6, %11 : vector<32x144xf32>
    %c0_6 = arith.constant 0 : index
    %c0_7 = arith.constant 0 : index
    %13 = vector.load %arg3[%c0_6, %c0_7] : memref<32x144xf32, #tpu.memory_space<vmem>>, vector<32x144xf32>
    tpu.vector_store %arg3[%c0_6, %c0_7], %12 {strides = array<i32>} : memref<32x144xf32, #tpu.memory_space<vmem>>, vector<32x144xf32>,
    return
  }
}

module attributes {stable_mosaic.version = 11 : i64} {
  func.func @_se_proj_kernel(%arg0: memref<2x16x96xf32, #tpu.memory_space<vmem>>, %arg1: memref<2x96xf32, #tpu.memory_space<vmem>>, %arg2: memref<96x4xbf16, #tpu.memory_space<vmem>>, %arg3: memref<1x4xf32, #tpu.memory_space<vmem>>, %arg4: memref<4x96xbf16, #tpu.memory_space<vmem>>, %arg5: memref<1x96xf32, #tpu.memory_space<vmem>>, %arg6: memref<96x24xbf16, #tpu.memory_space<vmem>>, %arg7: memref<1x24xf32, #tpu.memory_space<vmem>>, %arg8: memref<2x16x24xf32, #tpu.memory_space<vmem>>) attributes {dimension_semantics = [], scalar_prefetch = 0 : i64, scratch_operands = 0 : i64, tpu.core_type = #tpu.core_type<tc>} {
    %c0 = arith.constant 0 : index
    %c0_0 = arith.constant 0 : index
    %0 = vector.load %arg1[%c0, %c0_0] : memref<2x96xf32, #tpu.memory_space<vmem>>, vector<2x96xf32>
    %1 = arith.truncf %0 : vector<2x96xf32> to vector<2x96xbf16>
    %c0_1 = arith.constant 0 : index
    %c0_2 = arith.constant 0 : index
    %2 = vector.load %arg2[%c0_1, %c0_2] : memref<96x4xbf16, #tpu.memory_space<vmem>>, vector<96x4xbf16>
    %cst = arith.constant dense<0.000000e+00> : vector<2x4xf32>
    %3 = tpu.matmul %1, %2, %cst {dimension_numbers = #tpu.dot_dimension_numbers<[1], [0], [0], [1], [0, 0, 1, 1], [], []>} : vector<2x96xbf16>, vector<96x4xbf16>, vector<2x4xf32> -> vector<2x4xf32>
    %c0_3 = arith.constant 0 : index
    %c0_4 = arith.constant 0 : index
    %4 = vector.load %arg3[%c0_3, %c0_4] : memref<1x4xf32, #tpu.memory_space<vmem>>, vector<1x4xf32>
    %5 = vector.broadcast %4 : vector<1x4xf32> to vector<2x4xf32>
    %6 = arith.addf %3, %5 : vector<2x4xf32>
    %7 = arith.negf %6 : vector<2x4xf32>
    %8 = math.exp %7 : vector<2x4xf32>
    %cst_5 = arith.constant 1.000000e+00 : f32
    %9 = vector.broadcast %cst_5 : f32 to vector<2x4xf32>
    %10 = arith.addf %9, %8 : vector<2x4xf32>
    %11 = arith.divf %9, %10 : vector<2x4xf32>
    %12 = arith.mulf %6, %11 : vector<2x4xf32>
    %13 = arith.truncf %12 : vector<2x4xf32> to vector<2x4xbf16>
    %c0_6 = arith.constant 0 : index
    %c0_7 = arith.constant 0 : index
    %14 = vector.load %arg4[%c0_6, %c0_7] : memref<4x96xbf16, #tpu.memory_space<vmem>>, vector<4x96xbf16>
    %cst_8 = arith.constant dense<0.000000e+00> : vector<2x96xf32>
    %15 = tpu.matmul %13, %14, %cst_8 {dimension_numbers = #tpu.dot_dimension_numbers<[1], [0], [0], [1], [0, 0, 1, 1], [], []>} : vector<2x4xbf16>, vector<4x96xbf16>, vector<2x96xf32> -> vector<2x96xf32>
    %c0_9 = arith.constant 0 : index
    %c0_10 = arith.constant 0 : index
    %16 = vector.load %arg5[%c0_9, %c0_10] : memref<1x96xf32, #tpu.memory_space<vmem>>, vector<1x96xf32>
    %17 = vector.broadcast %16 : vector<1x96xf32> to vector<2x96xf32>
    %18 = arith.addf %15, %17 : vector<2x96xf32>
    %19 = arith.negf %18 : vector<2x96xf32>
    %20 = math.exp %19 : vector<2x96xf32>
    %cst_11 = arith.constant 1.000000e+00 : f32
    %21 = vector.broadcast %cst_11 : f32 to vector<2x96xf32>
    %22 = arith.addf %21, %20 : vector<2x96xf32>
    %23 = arith.divf %21, %22 : vector<2x96xf32>
    %c0_12 = arith.constant 0 : index
    %c0_13 = arith.constant 0 : index
    %c0_14 = arith.constant 0 : index
    %24 = vector.load %arg0[%c0_12, %c0_13, %c0_14] : memref<2x16x96xf32, #tpu.memory_space<vmem>>, vector<1x16x96xf32>
    %25 = vector.shape_cast %24 : vector<1x16x96xf32> to vector<16x96xf32>
    %26 = vector.extract_strided_slice %23 {offsets = [0, 0], sizes = [1, 96], strides = [1, 1]} : vector<2x96xf32> to vector<1x96xf32>
    %27 = vector.broadcast %26 : vector<1x96xf32> to vector<16x96xf32>
    %28 = arith.mulf %25, %27 : vector<16x96xf32>
    %29 = arith.truncf %28 : vector<16x96xf32> to vector<16x96xbf16>
    %c0_15 = arith.constant 0 : index
    %c0_16 = arith.constant 0 : index
    %30 = vector.load %arg6[%c0_15, %c0_16] : memref<96x24xbf16, #tpu.memory_space<vmem>>, vector<96x24xbf16>
    %cst_17 = arith.constant dense<0.000000e+00> : vector<16x24xf32>
    %31 = tpu.matmul %29, %30, %cst_17 {dimension_numbers = #tpu.dot_dimension_numbers<[1], [0], [0], [1], [0, 0, 1, 1], [], []>} : vector<16x96xbf16>, vector<96x24xbf16>, vector<16x24xf32> -> vector<16x24xf32>
    %c0_18 = arith.constant 0 : index
    %c0_19 = arith.constant 0 : index
    %32 = vector.load %arg7[%c0_18, %c0_19] : memref<1x24xf32, #tpu.memory_space<vmem>>, vector<1x24xf32>
    %33 = vector.broadcast %32 : vector<1x24xf32> to vector<16x24xf32>
    %34 = arith.addf %31, %33 : vector<16x24xf32>
    %c0_20 = arith.constant 0 : index
    %c0_21 = arith.constant 0 : index
    %c0_22 = arith.constant 0 : index
    %35 = vector.load %arg8[%c0_20, %c0_21, %c0_22] : memref<2x16x24xf32, #tpu.memory_space<vmem>>, vector<1x16x24xf32>
    %36 = vector.shape_cast %35 : vector<1x16x24xf32> to vector<16x24xf32>
    %37 = vector.shape_cast %34 : vector<16x24xf32> to vector<1x16x24xf32>
    tpu.vector_store %arg8[%c0_20, %c0_21, %c0_22], %37 {strides = array<i32>} : memref<2x16x24xf32, #tpu.memory_space<vmem>>, vector<1x16x24xf32>,
    %c1 = arith.constant 1 : index
    %c0_23 = arith.constant 0 : index
    %c0_24 = arith.constant 0 : index
    %38 = vector.load %arg0[%c1, %c0_23, %c0_24] : memref<2x16x96xf32, #tpu.memory_space<vmem>>, vector<1x16x96xf32>
    %39 = vector.shape_cast %38 : vector<1x16x96xf32> to vector<16x96xf32>
    %40 = vector.extract_strided_slice %23 {offsets = [1, 0], sizes = [1, 96], strides = [1, 1]} : vector<2x96xf32> to vector<1x96xf32>
    %41 = vector.broadcast %40 : vector<1x96xf32> to vector<16x96xf32>
    %42 = arith.mulf %39, %41 : vector<16x96xf32>
    %43 = arith.truncf %42 : vector<16x96xf32> to vector<16x96xbf16>
    %c0_25 = arith.constant 0 : index
    %c0_26 = arith.constant 0 : index
    %44 = vector.load %arg6[%c0_25, %c0_26] : memref<96x24xbf16, #tpu.memory_space<vmem>>, vector<96x24xbf16>
    %cst_27 = arith.constant dense<0.000000e+00> : vector<16x24xf32>
    %45 = tpu.matmul %43, %44, %cst_27 {dimension_numbers = #tpu.dot_dimension_numbers<[1], [0], [0], [1], [0, 0, 1, 1], [], []>} : vector<16x96xbf16>, vector<96x24xbf16>, vector<16x24xf32> -> vector<16x24xf32>
    %c0_28 = arith.constant 0 : index
    %c0_29 = arith.constant 0 : index
    %46 = vector.load %arg7[%c0_28, %c0_29] : memref<1x24xf32, #tpu.memory_space<vmem>>, vector<1x24xf32>
    %47 = vector.broadcast %46 : vector<1x24xf32> to vector<16x24xf32>
    %48 = arith.addf %45, %47 : vector<16x24xf32>
    %c1_30 = arith.constant 1 : index
    %c0_31 = arith.constant 0 : index
    %c0_32 = arith.constant 0 : index
    %49 = vector.load %arg8[%c1_30, %c0_31, %c0_32] : memref<2x16x24xf32, #tpu.memory_space<vmem>>, vector<1x16x24xf32>
    %50 = vector.shape_cast %49 : vector<1x16x24xf32> to vector<16x24xf32>
    %51 = vector.shape_cast %48 : vector<16x24xf32> to vector<1x16x24xf32>
    tpu.vector_store %arg8[%c1_30, %c0_31, %c0_32], %51 {strides = array<i32>} : memref<2x16x24xf32, #tpu.memory_space<vmem>>, vector<1x16x24xf32>,
    return
  }
}

module attributes {stable_mosaic.version = 11 : i64} {
  func.func @_dwconv_gap_kernel(%arg0: memref<4x2x3x3x144xf32, #tpu.memory_space<vmem>>, %arg1: memref<9x1x144xf32, #tpu.memory_space<vmem>>, %arg2: memref<1x144xf32, #tpu.memory_space<vmem>>, %arg3: memref<2x2x2x144xf32, #tpu.memory_space<vmem>>, %arg4: memref<2x144xf32, #tpu.memory_space<vmem>>) attributes {dimension_semantics = [], scalar_prefetch = 0 : i64, scratch_operands = 0 : i64, tpu.core_type = #tpu.core_type<tc>} {
    %c0 = arith.constant 0 : index
    %c0_0 = arith.constant 0 : index
    %c0_1 = arith.constant 0 : index
    %c0_2 = arith.constant 0 : index
    %c0_3 = arith.constant 0 : index
    %0 = vector.load %arg0[%c0, %c0_0, %c0_1, %c0_2, %c0_3] : memref<4x2x3x3x144xf32, #tpu.memory_space<vmem>>, vector<1x2x2x2x144xf32>
    %1 = vector.shape_cast %0 : vector<1x2x2x2x144xf32> to vector<2x2x2x144xf32>
    %c0_4 = arith.constant 0 : index
    %c0_5 = arith.constant 0 : index
    %c0_6 = arith.constant 0 : index
    %2 = vector.load %arg1[%c0_4, %c0_5, %c0_6] : memref<9x1x144xf32, #tpu.memory_space<vmem>>, vector<1x1x144xf32>
    %3 = vector.shape_cast %2 : vector<1x1x144xf32> to vector<1x144xf32>
    %4 = vector.shape_cast %3 : vector<1x144xf32> to vector<1x1x1x144xf32>
    %5 = vector.broadcast %4 : vector<1x1x1x144xf32> to vector<2x2x2x144xf32>
    %6 = arith.mulf %1, %5 : vector<2x2x2x144xf32>
    %c1 = arith.constant 1 : index
    %c0_7 = arith.constant 0 : index
    %c0_8 = arith.constant 0 : index
    %c0_9 = arith.constant 0 : index
    %c0_10 = arith.constant 0 : index
    %7 = vector.load %arg0[%c1, %c0_7, %c0_8, %c0_9, %c0_10] : memref<4x2x3x3x144xf32, #tpu.memory_space<vmem>>, vector<1x2x2x2x144xf32>
    %8 = vector.shape_cast %7 : vector<1x2x2x2x144xf32> to vector<2x2x2x144xf32>
    %c1_11 = arith.constant 1 : index
    %c0_12 = arith.constant 0 : index
    %c0_13 = arith.constant 0 : index
    %9 = vector.load %arg1[%c1_11, %c0_12, %c0_13] : memref<9x1x144xf32, #tpu.memory_space<vmem>>, vector<1x1x144xf32>
    %10 = vector.shape_cast %9 : vector<1x1x144xf32> to vector<1x144xf32>
    %11 = vector.shape_cast %10 : vector<1x144xf32> to vector<1x1x1x144xf32>
    %12 = vector.broadcast %11 : vector<1x1x1x144xf32> to vector<2x2x2x144xf32>
    %13 = arith.mulf %8, %12 : vector<2x2x2x144xf32>
    %14 = arith.addf %6, %13 : vector<2x2x2x144xf32>
    %c0_14 = arith.constant 0 : index
    %c0_15 = arith.constant 0 : index
    %c0_16 = arith.constant 0 : index
    %c1_17 = arith.constant 1 : index
    %c0_18 = arith.constant 0 : index
    %15 = vector.load %arg0[%c0_14, %c0_15, %c0_16, %c1_17, %c0_18] : memref<4x2x3x3x144xf32, #tpu.memory_space<vmem>>, vector<1x2x2x2x144xf32>
    %16 = vector.shape_cast %15 : vector<1x2x2x2x144xf32> to vector<2x2x2x144xf32>
    %c2 = arith.constant 2 : index
    %c0_19 = arith.constant 0 : index
    %c0_20 = arith.constant 0 : index
    %17 = vector.load %arg1[%c2, %c0_19, %c0_20] : memref<9x1x144xf32, #tpu.memory_space<vmem>>, vector<1x1x144xf32>
    %18 = vector.shape_cast %17 : vector<1x1x144xf32> to vector<1x144xf32>
    %19 = vector.shape_cast %18 : vector<1x144xf32> to vector<1x1x1x144xf32>
    %20 = vector.broadcast %19 : vector<1x1x1x144xf32> to vector<2x2x2x144xf32>
    %21 = arith.mulf %16, %20 : vector<2x2x2x144xf32>
    %22 = arith.addf %14, %21 : vector<2x2x2x144xf32>
    %c2_21 = arith.constant 2 : index
    %c0_22 = arith.constant 0 : index
    %c0_23 = arith.constant 0 : index
    %c0_24 = arith.constant 0 : index
    %c0_25 = arith.constant 0 : index
    %23 = vector.load %arg0[%c2_21, %c0_22, %c0_23, %c0_24, %c0_25] : memref<4x2x3x3x144xf32, #tpu.memory_space<vmem>>, vector<1x2x2x2x144xf32>
    %24 = vector.shape_cast %23 : vector<1x2x2x2x144xf32> to vector<2x2x2x144xf32>
    %c3 = arith.constant 3 : index
    %c0_26 = arith.constant 0 : index
    %c0_27 = arith.constant 0 : index
    %25 = vector.load %arg1[%c3, %c0_26, %c0_27] : memref<9x1x144xf32, #tpu.memory_space<vmem>>, vector<1x1x144xf32>
    %26 = vector.shape_cast %25 : vector<1x1x144xf32> to vector<1x144xf32>
    %27 = vector.shape_cast %26 : vector<1x144xf32> to vector<1x1x1x144xf32>
    %28 = vector.broadcast %27 : vector<1x1x1x144xf32> to vector<2x2x2x144xf32>
    %29 = arith.mulf %24, %28 : vector<2x2x2x144xf32>
    %30 = arith.addf %22, %29 : vector<2x2x2x144xf32>
    %c3_28 = arith.constant 3 : index
    %c0_29 = arith.constant 0 : index
    %c0_30 = arith.constant 0 : index
    %c0_31 = arith.constant 0 : index
    %c0_32 = arith.constant 0 : index
    %31 = vector.load %arg0[%c3_28, %c0_29, %c0_30, %c0_31, %c0_32] : memref<4x2x3x3x144xf32, #tpu.memory_space<vmem>>, vector<1x2x2x2x144xf32>
    %32 = vector.shape_cast %31 : vector<1x2x2x2x144xf32> to vector<2x2x2x144xf32>
    %c4 = arith.constant 4 : index
    %c0_33 = arith.constant 0 : index
    %c0_34 = arith.constant 0 : index
    %33 = vector.load %arg1[%c4, %c0_33, %c0_34] : memref<9x1x144xf32, #tpu.memory_space<vmem>>, vector<1x1x144xf32>
    %34 = vector.shape_cast %33 : vector<1x1x144xf32> to vector<1x144xf32>
    %35 = vector.shape_cast %34 : vector<1x144xf32> to vector<1x1x1x144xf32>
    %36 = vector.broadcast %35 : vector<1x1x1x144xf32> to vector<2x2x2x144xf32>
    %37 = arith.mulf %32, %36 : vector<2x2x2x144xf32>
    %38 = arith.addf %30, %37 : vector<2x2x2x144xf32>
    %c2_35 = arith.constant 2 : index
    %c0_36 = arith.constant 0 : index
    %c0_37 = arith.constant 0 : index
    %c1_38 = arith.constant 1 : index
    %c0_39 = arith.constant 0 : index
    %39 = vector.load %arg0[%c2_35, %c0_36, %c0_37, %c1_38, %c0_39] : memref<4x2x3x3x144xf32, #tpu.memory_space<vmem>>, vector<1x2x2x2x144xf32>
    %40 = vector.shape_cast %39 : vector<1x2x2x2x144xf32> to vector<2x2x2x144xf32>
    %c5 = arith.constant 5 : index
    %c0_40 = arith.constant 0 : index
    %c0_41 = arith.constant 0 : index
    %41 = vector.load %arg1[%c5, %c0_40, %c0_41] : memref<9x1x144xf32, #tpu.memory_space<vmem>>, vector<1x1x144xf32>
    %42 = vector.shape_cast %41 : vector<1x1x144xf32> to vector<1x144xf32>
    %43 = vector.shape_cast %42 : vector<1x144xf32> to vector<1x1x1x144xf32>
    %44 = vector.broadcast %43 : vector<1x1x1x144xf32> to vector<2x2x2x144xf32>
    %45 = arith.mulf %40, %44 : vector<2x2x2x144xf32>
    %46 = arith.addf %38, %45 : vector<2x2x2x144xf32>
    %c0_42 = arith.constant 0 : index
    %c0_43 = arith.constant 0 : index
    %c1_44 = arith.constant 1 : index
    %c0_45 = arith.constant 0 : index
    %c0_46 = arith.constant 0 : index
    %47 = vector.load %arg0[%c0_42, %c0_43, %c1_44, %c0_45, %c0_46] : memref<4x2x3x3x144xf32, #tpu.memory_space<vmem>>, vector<1x2x2x2x144xf32>
    %48 = vector.shape_cast %47 : vector<1x2x2x2x144xf32> to vector<2x2x2x144xf32>
    %c6 = arith.constant 6 : index
    %c0_47 = arith.constant 0 : index
    %c0_48 = arith.constant 0 : index
    %49 = vector.load %arg1[%c6, %c0_47, %c0_48] : memref<9x1x144xf32, #tpu.memory_space<vmem>>, vector<1x1x144xf32>
    %50 = vector.shape_cast %49 : vector<1x1x144xf32> to vector<1x144xf32>
    %51 = vector.shape_cast %50 : vector<1x144xf32> to vector<1x1x1x144xf32>
    %52 = vector.broadcast %51 : vector<1x1x1x144xf32> to vector<2x2x2x144xf32>
    %53 = arith.mulf %48, %52 : vector<2x2x2x144xf32>
    %54 = arith.addf %46, %53 : vector<2x2x2x144xf32>
    %c1_49 = arith.constant 1 : index
    %c0_50 = arith.constant 0 : index
    %c1_51 = arith.constant 1 : index
    %c0_52 = arith.constant 0 : index
    %c0_53 = arith.constant 0 : index
    %55 = vector.load %arg0[%c1_49, %c0_50, %c1_51, %c0_52, %c0_53] : memref<4x2x3x3x144xf32, #tpu.memory_space<vmem>>, vector<1x2x2x2x144xf32>
    %56 = vector.shape_cast %55 : vector<1x2x2x2x144xf32> to vector<2x2x2x144xf32>
    %c7 = arith.constant 7 : index
    %c0_54 = arith.constant 0 : index
    %c0_55 = arith.constant 0 : index
    %57 = vector.load %arg1[%c7, %c0_54, %c0_55] : memref<9x1x144xf32, #tpu.memory_space<vmem>>, vector<1x1x144xf32>
    %58 = vector.shape_cast %57 : vector<1x1x144xf32> to vector<1x144xf32>
    %59 = vector.shape_cast %58 : vector<1x144xf32> to vector<1x1x1x144xf32>
    %60 = vector.broadcast %59 : vector<1x1x1x144xf32> to vector<2x2x2x144xf32>
    %61 = arith.mulf %56, %60 : vector<2x2x2x144xf32>
    %62 = arith.addf %54, %61 : vector<2x2x2x144xf32>
    %c0_56 = arith.constant 0 : index
    %c0_57 = arith.constant 0 : index
    %c1_58 = arith.constant 1 : index
    %c1_59 = arith.constant 1 : index
    %c0_60 = arith.constant 0 : index
    %63 = vector.load %arg0[%c0_56, %c0_57, %c1_58, %c1_59, %c0_60] : memref<4x2x3x3x144xf32, #tpu.memory_space<vmem>>, vector<1x2x2x2x144xf32>
    %64 = vector.shape_cast %63 : vector<1x2x2x2x144xf32> to vector<2x2x2x144xf32>
    %c8 = arith.constant 8 : index
    %c0_61 = arith.constant 0 : index
    %c0_62 = arith.constant 0 : index
    %65 = vector.load %arg1[%c8, %c0_61, %c0_62] : memref<9x1x144xf32, #tpu.memory_space<vmem>>, vector<1x1x144xf32>
    %66 = vector.shape_cast %65 : vector<1x1x144xf32> to vector<1x144xf32>
    %67 = vector.shape_cast %66 : vector<1x144xf32> to vector<1x1x1x144xf32>
    %68 = vector.broadcast %67 : vector<1x1x1x144xf32> to vector<2x2x2x144xf32>
    %69 = arith.mulf %64, %68 : vector<2x2x2x144xf32>
    %70 = arith.addf %62, %69 : vector<2x2x2x144xf32>
    %c0_63 = arith.constant 0 : index
    %c0_64 = arith.constant 0 : index
    %71 = vector.load %arg2[%c0_63, %c0_64] : memref<1x144xf32, #tpu.memory_space<vmem>>, vector<1x144xf32>
    %72 = vector.shape_cast %71 : vector<1x144xf32> to vector<1x1x1x144xf32>
    %73 = vector.broadcast %72 : vector<1x1x1x144xf32> to vector<2x2x2x144xf32>
    %74 = arith.addf %70, %73 : vector<2x2x2x144xf32>
    %75 = arith.negf %74 : vector<2x2x2x144xf32>
    %76 = math.exp %75 : vector<2x2x2x144xf32>
    %cst = arith.constant 1.000000e+00 : f32
    %77 = vector.broadcast %cst : f32 to vector<2x2x2x144xf32>
    %78 = arith.addf %77, %76 : vector<2x2x2x144xf32>
    %79 = arith.divf %77, %78 : vector<2x2x2x144xf32>
    %80 = arith.mulf %74, %79 : vector<2x2x2x144xf32>
    %c0_65 = arith.constant 0 : index
    %c0_66 = arith.constant 0 : index
    %c0_67 = arith.constant 0 : index
    %c0_68 = arith.constant 0 : index
    %81 = vector.load %arg3[%c0_65, %c0_66, %c0_67, %c0_68] : memref<2x2x2x144xf32, #tpu.memory_space<vmem>>, vector<2x2x2x144xf32>
    tpu.vector_store %arg3[%c0_65, %c0_66, %c0_67, %c0_68], %80 {strides = array<i32>} : memref<2x2x2x144xf32, #tpu.memory_space<vmem>>, vector<2x2x2x144xf32>,
    %cst_69 = arith.constant dense<0.000000e+00> : vector<2x144xf32>
    %82 = vector.multi_reduction <add>, %80, %cst_69 [1, 2] : vector<2x2x2x144xf32> to vector<2x144xf32>
    %cst_70 = arith.constant 4.000000e+00 : f32
    %83 = vector.broadcast %cst_70 : f32 to vector<2x144xf32>
    %84 = arith.divf %82, %83 : vector<2x144xf32>
    %c0_71 = arith.constant 0 : index
    %c0_72 = arith.constant 0 : index
    %85 = vector.load %arg4[%c0_71, %c0_72] : memref<2x144xf32, #tpu.memory_space<vmem>>, vector<2x144xf32>
    tpu.vector_store %arg4[%c0_71, %c0_72], %84 {strides = array<i32>} : memref<2x144xf32, #tpu.memory_space<vmem>>, vector<2x144xf32>,
    return
  }
}

module attributes {stable_mosaic.version = 11 : i64} {
  func.func @_head_fc_kernel(%arg0: memref<2x4x40xf32, #tpu.memory_space<vmem>>, %arg1: memref<40x128xbf16, #tpu.memory_space<vmem>>, %arg2: memref<1x128xf32, #tpu.memory_space<vmem>>, %arg3: memref<2x8xf32, #tpu.memory_space<vmem>>, %arg4: memref<128x2xbf16, #tpu.memory_space<vmem>>, %arg5: memref<8x2xbf16, #tpu.memory_space<vmem>>, %arg6: memref<1x2xf32, #tpu.memory_space<vmem>>, %arg7: memref<2x2xf32, #tpu.memory_space<vmem>>) attributes {dimension_semantics = [], scalar_prefetch = 0 : i64, scratch_operands = 0 : i64, tpu.core_type = #tpu.core_type<tc>} {
    %c0 = arith.constant 0 : index
    %c0_0 = arith.constant 0 : index
    %c0_1 = arith.constant 0 : index
    %0 = vector.load %arg0[%c0, %c0_0, %c0_1] : memref<2x4x40xf32, #tpu.memory_space<vmem>>, vector<1x4x40xf32>
    %1 = vector.shape_cast %0 : vector<1x4x40xf32> to vector<4x40xf32>
    %2 = arith.truncf %1 : vector<4x40xf32> to vector<4x40xbf16>
    %c0_2 = arith.constant 0 : index
    %c0_3 = arith.constant 0 : index
    %3 = vector.load %arg1[%c0_2, %c0_3] : memref<40x128xbf16, #tpu.memory_space<vmem>>, vector<40x128xbf16>
    %cst = arith.constant dense<0.000000e+00> : vector<4x128xf32>
    %4 = tpu.matmul %2, %3, %cst {dimension_numbers = #tpu.dot_dimension_numbers<[1], [0], [0], [1], [0, 0, 1, 1], [], []>} : vector<4x40xbf16>, vector<40x128xbf16>, vector<4x128xf32> -> vector<4x128xf32>
    %c0_4 = arith.constant 0 : index
    %c0_5 = arith.constant 0 : index
    %5 = vector.load %arg2[%c0_4, %c0_5] : memref<1x128xf32, #tpu.memory_space<vmem>>, vector<1x128xf32>
    %6 = vector.broadcast %5 : vector<1x128xf32> to vector<4x128xf32>
    %7 = arith.addf %4, %6 : vector<4x128xf32>
    %8 = arith.negf %7 : vector<4x128xf32>
    %9 = math.exp %8 : vector<4x128xf32>
    %cst_6 = arith.constant 1.000000e+00 : f32
    %10 = vector.broadcast %cst_6 : f32 to vector<4x128xf32>
    %11 = arith.addf %10, %9 : vector<4x128xf32>
    %12 = arith.divf %10, %11 : vector<4x128xf32>
    %13 = arith.mulf %7, %12 : vector<4x128xf32>
    %cst_7 = arith.constant dense<0.000000e+00> : vector<128xf32>
    %14 = vector.multi_reduction <add>, %13, %cst_7 [0] : vector<4x128xf32> to vector<128xf32>
    %15 = vector.shape_cast %14 : vector<128xf32> to vector<1x128xf32>
    %cst_8 = arith.constant 4.000000e+00 : f32
    %16 = vector.broadcast %cst_8 : f32 to vector<1x128xf32>
    %17 = arith.divf %15, %16 : vector<1x128xf32>
    %c1 = arith.constant 1 : index
    %c0_9 = arith.constant 0 : index
    %c0_10 = arith.constant 0 : index
    %18 = vector.load %arg0[%c1, %c0_9, %c0_10] : memref<2x4x40xf32, #tpu.memory_space<vmem>>, vector<1x4x40xf32>
    %19 = vector.shape_cast %18 : vector<1x4x40xf32> to vector<4x40xf32>
    %20 = arith.truncf %19 : vector<4x40xf32> to vector<4x40xbf16>
    %c0_11 = arith.constant 0 : index
    %c0_12 = arith.constant 0 : index
    %21 = vector.load %arg1[%c0_11, %c0_12] : memref<40x128xbf16, #tpu.memory_space<vmem>>, vector<40x128xbf16>
    %cst_13 = arith.constant dense<0.000000e+00> : vector<4x128xf32>
    %22 = tpu.matmul %20, %21, %cst_13 {dimension_numbers = #tpu.dot_dimension_numbers<[1], [0], [0], [1], [0, 0, 1, 1], [], []>} : vector<4x40xbf16>, vector<40x128xbf16>, vector<4x128xf32> -> vector<4x128xf32>
    %c0_14 = arith.constant 0 : index
    %c0_15 = arith.constant 0 : index
    %23 = vector.load %arg2[%c0_14, %c0_15] : memref<1x128xf32, #tpu.memory_space<vmem>>, vector<1x128xf32>
    %24 = vector.broadcast %23 : vector<1x128xf32> to vector<4x128xf32>
    %25 = arith.addf %22, %24 : vector<4x128xf32>
    %26 = arith.negf %25 : vector<4x128xf32>
    %27 = math.exp %26 : vector<4x128xf32>
    %cst_16 = arith.constant 1.000000e+00 : f32
    %28 = vector.broadcast %cst_16 : f32 to vector<4x128xf32>
    %29 = arith.addf %28, %27 : vector<4x128xf32>
    %30 = arith.divf %28, %29 : vector<4x128xf32>
    %31 = arith.mulf %25, %30 : vector<4x128xf32>
    %cst_17 = arith.constant dense<0.000000e+00> : vector<128xf32>
    %32 = vector.multi_reduction <add>, %31, %cst_17 [0] : vector<4x128xf32> to vector<128xf32>
    %33 = vector.shape_cast %32 : vector<128xf32> to vector<1x128xf32>
    %cst_18 = arith.constant 4.000000e+00 : f32
    %34 = vector.broadcast %cst_18 : f32 to vector<1x128xf32>
    %35 = arith.divf %33, %34 : vector<1x128xf32>
    %36 = tpu.concatenate %17, %35 in 0 : vector<1x128xf32>, vector<1x128xf32> -> vector<2x128xf32>
    %37 = arith.truncf %36 : vector<2x128xf32> to vector<2x128xbf16>
    %c0_19 = arith.constant 0 : index
    %c0_20 = arith.constant 0 : index
    %38 = vector.load %arg4[%c0_19, %c0_20] : memref<128x2xbf16, #tpu.memory_space<vmem>>, vector<128x2xbf16>
    %cst_21 = arith.constant dense<0.000000e+00> : vector<2x2xf32>
    %39 = tpu.matmul %37, %38, %cst_21 {dimension_numbers = #tpu.dot_dimension_numbers<[1], [0], [0], [1], [0, 0, 1, 1], [], []>} : vector<2x128xbf16>, vector<128x2xbf16>, vector<2x2xf32> -> vector<2x2xf32>
    %c0_22 = arith.constant 0 : index
    %c0_23 = arith.constant 0 : index
    %40 = vector.load %arg3[%c0_22, %c0_23] : memref<2x8xf32, #tpu.memory_space<vmem>>, vector<2x8xf32>
    %41 = arith.truncf %40 : vector<2x8xf32> to vector<2x8xbf16>
    %c0_24 = arith.constant 0 : index
    %c0_25 = arith.constant 0 : index
    %42 = vector.load %arg5[%c0_24, %c0_25] : memref<8x2xbf16, #tpu.memory_space<vmem>>, vector<8x2xbf16>
    %cst_26 = arith.constant dense<0.000000e+00> : vector<2x2xf32>
    %43 = tpu.matmul %41, %42, %cst_26 {dimension_numbers = #tpu.dot_dimension_numbers<[1], [0], [0], [1], [0, 0, 1, 1], [], []>} : vector<2x8xbf16>, vector<8x2xbf16>, vector<2x2xf32> -> vector<2x2xf32>
    %44 = arith.addf %39, %43 : vector<2x2xf32>
    %c0_27 = arith.constant 0 : index
    %c0_28 = arith.constant 0 : index
    %45 = vector.load %arg6[%c0_27, %c0_28] : memref<1x2xf32, #tpu.memory_space<vmem>>, vector<1x2xf32>
    %46 = vector.broadcast %45 : vector<1x2xf32> to vector<2x2xf32>
    %47 = arith.addf %44, %46 : vector<2x2xf32>
    %c0_29 = arith.constant 0 : index
    %c0_30 = arith.constant 0 : index
    %48 = vector.load %arg7[%c0_29, %c0_30] : memref<2x2xf32, #tpu.memory_space<vmem>>, vector<2x2xf32>
    tpu.vector_store %arg7[%c0_29, %c0_30], %47 {strides = array<i32>} : memref<2x2xf32, #tpu.memory_space<vmem>>, vector<2x2xf32>,
    return
  }
}

module attributes {stable_mosaic.version = 11 : i64} {
  func.func @_se_proj_kernel(%arg0: memref<2x4x144xf32, #tpu.memory_space<vmem>>, %arg1: memref<2x144xf32, #tpu.memory_space<vmem>>, %arg2: memref<144x6xbf16, #tpu.memory_space<vmem>>, %arg3: memref<1x6xf32, #tpu.memory_space<vmem>>, %arg4: memref<6x144xbf16, #tpu.memory_space<vmem>>, %arg5: memref<1x144xf32, #tpu.memory_space<vmem>>, %arg6: memref<144x40xbf16, #tpu.memory_space<vmem>>, %arg7: memref<1x40xf32, #tpu.memory_space<vmem>>, %arg8: memref<2x4x40xf32, #tpu.memory_space<vmem>>) attributes {dimension_semantics = [], scalar_prefetch = 0 : i64, scratch_operands = 0 : i64, tpu.core_type = #tpu.core_type<tc>} {
    %c0 = arith.constant 0 : index
    %c0_0 = arith.constant 0 : index
    %0 = vector.load %arg1[%c0, %c0_0] : memref<2x144xf32, #tpu.memory_space<vmem>>, vector<2x144xf32>
    %1 = arith.truncf %0 : vector<2x144xf32> to vector<2x144xbf16>
    %c0_1 = arith.constant 0 : index
    %c0_2 = arith.constant 0 : index
    %2 = vector.load %arg2[%c0_1, %c0_2] : memref<144x6xbf16, #tpu.memory_space<vmem>>, vector<144x6xbf16>
    %cst = arith.constant dense<0.000000e+00> : vector<2x6xf32>
    %3 = tpu.matmul %1, %2, %cst {dimension_numbers = #tpu.dot_dimension_numbers<[1], [0], [0], [1], [0, 0, 1, 1], [], []>} : vector<2x144xbf16>, vector<144x6xbf16>, vector<2x6xf32> -> vector<2x6xf32>
    %c0_3 = arith.constant 0 : index
    %c0_4 = arith.constant 0 : index
    %4 = vector.load %arg3[%c0_3, %c0_4] : memref<1x6xf32, #tpu.memory_space<vmem>>, vector<1x6xf32>
    %5 = vector.broadcast %4 : vector<1x6xf32> to vector<2x6xf32>
    %6 = arith.addf %3, %5 : vector<2x6xf32>
    %7 = arith.negf %6 : vector<2x6xf32>
    %8 = math.exp %7 : vector<2x6xf32>
    %cst_5 = arith.constant 1.000000e+00 : f32
    %9 = vector.broadcast %cst_5 : f32 to vector<2x6xf32>
    %10 = arith.addf %9, %8 : vector<2x6xf32>
    %11 = arith.divf %9, %10 : vector<2x6xf32>
    %12 = arith.mulf %6, %11 : vector<2x6xf32>
    %13 = arith.truncf %12 : vector<2x6xf32> to vector<2x6xbf16>
    %c0_6 = arith.constant 0 : index
    %c0_7 = arith.constant 0 : index
    %14 = vector.load %arg4[%c0_6, %c0_7] : memref<6x144xbf16, #tpu.memory_space<vmem>>, vector<6x144xbf16>
    %cst_8 = arith.constant dense<0.000000e+00> : vector<2x144xf32>
    %15 = tpu.matmul %13, %14, %cst_8 {dimension_numbers = #tpu.dot_dimension_numbers<[1], [0], [0], [1], [0, 0, 1, 1], [], []>} : vector<2x6xbf16>, vector<6x144xbf16>, vector<2x144xf32> -> vector<2x144xf32>
    %c0_9 = arith.constant 0 : index
    %c0_10 = arith.constant 0 : index
    %16 = vector.load %arg5[%c0_9, %c0_10] : memref<1x144xf32, #tpu.memory_space<vmem>>, vector<1x144xf32>
    %17 = vector.broadcast %16 : vector<1x144xf32> to vector<2x144xf32>
    %18 = arith.addf %15, %17 : vector<2x144xf32>
    %19 = arith.negf %18 : vector<2x144xf32>
    %20 = math.exp %19 : vector<2x144xf32>
    %cst_11 = arith.constant 1.000000e+00 : f32
    %21 = vector.broadcast %cst_11 : f32 to vector<2x144xf32>
    %22 = arith.addf %21, %20 : vector<2x144xf32>
    %23 = arith.divf %21, %22 : vector<2x144xf32>
    %c0_12 = arith.constant 0 : index
    %c0_13 = arith.constant 0 : index
    %c0_14 = arith.constant 0 : index
    %24 = vector.load %arg0[%c0_12, %c0_13, %c0_14] : memref<2x4x144xf32, #tpu.memory_space<vmem>>, vector<1x4x144xf32>
    %25 = vector.shape_cast %24 : vector<1x4x144xf32> to vector<4x144xf32>
    %26 = vector.extract_strided_slice %23 {offsets = [0, 0], sizes = [1, 144], strides = [1, 1]} : vector<2x144xf32> to vector<1x144xf32>
    %27 = vector.broadcast %26 : vector<1x144xf32> to vector<4x144xf32>
    %28 = arith.mulf %25, %27 : vector<4x144xf32>
    %29 = arith.truncf %28 : vector<4x144xf32> to vector<4x144xbf16>
    %c0_15 = arith.constant 0 : index
    %c0_16 = arith.constant 0 : index
    %30 = vector.load %arg6[%c0_15, %c0_16] : memref<144x40xbf16, #tpu.memory_space<vmem>>, vector<144x40xbf16>
    %cst_17 = arith.constant dense<0.000000e+00> : vector<4x40xf32>
    %31 = tpu.matmul %29, %30, %cst_17 {dimension_numbers = #tpu.dot_dimension_numbers<[1], [0], [0], [1], [0, 0, 1, 1], [], []>} : vector<4x144xbf16>, vector<144x40xbf16>, vector<4x40xf32> -> vector<4x40xf32>
    %c0_18 = arith.constant 0 : index
    %c0_19 = arith.constant 0 : index
    %32 = vector.load %arg7[%c0_18, %c0_19] : memref<1x40xf32, #tpu.memory_space<vmem>>, vector<1x40xf32>
    %33 = vector.broadcast %32 : vector<1x40xf32> to vector<4x40xf32>
    %34 = arith.addf %31, %33 : vector<4x40xf32>
    %c0_20 = arith.constant 0 : index
    %c0_21 = arith.constant 0 : index
    %c0_22 = arith.constant 0 : index
    %35 = vector.load %arg8[%c0_20, %c0_21, %c0_22] : memref<2x4x40xf32, #tpu.memory_space<vmem>>, vector<1x4x40xf32>
    %36 = vector.shape_cast %35 : vector<1x4x40xf32> to vector<4x40xf32>
    %37 = vector.shape_cast %34 : vector<4x40xf32> to vector<1x4x40xf32>
    tpu.vector_store %arg8[%c0_20, %c0_21, %c0_22], %37 {strides = array<i32>} : memref<2x4x40xf32, #tpu.memory_space<vmem>>, vector<1x4x40xf32>,
    %c1 = arith.constant 1 : index
    %c0_23 = arith.constant 0 : index
    %c0_24 = arith.constant 0 : index
    %38 = vector.load %arg0[%c1, %c0_23, %c0_24] : memref<2x4x144xf32, #tpu.memory_space<vmem>>, vector<1x4x144xf32>
    %39 = vector.shape_cast %38 : vector<1x4x144xf32> to vector<4x144xf32>
    %40 = vector.extract_strided_slice %23 {offsets = [1, 0], sizes = [1, 144], strides = [1, 1]} : vector<2x144xf32> to vector<1x144xf32>
    %41 = vector.broadcast %40 : vector<1x144xf32> to vector<4x144xf32>
    %42 = arith.mulf %39, %41 : vector<4x144xf32>
    %43 = arith.truncf %42 : vector<4x144xf32> to vector<4x144xbf16>
    %c0_25 = arith.constant 0 : index
    %c0_26 = arith.constant 0 : index
    %44 = vector.load %arg6[%c0_25, %c0_26] : memref<144x40xbf16, #tpu.memory_space<vmem>>, vector<144x40xbf16>
    %cst_27 = arith.constant dense<0.000000e+00> : vector<4x40xf32>
    %45 = tpu.matmul %43, %44, %cst_27 {dimension_numbers = #tpu.dot_dimension_numbers<[1], [0], [0], [1], [0, 0, 1, 1], [], []>} : vector<4x144xbf16>, vector<144x40xbf16>, vector<4x40xf32> -> vector<4x40xf32>
    %c0_28 = arith.constant 0 : index
    %c0_29 = arith.constant 0 : index
    %46 = vector.load %arg7[%c0_28, %c0_29] : memref<1x40xf32, #tpu.memory_space<vmem>>, vector<1x40xf32>
    %47 = vector.broadcast %46 : vector<1x40xf32> to vector<4x40xf32>
    %48 = arith.addf %45, %47 : vector<4x40xf32>
    %c1_30 = arith.constant 1 : index
    %c0_31 = arith.constant 0 : index
    %c0_32 = arith.constant 0 : index
    %49 = vector.load %arg8[%c1_30, %c0_31, %c0_32] : memref<2x4x40xf32, #tpu.memory_space<vmem>>, vector<1x4x40xf32>
    %50 = vector.shape_cast %49 : vector<1x4x40xf32> to vector<4x40xf32>
    %51 = vector.shape_cast %48 : vector<4x40xf32> to vector<1x4x40xf32>
    tpu.vector_store %arg8[%c1_30, %c0_31, %c0_32], %51 {strides = array<i32>} : memref<2x4x40xf32, #tpu.memory_space<vmem>>, vector<1x4x40xf32>,
    return
  }
}

</mosaic_0001>

<llo_original>
// kernel: net_forward.13
$region0: #{net_forward.13}
  #allocation0 [shape = 'u32[]', space=smem, size = 0x4, offset = 0x4, fixed_abs, tag = 'smem constant byte address 0x4 - core index']
  #allocation1 [shape = 'u32[144,128]{1,0:T(1,128)}', space=vmem, size = 0x12000, scoped, tag = 'internal scratch']
  %s0 = inlined_call_operand.vmem [shape: f32[128,16], index: 0, kind: input, shape index: {}]
  %s1 = inlined_call_operand.vmem [shape: bf16[16,96], index: 1, kind: input, shape index: {}]
  %s2 = inlined_call_operand.vmem [shape: f32[1,96], index: 2, kind: input, shape index: {}]
  %s3 = inlined_call_operand.vmem [shape: f32[128,96], index: 3, kind: output, shape index: {}]
  %s4 = sld [smem:[#allocation0]]
  $region22: #{net_forward.13} parent=0
    _
  %s6 = ssub.s32 1, %s4
  %s7 = scalar_select 0, %s6, %s4
  // Predicated region
  $region2: #{net_forward.13} parent=0 // pred_check
    _
  $region3: #{net_forward.13} parent=0 // pred_check_branch
    %9 = sbr.rel (0) target = $region5
  $region4: #{net_forward.13} parent=0 // pred_region
    _
  $region5: #{net_forward.13} parent=0 // pred_fallthru
    _
  // Predicated region
  $region6: #{net_forward.13} parent=0 // pred_check
    _
  $region7: #{net_forward.13} parent=0 // pred_check_branch
    %11 = sbr.rel (0) target = $region9
  $region8: #{net_forward.13} parent=0 // pred_region
    _
  $region9: #{net_forward.13} parent=0 // pred_fallthru
    _
  // Predicated region
  $region10: #{net_forward.13} parent=0 // pred_check
    _
  $region11: #{net_forward.13} parent=0 // pred_check_branch
    %13 = sbr.rel (0) target = $region13
  $region12: #{net_forward.13} parent=0 // pred_region
    _
  $region13: #{net_forward.13} parent=0 // pred_fallthru
    _
  %v15 = vld [vmem:[%s0] sm:$0xff]
  %v16 = vld [vmem:[%s0 + $0x8] sm:$0xff]
  %v17 = vld [vmem:[%s0 + $0x10] sm:$0xff]
  %v18 = vld [vmem:[%s0 + $0x18] sm:$0xff]
  %v19 = vld [vmem:[%s0 + $0x20] sm:$0xff]
  %v20 = vld [vmem:[%s0 + $0x28] sm:$0xff]
  %v21 = vld [vmem:[%s0 + $0x30] sm:$0xff]
  %v22 = vld [vmem:[%s0 + $0x38] sm:$0xff]
  %v23 = vld [vmem:[%s0 + $0x40] sm:$0xff]
  %v24 = vld [vmem:[%s0 + $0x48] sm:$0xff]
  %v25 = vld [vmem:[%s0 + $0x50] sm:$0xff]
  %v26 = vld [vmem:[%s0 + $0x58] sm:$0xff]
  %v27 = vld [vmem:[%s0 + $0x60] sm:$0xff]
  %v28 = vld [vmem:[%s0 + $0x68] sm:$0xff]
  %v29 = vld [vmem:[%s0 + $0x70] sm:$0xff]
  %v30 = vld [vmem:[%s0 + $0x78] sm:$0xff]
  %v31 = vpack.c.bf16 %v16, %v15
  %v32 = vpack.c.bf16 %v18, %v17
  %v33 = vpack.c.bf16 %v20, %v19
  %v34 = vpack.c.bf16 %v22, %v21
  %v35 = vpack.c.bf16 %v24, %v23
  %v36 = vpack.c.bf16 %v26, %v25
  %v37 = vpack.c.bf16 %v28, %v27
  %v38 = vpack.c.bf16 %v30, %v29
  %v39 = vld [vmem:[%s1] sm:$0xf]
  %v40 = vld [vmem:[%s1 + $0x4] sm:$0xf]
  %v41 = vld [vmem:[%s2] sm:$0x1]
  %v43 = vlaneseq
  %v44 = vshrl.u32 %v43, 7
  %v45 = vsub.s32 0, %v44
  %v46 = vrot.slane %v41, %v45
  %v50 = vunpack.c.l.b16 %v39
  %v51 = vunpack.c.l.b16 %v40
  %v52 = vpack.c.b16 %v51, %v50
  %vm54 = vcmask 130048
  %v56 = vsel %vm54, %v31, 0
  %v59 = vsel %vm54, %v32, 0
  %v62 = vsel %vm54, %v33, 0
  %v65 = vsel %vm54, %v34, 0
  %v68 = vsel %vm54, %v35, 0
  %v71 = vsel %vm54, %v36, 0
  %v74 = vsel %vm54, %v37, 0
  %v77 = vsel %vm54, %v38, 0
  %79 = vmatprep.subr.bf16.mxu0 0
  %80 = vmatpush1.bf16.msra.mxu0 %v52
  %81 = vmatprep.subr.bf16.mxu0 0
  %82 = vmatpush1.bf16.msra.mxu0 0
  %83 = vmatprep.subr.bf16.mxu0 0
  %84 = vmatpush1.bf16.msra.mxu0 0
  %85 = vmatprep.subr.bf16.mxu0 0
  %86 = vmatpush1.bf16.msra.mxu0 0
  %87 = vmatprep.subr.bf16.mxu0 0
  %88 = vmatpush1.bf16.msra.mxu0 0
  %89 = vmatprep.subr.bf16.mxu0 0
  %90 = vmatpush1.bf16.msra.mxu0 0
  %91 = vmatprep.subr.bf16.mxu0 0
  %92 = vmatpush1.bf16.msra.mxu0 0
  %93 = vmatprep.subr.bf16.mxu0 0
  %94 = vmatpush1.bf16.msra.mxu0 0
  %95 = vmatprep.subr.bf16.mxu0 0
  %96 = vmatpush1.bf16.msra.mxu0 0
  %97 = vmatprep.subr.bf16.mxu0 0
  %98 = vmatpush1.bf16.msra.mxu0 0
  %99 = vmatprep.subr.bf16.mxu0 0
  %100 = vmatpush1.bf16.msra.mxu0 0
  %101 = vmatprep.subr.bf16.mxu0 0
  %102 = vmatpush1.bf16.msra.mxu0 0
  %103 = vmatprep.subr.bf16.mxu0 0
  %104 = vmatpush1.bf16.msra.mxu0 0
  %105 = vmatprep.subr.bf16.mxu0 0
  %106 = vmatpush1.bf16.msra.mxu0 0
  %107 = vmatprep.subr.bf16.mxu0 0
  %108 = vmatpush1.bf16.msra.mxu0 0
  %109 = vmatprep.subr.bf16.mxu0 0
  %110 = vmatpush1.bf16.msra.mxu0 0
  %111 = vmatprep.mubr.bf16.mxu0 0
  %112 = vmatmul.mubr.bf16.gmra.mrb[0].mxu0 %v56
  %v113 = vpop.f32.mrb[0].mxu0
  %v114 = vadd.f32 %v46, %v113
  %v115 = vpop.f32.mrb[0].mxu0
  %v116 = vpop.f32.mrb[0].mxu0
  %v117 = vadd.f32 %v46, %v116
  %v118 = vpop.f32.mrb[0].mxu0
  %119 = vmatprep.mubr.bf16.mxu0 0
  %120 = vmatmul.mubr.bf16.gmra.mrb[0].mxu0 %v59
  %v121 = vpop.f32.mrb[0].mxu0
  %v122 = vadd.f32 %v46, %v121
  %v123 = vpop.f32.mrb[0].mxu0
  %v124 = vpop.f32.mrb[0].mxu0
  %v125 = vadd.f32 %v46, %v124
  %v126 = vpop.f32.mrb[0].mxu0
  %127 = vmatprep.mubr.bf16.mxu0 0
  %128 = vmatmul.mubr.bf16.gmra.mrb[0].mxu0 %v62
  %v129 = vpop.f32.mrb[0].mxu0
  %v130 = vadd.f32 %v46, %v129
  %v131 = vpop.f32.mrb[0].mxu0
  %v132 = vpop.f32.mrb[0].mxu0
  %v133 = vadd.f32 %v46, %v132
  %v134 = vpop.f32.mrb[0].mxu0
  %135 = vmatprep.mubr.bf16.mxu0 0
  %136 = vmatmul.mubr.bf16.gmra.mrb[0].mxu0 %v65
  %v137 = vpop.f32.mrb[0].mxu0
  %v138 = vadd.f32 %v46, %v137
  %v139 = vpop.f32.mrb[0].mxu0
  %v140 = vpop.f32.mrb[0].mxu0
  %v141 = vadd.f32 %v46, %v140
  %v142 = vpop.f32.mrb[0].mxu0
  %143 = vmatprep.mubr.bf16.mxu0 0
  %144 = vmatmul.mubr.bf16.gmra.mrb[0].mxu0 %v68
  %v145 = vpop.f32.mrb[0].mxu0
  %v146 = vadd.f32 %v46, %v145
  %v147 = vpop.f32.mrb[0].mxu0
  %v148 = vpop.f32.mrb[0].mxu0
  %v149 = vadd.f32 %v46, %v148
  %v150 = vpop.f32.mrb[0].mxu0
  %151 = vmatprep.mubr.bf16.mxu0 0
  %152 = vmatmul.mubr.bf16.gmra.mrb[0].mxu0 %v71
  %v153 = vpop.f32.mrb[0].mxu0
  %v154 = vadd.f32 %v46, %v153
  %v155 = vpop.f32.mrb[0].mxu0
  %v156 = vpop.f32.mrb[0].mxu0
  %v157 = vadd.f32 %v46, %v156
  %v158 = vpop.f32.mrb[0].mxu0
  %159 = vmatprep.mubr.bf16.mxu0 0
  %160 = vmatmul.mubr.bf16.gmra.mrb[0].mxu0 %v74
  %v161 = vpop.f32.mrb[0].mxu0
  %v162 = vadd.f32 %v46, %v161
  %v163 = vpop.f32.mrb[0].mxu0
  %v164 = vpop.f32.mrb[0].mxu0
  %v165 = vadd.f32 %v46, %v164
  %v166 = vpop.f32.mrb[0].mxu0
  %167 = vmatprep.mubr.bf16.mxu0 0
  %168 = vmatmul.mubr.bf16.gmra.mrb[0].mxu0 %v77
  %v169 = vpop.f32.mrb[0].mxu0
  %v170 = vadd.f32 %v46, %v169
  %v171 = vpop.f32.mrb[0].mxu0
  %v172 = vpop.f32.mrb[0].mxu0
  %v173 = vadd.f32 %v46, %v172
  %v174 = vpop.f32.mrb[0].mxu0
  %175 = vdwg.mxu0
  %v176 = vxor.u32 %v114, 2147483648
  %v177 = vxor.u32 %v117, 2147483648
  %v178 = vxor.u32 %v122, 2147483648
  %v179 = vxor.u32 %v125, 2147483648
  %v180 = vxor.u32 %v130, 2147483648
  %v181 = vxor.u32 %v133, 2147483648
  %v182 = vxor.u32 %v138, 2147483648
  %v183 = vxor.u32 %v141, 2147483648
  %v184 = vxor.u32 %v146, 2147483648
  %v185 = vxor.u32 %v149, 2147483648
  %v186 = vxor.u32 %v154, 2147483648
  %v187 = vxor.u32 %v157, 2147483648
  %v188 = vxor.u32 %v162, 2147483648
  %v189 = vxor.u32 %v165, 2147483648
  %v190 = vxor.u32 %v170, 2147483648
  %v191 = vxor.u32 %v173, 2147483648
  %v192 = vmul.f32 %v176, 1.442695
  %v193 = vpow.pop %v192
  %v194 = vmul.f32 %v177, 1.442695
  %v195 = vpow.pop %v194
  %v196 = vmul.f32 %v178, 1.442695
  %v197 = vpow.pop %v196
  %v198 = vmul.f32 %v179, 1.442695
  %v199 = vpow.pop %v198
  %v200 = vmul.f32 %v180, 1.442695
  %v201 = vpow.pop %v200
  %v202 = vmul.f32 %v181, 1.442695
  %v203 = vpow.pop %v202
  %v204 = vmul.f32 %v182, 1.442695
  %v205 = vpow.pop %v204
  %v206 = vmul.f32 %v183, 1.442695
  %v207 = vpow.pop %v206
  %v208 = vmul.f32 %v184, 1.442695
  %v209 = vpow.pop %v208
  %v210 = vmul.f32 %v185, 1.442695
  %v211 = vpow.pop %v210
  %v212 = vmul.f32 %v186, 1.442695
  %v213 = vpow.pop %v212
  %v214 = vmul.f32 %v187, 1.442695
  %v215 = vpow.pop %v214
  %v216 = vmul.f32 %v188, 1.442695
  %v217 = vpow.pop %v216
  %v218 = vmul.f32 %v189, 1.442695
  %v219 = vpow.pop %v218
  %v220 = vmul.f32 %v190, 1.442695
  %v221 = vpow.pop %v220
  %v222 = vmul.f32 %v191, 1.442695
  %v223 = vpow.pop %v222
  %v224 = vadd.f32 %v193, 1.0
  %v225 = vadd.f32 %v195, 1.0
  %v226 = vadd.f32 %v197, 1.0
  %v227 = vadd.f32 %v199, 1.0
  %v228 = vadd.f32 %v201, 1.0
  %v229 = vadd.f32 %v203, 1.0
  %v230 = vadd.f32 %v205, 1.0
  %v231 = vadd.f32 %v207, 1.0
  %v232 = vadd.f32 %v209, 1.0
  %v233 = vadd.f32 %v211, 1.0
  %v234 = vadd.f32 %v213, 1.0
  %v235 = vadd.f32 %v215, 1.0
  %v236 = vadd.f32 %v217, 1.0
  %v237 = vadd.f32 %v219, 1.0
  %v238 = vadd.f32 %v221, 1.0
  %v239 = vadd.f32 %v223, 1.0
  %v240 = vrcp.pop %v224
  %v241 = vmul.f32 1.0, %v240
  %v242 = vrcp.pop %v225
  %v243 = vmul.f32 1.0, %v242
  %v244 = vrcp.pop %v226
  %v245 = vmul.f32 1.0, %v244
  %v246 = vrcp.pop %v227
  %v247 = vmul.f32 1.0, %v246
  %v248 = vrcp.pop %v228
  %v249 = vmul.f32 1.0, %v248
  %v250 = vrcp.pop %v229
  %v251 = vmul.f32 1.0, %v250
  %v252 = vrcp.pop %v230
  %v253 = vmul.f32 1.0, %v252
  %v254 = vrcp.pop %v231
  %v255 = vmul.f32 1.0, %v254
  %v256 = vrcp.pop %v232
  %v257 = vmul.f32 1.0, %v256
  %v258 = vrcp.pop %v233
  %v259 = vmul.f32 1.0, %v258
  %v260 = vrcp.pop %v234
  %v261 = vmul.f32 1.0, %v260
  %v262 = vrcp.pop %v235
  %v263 = vmul.f32 1.0, %v262
  %v264 = vrcp.pop %v236
  %v265 = vmul.f32 1.0, %v264
  %v266 = vrcp.pop %v237
  %v267 = vmul.f32 1.0, %v266
  %v268 = vrcp.pop %v238
  %v269 = vmul.f32 1.0, %v268
  %v270 = vrcp.pop %v239
  %v271 = vmul.f32 1.0, %v270
  %v272 = vmul.f32 %v114, %v241
  %v273 = vmul.f32 %v117, %v243
  %v274 = vmul.f32 %v122, %v245
  %v275 = vmul.f32 %v125, %v247
  %v276 = vmul.f32 %v130, %v249
  %v277 = vmul.f32 %v133, %v251
  %v278 = vmul.f32 %v138, %v253
  %v279 = vmul.f32 %v141, %v255
  %v280 = vmul.f32 %v146, %v257
  %v281 = vmul.f32 %v149, %v259
  %v282 = vmul.f32 %v154, %v261
  %v283 = vmul.f32 %v157, %v263
  %v284 = vmul.f32 %v162, %v265
  %v285 = vmul.f32 %v165, %v267
  %v286 = vmul.f32 %v170, %v269
  %v287 = vmul.f32 %v173, %v271
  %vm288 = vcmask 785408
  %289 = vst.msk [vmem:[%s3] sm:$0xff] %vm288, %v272
  %290 = vst.msk [vmem:[%s3 + $0x8] sm:$0xff] %vm288, %v273
  %291 = vst.msk [vmem:[%s3 + $0x10] sm:$0xff] %vm288, %v274
  %292 = vst.msk [vmem:[%s3 + $0x18] sm:$0xff] %vm288, %v275
  %293 = vst.msk [vmem:[%s3 + $0x20] sm:$0xff] %vm288, %v276
  %294 = vst.msk [vmem:[%s3 + $0x28] sm:$0xff] %vm288, %v277
  %295 = vst.msk [vmem:[%s3 + $0x30] sm:$0xff] %vm288, %v278
  %296 = vst.msk [vmem:[%s3 + $0x38] sm:$0xff] %vm288, %v279
  %297 = vst.msk [vmem:[%s3 + $0x40] sm:$0xff] %vm288, %v280
  %298 = vst.msk [vmem:[%s3 + $0x48] sm:$0xff] %vm288, %v281
  %299 = vst.msk [vmem:[%s3 + $0x50] sm:$0xff] %vm288, %v282
  %300 = vst.msk [vmem:[%s3 + $0x58] sm:$0xff] %vm288, %v283
  %301 = vst.msk [vmem:[%s3 + $0x60] sm:$0xff] %vm288, %v284
  %302 = vst.msk [vmem:[%s3 + $0x68] sm:$0xff] %vm288, %v285
  %303 = vst.msk [vmem:[%s3 + $0x70] sm:$0xff] %vm288, %v286
  %304 = vst.msk [vmem:[%s3 + $0x78] sm:$0xff] %vm288, %v287
  // Predicated region
  $region14: #{net_forward.13} parent=0 // pred_check
    _
  $region15: #{net_forward.13} parent=0 // pred_check_branch
    %306 = sbr.rel (0) target = $region17
  $region16: #{net_forward.13} parent=0 // pred_region
    _
  $region17: #{net_forward.13} parent=0 // pred_fallthru
    _
  // Predicated region
  $region18: #{net_forward.13} parent=0 // pred_check
    _
  $region19: #{net_forward.13} parent=0 // pred_check_branch
    %308 = sbr.rel (0) target = $region21
  $region20: #{net_forward.13} parent=0 // pred_region
    _
  $region21: #{net_forward.13} parent=0 // pred_fallthru
    _

// kernel: net_forward.12
$region0: #{net_forward.12}
  #allocation0 [shape = 'u32[]', space=smem, size = 0x4, offset = 0x4, fixed_abs, tag = 'smem constant byte address 0x4 - core index']
  #allocation1 [shape = 'u32[144,128]{1,0:T(1,128)}', space=vmem, size = 0x12000, scoped, tag = 'internal scratch']
  %s0 = inlined_call_operand.vmem [shape: f32[2,64,16], index: 0, kind: input, shape index: {}]
  %s1 = inlined_call_operand.vmem [shape: f32[2,16], index: 1, kind: input, shape index: {}]
  %s2 = inlined_call_operand.vmem [shape: bf16[16,4], index: 2, kind: input, shape index: {}]
  %s3 = inlined_call_operand.vmem [shape: f32[1,4], index: 3, kind: input, shape index: {}]
  %s4 = inlined_call_operand.vmem [shape: bf16[4,16], index: 4, kind: input, shape index: {}]
  %s5 = inlined_call_operand.vmem [shape: f32[1,16], index: 5, kind: input, shape index: {}]
  %s6 = inlined_call_operand.vmem [shape: bf16[16,16], index: 6, kind: input, shape index: {}]
  %s7 = inlined_call_operand.vmem [shape: f32[1,16], index: 7, kind: input, shape index: {}]
  %s8 = inlined_call_operand.vmem [shape: f32[2,64,16], index: 8, kind: input, shape index: {}]
  %s9 = inlined_call_operand.vmem [shape: f32[2,64,16], index: 9, kind: output, shape index: {}]
  %s10 = sld [smem:[#allocation0]]
  $region46: #{net_forward.12} parent=0
    _
  %s12 = ssub.s32 1, %s10
  %s13 = scalar_select 0, %s12, %s10
  // Predicated region
  $region2: #{net_forward.12} parent=0 // pred_check
    _
  $region3: #{net_forward.12} parent=0 // pred_check_branch
    %15 = sbr.rel (0) target = $region5
  $region4: #{net_forward.12} parent=0 // pred_region
    _
  $region5: #{net_forward.12} parent=0 // pred_fallthru
    _
  // Predicated region
  $region6: #{net_forward.12} parent=0 // pred_check
    _
  $region7: #{net_forward.12} parent=0 // pred_check_branch
    %17 = sbr.rel (0) target = $region9
  $region8: #{net_forward.12} parent=0 // pred_region
    _
  $region9: #{net_forward.12} parent=0 // pred_fallthru
    _
  // Predicated region
  $region10: #{net_forward.12} parent=0 // pred_check
    _
  $region11: #{net_forward.12} parent=0 // pred_check_branch
    %19 = sbr.rel (0) target = $region13
  $region12: #{net_forward.12} parent=0 // pred_region
    _
  $region13: #{net_forward.12} parent=0 // pred_fallthru
    _
  // Predicated region
  $region14: #{net_forward.12} parent=0 // pred_check
    _
  $region15: #{net_forward.12} parent=0 // pred_check_branch
    %21 = sbr.rel (0) target = $region17
  $region16: #{net_forward.12} parent=0 // pred_region
    _
  $region17: #{net_forward.12} parent=0 // pred_fallthru
    _
  // Predicated region
  $region18: #{net_forward.12} parent=0 // pred_check
    _
  $region19: #{net_forward.12} parent=0 // pred_check_branch
    %23 = sbr.rel (0) target = $region21
  $region20: #{net_forward.12} parent=0 // pred_region
    _
  $region21: #{net_forward.12} parent=0 // pred_fallthru
    _
  // Predicated region
  $region22: #{net_forward.12} parent=0 // pred_check
    _
  $region23: #{net_forward.12} parent=0 // pred_check_branch
    %25 = sbr.rel (0) target = $region25
  $region24: #{net_forward.12} parent=0 // pred_region
    _
  $region25: #{net_forward.12} parent=0 // pred_fallthru
    _
  // Predicated region
  $region26: #{net_forward.12} parent=0 // pred_check
    _
  $region27: #{net_forward.12} parent=0 // pred_check_branch
    %27 = sbr.rel (0) target = $region29
  $region28: #{net_forward.12} parent=0 // pred_region
    _
  $region29: #{net_forward.12} parent=0 // pred_fallthru
    _
  // Predicated region
  $region30: #{net_forward.12} parent=0 // pred_check
    _
  $region31: #{net_forward.12} parent=0 // pred_check_branch
    %29 = sbr.rel (0) target = $region33
  $region32: #{net_forward.12} parent=0 // pred_region
    _
  $region33: #{net_forward.12} parent=0 // pred_fallthru
    _
  // Predicated region
  $region34: #{net_forward.12} parent=0 // pred_check
    _
  $region35: #{net_forward.12} parent=0 // pred_check_branch
    %31 = sbr.rel (0) target = $region37
  $region36: #{net_forward.12} parent=0 // pred_region
    _
  $region37: #{net_forward.12} parent=0 // pred_fallthru
    _
  %v33 = vld [vmem:[%s1] sm:$0x3]
  %v34 = vpack.c.bf16 %v33, %v33
  %v35 = vld [vmem:[%s2] sm:$0xf]
  %v36 = vld [vmem:[%s2 + $0x4] sm:$0xf]
  %v37 = vld [vmem:[%s3] sm:$0x1]
  %v39 = vlaneseq
  %v40 = vshrl.u32 %v39, 7
  %v41 = vsub.s32 0, %v40
  %v42 = vrot.slane %v37, %v41
  %v46 = vunpack.c.l.b16 %v35
  %v47 = vunpack.c.l.b16 %v36
  %v48 = vpack.c.b16 %v47, %v46
  %vm50 = vcmask 130048
  %v52 = vsel %vm50, %v34, 0
  %54 = vmatprep.subr.bf16.mxu0 0
  %55 = vmatpush1.bf16.msra.mxu0 %v48
  %56 = vmatprep.subr.bf16.mxu0 0
  %57 = vmatpush1.bf16.msra.mxu0 0
  %58 = vmatprep.subr.bf16.mxu0 0
  %59 = vmatpush1.bf16.msra.mxu0 0
  %60 = vmatprep.subr.bf16.mxu0 0
  %61 = vmatpush1.bf16.msra.mxu0 0
  %62 = vmatprep.subr.bf16.mxu0 0
  %63 = vmatpush1.bf16.msra.mxu0 0
  %64 = vmatprep.subr.bf16.mxu0 0
  %65 = vmatpush1.bf16.msra.mxu0 0
  %66 = vmatprep.subr.bf16.mxu0 0
  %67 = vmatpush1.bf16.msra.mxu0 0
  %68 = vmatprep.subr.bf16.mxu0 0
  %69 = vmatpush1.bf16.msra.mxu0 0
  %70 = vmatprep.subr.bf16.mxu0 0
  %71 = vmatpush1.bf16.msra.mxu0 0
  %72 = vmatprep.subr.bf16.mxu0 0
  %73 = vmatpush1.bf16.msra.mxu0 0
  %74 = vmatprep.subr.bf16.mxu0 0
  %75 = vmatpush1.bf16.msra.mxu0 0
  %76 = vmatprep.subr.bf16.mxu0 0
  %77 = vmatpush1.bf16.msra.mxu0 0
  %78 = vmatprep.subr.bf16.mxu0 0
  %79 = vmatpush1.bf16.msra.mxu0 0
  %80 = vmatprep.subr.bf16.mxu0 0
  %81 = vmatpush1.bf16.msra.mxu0 0
  %82 = vmatprep.subr.bf16.mxu0 0
  %83 = vmatpush1.bf16.msra.mxu0 0
  %84 = vmatprep.subr.bf16.mxu0 0
  %85 = vmatpush1.bf16.msra.mxu0 0
  %86 = vmatprep.mubr.bf16.mxu0 0
  %87 = vmatmul.mubr.bf16.gmra.mrb[0].mxu0 %v52
  %v88 = vpop.f32.mrb[0].mxu0
  %v89 = vadd.f32 %v42, %v88
  %v90 = vpop.f32.mrb[0].mxu0
  %v91 = vpop.f32.mrb[0].mxu0
  %v92 = vpop.f32.mrb[0].mxu0
  %93 = vdwg.mxu0
  %v94 = vxor.u32 %v89, 2147483648
  %v95 = vmul.f32 %v94, 1.442695
  %v96 = vpow.pop %v95
  %v97 = vadd.f32 %v96, 1.0
  %v98 = vrcp.pop %v97
  %v99 = vmul.f32 1.0, %v98
  %v100 = vmul.f32 %v89, %v99
  %v101 = vpack.c.bf16 %v100, %v100
  %v102 = vld [vmem:[%s4] sm:$0x3]
  %v103 = vld [vmem:[%s5] sm:$0x1]
  %v105 = vlaneseq
  %v106 = vshrl.u32 %v105, 7
  %v107 = vsub.s32 0, %v106
  %v108 = vrot.slane %v103, %v107
  %vm110 = vcmask 31744
  %v112 = vsel %vm110, %v101, 0
  %vm114 = vcmask 1041408
  %v116 = vsel %vm114, %v102, 0
  %118 = vmatprep.subr.bf16.mxu0 0
  %119 = vmatpush1.bf16.msra.mxu0 %v116
  %120 = vmatprep.subr.bf16.mxu0 0
  %121 = vmatpush1.bf16.msra.mxu0 0
  %122 = vmatprep.subr.bf16.mxu0 0
  %123 = vmatpush1.bf16.msra.mxu0 0
  %124 = vmatprep.subr.bf16.mxu0 0
  %125 = vmatpush1.bf16.msra.mxu0 0
  %126 = vmatprep.subr.bf16.mxu0 0
  %127 = vmatpush1.bf16.msra.mxu0 0
  %128 = vmatprep.subr.bf16.mxu0 0
  %129 = vmatpush1.bf16.msra.mxu0 0
  %130 = vmatprep.subr.bf16.mxu0 0
  %131 = vmatpush1.bf16.msra.mxu0 0
  %132 = vmatprep.subr.bf16.mxu0 0
  %133 = vmatpush1.bf16.msra.mxu0 0
  %134 = vmatprep.subr.bf16.mxu0 0
  %135 = vmatpush1.bf16.msra.mxu0 0
  %136 = vmatprep.subr.bf16.mxu0 0
  %137 = vmatpush1.bf16.msra.mxu0 0
  %138 = vmatprep.subr.bf16.mxu0 0
  %139 = vmatpush1.bf16.msra.mxu0 0
  %140 = vmatprep.subr.bf16.mxu0 0
  %141 = vmatpush1.bf16.msra.mxu0 0
  %142 = vmatprep.subr.bf16.mxu0 0
  %143 = vmatpush1.bf16.msra.mxu0 0
  %144 = vmatprep.subr.bf16.mxu0 0
  %145 = vmatpush1.bf16.msra.mxu0 0
  %146 = vmatprep.subr.bf16.mxu0 0
  %147 = vmatpush1.bf16.msra.mxu0 0
  %148 = vmatprep.subr.bf16.mxu0 0
  %149 = vmatpush1.bf16.msra.mxu0 0
  %150 = vmatprep.mubr.bf16.mxu0 0
  %151 = vmatmul.mubr.bf16.gmra.mrb[0].mxu0 %v112
  %v152 = vpop.f32.mrb[0].mxu0
  %v153 = vadd.f32 %v108, %v152
  %v154 = vpop.f32.mrb[0].mxu0
  %v155 = vpop.f32.mrb[0].mxu0
  %v156 = vpop.f32.mrb[0].mxu0
  %157 = vdwg.mxu0
  %v158 = vxor.u32 %v153, 2147483648
  %v159 = vmul.f32 %v158, 1.442695
  %v160 = vpow.pop %v159
  %v161 = vadd.f32 %v160, 1.0
  %v162 = vrcp.pop %v161
  %v163 = vmul.f32 1.0, %v162
  %v164 = vld [vmem:[%s0] sm:$0xff]
  %v165 = vld [vmem:[%s0 + $0x8] sm:$0xff]
  %v166 = vld [vmem:[%s0 + $0x10] sm:$0xff]
  %v167 = vld [vmem:[%s0 + $0x18] sm:$0xff]
  %v168 = vld [vmem:[%s0 + $0x20] sm:$0xff]
  %v169 = vld [vmem:[%s0 + $0x28] sm:$0xff]
  %v170 = vld [vmem:[%s0 + $0x30] sm:$0xff]
  %v171 = vld [vmem:[%s0 + $0x38] sm:$0xff]
  %v172 = vlaneseq
  %v173 = vshrl.u32 %v172, 7
  %v174 = vsub.s32 0, %v173
  %v175 = vrot.slane %v163, %v174
  %v176 = vmul.f32 %v164, %v175
  %v177 = vmul.f32 %v165, %v175
  %v178 = vmul.f32 %v166, %v175
  %v179 = vmul.f32 %v167, %v175
  %v180 = vmul.f32 %v168, %v175
  %v181 = vmul.f32 %v169, %v175
  %v182 = vmul.f32 %v170, %v175
  %v183 = vmul.f32 %v171, %v175
  %v184 = vpack.c.bf16 %v177, %v176
  %v185 = vpack.c.bf16 %v179, %v178
  %v186 = vpack.c.bf16 %v181, %v180
  %v187 = vpack.c.bf16 %v183, %v182
  %v188 = vld [vmem:[%s6] sm:$0xf]
  %v189 = vld [vmem:[%s6 + $0x4] sm:$0xf]
  %v190 = vld [vmem:[%s7] sm:$0x1]
  %v192 = vlaneseq
  %v193 = vshrl.u32 %v192, 7
  %v194 = vsub.s32 0, %v193
  %v195 = vrot.slane %v190, %v194
  %v199 = vunpack.c.l.b16 %v188
  %v200 = vunpack.c.l.b16 %v189
  %v201 = vpack.c.b16 %v200, %v199
  %v204 = vsel %vm50, %v184, 0
  %v207 = vsel %vm50, %v185, 0
  %v210 = vsel %vm50, %v186, 0
  %v213 = vsel %vm50, %v187, 0
  %215 = vmatprep.subr.bf16.mxu0 0
  %216 = vmatpush1.bf16.msra.mxu0 %v201
  %217 = vmatprep.subr.bf16.mxu0 0
  %218 = vmatpush1.bf16.msra.mxu0 0
  %219 = vmatprep.subr.bf16.mxu0 0
  %220 = vmatpush1.bf16.msra.mxu0 0
  %221 = vmatprep.subr.bf16.mxu0 0
  %222 = vmatpush1.bf16.msra.mxu0 0
  %223 = vmatprep.subr.bf16.mxu0 0
  %224 = vmatpush1.bf16.msra.mxu0 0
  %225 = vmatprep.subr.bf16.mxu0 0
  %226 = vmatpush1.bf16.msra.mxu0 0
  %227 = vmatprep.subr.bf16.mxu0 0
  %228 = vmatpush1.bf16.msra.mxu0 0
  %229 = vmatprep.subr.bf16.mxu0 0
  %230 = vmatpush1.bf16.msra.mxu0 0
  %231 = vmatprep.subr.bf16.mxu0 0
  %232 = vmatpush1.bf16.msra.mxu0 0
  %233 = vmatprep.subr.bf16.mxu0 0
  %234 = vmatpush1.bf16.msra.mxu0 0
  %235 = vmatprep.subr.bf16.mxu0 0
  %236 = vmatpush1.bf16.msra.mxu0 0
  %237 = vmatprep.subr.bf16.mxu0 0
  %238 = vmatpush1.bf16.msra.mxu0 0
  %239 = vmatprep.subr.bf16.mxu0 0
  %240 = vmatpush1.bf16.msra.mxu0 0
  %241 = vmatprep.subr.bf16.mxu0 0
  %242 = vmatpush1.bf16.msra.mxu0 0
  %243 = vmatprep.subr.bf16.mxu0 0
  %244 = vmatpush1.bf16.msra.mxu0 0
  %245 = vmatprep.subr.bf16.mxu0 0
  %246 = vmatpush1.bf16.msra.mxu0 0
  %247 = vmatprep.mubr.bf16.mxu0 0
  %248 = vmatmul.mubr.bf16.gmra.mrb[0].mxu0 %v204
  %v249 = vpop.f32.mrb[0].mxu0
  %v250 = vadd.f32 %v195, %v249
  %v251 = vpop.f32.mrb[0].mxu0
  %v252 = vpop.f32.mrb[0].mxu0
  %v253 = vadd.f32 %v195, %v252
  %v254 = vpop.f32.mrb[0].mxu0
  %255 = vmatprep.mubr.bf16.mxu0 0
  %256 = vmatmul.mubr.bf16.gmra.mrb[0].mxu0 %v207
  %v257 = vpop.f32.mrb[0].mxu0
  %v258 = vadd.f32 %v195, %v257
  %v259 = vpop.f32.mrb[0].mxu0
  %v260 = vpop.f32.mrb[0].mxu0
  %v261 = vadd.f32 %v195, %v260
  %v262 = vpop.f32.mrb[0].mxu0
  %263 = vmatprep.mubr.bf16.mxu0 0
  %264 = vmatmul.mubr.bf16.gmra.mrb[0].mxu0 %v210
  %v265 = vpop.f32.mrb[0].mxu0
  %v266 = vadd.f32 %v195, %v265
  %v267 = vpop.f32.mrb[0].mxu0
  %v268 = vpop.f32.mrb[0].mxu0
  %v269 = vadd.f32 %v195, %v268
  %v270 = vpop.f32.mrb[0].mxu0
  %271 = vmatprep.mubr.bf16.mxu0 0
  %272 = vmatmul.mubr.bf16.gmra.mrb[0].mxu0 %v213
  %v273 = vpop.f32.mrb[0].mxu0
  %v274 = vadd.f32 %v195, %v273
  %v275 = vpop.f32.mrb[0].mxu0
  %v276 = vpop.f32.mrb[0].mxu0
  %v277 = vadd.f32 %v195, %v276
  %v278 = vpop.f32.mrb[0].mxu0
  %279 = vdwg.mxu0
  %v280 = vld [vmem:[%s8] sm:$0xff]
  %v281 = vld [vmem:[%s8 + $0x8] sm:$0xff]
  %v282 = vld [vmem:[%s8 + $0x10] sm:$0xff]
  %v283 = vld [vmem:[%s8 + $0x18] sm:$0xff]
  %v284 = vld [vmem:[%s8 + $0x20] sm:$0xff]
  %v285 = vld [vmem:[%s8 + $0x28] sm:$0xff]
  %v286 = vld [vmem:[%s8 + $0x30] sm:$0xff]
  %v287 = vld [vmem:[%s8 + $0x38] sm:$0xff]
  %v288 = vadd.f32 %v250, %v280
  %v289 = vadd.f32 %v253, %v281
  %v290 = vadd.f32 %v258, %v282
  %v291 = vadd.f32 %v261, %v283
  %v292 = vadd.f32 %v266, %v284
  %v293 = vadd.f32 %v269, %v285
  %v294 = vadd.f32 %v274, %v286
  %v295 = vadd.f32 %v277, %v287
  %296 = vst.msk [vmem:[%s9] sm:$0xff] %vm50, %v288
  %297 = vst.msk [vmem:[%s9 + $0x8] sm:$0xff] %vm50, %v289
  %298 = vst.msk [vmem:[%s9 + $0x10] sm:$0xff] %vm50, %v290
  %299 = vst.msk [vmem:[%s9 + $0x18] sm:$0xff] %vm50, %v291
  %300 = vst.msk [vmem:[%s9 + $0x20] sm:$0xff] %vm50, %v292
  %301 = vst.msk [vmem:[%s9 + $0x28] sm:$0xff] %vm50, %v293
  %302 = vst.msk [vmem:[%s9 + $0x30] sm:$0xff] %vm50, %v294
  %303 = vst.msk [vmem:[%s9 + $0x38] sm:$0xff] %vm50, %v295
  %s304 = scalar_lea.vmem %s0, 64
  %v305 = vld [vmem:[%s304] sm:$0xff]
  %v306 = vld [vmem:[%s304 + $0x8] sm:$0xff]
  %v307 = vld [vmem:[%s304 + $0x10] sm:$0xff]
  %v308 = vld [vmem:[%s304 + $0x18] sm:$0xff]
  %v309 = vld [vmem:[%s304 + $0x20] sm:$0xff]
  %v310 = vld [vmem:[%s304 + $0x28] sm:$0xff]
  %v311 = vld [vmem:[%s304 + $0x30] sm:$0xff]
  %v312 = vld [vmem:[%s304 + $0x38] sm:$0xff]
  %v313 = vlaneseq
  %v314 = vshrl.u32 %v313, 7
  %v315 = vsub.s32 1, %v314
  %v316 = vrot.slane %v163, %v315
  %v317 = vmul.f32 %v305, %v316
  %v318 = vmul.f32 %v306, %v316
  %v319 = vmul.f32 %v307, %v316
  %v320 = vmul.f32 %v308, %v316
  %v321 = vmul.f32 %v309, %v316
  %v322 = vmul.f32 %v310, %v316
  %v323 = vmul.f32 %v311, %v316
  %v324 = vmul.f32 %v312, %v316
  %v325 = vpack.c.bf16 %v318, %v317
  %v326 = vpack.c.bf16 %v320, %v319
  %v327 = vpack.c.bf16 %v322, %v321
  %v328 = vpack.c.bf16 %v324, %v323
  %v329 = vld [vmem:[%s6] sm:$0xf]
  %v330 = vld [vmem:[%s6 + $0x4] sm:$0xf]
  %v331 = vld [vmem:[%s7] sm:$0x1]
  %v333 = vlaneseq
  %v334 = vshrl.u32 %v333, 7
  %v335 = vsub.s32 0, %v334
  %v336 = vrot.slane %v331, %v335
  %v340 = vunpack.c.l.b16 %v329
  %v341 = vunpack.c.l.b16 %v330
  %v342 = vpack.c.b16 %v341, %v340
  %v345 = vsel %vm50, %v325, 0
  %v348 = vsel %vm50, %v326, 0
  %v351 = vsel %vm50, %v327, 0
  %v354 = vsel %vm50, %v328, 0
  %356 = vmatprep.subr.bf16.mxu0 0
  %357 = vmatpush1.bf16.msra.mxu0 %v342
  %358 = vmatprep.subr.bf16.mxu0 0
  %359 = vmatpush1.bf16.msra.mxu0 0
  %360 = vmatprep.subr.bf16.mxu0 0
  %361 = vmatpush1.bf16.msra.mxu0 0
  %362 = vmatprep.subr.bf16.mxu0 0
  %363 = vmatpush1.bf16.msra.mxu0 0
  %364 = vmatprep.subr.bf16.mxu0 0
  %365 = vmatpush1.bf16.msra.mxu0 0
  %366 = vmatprep.subr.bf16.mxu0 0
  %367 = vmatpush1.bf16.msra.mxu0 0
  %368 = vmatprep.subr.bf16.mxu0 0
  %369 = vmatpush1.bf16.msra.mxu0 0
  %370 = vmatprep.subr.bf16.mxu0 0
  %371 = vmatpush1.bf16.msra.mxu0 0
  %372 = vmatprep.subr.bf16.mxu0 0
  %373 = vmatpush1.bf16.msra.mxu0 0
  %374 = vmatprep.subr.bf16.mxu0 0
  %375 = vmatpush1.bf16.msra.mxu0 0
  %376 = vmatprep.subr.bf16.mxu0 0
  %377 = vmatpush1.bf16.msra.mxu0 0
  %378 = vmatprep.subr.bf16.mxu0 0
  %379 = vmatpush1.bf16.msra.mxu0 0
  %380 = vmatprep.subr.bf16.mxu0 0
  %381 = vmatpush1.bf16.msra.mxu0 0
  %382 = vmatprep.subr.bf16.mxu0 0
  %383 = vmatpush1.bf16.msra.mxu0 0
  %384 = vmatprep.subr.bf16.mxu0 0
  %385 = vmatpush1.bf16.msra.mxu0 0
  %386 = vmatprep.subr.bf16.mxu0 0
  %387 = vmatpush1.bf16.msra.mxu0 0
  %388 = vmatprep.mubr.bf16.mxu0 0
  %389 = vmatmul.mubr.bf16.gmra.mrb[0].mxu0 %v345
  %v390 = vpop.f32.mrb[0].mxu0
  %v391 = vadd.f32 %v336, %v390
  %v392 = vpop.f32.mrb[0].mxu0
  %v393 = vpop.f32.mrb[0].mxu0
  %v394 = vadd.f32 %v336, %v393
  %v395 = vpop.f32.mrb[0].mxu0
  %396 = vmatprep.mubr.bf16.mxu0 0
  %397 = vmatmul.mubr.bf16.gmra.mrb[0].mxu0 %v348
  %v398 = vpop.f32.mrb[0].mxu0
  %v399 = vadd.f32 %v336, %v398
  %v400 = vpop.f32.mrb[0].mxu0
  %v401 = vpop.f32.mrb[0].mxu0
  %v402 = vadd.f32 %v336, %v401
  %v403 = vpop.f32.mrb[0].mxu0
  %404 = vmatprep.mubr.bf16.mxu0 0
  %405 = vmatmul.mubr.bf16.gmra.mrb[0].mxu0 %v351
  %v406 = vpop.f32.mrb[0].mxu0
  %v407 = vadd.f32 %v336, %v406
  %v408 = vpop.f32.mrb[0].mxu0
  %v409 = vpop.f32.mrb[0].mxu0
  %v410 = vadd.f32 %v336, %v409
  %v411 = vpop.f32.mrb[0].mxu0
  %412 = vmatprep.mubr.bf16.mxu0 0
  %413 = vmatmul.mubr.bf16.gmra.mrb[0].mxu0 %v354
  %v414 = vpop.f32.mrb[0].mxu0
  %v415 = vadd.f32 %v336, %v414
  %v416 = vpop.f32.mrb[0].mxu0
  %v417 = vpop.f32.mrb[0].mxu0
  %v418 = vadd.f32 %v336, %v417
  %v419 = vpop.f32.mrb[0].mxu0
  %420 = vdwg.mxu0
  %s421 = scalar_lea.vmem %s8, 64
  %v422 = vld [vmem:[%s421] sm:$0xff]
  %v423 = vld [vmem:[%s421 + $0x8] sm:$0xff]
  %v424 = vld [vmem:[%s421 + $0x10] sm:$0xff]
  %v425 = vld [vmem:[%s421 + $0x18] sm:$0xff]
  %v426 = vld [vmem:[%s421 + $0x20] sm:$0xff]
  %v427 = vld [vmem:[%s421 + $0x28] sm:$0xff]
  %v428 = vld [vmem:[%s421 + $0x30] sm:$0xff]
  %v429 = vld [vmem:[%s421 + $0x38] sm:$0xff]
  %v430 = vadd.f32 %v391, %v422
  %v431 = vadd.f32 %v394, %v423
  %v432 = vadd.f32 %v399, %v424
  %v433 = vadd.f32 %v402, %v425
  %v434 = vadd.f32 %v407, %v426
  %v435 = vadd.f32 %v410, %v427
  %v436 = vadd.f32 %v415, %v428
  %v437 = vadd.f32 %v418, %v429
  %s438 = scalar_lea.vmem %s9, 64
  %439 = vst.msk [vmem:[%s438] sm:$0xff] %vm50, %v430
  %440 = vst.msk [vmem:[%s438 + $0x8] sm:$0xff] %vm50, %v431
  %441 = vst.msk [vmem:[%s438 + $0x10] sm:$0xff] %vm50, %v432
  %442 = vst.msk [vmem:[%s438 + $0x18] sm:$0xff] %vm50, %v433
  %443 = vst.msk [vmem:[%s438 + $0x20] sm:$0xff] %vm50, %v434
  %444 = vst.msk [vmem:[%s438 + $0x28] sm:$0xff] %vm50, %v435
  %445 = vst.msk [vmem:[%s438 + $0x30] sm:$0xff] %vm50, %v436
  %446 = vst.msk [vmem:[%s438 + $0x38] sm:$0xff] %vm50, %v437
  // Predicated region
  $region38: #{net_forward.12} parent=0 // pred_check
    _
  $region39: #{net_forward.12} parent=0 // pred_check_branch
    %448 = sbr.rel (0) target = $region41
  $region40: #{net_forward.12} parent=0 // pred_region
    _
  $region41: #{net_forward.12} parent=0 // pred_fallthru
    _
  // Predicated region
  $region42: #{net_forward.12} parent=0 // pred_check
    _
  $region43: #{net_forward.12} parent=0 // pred_check_branch
    %450 = sbr.rel (0) target = $region45
  $region44: #{net_forward.12} parent=0 // pred_region
    _
  $region45: #{net_forward.12} parent=0 // pred_fallthru
    _

// kernel: net_forward.11
$region0: #{net_forward.11}
  #allocation0 [shape = 'u32[]', space=smem, size = 0x4, offset = 0x4, fixed_abs, tag = 'smem constant byte address 0x4 - core index']
  #allocation1 [shape = 'u32[144,128]{1,0:T(1,128)}', space=vmem, size = 0x12000, scoped, tag = 'internal scratch']
  %s0 = inlined_call_operand.vmem [shape: f32[1,2,10,10,16], index: 0, kind: input, shape index: {}]
  %s1 = inlined_call_operand.vmem [shape: f32[9,1,16], index: 1, kind: input, shape index: {}]
  %s2 = inlined_call_operand.vmem [shape: f32[1,16], index: 2, kind: input, shape index: {}]
  %s3 = inlined_call_operand.vmem [shape: f32[2,8,8,16], index: 3, kind: output, shape index: {0}]
  %s4 = inlined_call_operand.vmem [shape: f32[2,16], index: 4, kind: output, shape index: {1}]
  %5 = xla_tuple %s3, %s4
  %s6 = sld [smem:[#allocation0]]
  $region30: #{net_forward.11} parent=0
    _
  %s8 = ssub.s32 1, %s6
  %s9 = scalar_select 0, %s8, %s6
  // Predicated region
  $region2: #{net_forward.11} parent=0 // pred_check
    _
  $region3: #{net_forward.11} parent=0 // pred_check_branch
    %11 = sbr.rel (0) target = $region5
  $region4: #{net_forward.11} parent=0 // pred_region
    _
  $region5: #{net_forward.11} parent=0 // pred_fallthru
    _
  // Predicated region
  $region6: #{net_forward.11} parent=0 // pred_check
    _
  $region7: #{net_forward.11} parent=0 // pred_check_branch
    %13 = sbr.rel (0) target = $region9
  $region8: #{net_forward.11} parent=0 // pred_region
    _
  $region9: #{net_forward.11} parent=0 // pred_fallthru
    _
  // Predicated region
  $region10: #{net_forward.11} parent=0 // pred_check
    _
  $region11: #{net_forward.11} parent=0 // pred_check_branch
    %15 = sbr.rel (0) target = $region13
  $region12: #{net_forward.11} parent=0 // pred_region
    _
  $region13: #{net_forward.11} parent=0 // pred_fallthru
    _
  %v16 = vld [vmem:[%s0] sm:$0xff]
  %v17 = vld [vmem:[%s0 + $0x10] sm:$0xff]
  %v18 = vld [vmem:[%s0 + $0x20] sm:$0xff]
  %v19 = vld [vmem:[%s0 + $0x30] sm:$0xff]
  %v20 = vld [vmem:[%s0 + $0x40] sm:$0xff]
  %v21 = vld [vmem:[%s0 + $0x50] sm:$0xff]
  %v22 = vld [vmem:[%s0 + $0x60] sm:$0xff]
  %v23 = vld [vmem:[%s0 + $0x70] sm:$0xff]
  %v24 = vld [vmem:[%s0 + $0xa0] sm:$0xff]
  %v25 = vld [vmem:[%s0 + $0xb0] sm:$0xff]
  %v26 = vld [vmem:[%s0 + $0xc0] sm:$0xff]
  %v27 = vld [vmem:[%s0 + $0xd0] sm:$0xff]
  %v28 = vld [vmem:[%s0 + $0xe0] sm:$0xff]
  %v29 = vld [vmem:[%s0 + $0xf0] sm:$0xff]
  %v30 = vld [vmem:[%s0 + $0x100] sm:$0xff]
  %v31 = vld [vmem:[%s0 + $0x110] sm:$0xff]
  %v32 = vld [vmem:[%s1] sm:$0x1]
  %v34 = vlaneseq
  %v35 = vshrl.u32 %v34, 7
  %v36 = vsub.s32 0, %v35
  %v37 = vrot.slane %v32, %v36
  %v39 = vmul.f32 %v16, %v37
  %v40 = vmul.f32 %v17, %v37
  %v41 = vmul.f32 %v18, %v37
  %v42 = vmul.f32 %v19, %v37
  %v43 = vmul.f32 %v20, %v37
  %v44 = vmul.f32 %v21, %v37
  %v45 = vmul.f32 %v22, %v37
  %v46 = vmul.f32 %v23, %v37
  %v47 = vmul.f32 %v24, %v37
  %v48 = vmul.f32 %v25, %v37
  %v49 = vmul.f32 %v26, %v37
  %v50 = vmul.f32 %v27, %v37
  %v51 = vmul.f32 %v28, %v37
  %v52 = vmul.f32 %v29, %v37
  %v53 = vmul.f32 %v30, %v37
  %v54 = vmul.f32 %v31, %v37
  %v55 = vld [vmem:[%s0 + $0x1] sm:$0xff]
  %v56 = vld [vmem:[%s0 + $0x11] sm:$0xff]
  %v57 = vld [vmem:[%s0 + $0x21] sm:$0xff]
  %v58 = vld [vmem:[%s0 + $0x31] sm:$0xff]
  %v59 = vld [vmem:[%s0 + $0x41] sm:$0xff]
  %v60 = vld [vmem:[%s0 + $0x51] sm:$0xff]
  %v61 = vld [vmem:[%s0 + $0x61] sm:$0xff]
  %v62 = vld [vmem:[%s0 + $0x71] sm:$0xff]
  %v63 = vld [vmem:[%s0 + $0xa1] sm:$0xff]
  %v64 = vld [vmem:[%s0 + $0xb1] sm:$0xff]
  %v65 = vld [vmem:[%s0 + $0xc1] sm:$0xff]
  %v66 = vld [vmem:[%s0 + $0xd1] sm:$0xff]
  %v67 = vld [vmem:[%s0 + $0xe1] sm:$0xff]
  %v68 = vld [vmem:[%s0 + $0xf1] sm:$0xff]
  %v69 = vld [vmem:[%s0 + $0x101] sm:$0xff]
  %v70 = vld [vmem:[%s0 + $0x111] sm:$0xff]
  %s71 = scalar_lea.vmem %s1, 1
  %v72 = vld [vmem:[%s71] sm:$0x1]
  %v74 = vlaneseq
  %v75 = vshrl.u32 %v74, 7
  %v76 = vsub.s32 0, %v75
  %v77 = vrot.slane %v72, %v76
  %v79 = vmul.f32 %v55, %v77
  %v80 = vmul.f32 %v56, %v77
  %v81 = vmul.f32 %v57, %v77
  %v82 = vmul.f32 %v58, %v77
  %v83 = vmul.f32 %v59, %v77
  %v84 = vmul.f32 %v60, %v77
  %v85 = vmul.f32 %v61, %v77
  %v86 = vmul.f32 %v62, %v77
  %v87 = vmul.f32 %v63, %v77
  %v88 = vmul.f32 %v64, %v77
  %v89 = vmul.f32 %v65, %v77
  %v90 = vmul.f32 %v66, %v77
  %v91 = vmul.f32 %v67, %v77
  %v92 = vmul.f32 %v68, %v77
  %v93 = vmul.f32 %v69, %v77
  %v94 = vmul.f32 %v70, %v77
  %v95 = vadd.f32 %v39, %v79
  %v96 = vadd.f32 %v40, %v80
  %v97 = vadd.f32 %v41, %v81
  %v98 = vadd.f32 %v42, %v82
  %v99 = vadd.f32 %v43, %v83
  %v100 = vadd.f32 %v44, %v84
  %v101 = vadd.f32 %v45, %v85
  %v102 = vadd.f32 %v46, %v86
  %v103 = vadd.f32 %v47, %v87
  %v104 = vadd.f32 %v48, %v88
  %v105 = vadd.f32 %v49, %v89
  %v106 = vadd.f32 %v50, %v90
  %v107 = vadd.f32 %v51, %v91
  %v108 = vadd.f32 %v52, %v92
  %v109 = vadd.f32 %v53, %v93
  %v110 = vadd.f32 %v54, %v94
  %v111 = vld [vmem:[%s0 + $0x2] sm:$0xff]
  %v112 = vld [vmem:[%s0 + $0x12] sm:$0xff]
  %v113 = vld [vmem:[%s0 + $0x22] sm:$0xff]
  %v114 = vld [vmem:[%s0 + $0x32] sm:$0xff]
  %v115 = vld [vmem:[%s0 + $0x42] sm:$0xff]
  %v116 = vld [vmem:[%s0 + $0x52] sm:$0xff]
  %v117 = vld [vmem:[%s0 + $0x62] sm:$0xff]
  %v118 = vld [vmem:[%s0 + $0x72] sm:$0xff]
  %v119 = vld [vmem:[%s0 + $0xa2] sm:$0xff]
  %v120 = vld [vmem:[%s0 + $0xb2] sm:$0xff]
  %v121 = vld [vmem:[%s0 + $0xc2] sm:$0xff]
  %v122 = vld [vmem:[%s0 + $0xd2] sm:$0xff]
  %v123 = vld [vmem:[%s0 + $0xe2] sm:$0xff]
  %v124 = vld [vmem:[%s0 + $0xf2] sm:$0xff]
  %v125 = vld [vmem:[%s0 + $0x102] sm:$0xff]
  %v126 = vld [vmem:[%s0 + $0x112] sm:$0xff]
  %s127 = scalar_lea.vmem %s1, 2
  %v128 = vld [vmem:[%s127] sm:$0x1]
  %v130 = vlaneseq
  %v131 = vshrl.u32 %v130, 7
  %v132 = vsub.s32 0, %v131
  %v133 = vrot.slane %v128, %v132
  %v135 = vmul.f32 %v111, %v133
  %v136 = vmul.f32 %v112, %v133
  %v137 = vmul.f32 %v113, %v133
  %v138 = vmul.f32 %v114, %v133
  %v139 = vmul.f32 %v115, %v133
  %v140 = vmul.f32 %v116, %v133
  %v141 = vmul.f32 %v117, %v133
  %v142 = vmul.f32 %v118, %v133
  %v143 = vmul.f32 %v119, %v133
  %v144 = vmul.f32 %v120, %v133
  %v145 = vmul.f32 %v121, %v133
  %v146 = vmul.f32 %v122, %v133
  %v147 = vmul.f32 %v123, %v133
  %v148 = vmul.f32 %v124, %v133
  %v149 = vmul.f32 %v125, %v133
  %v150 = vmul.f32 %v126, %v133
  %v151 = vadd.f32 %v95, %v135
  %v152 = vadd.f32 %v96, %v136
  %v153 = vadd.f32 %v97, %v137
  %v154 = vadd.f32 %v98, %v138
  %v155 = vadd.f32 %v99, %v139
  %v156 = vadd.f32 %v100, %v140
  %v157 = vadd.f32 %v101, %v141
  %v158 = vadd.f32 %v102, %v142
  %v159 = vadd.f32 %v103, %v143
  %v160 = vadd.f32 %v104, %v144
  %v161 = vadd.f32 %v105, %v145
  %v162 = vadd.f32 %v106, %v146
  %v163 = vadd.f32 %v107, %v147
  %v164 = vadd.f32 %v108, %v148
  %v165 = vadd.f32 %v109, %v149
  %v166 = vadd.f32 %v110, %v150
  %s167 = scalar_lea.vmem %s0, 16
  %v168 = vld [vmem:[%s167] sm:$0xff]
  %v169 = vld [vmem:[%s167 + $0x10] sm:$0xff]
  %v170 = vld [vmem:[%s167 + $0x20] sm:$0xff]
  %v171 = vld [vmem:[%s167 + $0x30] sm:$0xff]
  %v172 = vld [vmem:[%s167 + $0x40] sm:$0xff]
  %v173 = vld [vmem:[%s167 + $0x50] sm:$0xff]
  %v174 = vld [vmem:[%s167 + $0x60] sm:$0xff]
  %v175 = vld [vmem:[%s167 + $0x70] sm:$0xff]
  %v176 = vld [vmem:[%s167 + $0xa0] sm:$0xff]
  %v177 = vld [vmem:[%s167 + $0xb0] sm:$0xff]
  %v178 = vld [vmem:[%s167 + $0xc0] sm:$0xff]
  %v179 = vld [vmem:[%s167 + $0xd0] sm:$0xff]
  %v180 = vld [vmem:[%s167 + $0xe0] sm:$0xff]
  %v181 = vld [vmem:[%s167 + $0xf0] sm:$0xff]
  %v182 = vld [vmem:[%s167 + $0x100] sm:$0xff]
  %v183 = vld [vmem:[%s167 + $0x110] sm:$0xff]
  %s184 = scalar_lea.vmem %s1, 3
  %v185 = vld [vmem:[%s184] sm:$0x1]
  %v187 = vlaneseq
  %v188 = vshrl.u32 %v187, 7
  %v189 = vsub.s32 0, %v188
  %v190 = vrot.slane %v185, %v189
  %v192 = vmul.f32 %v168, %v190
  %v193 = vmul.f32 %v169, %v190
  %v194 = vmul.f32 %v170, %v190
  %v195 = vmul.f32 %v171, %v190
  %v196 = vmul.f32 %v172, %v190
  %v197 = vmul.f32 %v173, %v190
  %v198 = vmul.f32 %v174, %v190
  %v199 = vmul.f32 %v175, %v190
  %v200 = vmul.f32 %v176, %v190
  %v201 = vmul.f32 %v177, %v190
  %v202 = vmul.f32 %v178, %v190
  %v203 = vmul.f32 %v179, %v190
  %v204 = vmul.f32 %v180, %v190
  %v205 = vmul.f32 %v181, %v190
  %v206 = vmul.f32 %v182, %v190
  %v207 = vmul.f32 %v183, %v190
  %v208 = vadd.f32 %v151, %v192
  %v209 = vadd.f32 %v152, %v193
  %v210 = vadd.f32 %v153, %v194
  %v211 = vadd.f32 %v154, %v195
  %v212 = vadd.f32 %v155, %v196
  %v213 = vadd.f32 %v156, %v197
  %v214 = vadd.f32 %v157, %v198
  %v215 = vadd.f32 %v158, %v199
  %v216 = vadd.f32 %v159, %v200
  %v217 = vadd.f32 %v160, %v201
  %v218 = vadd.f32 %v161, %v202
  %v219 = vadd.f32 %v162, %v203
  %v220 = vadd.f32 %v163, %v204
  %v221 = vadd.f32 %v164, %v205
  %v222 = vadd.f32 %v165, %v206
  %v223 = vadd.f32 %v166, %v207
  %v224 = vld [vmem:[%s167 + $0x1] sm:$0xff]
  %v225 = vld [vmem:[%s167 + $0x11] sm:$0xff]
  %v226 = vld [vmem:[%s167 + $0x21] sm:$0xff]
  %v227 = vld [vmem:[%s167 + $0x31] sm:$0xff]
  %v228 = vld [vmem:[%s167 + $0x41] sm:$0xff]
  %v229 = vld [vmem:[%s167 + $0x51] sm:$0xff]
  %v230 = vld [vmem:[%s167 + $0x61] sm:$0xff]
  %v231 = vld [vmem:[%s167 + $0x71] sm:$0xff]
  %v232 = vld [vmem:[%s167 + $0xa1] sm:$0xff]
  %v233 = vld [vmem:[%s167 + $0xb1] sm:$0xff]
  %v234 = vld [vmem:[%s167 + $0xc1] sm:$0xff]
  %v235 = vld [vmem:[%s167 + $0xd1] sm:$0xff]
  %v236 = vld [vmem:[%s167 + $0xe1] sm:$0xff]
  %v237 = vld [vmem:[%s167 + $0xf1] sm:$0xff]
  %v238 = vld [vmem:[%s167 + $0x101] sm:$0xff]
  %v239 = vld [vmem:[%s167 + $0x111] sm:$0xff]
  %s240 = scalar_lea.vmem %s1, 4
  %v241 = vld [vmem:[%s240] sm:$0x1]
  %v243 = vlaneseq
  %v244 = vshrl.u32 %v243, 7
  %v245 = vsub.s32 0, %v244
  %v246 = vrot.slane %v241, %v245
  %v248 = vmul.f32 %v224, %v246
  %v249 = vmul.f32 %v225, %v246
  %v250 = vmul.f32 %v226, %v246
  %v251 = vmul.f32 %v227, %v246
  %v252 = vmul.f32 %v228, %v246
  %v253 = vmul.f32 %v229, %v246
  %v254 = vmul.f32 %v230, %v246
  %v255 = vmul.f32 %v231, %v246
  %v256 = vmul.f32 %v232, %v246
  %v257 = vmul.f32 %v233, %v246
  %v258 = vmul.f32 %v234, %v246
  %v259 = vmul.f32 %v235, %v246
  %v260 = vmul.f32 %v236, %v246
  %v261 = vmul.f32 %v237, %v246
  %v262 = vmul.f32 %v238, %v246
  %v263 = vmul.f32 %v239, %v246
  %v264 = vadd.f32 %v208, %v248
  %v265 = vadd.f32 %v209, %v249
  %v266 = vadd.f32 %v210, %v250
  %v267 = vadd.f32 %v211, %v251
  %v268 = vadd.f32 %v212, %v252
  %v269 = vadd.f32 %v213, %v253
  %v270 = vadd.f32 %v214, %v254
  %v271 = vadd.f32 %v215, %v255
  %v272 = vadd.f32 %v216, %v256
  %v273 = vadd.f32 %v217, %v257
  %v274 = vadd.f32 %v218, %v258
  %v275 = vadd.f32 %v219, %v259
  %v276 = vadd.f32 %v220, %v260
  %v277 = vadd.f32 %v221, %v261
  %v278 = vadd.f32 %v222, %v262
  %v279 = vadd.f32 %v223, %v263
  %v280 = vld [vmem:[%s167 + $0x2] sm:$0xff]
  %v281 = vld [vmem:[%s167 + $0x12] sm:$0xff]
  %v282 = vld [vmem:[%s167 + $0x22] sm:$0xff]
  %v283 = vld [vmem:[%s167 + $0x32] sm:$0xff]
  %v284 = vld [vmem:[%s167 + $0x42] sm:$0xff]
  %v285 = vld [vmem:[%s167 + $0x52] sm:$0xff]
  %v286 = vld [vmem:[%s167 + $0x62] sm:$0xff]
  %v287 = vld [vmem:[%s167 + $0x72] sm:$0xff]
  %v288 = vld [vmem:[%s167 + $0xa2] sm:$0xff]
  %v289 = vld [vmem:[%s167 + $0xb2] sm:$0xff]
  %v290 = vld [vmem:[%s167 + $0xc2] sm:$0xff]
  %v291 = vld [vmem:[%s167 + $0xd2] sm:$0xff]
  %v292 = vld [vmem:[%s167 + $0xe2] sm:$0xff]
  %v293 = vld [vmem:[%s167 + $0xf2] sm:$0xff]
  %v294 = vld [vmem:[%s167 + $0x102] sm:$0xff]
  %v295 = vld [vmem:[%s167 + $0x112] sm:$0xff]
  %s296 = scalar_lea.vmem %s1, 5
  %v297 = vld [vmem:[%s296] sm:$0x1]
  %v299 = vlaneseq
  %v300 = vshrl.u32 %v299, 7
  %v301 = vsub.s32 0, %v300
  %v302 = vrot.slane %v297, %v301
  %v304 = vmul.f32 %v280, %v302
  %v305 = vmul.f32 %v281, %v302
  %v306 = vmul.f32 %v282, %v302
  %v307 = vmul.f32 %v283, %v302
  %v308 = vmul.f32 %v284, %v302
  %v309 = vmul.f32 %v285, %v302
  %v310 = vmul.f32 %v286, %v302
  %v311 = vmul.f32 %v287, %v302
  %v312 = vmul.f32 %v288, %v302
  %v313 = vmul.f32 %v289, %v302
  %v314 = vmul.f32 %v290, %v302
  %v315 = vmul.f32 %v291, %v302
  %v316 = vmul.f32 %v292, %v302
  %v317 = vmul.f32 %v293, %v302
  %v318 = vmul.f32 %v294, %v302
  %v319 = vmul.f32 %v295, %v302
  %v320 = vadd.f32 %v264, %v304
  %v321 = vadd.f32 %v265, %v305
  %v322 = vadd.f32 %v266, %v306
  %v323 = vadd.f32 %v267, %v307
  %v324 = vadd.f32 %v268, %v308
  %v325 = vadd.f32 %v269, %v309
  %v326 = vadd.f32 %v270, %v310
  %v327 = vadd.f32 %v271, %v311
  %v328 = vadd.f32 %v272, %v312
  %v329 = vadd.f32 %v273, %v313
  %v330 = vadd.f32 %v274, %v314
  %v331 = vadd.f32 %v275, %v315
  %v332 = vadd.f32 %v276, %v316
  %v333 = vadd.f32 %v277, %v317
  %v334 = vadd.f32 %v278, %v318
  %v335 = vadd.f32 %v279, %v319
  %s336 = scalar_lea.vmem %s0, 32
  %v337 = vld [vmem:[%s336] sm:$0xff]
  %v338 = vld [vmem:[%s336 + $0x10] sm:$0xff]
  %v339 = vld [vmem:[%s336 + $0x20] sm:$0xff]
  %v340 = vld [vmem:[%s336 + $0x30] sm:$0xff]
  %v341 = vld [vmem:[%s336 + $0x40] sm:$0xff]
  %v342 = vld [vmem:[%s336 + $0x50] sm:$0xff]
  %v343 = vld [vmem:[%s336 + $0x60] sm:$0xff]
  %v344 = vld [vmem:[%s336 + $0x70] sm:$0xff]
  %v345 = vld [vmem:[%s336 + $0xa0] sm:$0xff]
  %v346 = vld [vmem:[%s336 + $0xb0] sm:$0xff]
  %v347 = vld [vmem:[%s336 + $0xc0] sm:$0xff]
  %v348 = vld [vmem:[%s336 + $0xd0] sm:$0xff]
  %v349 = vld [vmem:[%s336 + $0xe0] sm:$0xff]
  %v350 = vld [vmem:[%s336 + $0xf0] sm:$0xff]
  %v351 = vld [vmem:[%s336 + $0x100] sm:$0xff]
  %v352 = vld [vmem:[%s336 + $0x110] sm:$0xff]
  %s353 = scalar_lea.vmem %s1, 6
  %v354 = vld [vmem:[%s353] sm:$0x1]
  %v356 = vlaneseq
  %v357 = vshrl.u32 %v356, 7
  %v358 = vsub.s32 0, %v357
  %v359 = vrot.slane %v354, %v358
  %v361 = vmul.f32 %v337, %v359
  %v362 = vmul.f32 %v338, %v359
  %v363 = vmul.f32 %v339, %v359
  %v364 = vmul.f32 %v340, %v359
  %v365 = vmul.f32 %v341, %v359
  %v366 = vmul.f32 %v342, %v359
  %v367 = vmul.f32 %v343, %v359
  %v368 = vmul.f32 %v344, %v359
  %v369 = vmul.f32 %v345, %v359
  %v370 = vmul.f32 %v346, %v359
  %v371 = vmul.f32 %v347, %v359
  %v372 = vmul.f32 %v348, %v359
  %v373 = vmul.f32 %v349, %v359
  %v374 = vmul.f32 %v350, %v359
  %v375 = vmul.f32 %v351, %v359
  %v376 = vmul.f32 %v352, %v359
  %v377 = vadd.f32 %v320, %v361
  %v378 = vadd.f32 %v321, %v362
  %v379 = vadd.f32 %v322, %v363
  %v380 = vadd.f32 %v323, %v364
  %v381 = vadd.f32 %v324, %v365
  %v382 = vadd.f32 %v325, %v366
  %v383 = vadd.f32 %v326, %v367
  %v384 = vadd.f32 %v327, %v368
  %v385 = vadd.f32 %v328, %v369
  %v386 = vadd.f32 %v329, %v370
  %v387 = vadd.f32 %v330, %v371
  %v388 = vadd.f32 %v331, %v372
  %v389 = vadd.f32 %v332, %v373
  %v390 = vadd.f32 %v333, %v374
  %v391 = vadd.f32 %v334, %v375
  %v392 = vadd.f32 %v335, %v376
  %v393 = vld [vmem:[%s336 + $0x1] sm:$0xff]
  %v394 = vld [vmem:[%s336 + $0x11] sm:$0xff]
  %v395 = vld [vmem:[%s336 + $0x21] sm:$0xff]
  %v396 = vld [vmem:[%s336 + $0x31] sm:$0xff]
  %v397 = vld [vmem:[%s336 + $0x41] sm:$0xff]
  %v398 = vld [vmem:[%s336 + $0x51] sm:$0xff]
  %v399 = vld [vmem:[%s336 + $0x61] sm:$0xff]
  %v400 = vld [vmem:[%s336 + $0x71] sm:$0xff]
  %v401 = vld [vmem:[%s336 + $0xa1] sm:$0xff]
  %v402 = vld [vmem:[%s336 + $0xb1] sm:$0xff]
  %v403 = vld [vmem:[%s336 + $0xc1] sm:$0xff]
  %v404 = vld [vmem:[%s336 + $0xd1] sm:$0xff]
  %v405 = vld [vmem:[%s336 + $0xe1] sm:$0xff]
  %v406 = vld [vmem:[%s336 + $0xf1] sm:$0xff]
  %v407 = vld [vmem:[%s336 + $0x101] sm:$0xff]
  %v408 = vld [vmem:[%s336 + $0x111] sm:$0xff]
  %s409 = scalar_lea.vmem %s1, 7
  %v410 = vld [vmem:[%s409] sm:$0x1]
  %v412 = vlaneseq
  %v413 = vshrl.u32 %v412, 7
  %v414 = vsub.s32 0, %v413
  %v415 = vrot.slane %v410, %v414
  %v417 = vmul.f32 %v393, %v415
  %v418 = vmul.f32 %v394, %v415
  %v419 = vmul.f32 %v395, %v415
  %v420 = vmul.f32 %v396, %v415
  %v421 = vmul.f32 %v397, %v415
  %v422 = vmul.f32 %v398, %v415
  %v423 = vmul.f32 %v399, %v415
  %v424 = vmul.f32 %v400, %v415
  %v425 = vmul.f32 %v401, %v415
  %v426 = vmul.f32 %v402, %v415
  %v427 = vmul.f32 %v403, %v415
  %v428 = vmul.f32 %v404, %v415
  %v429 = vmul.f32 %v405, %v415
  %v430 = vmul.f32 %v406, %v415
  %v431 = vmul.f32 %v407, %v415
  %v432 = vmul.f32 %v408, %v415
  %v433 = vadd.f32 %v377, %v417
  %v434 = vadd.f32 %v378, %v418
  %v435 = vadd.f32 %v379, %v419
  %v436 = vadd.f32 %v380, %v420
  %v437 = vadd.f32 %v381, %v421
  %v438 = vadd.f32 %v382, %v422
  %v439 = vadd.f32 %v383, %v423
  %v440 = vadd.f32 %v384, %v424
  %v441 = vadd.f32 %v385, %v425
  %v442 = vadd.f32 %v386, %v426
  %v443 = vadd.f32 %v387, %v427
  %v444 = vadd.f32 %v388, %v428
  %v445 = vadd.f32 %v389, %v429
  %v446 = vadd.f32 %v390, %v430
  %v447 = vadd.f32 %v391, %v431
  %v448 = vadd.f32 %v392, %v432
  %v449 = vld [vmem:[%s336 + $0x2] sm:$0xff]
  %v450 = vld [vmem:[%s336 + $0x12] sm:$0xff]
  %v451 = vld [vmem:[%s336 + $0x22] sm:$0xff]
  %v452 = vld [vmem:[%s336 + $0x32] sm:$0xff]
  %v453 = vld [vmem:[%s336 + $0x42] sm:$0xff]
  %v454 = vld [vmem:[%s336 + $0x52] sm:$0xff]
  %v455 = vld [vmem:[%s336 + $0x62] sm:$0xff]
  %v456 = vld [vmem:[%s336 + $0x72] sm:$0xff]
  %v457 = vld [vmem:[%s336 + $0xa2] sm:$0xff]
  %v458 = vld [vmem:[%s336 + $0xb2] sm:$0xff]
  %v459 = vld [vmem:[%s336 + $0xc2] sm:$0xff]
  %v460 = vld [vmem:[%s336 + $0xd2] sm:$0xff]
  %v461 = vld [vmem:[%s336 + $0xe2] sm:$0xff]
  %v462 = vld [vmem:[%s336 + $0xf2] sm:$0xff]
  %v463 = vld [vmem:[%s336 + $0x102] sm:$0xff]
  %v464 = vld [vmem:[%s336 + $0x112] sm:$0xff]
  %s465 = scalar_lea.vmem %s1, 8
  %v466 = vld [vmem:[%s465] sm:$0x1]
  %v468 = vlaneseq
  %v469 = vshrl.u32 %v468, 7
  %v470 = vsub.s32 0, %v469
  %v471 = vrot.slane %v466, %v470
  %v473 = vmul.f32 %v449, %v471
  %v474 = vmul.f32 %v450, %v471
  %v475 = vmul.f32 %v451, %v471
  %v476 = vmul.f32 %v452, %v471
  %v477 = vmul.f32 %v453, %v471
  %v478 = vmul.f32 %v454, %v471
  %v479 = vmul.f32 %v455, %v471
  %v480 = vmul.f32 %v456, %v471
  %v481 = vmul.f32 %v457, %v471
  %v482 = vmul.f32 %v458, %v471
  %v483 = vmul.f32 %v459, %v471
  %v484 = vmul.f32 %v460, %v471
  %v485 = vmul.f32 %v461, %v471
  %v486 = vmul.f32 %v462, %v471
  %v487 = vmul.f32 %v463, %v471
  %v488 = vmul.f32 %v464, %v471
  %v489 = vadd.f32 %v433, %v473
  %v490 = vadd.f32 %v434, %v474
  %v491 = vadd.f32 %v435, %v475
  %v492 = vadd.f32 %v436, %v476
  %v493 = vadd.f32 %v437, %v477
  %v494 = vadd.f32 %v438, %v478
  %v495 = vadd.f32 %v439, %v479
  %v496 = vadd.f32 %v440, %v480
  %v497 = vadd.f32 %v441, %v481
  %v498 = vadd.f32 %v442, %v482
  %v499 = vadd.f32 %v443, %v483
  %v500 = vadd.f32 %v444, %v484
  %v501 = vadd.f32 %v445, %v485
  %v502 = vadd.f32 %v446, %v486
  %v503 = vadd.f32 %v447, %v487
  %v504 = vadd.f32 %v448, %v488
  %v505 = vld [vmem:[%s2] sm:$0x1]
  %v507 = vlaneseq
  %v508 = vshrl.u32 %v507, 7
  %v509 = vsub.s32 0, %v508
  %v510 = vrot.slane %v505, %v509
  %v512 = vadd.f32 %v489, %v510
  %v513 = vadd.f32 %v490, %v510
  %v514 = vadd.f32 %v491, %v510
  %v515 = vadd.f32 %v492, %v510
  %v516 = vadd.f32 %v493, %v510
  %v517 = vadd.f32 %v494, %v510
  %v518 = vadd.f32 %v495, %v510
  %v519 = vadd.f32 %v496, %v510
  %v520 = vadd.f32 %v497, %v510
  %v521 = vadd.f32 %v498, %v510
  %v522 = vadd.f32 %v499, %v510
  %v523 = vadd.f32 %v500, %v510
  %v524 = vadd.f32 %v501, %v510
  %v525 = vadd.f32 %v502, %v510
  %v526 = vadd.f32 %v503, %v510
  %v527 = vadd.f32 %v504, %v510
  %v528 = vxor.u32 %v512, 2147483648
  %v529 = vxor.u32 %v513, 2147483648
  %v530 = vxor.u32 %v514, 2147483648
  %v531 = vxor.u32 %v515, 2147483648
  %v532 = vxor.u32 %v516, 2147483648
  %v533 = vxor.u32 %v517, 2147483648
  %v534 = vxor.u32 %v518, 2147483648
  %v535 = vxor.u32 %v519, 2147483648
  %v536 = vxor.u32 %v520, 2147483648
  %v537 = vxor.u32 %v521, 2147483648
  %v538 = vxor.u32 %v522, 2147483648
  %v539 = vxor.u32 %v523, 2147483648
  %v540 = vxor.u32 %v524, 2147483648
  %v541 = vxor.u32 %v525, 2147483648
  %v542 = vxor.u32 %v526, 2147483648
  %v543 = vxor.u32 %v527, 2147483648
  %v544 = vmul.f32 %v528, 1.442695
  %v545 = vpow.pop %v544
  %v546 = vmul.f32 %v529, 1.442695
  %v547 = vpow.pop %v546
  %v548 = vmul.f32 %v530, 1.442695
  %v549 = vpow.pop %v548
  %v550 = vmul.f32 %v531, 1.442695
  %v551 = vpow.pop %v550
  %v552 = vmul.f32 %v532, 1.442695
  %v553 = vpow.pop %v552
  %v554 = vmul.f32 %v533, 1.442695
  %v555 = vpow.pop %v554
  %v556 = vmul.f32 %v534, 1.442695
  %v557 = vpow.pop %v556
  %v558 = vmul.f32 %v535, 1.442695
  %v559 = vpow.pop %v558
  %v560 = vmul.f32 %v536, 1.442695
  %v561 = vpow.pop %v560
  %v562 = vmul.f32 %v537, 1.442695
  %v563 = vpow.pop %v562
  %v564 = vmul.f32 %v538, 1.442695
  %v565 = vpow.pop %v564
  %v566 = vmul.f32 %v539, 1.442695
  %v567 = vpow.pop %v566
  %v568 = vmul.f32 %v540, 1.442695
  %v569 = vpow.pop %v568
  %v570 = vmul.f32 %v541, 1.442695
  %v571 = vpow.pop %v570
  %v572 = vmul.f32 %v542, 1.442695
  %v573 = vpow.pop %v572
  %v574 = vmul.f32 %v543, 1.442695
  %v575 = vpow.pop %v574
  %v576 = vadd.f32 %v545, 1.0
  %v577 = vadd.f32 %v547, 1.0
  %v578 = vadd.f32 %v549, 1.0
  %v579 = vadd.f32 %v551, 1.0
  %v580 = vadd.f32 %v553, 1.0
  %v581 = vadd.f32 %v555, 1.0
  %v582 = vadd.f32 %v557, 1.0
  %v583 = vadd.f32 %v559, 1.0
  %v584 = vadd.f32 %v561, 1.0
  %v585 = vadd.f32 %v563, 1.0
  %v586 = vadd.f32 %v565, 1.0
  %v587 = vadd.f32 %v567, 1.0
  %v588 = vadd.f32 %v569, 1.0
  %v589 = vadd.f32 %v571, 1.0
  %v590 = vadd.f32 %v573, 1.0
  %v591 = vadd.f32 %v575, 1.0
  %v592 = vrcp.pop %v576
  %v593 = vmul.f32 1.0, %v592
  %v594 = vrcp.pop %v577
  %v595 = vmul.f32 1.0, %v594
  %v596 = vrcp.pop %v578
  %v597 = vmul.f32 1.0, %v596
  %v598 = vrcp.pop %v579
  %v599 = vmul.f32 1.0, %v598
  %v600 = vrcp.pop %v580
  %v601 = vmul.f32 1.0, %v600
  %v602 = vrcp.pop %v581
  %v603 = vmul.f32 1.0, %v602
  %v604 = vrcp.pop %v582
  %v605 = vmul.f32 1.0, %v604
  %v606 = vrcp.pop %v583
  %v607 = vmul.f32 1.0, %v606
  %v608 = vrcp.pop %v584
  %v609 = vmul.f32 1.0, %v608
  %v610 = vrcp.pop %v585
  %v611 = vmul.f32 1.0, %v610
  %v612 = vrcp.pop %v586
  %v613 = vmul.f32 1.0, %v612
  %v614 = vrcp.pop %v587
  %v615 = vmul.f32 1.0, %v614
  %v616 = vrcp.pop %v588
  %v617 = vmul.f32 1.0, %v616
  %v618 = vrcp.pop %v589
  %v619 = vmul.f32 1.0, %v618
  %v620 = vrcp.pop %v590
  %v621 = vmul.f32 1.0, %v620
  %v622 = vrcp.pop %v591
  %v623 = vmul.f32 1.0, %v622
  %v624 = vmul.f32 %v512, %v593
  %v625 = vmul.f32 %v513, %v595
  %v626 = vmul.f32 %v514, %v597
  %v627 = vmul.f32 %v515, %v599
  %v628 = vmul.f32 %v516, %v601
  %v629 = vmul.f32 %v517, %v603
  %v630 = vmul.f32 %v518, %v605
  %v631 = vmul.f32 %v519, %v607
  %v632 = vmul.f32 %v520, %v609
  %v633 = vmul.f32 %v521, %v611
  %v634 = vmul.f32 %v522, %v613
  %v635 = vmul.f32 %v523, %v615
  %v636 = vmul.f32 %v524, %v617
  %v637 = vmul.f32 %v525, %v619
  %v638 = vmul.f32 %v526, %v621
  %v639 = vmul.f32 %v527, %v623
  %vm640 = vcmask 130048
  %641 = vst.msk [vmem:[%s3] sm:$0xff] %vm640, %v624
  %642 = vst.msk [vmem:[%s3 + $0x8] sm:$0xff] %vm640, %v625
  %643 = vst.msk [vmem:[%s3 + $0x10] sm:$0xff] %vm640, %v626
  %644 = vst.msk [vmem:[%s3 + $0x18] sm:$0xff] %vm640, %v627
  %645 = vst.msk [vmem:[%s3 + $0x20] sm:$0xff] %vm640, %v628
  %646 = vst.msk [vmem:[%s3 + $0x28] sm:$0xff] %vm640, %v629
  %647 = vst.msk [vmem:[%s3 + $0x30] sm:$0xff] %vm640, %v630
  %648 = vst.msk [vmem:[%s3 + $0x38] sm:$0xff] %vm640, %v631
  %649 = vst.msk [vmem:[%s3 + $0x40] sm:$0xff] %vm640, %v632
  %650 = vst.msk [vmem:[%s3 + $0x48] sm:$0xff] %vm640, %v633
  %651 = vst.msk [vmem:[%s3 + $0x50] sm:$0xff] %vm640, %v634
  %652 = vst.msk [vmem:[%s3 + $0x58] sm:$0xff] %vm640, %v635
  %653 = vst.msk [vmem:[%s3 + $0x60] sm:$0xff] %vm640, %v636
  %654 = vst.msk [vmem:[%s3 + $0x68] sm:$0xff] %vm640, %v637
  %655 = vst.msk [vmem:[%s3 + $0x70] sm:$0xff] %vm640, %v638
  %656 = vst.msk [vmem:[%s3 + $0x78] sm:$0xff] %vm640, %v639
  %v657 = vsel %vm640, %v624, 0.0
  %v658 = vsel %vm640, %v625, 0.0
  %v659 = vadd.f32 %v657, %v658
  %v660 = vsel %vm640, %v626, 0.0
  %v661 = vadd.f32 %v659, %v660
  %v662 = vsel %vm640, %v627, 0.0
  %v663 = vadd.f32 %v661, %v662
  %v664 = vsel %vm640, %v628, 0.0
  %v665 = vadd.f32 %v663, %v664
  %v666 = vsel %vm640, %v629, 0.0
  %v667 = vadd.f32 %v665, %v666
  %v668 = vsel %vm640, %v630, 0.0
  %v669 = vadd.f32 %v667, %v668
  %v670 = vsel %vm640, %v631, 0.0
  %v671 = vadd.f32 %v669, %v670
  %v672 = vrot.slane %v671, 4
  %v673 = vadd.f32 %v671, %v672
  %v674 = vrot.slane %v673, 2
  %v675 = vadd.f32 %v673, %v674
  %v676 = vrot.slane %v675, 1
  %v677 = vadd.f32 %v675, %v676
  %v678 = vsel %vm640, %v632, 0.0
  %v679 = vsel %vm640, %v633, 0.0
  %v680 = vadd.f32 %v678, %v679
  %v681 = vsel %vm640, %v634, 0.0
  %v682 = vadd.f32 %v680, %v681
  %v683 = vsel %vm640, %v635, 0.0
  %v684 = vadd.f32 %v682, %v683
  %v685 = vsel %vm640, %v636, 0.0
  %v686 = vadd.f32 %v684, %v685
  %v687 = vsel %vm640, %v637, 0.0
  %v688 = vadd.f32 %v686, %v687
  %v689 = vsel %vm640, %v638, 0.0
  %v690 = vadd.f32 %v688, %v689
  %v691 = vsel %vm640, %v639, 0.0
  %v692 = vadd.f32 %v690, %v691
  %v693 = vrot.slane %v692, 4
  %v694 = vadd.f32 %v692, %v693
  %v695 = vrot.slane %v694, 2
  %v696 = vadd.f32 %v694, %v695
  %v697 = vrot.slane %v696, 1
  %v698 = vadd.f32 %v696, %v697
  %v699 = vrcp.pop 64.0
  %v700 = vmul.f32 %v677, %v699
  %v701 = vmul.f32 %v698, %v699
  %vm704 = vcmask 1041409
  %v705 = vsel %vm704, %v701, %v700
  %vm707 = vcmask 123904
  %708 = vst.msk [vmem:[%s4] sm:$0x3] %vm707, %v705
  // Predicated region
  $region14: #{net_forward.11} parent=0 // pred_check
    _
  $region15: #{net_forward.11} parent=0 // pred_check_branch
    %710 = sbr.rel (0) target = $region17
  $region16: #{net_forward.11} parent=0 // pred_region
    _
  $region17: #{net_forward.11} parent=0 // pred_fallthru
    _
  // Predicated region
  $region18: #{net_forward.11} parent=0 // pred_check
    _
  $region19: #{net_forward.11} parent=0 // pred_check_branch
    %712 = sbr.rel (0) target = $region21
  $region20: #{net_forward.11} parent=0 // pred_region
    _
  $region21: #{net_forward.11} parent=0 // pred_fallthru
    _
  // Predicated region
  $region22: #{net_forward.11} parent=0 // pred_check
    _
  $region23: #{net_forward.11} parent=0 // pred_check_branch
    %714 = sbr.rel (0) target = $region25
  $region24: #{net_forward.11} parent=0 // pred_region
    _
  $region25: #{net_forward.11} parent=0 // pred_fallthru
    _
  // Predicated region
  $region26: #{net_forward.11} parent=0 // pred_check
    _
  $region27: #{net_forward.11} parent=0 // pred_check_branch
    %716 = sbr.rel (0) target = $region29
  $region28: #{net_forward.11} parent=0 // pred_region
    _
  $region29: #{net_forward.11} parent=0 // pred_fallthru
    _

// kernel: net_forward.16
$region0: #{net_forward.16}
  #allocation0 [shape = 'u32[]', space=smem, size = 0x4, offset = 0x4, fixed_abs, tag = 'smem constant byte address 0x4 - core index']
  #allocation1 [shape = 'u32[144,128]{1,0:T(1,128)}', space=vmem, size = 0x12000, scoped, tag = 'internal scratch']
  %s0 = inlined_call_operand.vmem [shape: f32[32,24], index: 0, kind: input, shape index: {}]
  %s1 = inlined_call_operand.vmem [shape: bf16[24,144], index: 1, kind: input, shape index: {}]
  %s2 = inlined_call_operand.vmem [shape: f32[1,144], index: 2, kind: input, shape index: {}]
  %s3 = inlined_call_operand.vmem [shape: f32[32,144], index: 3, kind: output, shape index: {}]
  %s4 = sld [smem:[#allocation0]]
  $region22: #{net_forward.16} parent=0
    _
  %s6 = ssub.s32 1, %s4
  %s7 = scalar_select 0, %s6, %s4
  // Predicated region
  $region2: #{net_forward.16} parent=0 // pred_check
    _
  $region3: #{net_forward.16} parent=0 // pred_check_branch
    %9 = sbr.rel (0) target = $region5
  $region4: #{net_forward.16} parent=0 // pred_region
    _
  $region5: #{net_forward.16} parent=0 // pred_fallthru
    _
  // Predicated region
  $region6: #{net_forward.16} parent=0 // pred_check
    _
  $region7: #{net_forward.16} parent=0 // pred_check_branch
    %11 = sbr.rel (0) target = $region9
  $region8: #{net_forward.16} parent=0 // pred_region
    _
  $region9: #{net_forward.16} parent=0 // pred_fallthru
    _
  // Predicated region
  $region10: #{net_forward.16} parent=0 // pred_check
    _
  $region11: #{net_forward.16} parent=0 // pred_check_branch
    %13 = sbr.rel (0) target = $region13
  $region12: #{net_forward.16} parent=0 // pred_region
    _
  $region13: #{net_forward.16} parent=0 // pred_fallthru
    _
  %v15 = vld [vmem:[%s0] sm:$0xff]
  %v16 = vld [vmem:[%s0 + $0x8] sm:$0xff]
  %v17 = vld [vmem:[%s0 + $0x10] sm:$0xff]
  %v18 = vld [vmem:[%s0 + $0x18] sm:$0xff]
  %v19 = vpack.c.bf16 %v16, %v15
  %v20 = vpack.c.bf16 %v18, %v17
  %v21 = vld [vmem:[%s1] sm:$0xff]
  %v22 = vld [vmem:[%s1 + $0x8] sm:$0xff]
  %v23 = vld [vmem:[%s1 + $0x10] sm:$0xff]
  %v24 = vld [vmem:[%s2] sm:$0x3]
  %v26 = vlaneseq
  %v27 = vshrl.u32 %v26, 7
  %v28 = vsub.s32 0, %v27
  %v29 = vrot.slane %v24, %v28
  %v30 = vlaneseq
  %v31 = vshrl.u32 %v30, 7
  %v32 = vsub.s32 1, %v31
  %v33 = vrot.slane %v24, %v32
  %v39 = vunpack.c.l.b16 %v21
  %v40 = vunpack.c.h.b16 %v21
  %v41 = vunpack.c.l.b16 %v22
  %v42 = vunpack.c.h.b16 %v22
  %v43 = vunpack.c.l.b16 %v23
  %v44 = vunpack.c.h.b16 %v23
  %v45 = vpack.c.b16 %v41, %v39
  %v46 = vpack.c.b16 %v42, %v40
  %v47 = vpack.c.b16 %v43, %v43
  %v48 = vpack.c.b16 %v44, %v44
  %vm51 = vcmask 195584
  %v53 = vsel %vm51, %v19, 0
  %v56 = vsel %vm51, %v20, 0
  %vm58 = vcmask 1043456
  %v60 = vsel %vm58, %v47, 0
  %v63 = vsel %vm58, %v48, 0
  %65 = vmatprep.subr.bf16.mxu0 %v46
  %66 = vmatpush1.bf16.msra.mxu0 %v45
  %67 = vmatprep.subr.bf16.mxu0 %v63
  %68 = vmatpush1.bf16.msra.mxu0 %v60
  %69 = vmatprep.subr.bf16.mxu0 0
  %70 = vmatpush1.bf16.msra.mxu0 0
  %71 = vmatprep.subr.bf16.mxu0 0
  %72 = vmatpush1.bf16.msra.mxu0 0
  %73 = vmatprep.subr.bf16.mxu0 0
  %74 = vmatpush1.bf16.msra.mxu0 0
  %75 = vmatprep.subr.bf16.mxu0 0
  %76 = vmatpush1.bf16.msra.mxu0 0
  %77 = vmatprep.subr.bf16.mxu0 0
  %78 = vmatpush1.bf16.msra.mxu0 0
  %79 = vmatprep.subr.bf16.mxu0 0
  %80 = vmatpush1.bf16.msra.mxu0 0
  %81 = vmatprep.subr.bf16.mxu0 0
  %82 = vmatpush1.bf16.msra.mxu0 0
  %83 = vmatprep.subr.bf16.mxu0 0
  %84 = vmatpush1.bf16.msra.mxu0 0
  %85 = vmatprep.subr.bf16.mxu0 0
  %86 = vmatpush1.bf16.msra.mxu0 0
  %87 = vmatprep.subr.bf16.mxu0 0
  %88 = vmatpush1.bf16.msra.mxu0 0
  %89 = vmatprep.subr.bf16.mxu0 0
  %90 = vmatpush1.bf16.msra.mxu0 0
  %91 = vmatprep.subr.bf16.mxu0 0
  %92 = vmatpush1.bf16.msra.mxu0 0
  %93 = vmatprep.subr.bf16.mxu0 0
  %94 = vmatpush1.bf16.msra.mxu0 0
  %95 = vmatprep.subr.bf16.mxu0 0
  %96 = vmatpush1.bf16.msra.mxu0 0
  %97 = vmatprep.mubr.bf16.mxu0 0
  %98 = vmatmul.mubr.bf16.gmra.mrb[0].mxu0 %v53
  %v99 = vpop.f32.mrb[0].mxu0
  %v100 = vadd.f32 %v29, %v99
  %v101 = vpop.f32.mrb[0].mxu0
  %v102 = vadd.f32 %v33, %v101
  %v103 = vpop.f32.mrb[0].mxu0
  %v104 = vadd.f32 %v29, %v103
  %v105 = vpop.f32.mrb[0].mxu0
  %v106 = vadd.f32 %v33, %v105
  %107 = vmatprep.mubr.bf16.mxu0 0
  %108 = vmatmul.mubr.bf16.gmra.mrb[0].mxu0 %v56
  %v109 = vpop.f32.mrb[0].mxu0
  %v110 = vadd.f32 %v29, %v109
  %v111 = vpop.f32.mrb[0].mxu0
  %v112 = vadd.f32 %v33, %v111
  %v113 = vpop.f32.mrb[0].mxu0
  %v114 = vadd.f32 %v29, %v113
  %v115 = vpop.f32.mrb[0].mxu0
  %v116 = vadd.f32 %v33, %v115
  %117 = vdwg.mxu0
  %v118 = vxor.u32 %v100, 2147483648
  %v119 = vxor.u32 %v102, 2147483648
  %v120 = vxor.u32 %v104, 2147483648
  %v121 = vxor.u32 %v106, 2147483648
  %v122 = vxor.u32 %v110, 2147483648
  %v123 = vxor.u32 %v112, 2147483648
  %v124 = vxor.u32 %v114, 2147483648
  %v125 = vxor.u32 %v116, 2147483648
  %v126 = vmul.f32 %v118, 1.442695
  %v127 = vpow.pop %v126
  %v128 = vmul.f32 %v119, 1.442695
  %v129 = vpow.pop %v128
  %v130 = vmul.f32 %v120, 1.442695
  %v131 = vpow.pop %v130
  %v132 = vmul.f32 %v121, 1.442695
  %v133 = vpow.pop %v132
  %v134 = vmul.f32 %v122, 1.442695
  %v135 = vpow.pop %v134
  %v136 = vmul.f32 %v123, 1.442695
  %v137 = vpow.pop %v136
  %v138 = vmul.f32 %v124, 1.442695
  %v139 = vpow.pop %v138
  %v140 = vmul.f32 %v125, 1.442695
  %v141 = vpow.pop %v140
  %v142 = vadd.f32 %v127, 1.0
  %v143 = vadd.f32 %v129, 1.0
  %v144 = vadd.f32 %v131, 1.0
  %v145 = vadd.f32 %v133, 1.0
  %v146 = vadd.f32 %v135, 1.0
  %v147 = vadd.f32 %v137, 1.0
  %v148 = vadd.f32 %v139, 1.0
  %v149 = vadd.f32 %v141, 1.0
  %v150 = vrcp.pop %v142
  %v151 = vmul.f32 1.0, %v150
  %v152 = vrcp.pop %v143
  %v153 = vmul.f32 1.0, %v152
  %v154 = vrcp.pop %v144
  %v155 = vmul.f32 1.0, %v154
  %v156 = vrcp.pop %v145
  %v157 = vmul.f32 1.0, %v156
  %v158 = vrcp.pop %v146
  %v159 = vmul.f32 1.0, %v158
  %v160 = vrcp.pop %v147
  %v161 = vmul.f32 1.0, %v160
  %v162 = vrcp.pop %v148
  %v163 = vmul.f32 1.0, %v162
  %v164 = vrcp.pop %v149
  %v165 = vmul.f32 1.0, %v164
  %v166 = vmul.f32 %v100, %v151
  %v167 = vmul.f32 %v102, %v153
  %v168 = vmul.f32 %v104, %v155
  %v169 = vmul.f32 %v106, %v157
  %v170 = vmul.f32 %v110, %v159
  %v171 = vmul.f32 %v112, %v161
  %v172 = vmul.f32 %v114, %v163
  %v173 = vmul.f32 %v116, %v165
  %174 = vst [vmem:[%s3] sm:$0xff] %v166
  %vm175 = vcmask 130048
  %176 = vst.msk [vmem:[%s3 + $0x8] sm:$0xff] %vm175, %v167
  %177 = vst [vmem:[%s3 + $0x10] sm:$0xff] %v168
  %178 = vst.msk [vmem:[%s3 + $0x18] sm:$0xff] %vm175, %v169
  %179 = vst [vmem:[%s3 + $0x20] sm:$0xff] %v170
  %180 = vst.msk [vmem:[%s3 + $0x28] sm:$0xff] %vm175, %v171
  %181 = vst [vmem:[%s3 + $0x30] sm:$0xff] %v172
  %182 = vst.msk [vmem:[%s3 + $0x38] sm:$0xff] %vm175, %v173
  // Predicated region
  $region14: #{net_forward.16} parent=0 // pred_check
    _
  $region15: #{net_forward.16} parent=0 // pred_check_branch
    %184 = sbr.rel (0) target = $region17
  $region16: #{net_forward.16} parent=0 // pred_region
    _
  $region17: #{net_forward.16} parent=0 // pred_fallthru
    _
  // Predicated region
  $region18: #{net_forward.16} parent=0 // pred_check
    _
  $region19: #{net_forward.16} parent=0 // pred_check_branch
    %186 = sbr.rel (0) target = $region21
  $region20: #{net_forward.16} parent=0 // pred_region
    _
  $region21: #{net_forward.16} parent=0 // pred_fallthru
    _

// kernel: net_forward.10
$region0: #{net_forward.10}
  #allocation0 [shape = 'u32[]', space=smem, size = 0x4, offset = 0x4, fixed_abs, tag = 'smem constant byte address 0x4 - core index']
  #allocation1 [shape = 'u32[144,128]{1,0:T(1,128)}', space=vmem, size = 0x12000, scoped, tag = 'internal scratch']
  %s0 = inlined_call_operand.vmem [shape: f32[4,2,9,9,4], index: 0, kind: input, shape index: {}]
  %s1 = inlined_call_operand.vmem [shape: f32[36,1,16], index: 1, kind: input, shape index: {}]
  %s2 = inlined_call_operand.vmem [shape: f32[1,16], index: 2, kind: input, shape index: {}]
  %s3 = inlined_call_operand.vmem [shape: f32[2,8,8,16], index: 3, kind: output, shape index: {}]
  %s4 = sld [smem:[#allocation0]]
  $region22: #{net_forward.10} parent=0
    _
  %s6 = ssub.s32 1, %s4
  %s7 = scalar_select 0, %s6, %s4
  // Predicated region
  $region2: #{net_forward.10} parent=0 // pred_check
    _
  $region3: #{net_forward.10} parent=0 // pred_check_branch
    %9 = sbr.rel (0) target = $region5
  $region4: #{net_forward.10} parent=0 // pred_region
    _
  $region5: #{net_forward.10} parent=0 // pred_fallthru
    _
  // Predicated region
  $region6: #{net_forward.10} parent=0 // pred_check
    _
  $region7: #{net_forward.10} parent=0 // pred_check_branch
    %11 = sbr.rel (0) target = $region9
  $region8: #{net_forward.10} parent=0 // pred_region
    _
  $region9: #{net_forward.10} parent=0 // pred_fallthru
    _
  // Predicated region
  $region10: #{net_forward.10} parent=0 // pred_check
    _
  $region11: #{net_forward.10} parent=0 // pred_check_branch
    %13 = sbr.rel (0) target = $region13
  $region12: #{net_forward.10} parent=0 // pred_region
    _
  $region13: #{net_forward.10} parent=0 // pred_fallthru
    _
  %v14 = vld [vmem:[%s0] sm:$0xff]
  %v15 = vld [vmem:[%s0 + $0x10] sm:$0xff]
  %v16 = vld [vmem:[%s0 + $0x20] sm:$0xff]
  %v17 = vld [vmem:[%s0 + $0x30] sm:$0xff]
  %v18 = vld [vmem:[%s0 + $0x40] sm:$0xff]
  %v19 = vld [vmem:[%s0 + $0x50] sm:$0xff]
  %v20 = vld [vmem:[%s0 + $0x60] sm:$0xff]
  %v21 = vld [vmem:[%s0 + $0x70] sm:$0xff]
  %v22 = vld [vmem:[%s0 + $0x90] sm:$0xff]
  %v23 = vld [vmem:[%s0 + $0xa0] sm:$0xff]
  %v24 = vld [vmem:[%s0 + $0xb0] sm:$0xff]
  %v25 = vld [vmem:[%s0 + $0xc0] sm:$0xff]
  %v26 = vld [vmem:[%s0 + $0xd0] sm:$0xff]
  %v27 = vld [vmem:[%s0 + $0xe0] sm:$0xff]
  %v28 = vld [vmem:[%s0 + $0xf0] sm:$0xff]
  %v29 = vld [vmem:[%s0 + $0x100] sm:$0xff]
  %v30 = vld [vmem:[%s1] sm:$0x1]
  %32 = vset.pattern.permute.xlu0 0
  %33 = vperm.xlu0 %32, %v14
  %v34 = vpop.permute.xlu0 %33
  %37 = vset.pattern.permute.xlu0 0
  %38 = vperm.xlu0 %37, %v15
  %v39 = vpop.permute.xlu0 %38
  %42 = vset.pattern.permute.xlu0 0
  %43 = vperm.xlu0 %42, %v16
  %v44 = vpop.permute.xlu0 %43
  %47 = vset.pattern.permute.xlu0 0
  %48 = vperm.xlu0 %47, %v17
  %v49 = vpop.permute.xlu0 %48
  %52 = vset.pattern.permute.xlu0 0
  %53 = vperm.xlu0 %52, %v18
  %v54 = vpop.permute.xlu0 %53
  %57 = vset.pattern.permute.xlu0 0
  %58 = vperm.xlu0 %57, %v19
  %v59 = vpop.permute.xlu0 %58
  %62 = vset.pattern.permute.xlu0 0
  %63 = vperm.xlu0 %62, %v20
  %v64 = vpop.permute.xlu0 %63
  %67 = vset.pattern.permute.xlu0 0
  %68 = vperm.xlu0 %67, %v21
  %v69 = vpop.permute.xlu0 %68
  %72 = vset.pattern.permute.xlu0 0
  %73 = vperm.xlu0 %72, %v22
  %v74 = vpop.permute.xlu0 %73
  %77 = vset.pattern.permute.xlu0 0
  %78 = vperm.xlu0 %77, %v23
  %v79 = vpop.permute.xlu0 %78
  %82 = vset.pattern.permute.xlu0 0
  %83 = vperm.xlu0 %82, %v24
  %v84 = vpop.permute.xlu0 %83
  %87 = vset.pattern.permute.xlu0 0
  %88 = vperm.xlu0 %87, %v25
  %v89 = vpop.permute.xlu0 %88
  %92 = vset.pattern.permute.xlu0 0
  %93 = vperm.xlu0 %92, %v26
  %v94 = vpop.permute.xlu0 %93
  %97 = vset.pattern.permute.xlu0 0
  %98 = vperm.xlu0 %97, %v27
  %v99 = vpop.permute.xlu0 %98
  %102 = vset.pattern.permute.xlu0 0
  %103 = vperm.xlu0 %102, %v28
  %v104 = vpop.permute.xlu0 %103
  %107 = vset.pattern.permute.xlu0 0
  %108 = vperm.xlu0 %107, %v29
  %v109 = vpop.permute.xlu0 %108
  %v112 = vlaneseq
  %v113 = vshrl.u32 %v112, 7
  %v114 = vsub.s32 0, %v113
  %v115 = vrot.slane %v30, %v114
  %v117 = vmul.f32 %v34, %v115
  %v118 = vmul.f32 %v39, %v115
  %v119 = vmul.f32 %v44, %v115
  %v120 = vmul.f32 %v49, %v115
  %v121 = vmul.f32 %v54, %v115
  %v122 = vmul.f32 %v59, %v115
  %v123 = vmul.f32 %v64, %v115
  %v124 = vmul.f32 %v69, %v115
  %v125 = vmul.f32 %v74, %v115
  %v126 = vmul.f32 %v79, %v115
  %v127 = vmul.f32 %v84, %v115
  %v128 = vmul.f32 %v89, %v115
  %v129 = vmul.f32 %v94, %v115
  %v130 = vmul.f32 %v99, %v115
  %v131 = vmul.f32 %v104, %v115
  %v132 = vmul.f32 %v109, %v115
  %s133 = scalar_lea.vmem %s1, 1
  %v134 = vld [vmem:[%s133] sm:$0x1]
  %135 = vset.pattern.permute.xlu0 1
  %136 = vperm.xlu0 %135, %v14
  %v137 = vpop.permute.xlu0 %136
  %139 = vset.pattern.permute.xlu0 1
  %140 = vperm.xlu0 %139, %v15
  %v141 = vpop.permute.xlu0 %140
  %143 = vset.pattern.permute.xlu0 1
  %144 = vperm.xlu0 %143, %v16
  %v145 = vpop.permute.xlu0 %144
  %147 = vset.pattern.permute.xlu0 1
  %148 = vperm.xlu0 %147, %v17
  %v149 = vpop.permute.xlu0 %148
  %151 = vset.pattern.permute.xlu0 1
  %152 = vperm.xlu0 %151, %v18
  %v153 = vpop.permute.xlu0 %152
  %155 = vset.pattern.permute.xlu0 1
  %156 = vperm.xlu0 %155, %v19
  %v157 = vpop.permute.xlu0 %156
  %159 = vset.pattern.permute.xlu0 1
  %160 = vperm.xlu0 %159, %v20
  %v161 = vpop.permute.xlu0 %160
  %163 = vset.pattern.permute.xlu0 1
  %164 = vperm.xlu0 %163, %v21
  %v165 = vpop.permute.xlu0 %164
  %167 = vset.pattern.permute.xlu0 1
  %168 = vperm.xlu0 %167, %v22
  %v169 = vpop.permute.xlu0 %168
  %171 = vset.pattern.permute.xlu0 1
  %172 = vperm.xlu0 %171, %v23
  %v173 = vpop.permute.xlu0 %172
  %175 = vset.pattern.permute.xlu0 1
  %176 = vperm.xlu0 %175, %v24
  %v177 = vpop.permute.xlu0 %176
  %179 = vset.pattern.permute.xlu0 1
  %180 = vperm.xlu0 %179, %v25
  %v181 = vpop.permute.xlu0 %180
  %183 = vset.pattern.permute.xlu0 1
  %184 = vperm.xlu0 %183, %v26
  %v185 = vpop.permute.xlu0 %184
  %187 = vset.pattern.permute.xlu0 1
  %188 = vperm.xlu0 %187, %v27
  %v189 = vpop.permute.xlu0 %188
  %191 = vset.pattern.permute.xlu0 1
  %192 = vperm.xlu0 %191, %v28
  %v193 = vpop.permute.xlu0 %192
  %195 = vset.pattern.permute.xlu0 1
  %196 = vperm.xlu0 %195, %v29
  %v197 = vpop.permute.xlu0 %196
  %v200 = vlaneseq
  %v201 = vshrl.u32 %v200, 7
  %v202 = vsub.s32 0, %v201
  %v203 = vrot.slane %v134, %v202
  %v205 = vmul.f32 %v137, %v203
  %v206 = vmul.f32 %v141, %v203
  %v207 = vmul.f32 %v145, %v203
  %v208 = vmul.f32 %v149, %v203
  %v209 = vmul.f32 %v153, %v203
  %v210 = vmul.f32 %v157, %v203
  %v211 = vmul.f32 %v161, %v203
  %v212 = vmul.f32 %v165, %v203
  %v213 = vmul.f32 %v169, %v203
  %v214 = vmul.f32 %v173, %v203
  %v215 = vmul.f32 %v177, %v203
  %v216 = vmul.f32 %v181, %v203
  %v217 = vmul.f32 %v185, %v203
  %v218 = vmul.f32 %v189, %v203
  %v219 = vmul.f32 %v193, %v203
  %v220 = vmul.f32 %v197, %v203
  %v221 = vadd.f32 %v117, %v205
  %v222 = vadd.f32 %v118, %v206
  %v223 = vadd.f32 %v119, %v207
  %v224 = vadd.f32 %v120, %v208
  %v225 = vadd.f32 %v121, %v209
  %v226 = vadd.f32 %v122, %v210
  %v227 = vadd.f32 %v123, %v211
  %v228 = vadd.f32 %v124, %v212
  %v229 = vadd.f32 %v125, %v213
  %v230 = vadd.f32 %v126, %v214
  %v231 = vadd.f32 %v127, %v215
  %v232 = vadd.f32 %v128, %v216
  %v233 = vadd.f32 %v129, %v217
  %v234 = vadd.f32 %v130, %v218
  %v235 = vadd.f32 %v131, %v219
  %v236 = vadd.f32 %v132, %v220
  %s237 = scalar_lea.vmem %s1, 2
  %v238 = vld [vmem:[%s237] sm:$0x1]
  %239 = vset.pattern.permute.xlu0 2
  %240 = vperm.xlu0 %239, %v14
  %v241 = vpop.permute.xlu0 %240
  %243 = vset.pattern.permute.xlu0 2
  %244 = vperm.xlu0 %243, %v15
  %v245 = vpop.permute.xlu0 %244
  %247 = vset.pattern.permute.xlu0 2
  %248 = vperm.xlu0 %247, %v16
  %v249 = vpop.permute.xlu0 %248
  %251 = vset.pattern.permute.xlu0 2
  %252 = vperm.xlu0 %251, %v17
  %v253 = vpop.permute.xlu0 %252
  %255 = vset.pattern.permute.xlu0 2
  %256 = vperm.xlu0 %255, %v18
  %v257 = vpop.permute.xlu0 %256
  %259 = vset.pattern.permute.xlu0 2
  %260 = vperm.xlu0 %259, %v19
  %v261 = vpop.permute.xlu0 %260
  %263 = vset.pattern.permute.xlu0 2
  %264 = vperm.xlu0 %263, %v20
  %v265 = vpop.permute.xlu0 %264
  %267 = vset.pattern.permute.xlu0 2
  %268 = vperm.xlu0 %267, %v21
  %v269 = vpop.permute.xlu0 %268
  %271 = vset.pattern.permute.xlu0 2
  %272 = vperm.xlu0 %271, %v22
  %v273 = vpop.permute.xlu0 %272
  %275 = vset.pattern.permute.xlu0 2
  %276 = vperm.xlu0 %275, %v23
  %v277 = vpop.permute.xlu0 %276
  %279 = vset.pattern.permute.xlu0 2
  %280 = vperm.xlu0 %279, %v24
  %v281 = vpop.permute.xlu0 %280
  %283 = vset.pattern.permute.xlu0 2
  %284 = vperm.xlu0 %283, %v25
  %v285 = vpop.permute.xlu0 %284
  %287 = vset.pattern.permute.xlu0 2
  %288 = vperm.xlu0 %287, %v26
  %v289 = vpop.permute.xlu0 %288
  %291 = vset.pattern.permute.xlu0 2
  %292 = vperm.xlu0 %291, %v27
  %v293 = vpop.permute.xlu0 %292
  %295 = vset.pattern.permute.xlu0 2
  %296 = vperm.xlu0 %295, %v28
  %v297 = vpop.permute.xlu0 %296
  %299 = vset.pattern.permute.xlu0 2
  %300 = vperm.xlu0 %299, %v29
  %v301 = vpop.permute.xlu0 %300
  %v304 = vlaneseq
  %v305 = vshrl.u32 %v304, 7
  %v306 = vsub.s32 0, %v305
  %v307 = vrot.slane %v238, %v306
  %v309 = vmul.f32 %v241, %v307
  %v310 = vmul.f32 %v245, %v307
  %v311 = vmul.f32 %v249, %v307
  %v312 = vmul.f32 %v253, %v307
  %v313 = vmul.f32 %v257, %v307
  %v314 = vmul.f32 %v261, %v307
  %v315 = vmul.f32 %v265, %v307
  %v316 = vmul.f32 %v269, %v307
  %v317 = vmul.f32 %v273, %v307
  %v318 = vmul.f32 %v277, %v307
  %v319 = vmul.f32 %v281, %v307
  %v320 = vmul.f32 %v285, %v307
  %v321 = vmul.f32 %v289, %v307
  %v322 = vmul.f32 %v293, %v307
  %v323 = vmul.f32 %v297, %v307
  %v324 = vmul.f32 %v301, %v307
  %v325 = vadd.f32 %v221, %v309
  %v326 = vadd.f32 %v222, %v310
  %v327 = vadd.f32 %v223, %v311
  %v328 = vadd.f32 %v224, %v312
  %v329 = vadd.f32 %v225, %v313
  %v330 = vadd.f32 %v226, %v314
  %v331 = vadd.f32 %v227, %v315
  %v332 = vadd.f32 %v228, %v316
  %v333 = vadd.f32 %v229, %v317
  %v334 = vadd.f32 %v230, %v318
  %v335 = vadd.f32 %v231, %v319
  %v336 = vadd.f32 %v232, %v320
  %v337 = vadd.f32 %v233, %v321
  %v338 = vadd.f32 %v234, %v322
  %v339 = vadd.f32 %v235, %v323
  %v340 = vadd.f32 %v236, %v324
  %s341 = scalar_lea.vmem %s1, 3
  %v342 = vld [vmem:[%s341] sm:$0x1]
  %343 = vset.pattern.permute.xlu0 3
  %344 = vperm.xlu0 %343, %v14
  %v345 = vpop.permute.xlu0 %344
  %347 = vset.pattern.permute.xlu0 3
  %348 = vperm.xlu0 %347, %v15
  %v349 = vpop.permute.xlu0 %348
  %351 = vset.pattern.permute.xlu0 3
  %352 = vperm.xlu0 %351, %v16
  %v353 = vpop.permute.xlu0 %352
  %355 = vset.pattern.permute.xlu0 3
  %356 = vperm.xlu0 %355, %v17
  %v357 = vpop.permute.xlu0 %356
  %359 = vset.pattern.permute.xlu0 3
  %360 = vperm.xlu0 %359, %v18
  %v361 = vpop.permute.xlu0 %360
  %363 = vset.pattern.permute.xlu0 3
  %364 = vperm.xlu0 %363, %v19
  %v365 = vpop.permute.xlu0 %364
  %367 = vset.pattern.permute.xlu0 3
  %368 = vperm.xlu0 %367, %v20
  %v369 = vpop.permute.xlu0 %368
  %371 = vset.pattern.permute.xlu0 3
  %372 = vperm.xlu0 %371, %v21
  %v373 = vpop.permute.xlu0 %372
  %375 = vset.pattern.permute.xlu0 3
  %376 = vperm.xlu0 %375, %v22
  %v377 = vpop.permute.xlu0 %376
  %379 = vset.pattern.permute.xlu0 3
  %380 = vperm.xlu0 %379, %v23
  %v381 = vpop.permute.xlu0 %380
  %383 = vset.pattern.permute.xlu0 3
  %384 = vperm.xlu0 %383, %v24
  %v385 = vpop.permute.xlu0 %384
  %387 = vset.pattern.permute.xlu0 3
  %388 = vperm.xlu0 %387, %v25
  %v389 = vpop.permute.xlu0 %388
  %391 = vset.pattern.permute.xlu0 3
  %392 = vperm.xlu0 %391, %v26
  %v393 = vpop.permute.xlu0 %392
  %395 = vset.pattern.permute.xlu0 3
  %396 = vperm.xlu0 %395, %v27
  %v397 = vpop.permute.xlu0 %396
  %399 = vset.pattern.permute.xlu0 3
  %400 = vperm.xlu0 %399, %v28
  %v401 = vpop.permute.xlu0 %400
  %403 = vset.pattern.permute.xlu0 3
  %404 = vperm.xlu0 %403, %v29
  %v405 = vpop.permute.xlu0 %404
  %v408 = vlaneseq
  %v409 = vshrl.u32 %v408, 7
  %v410 = vsub.s32 0, %v409
  %v411 = vrot.slane %v342, %v410
  %v413 = vmul.f32 %v345, %v411
  %v414 = vmul.f32 %v349, %v411
  %v415 = vmul.f32 %v353, %v411
  %v416 = vmul.f32 %v357, %v411
  %v417 = vmul.f32 %v361, %v411
  %v418 = vmul.f32 %v365, %v411
  %v419 = vmul.f32 %v369, %v411
  %v420 = vmul.f32 %v373, %v411
  %v421 = vmul.f32 %v377, %v411
  %v422 = vmul.f32 %v381, %v411
  %v423 = vmul.f32 %v385, %v411
  %v424 = vmul.f32 %v389, %v411
  %v425 = vmul.f32 %v393, %v411
  %v426 = vmul.f32 %v397, %v411
  %v427 = vmul.f32 %v401, %v411
  %v428 = vmul.f32 %v405, %v411
  %v429 = vadd.f32 %v325, %v413
  %v430 = vadd.f32 %v326, %v414
  %v431 = vadd.f32 %v327, %v415
  %v432 = vadd.f32 %v328, %v416
  %v433 = vadd.f32 %v329, %v417
  %v434 = vadd.f32 %v330, %v418
  %v435 = vadd.f32 %v331, %v419
  %v436 = vadd.f32 %v332, %v420
  %v437 = vadd.f32 %v333, %v421
  %v438 = vadd.f32 %v334, %v422
  %v439 = vadd.f32 %v335, %v423
  %v440 = vadd.f32 %v336, %v424
  %v441 = vadd.f32 %v337, %v425
  %v442 = vadd.f32 %v338, %v426
  %v443 = vadd.f32 %v339, %v427
  %v444 = vadd.f32 %v340, %v428
  %s445 = scalar_lea.vmem %s0, 288
  %v446 = vld [vmem:[%s445] sm:$0xff]
  %v447 = vld [vmem:[%s445 + $0x10] sm:$0xff]
  %v448 = vld [vmem:[%s445 + $0x20] sm:$0xff]
  %v449 = vld [vmem:[%s445 + $0x30] sm:$0xff]
  %v450 = vld [vmem:[%s445 + $0x40] sm:$0xff]
  %v451 = vld [vmem:[%s445 + $0x50] sm:$0xff]
  %v452 = vld [vmem:[%s445 + $0x60] sm:$0xff]
  %v453 = vld [vmem:[%s445 + $0x70] sm:$0xff]
  %v454 = vld [vmem:[%s445 + $0x90] sm:$0xff]
  %v455 = vld [vmem:[%s445 + $0xa0] sm:$0xff]
  %v456 = vld [vmem:[%s445 + $0xb0] sm:$0xff]
  %v457 = vld [vmem:[%s445 + $0xc0] sm:$0xff]
  %v458 = vld [vmem:[%s445 + $0xd0] sm:$0xff]
  %v459 = vld [vmem:[%s445 + $0xe0] sm:$0xff]
  %v460 = vld [vmem:[%s445 + $0xf0] sm:$0xff]
  %v461 = vld [vmem:[%s445 + $0x100] sm:$0xff]
  %s462 = scalar_lea.vmem %s1, 4
  %v463 = vld [vmem:[%s462] sm:$0x1]
  %465 = vset.pattern.permute.xlu0 0
  %466 = vperm.xlu0 %465, %v446
  %v467 = vpop.permute.xlu0 %466
  %470 = vset.pattern.permute.xlu0 0
  %471 = vperm.xlu0 %470, %v447
  %v472 = vpop.permute.xlu0 %471
  %475 = vset.pattern.permute.xlu0 0
  %476 = vperm.xlu0 %475, %v448
  %v477 = vpop.permute.xlu0 %476
  %480 = vset.pattern.permute.xlu0 0
  %481 = vperm.xlu0 %480, %v449
  %v482 = vpop.permute.xlu0 %481
  %485 = vset.pattern.permute.xlu0 0
  %486 = vperm.xlu0 %485, %v450
  %v487 = vpop.permute.xlu0 %486
  %490 = vset.pattern.permute.xlu0 0
  %491 = vperm.xlu0 %490, %v451
  %v492 = vpop.permute.xlu0 %491
  %495 = vset.pattern.permute.xlu0 0
  %496 = vperm.xlu0 %495, %v452
  %v497 = vpop.permute.xlu0 %496
  %500 = vset.pattern.permute.xlu0 0
  %501 = vperm.xlu0 %500, %v453
  %v502 = vpop.permute.xlu0 %501
  %505 = vset.pattern.permute.xlu0 0
  %506 = vperm.xlu0 %505, %v454
  %v507 = vpop.permute.xlu0 %506
  %510 = vset.pattern.permute.xlu0 0
  %511 = vperm.xlu0 %510, %v455
  %v512 = vpop.permute.xlu0 %511
  %515 = vset.pattern.permute.xlu0 0
  %516 = vperm.xlu0 %515, %v456
  %v517 = vpop.permute.xlu0 %516
  %520 = vset.pattern.permute.xlu0 0
  %521 = vperm.xlu0 %520, %v457
  %v522 = vpop.permute.xlu0 %521
  %525 = vset.pattern.permute.xlu0 0
  %526 = vperm.xlu0 %525, %v458
  %v527 = vpop.permute.xlu0 %526
  %530 = vset.pattern.permute.xlu0 0
  %531 = vperm.xlu0 %530, %v459
  %v532 = vpop.permute.xlu0 %531
  %535 = vset.pattern.permute.xlu0 0
  %536 = vperm.xlu0 %535, %v460
  %v537 = vpop.permute.xlu0 %536
  %540 = vset.pattern.permute.xlu0 0
  %541 = vperm.xlu0 %540, %v461
  %v542 = vpop.permute.xlu0 %541
  %v545 = vlaneseq
  %v546 = vshrl.u32 %v545, 7
  %v547 = vsub.s32 0, %v546
  %v548 = vrot.slane %v463, %v547
  %v550 = vmul.f32 %v467, %v548
  %v551 = vmul.f32 %v472, %v548
  %v552 = vmul.f32 %v477, %v548
  %v553 = vmul.f32 %v482, %v548
  %v554 = vmul.f32 %v487, %v548
  %v555 = vmul.f32 %v492, %v548
  %v556 = vmul.f32 %v497, %v548
  %v557 = vmul.f32 %v502, %v548
  %v558 = vmul.f32 %v507, %v548
  %v559 = vmul.f32 %v512, %v548
  %v560 = vmul.f32 %v517, %v548
  %v561 = vmul.f32 %v522, %v548
  %v562 = vmul.f32 %v527, %v548
  %v563 = vmul.f32 %v532, %v548
  %v564 = vmul.f32 %v537, %v548
  %v565 = vmul.f32 %v542, %v548
  %v566 = vadd.f32 %v429, %v550
  %v567 = vadd.f32 %v430, %v551
  %v568 = vadd.f32 %v431, %v552
  %v569 = vadd.f32 %v432, %v553
  %v570 = vadd.f32 %v433, %v554
  %v571 = vadd.f32 %v434, %v555
  %v572 = vadd.f32 %v435, %v556
  %v573 = vadd.f32 %v436, %v557
  %v574 = vadd.f32 %v437, %v558
  %v575 = vadd.f32 %v438, %v559
  %v576 = vadd.f32 %v439, %v560
  %v577 = vadd.f32 %v440, %v561
  %v578 = vadd.f32 %v441, %v562
  %v579 = vadd.f32 %v442, %v563
  %v580 = vadd.f32 %v443, %v564
  %v581 = vadd.f32 %v444, %v565
  %s582 = scalar_lea.vmem %s1, 5
  %v583 = vld [vmem:[%s582] sm:$0x1]
  %584 = vset.pattern.permute.xlu0 1
  %585 = vperm.xlu0 %584, %v446
  %v586 = vpop.permute.xlu0 %585
  %588 = vset.pattern.permute.xlu0 1
  %589 = vperm.xlu0 %588, %v447
  %v590 = vpop.permute.xlu0 %589
  %592 = vset.pattern.permute.xlu0 1
  %593 = vperm.xlu0 %592, %v448
  %v594 = vpop.permute.xlu0 %593
  %596 = vset.pattern.permute.xlu0 1
  %597 = vperm.xlu0 %596, %v449
  %v598 = vpop.permute.xlu0 %597
  %600 = vset.pattern.permute.xlu0 1
  %601 = vperm.xlu0 %600, %v450
  %v602 = vpop.permute.xlu0 %601
  %604 = vset.pattern.permute.xlu0 1
  %605 = vperm.xlu0 %604, %v451
  %v606 = vpop.permute.xlu0 %605
  %608 = vset.pattern.permute.xlu0 1
  %609 = vperm.xlu0 %608, %v452
  %v610 = vpop.permute.xlu0 %609
  %612 = vset.pattern.permute.xlu0 1
  %613 = vperm.xlu0 %612, %v453
  %v614 = vpop.permute.xlu0 %613
  %616 = vset.pattern.permute.xlu0 1
  %617 = vperm.xlu0 %616, %v454
  %v618 = vpop.permute.xlu0 %617
  %620 = vset.pattern.permute.xlu0 1
  %621 = vperm.xlu0 %620, %v455
  %v622 = vpop.permute.xlu0 %621
  %624 = vset.pattern.permute.xlu0 1
  %625 = vperm.xlu0 %624, %v456
  %v626 = vpop.permute.xlu0 %625
  %628 = vset.pattern.permute.xlu0 1
  %629 = vperm.xlu0 %628, %v457
  %v630 = vpop.permute.xlu0 %629
  %632 = vset.pattern.permute.xlu0 1
  %633 = vperm.xlu0 %632, %v458
  %v634 = vpop.permute.xlu0 %633
  %636 = vset.pattern.permute.xlu0 1
  %637 = vperm.xlu0 %636, %v459
  %v638 = vpop.permute.xlu0 %637
  %640 = vset.pattern.permute.xlu0 1
  %641 = vperm.xlu0 %640, %v460
  %v642 = vpop.permute.xlu0 %641
  %644 = vset.pattern.permute.xlu0 1
  %645 = vperm.xlu0 %644, %v461
  %v646 = vpop.permute.xlu0 %645
  %v649 = vlaneseq
  %v650 = vshrl.u32 %v649, 7
  %v651 = vsub.s32 0, %v650
  %v652 = vrot.slane %v583, %v651
  %v654 = vmul.f32 %v586, %v652
  %v655 = vmul.f32 %v590, %v652
  %v656 = vmul.f32 %v594, %v652
  %v657 = vmul.f32 %v598, %v652
  %v658 = vmul.f32 %v602, %v652
  %v659 = vmul.f32 %v606, %v652
  %v660 = vmul.f32 %v610, %v652
  %v661 = vmul.f32 %v614, %v652
  %v662 = vmul.f32 %v618, %v652
  %v663 = vmul.f32 %v622, %v652
  %v664 = vmul.f32 %v626, %v652
  %v665 = vmul.f32 %v630, %v652
  %v666 = vmul.f32 %v634, %v652
  %v667 = vmul.f32 %v638, %v652
  %v668 = vmul.f32 %v642, %v652
  %v669 = vmul.f32 %v646, %v652
  %v670 = vadd.f32 %v566, %v654
  %v671 = vadd.f32 %v567, %v655
  %v672 = vadd.f32 %v568, %v656
  %v673 = vadd.f32 %v569, %v657
  %v674 = vadd.f32 %v570, %v658
  %v675 = vadd.f32 %v571, %v659
  %v676 = vadd.f32 %v572, %v660
  %v677 = vadd.f32 %v573, %v661
  %v678 = vadd.f32 %v574, %v662
  %v679 = vadd.f32 %v575, %v663
  %v680 = vadd.f32 %v576, %v664
  %v681 = vadd.f32 %v577, %v665
  %v682 = vadd.f32 %v578, %v666
  %v683 = vadd.f32 %v579, %v667
  %v684 = vadd.f32 %v580, %v668
  %v685 = vadd.f32 %v581, %v669
  %s686 = scalar_lea.vmem %s1, 6
  %v687 = vld [vmem:[%s686] sm:$0x1]
  %688 = vset.pattern.permute.xlu0 2
  %689 = vperm.xlu0 %688, %v446
  %v690 = vpop.permute.xlu0 %689
  %692 = vset.pattern.permute.xlu0 2
  %693 = vperm.xlu0 %692, %v447
  %v694 = vpop.permute.xlu0 %693
  %696 = vset.pattern.permute.xlu0 2
  %697 = vperm.xlu0 %696, %v448
  %v698 = vpop.permute.xlu0 %697
  %700 = vset.pattern.permute.xlu0 2
  %701 = vperm.xlu0 %700, %v449
  %v702 = vpop.permute.xlu0 %701
  %704 = vset.pattern.permute.xlu0 2
  %705 = vperm.xlu0 %704, %v450
  %v706 = vpop.permute.xlu0 %705
  %708 = vset.pattern.permute.xlu0 2
  %709 = vperm.xlu0 %708, %v451
  %v710 = vpop.permute.xlu0 %709
  %712 = vset.pattern.permute.xlu0 2
  %713 = vperm.xlu0 %712, %v452
  %v714 = vpop.permute.xlu0 %713
  %716 = vset.pattern.permute.xlu0 2
  %717 = vperm.xlu0 %716, %v453
  %v718 = vpop.permute.xlu0 %717
  %720 = vset.pattern.permute.xlu0 2
  %721 = vperm.xlu0 %720, %v454
  %v722 = vpop.permute.xlu0 %721
  %724 = vset.pattern.permute.xlu0 2
  %725 = vperm.xlu0 %724, %v455
  %v726 = vpop.permute.xlu0 %725
  %728 = vset.pattern.permute.xlu0 2
  %729 = vperm.xlu0 %728, %v456
  %v730 = vpop.permute.xlu0 %729
  %732 = vset.pattern.permute.xlu0 2
  %733 = vperm.xlu0 %732, %v457
  %v734 = vpop.permute.xlu0 %733
  %736 = vset.pattern.permute.xlu0 2
  %737 = vperm.xlu0 %736, %v458
  %v738 = vpop.permute.xlu0 %737
  %740 = vset.pattern.permute.xlu0 2
  %741 = vperm.xlu0 %740, %v459
  %v742 = vpop.permute.xlu0 %741
  %744 = vset.pattern.permute.xlu0 2
  %745 = vperm.xlu0 %744, %v460
  %v746 = vpop.permute.xlu0 %745
  %748 = vset.pattern.permute.xlu0 2
  %749 = vperm.xlu0 %748, %v461
  %v750 = vpop.permute.xlu0 %749
  %v753 = vlaneseq
  %v754 = vshrl.u32 %v753, 7
  %v755 = vsub.s32 0, %v754
  %v756 = vrot.slane %v687, %v755
  %v758 = vmul.f32 %v690, %v756
  %v759 = vmul.f32 %v694, %v756
  %v760 = vmul.f32 %v698, %v756
  %v761 = vmul.f32 %v702, %v756
  %v762 = vmul.f32 %v706, %v756
  %v763 = vmul.f32 %v710, %v756
  %v764 = vmul.f32 %v714, %v756
  %v765 = vmul.f32 %v718, %v756
  %v766 = vmul.f32 %v722, %v756
  %v767 = vmul.f32 %v726, %v756
  %v768 = vmul.f32 %v730, %v756
  %v769 = vmul.f32 %v734, %v756
  %v770 = vmul.f32 %v738, %v756
  %v771 = vmul.f32 %v742, %v756
  %v772 = vmul.f32 %v746, %v756
  %v773 = vmul.f32 %v750, %v756
  %v774 = vadd.f32 %v670, %v758
  %v775 = vadd.f32 %v671, %v759
  %v776 = vadd.f32 %v672, %v760
  %v777 = vadd.f32 %v673, %v761
  %v778 = vadd.f32 %v674, %v762
  %v779 = vadd.f32 %v675, %v763
  %v780 = vadd.f32 %v676, %v764
  %v781 = vadd.f32 %v677, %v765
  %v782 = vadd.f32 %v678, %v766
  %v783 = vadd.f32 %v679, %v767
  %v784 = vadd.f32 %v680, %v768
  %v785 = vadd.f32 %v681, %v769
  %v786 = vadd.f32 %v682, %v770
  %v787 = vadd.f32 %v683, %v771
  %v788 = vadd.f32 %v684, %v772
  %v789 = vadd.f32 %v685, %v773
  %s790 = scalar_lea.vmem %s1, 7
  %v791 = vld [vmem:[%s790] sm:$0x1]
  %792 = vset.pattern.permute.xlu0 3
  %793 = vperm.xlu0 %792, %v446
  %v794 = vpop.permute.xlu0 %793
  %796 = vset.pattern.permute.xlu0 3
  %797 = vperm.xlu0 %796, %v447
  %v798 = vpop.permute.xlu0 %797
  %800 = vset.pattern.permute.xlu0 3
  %801 = vperm.xlu0 %800, %v448
  %v802 = vpop.permute.xlu0 %801
  %804 = vset.pattern.permute.xlu0 3
  %805 = vperm.xlu0 %804, %v449
  %v806 = vpop.permute.xlu0 %805
  %808 = vset.pattern.permute.xlu0 3
  %809 = vperm.xlu0 %808, %v450
  %v810 = vpop.permute.xlu0 %809
  %812 = vset.pattern.permute.xlu0 3
  %813 = vperm.xlu0 %812, %v451
  %v814 = vpop.permute.xlu0 %813
  %816 = vset.pattern.permute.xlu0 3
  %817 = vperm.xlu0 %816, %v452
  %v818 = vpop.permute.xlu0 %817
  %820 = vset.pattern.permute.xlu0 3
  %821 = vperm.xlu0 %820, %v453
  %v822 = vpop.permute.xlu0 %821
  %824 = vset.pattern.permute.xlu0 3
  %825 = vperm.xlu0 %824, %v454
  %v826 = vpop.permute.xlu0 %825
  %828 = vset.pattern.permute.xlu0 3
  %829 = vperm.xlu0 %828, %v455
  %v830 = vpop.permute.xlu0 %829
  %832 = vset.pattern.permute.xlu0 3
  %833 = vperm.xlu0 %832, %v456
  %v834 = vpop.permute.xlu0 %833
  %836 = vset.pattern.permute.xlu0 3
  %837 = vperm.xlu0 %836, %v457
  %v838 = vpop.permute.xlu0 %837
  %840 = vset.pattern.permute.xlu0 3
  %841 = vperm.xlu0 %840, %v458
  %v842 = vpop.permute.xlu0 %841
  %844 = vset.pattern.permute.xlu0 3
  %845 = vperm.xlu0 %844, %v459
  %v846 = vpop.permute.xlu0 %845
  %848 = vset.pattern.permute.xlu0 3
  %849 = vperm.xlu0 %848, %v460
  %v850 = vpop.permute.xlu0 %849
  %852 = vset.pattern.permute.xlu0 3
  %853 = vperm.xlu0 %852, %v461
  %v854 = vpop.permute.xlu0 %853
  %v857 = vlaneseq
  %v858 = vshrl.u32 %v857, 7
  %v859 = vsub.s32 0, %v858
  %v860 = vrot.slane %v791, %v859
  %v862 = vmul.f32 %v794, %v860
  %v863 = vmul.f32 %v798, %v860
  %v864 = vmul.f32 %v802, %v860
  %v865 = vmul.f32 %v806, %v860
  %v866 = vmul.f32 %v810, %v860
  %v867 = vmul.f32 %v814, %v860
  %v868 = vmul.f32 %v818, %v860
  %v869 = vmul.f32 %v822, %v860
  %v870 = vmul.f32 %v826, %v860
  %v871 = vmul.f32 %v830, %v860
  %v872 = vmul.f32 %v834, %v860
  %v873 = vmul.f32 %v838, %v860
  %v874 = vmul.f32 %v842, %v860
  %v875 = vmul.f32 %v846, %v860
  %v876 = vmul.f32 %v850, %v860
  %v877 = vmul.f32 %v854, %v860
  %v878 = vadd.f32 %v774, %v862
  %v879 = vadd.f32 %v775, %v863
  %v880 = vadd.f32 %v776, %v864
  %v881 = vadd.f32 %v777, %v865
  %v882 = vadd.f32 %v778, %v866
  %v883 = vadd.f32 %v779, %v867
  %v884 = vadd.f32 %v780, %v868
  %v885 = vadd.f32 %v781, %v869
  %v886 = vadd.f32 %v782, %v870
  %v887 = vadd.f32 %v783, %v871
  %v888 = vadd.f32 %v784, %v872
  %v889 = vadd.f32 %v785, %v873
  %v890 = vadd.f32 %v786, %v874
  %v891 = vadd.f32 %v787, %v875
  %v892 = vadd.f32 %v788, %v876
  %v893 = vadd.f32 %v789, %v877
  %v894 = vld [vmem:[%s0 + $0x1] sm:$0xff]
  %v895 = vld [vmem:[%s0 + $0x11] sm:$0xff]
  %v896 = vld [vmem:[%s0 + $0x21] sm:$0xff]
  %v897 = vld [vmem:[%s0 + $0x31] sm:$0xff]
  %v898 = vld [vmem:[%s0 + $0x41] sm:$0xff]
  %v899 = vld [vmem:[%s0 + $0x51] sm:$0xff]
  %v900 = vld [vmem:[%s0 + $0x61] sm:$0xff]
  %v901 = vld [vmem:[%s0 + $0x71] sm:$0xff]
  %v902 = vld [vmem:[%s0 + $0x91] sm:$0xff]
  %v903 = vld [vmem:[%s0 + $0xa1] sm:$0xff]
  %v904 = vld [vmem:[%s0 + $0xb1] sm:$0xff]
  %v905 = vld [vmem:[%s0 + $0xc1] sm:$0xff]
  %v906 = vld [vmem:[%s0 + $0xd1] sm:$0xff]
  %v907 = vld [vmem:[%s0 + $0xe1] sm:$0xff]
  %v908 = vld [vmem:[%s0 + $0xf1] sm:$0xff]
  %v909 = vld [vmem:[%s0 + $0x101] sm:$0xff]
  %s910 = scalar_lea.vmem %s1, 8
  %v911 = vld [vmem:[%s910] sm:$0x1]
  %913 = vset.pattern.permute.xlu0 0
  %914 = vperm.xlu0 %913, %v894
  %v915 = vpop.permute.xlu0 %914
  %918 = vset.pattern.permute.xlu0 0
  %919 = vperm.xlu0 %918, %v895
  %v920 = vpop.permute.xlu0 %919
  %923 = vset.pattern.permute.xlu0 0
  %924 = vperm.xlu0 %923, %v896
  %v925 = vpop.permute.xlu0 %924
  %928 = vset.pattern.permute.xlu0 0
  %929 = vperm.xlu0 %928, %v897
  %v930 = vpop.permute.xlu0 %929
  %933 = vset.pattern.permute.xlu0 0
  %934 = vperm.xlu0 %933, %v898
  %v935 = vpop.permute.xlu0 %934
  %938 = vset.pattern.permute.xlu0 0
  %939 = vperm.xlu0 %938, %v899
  %v940 = vpop.permute.xlu0 %939
  %943 = vset.pattern.permute.xlu0 0
  %944 = vperm.xlu0 %943, %v900
  %v945 = vpop.permute.xlu0 %944
  %948 = vset.pattern.permute.xlu0 0
  %949 = vperm.xlu0 %948, %v901
  %v950 = vpop.permute.xlu0 %949
  %953 = vset.pattern.permute.xlu0 0
  %954 = vperm.xlu0 %953, %v902
  %v955 = vpop.permute.xlu0 %954
  %958 = vset.pattern.permute.xlu0 0
  %959 = vperm.xlu0 %958, %v903
  %v960 = vpop.permute.xlu0 %959
  %963 = vset.pattern.permute.xlu0 0
  %964 = vperm.xlu0 %963, %v904
  %v965 = vpop.permute.xlu0 %964
  %968 = vset.pattern.permute.xlu0 0
  %969 = vperm.xlu0 %968, %v905
  %v970 = vpop.permute.xlu0 %969
  %973 = vset.pattern.permute.xlu0 0
  %974 = vperm.xlu0 %973, %v906
  %v975 = vpop.permute.xlu0 %974
  %978 = vset.pattern.permute.xlu0 0
  %979 = vperm.xlu0 %978, %v907
  %v980 = vpop.permute.xlu0 %979
  %983 = vset.pattern.permute.xlu0 0
  %984 = vperm.xlu0 %983, %v908
  %v985 = vpop.permute.xlu0 %984
  %988 = vset.pattern.permute.xlu0 0
  %989 = vperm.xlu0 %988, %v909
  %v990 = vpop.permute.xlu0 %989
  %v993 = vlaneseq
  %v994 = vshrl.u32 %v993, 7
  %v995 = vsub.s32 0, %v994
  %v996 = vrot.slane %v911, %v995
  %v998 = vmul.f32 %v915, %v996
  %v999 = vmul.f32 %v920, %v996
  %v1000 = vmul.f32 %v925, %v996
  %v1001 = vmul.f32 %v930, %v996
  %v1002 = vmul.f32 %v935, %v996
  %v1003 = vmul.f32 %v940, %v996
  %v1004 = vmul.f32 %v945, %v996
  %v1005 = vmul.f32 %v950, %v996
  %v1006 = vmul.f32 %v955, %v996
  %v1007 = vmul.f32 %v960, %v996
  %v1008 = vmul.f32 %v965, %v996
  %v1009 = vmul.f32 %v970, %v996
  %v1010 = vmul.f32 %v975, %v996
  %v1011 = vmul.f32 %v980, %v996
  %v1012 = vmul.f32 %v985, %v996
  %v1013 = vmul.f32 %v990, %v996
  %v1014 = vadd.f32 %v878, %v998
  %v1015 = vadd.f32 %v879, %v999
  %v1016 = vadd.f32 %v880, %v1000
  %v1017 = vadd.f32 %v881, %v1001
  %v1018 = vadd.f32 %v882, %v1002
  %v1019 = vadd.f32 %v883, %v1003
  %v1020 = vadd.f32 %v884, %v1004
  %v1021 = vadd.f32 %v885, %v1005
  %v1022 = vadd.f32 %v886, %v1006
  %v1023 = vadd.f32 %v887, %v1007
  %v1024 = vadd.f32 %v888, %v1008
  %v1025 = vadd.f32 %v889, %v1009
  %v1026 = vadd.f32 %v890, %v1010
  %v1027 = vadd.f32 %v891, %v1011
  %v1028 = vadd.f32 %v892, %v1012
  %v1029 = vadd.f32 %v893, %v1013
  %s1030 = scalar_lea.vmem %s1, 9
  %v1031 = vld [vmem:[%s1030] sm:$0x1]
  %1032 = vset.pattern.permute.xlu0 1
  %1033 = vperm.xlu0 %1032, %v894
  %v1034 = vpop.permute.xlu0 %1033
  %1036 = vset.pattern.permute.xlu0 1
  %1037 = vperm.xlu0 %1036, %v895
  %v1038 = vpop.permute.xlu0 %1037
  %1040 = vset.pattern.permute.xlu0 1
  %1041 = vperm.xlu0 %1040, %v896
  %v1042 = vpop.permute.xlu0 %1041
  %1044 = vset.pattern.permute.xlu0 1
  %1045 = vperm.xlu0 %1044, %v897
  %v1046 = vpop.permute.xlu0 %1045
  %1048 = vset.pattern.permute.xlu0 1
  %1049 = vperm.xlu0 %1048, %v898
  %v1050 = vpop.permute.xlu0 %1049
  %1052 = vset.pattern.permute.xlu0 1
  %1053 = vperm.xlu0 %1052, %v899
  %v1054 = vpop.permute.xlu0 %1053
  %1056 = vset.pattern.permute.xlu0 1
  %1057 = vperm.xlu0 %1056, %v900
  %v1058 = vpop.permute.xlu0 %1057
  %1060 = vset.pattern.permute.xlu0 1
  %1061 = vperm.xlu0 %1060, %v901
  %v1062 = vpop.permute.xlu0 %1061
  %1064 = vset.pattern.permute.xlu0 1
  %1065 = vperm.xlu0 %1064, %v902
  %v1066 = vpop.permute.xlu0 %1065
  %1068 = vset.pattern.permute.xlu0 1
  %1069 = vperm.xlu0 %1068, %v903
  %v1070 = vpop.permute.xlu0 %1069
  %1072 = vset.pattern.permute.xlu0 1
  %1073 = vperm.xlu0 %1072, %v904
  %v1074 = vpop.permute.xlu0 %1073
  %1076 = vset.pattern.permute.xlu0 1
  %1077 = vperm.xlu0 %1076, %v905
  %v1078 = vpop.permute.xlu0 %1077
  %1080 = vset.pattern.permute.xlu0 1
  %1081 = vperm.xlu0 %1080, %v906
  %v1082 = vpop.permute.xlu0 %1081
  %1084 = vset.pattern.permute.xlu0 1
  %1085 = vperm.xlu0 %1084, %v907
  %v1086 = vpop.permute.xlu0 %1085
  %1088 = vset.pattern.permute.xlu0 1
  %1089 = vperm.xlu0 %1088, %v908
  %v1090 = vpop.permute.xlu0 %1089
  %1092 = vset.pattern.permute.xlu0 1
  %1093 = vperm.xlu0 %1092, %v909
  %v1094 = vpop.permute.xlu0 %1093
  %v1097 = vlaneseq
  %v1098 = vshrl.u32 %v1097, 7
  %v1099 = vsub.s32 0, %v1098
  %v1100 = vrot.slane %v1031, %v1099
  %v1102 = vmul.f32 %v1034, %v1100
  %v1103 = vmul.f32 %v1038, %v1100
  %v1104 = vmul.f32 %v1042, %v1100
  %v1105 = vmul.f32 %v1046, %v1100
  %v1106 = vmul.f32 %v1050, %v1100
  %v1107 = vmul.f32 %v1054, %v1100
  %v1108 = vmul.f32 %v1058, %v1100
  %v1109 = vmul.f32 %v1062, %v1100
  %v1110 = vmul.f32 %v1066, %v1100
  %v1111 = vmul.f32 %v1070, %v1100
  %v1112 = vmul.f32 %v1074, %v1100
  %v1113 = vmul.f32 %v1078, %v1100
  %v1114 = vmul.f32 %v1082, %v1100
  %v1115 = vmul.f32 %v1086, %v1100
  %v1116 = vmul.f32 %v1090, %v1100
  %v1117 = vmul.f32 %v1094, %v1100
  %v1118 = vadd.f32 %v1014, %v1102
  %v1119 = vadd.f32 %v1015, %v1103
  %v1120 = vadd.f32 %v1016, %v1104
  %v1121 = vadd.f32 %v1017, %v1105
  %v1122 = vadd.f32 %v1018, %v1106
  %v1123 = vadd.f32 %v1019, %v1107
  %v1124 = vadd.f32 %v1020, %v1108
  %v1125 = vadd.f32 %v1021, %v1109
  %v1126 = vadd.f32 %v1022, %v1110
  %v1127 = vadd.f32 %v1023, %v1111
  %v1128 = vadd.f32 %v1024, %v1112
  %v1129 = vadd.f32 %v1025, %v1113
  %v1130 = vadd.f32 %v1026, %v1114
  %v1131 = vadd.f32 %v1027, %v1115
  %v1132 = vadd.f32 %v1028, %v1116
  %v1133 = vadd.f32 %v1029, %v1117
  %s1134 = scalar_lea.vmem %s1, 10
  %v1135 = vld [vmem:[%s1134] sm:$0x1]
  %1136 = vset.pattern.permute.xlu0 2
  %1137 = vperm.xlu0 %1136, %v894
  %v1138 = vpop.permute.xlu0 %1137
  %1140 = vset.pattern.permute.xlu0 2
  %1141 = vperm.xlu0 %1140, %v895
  %v1142 = vpop.permute.xlu0 %1141
  %1144 = vset.pattern.permute.xlu0 2
  %1145 = vperm.xlu0 %1144, %v896
  %v1146 = vpop.permute.xlu0 %1145
  %1148 = vset.pattern.permute.xlu0 2
  %1149 = vperm.xlu0 %1148, %v897
  %v1150 = vpop.permute.xlu0 %1149
  %1152 = vset.pattern.permute.xlu0 2
  %1153 = vperm.xlu0 %1152, %v898
  %v1154 = vpop.permute.xlu0 %1153
  %1156 = vset.pattern.permute.xlu0 2
  %1157 = vperm.xlu0 %1156, %v899
  %v1158 = vpop.permute.xlu0 %1157
  %1160 = vset.pattern.permute.xlu0 2
  %1161 = vperm.xlu0 %1160, %v900
  %v1162 = vpop.permute.xlu0 %1161
  %1164 = vset.pattern.permute.xlu0 2
  %1165 = vperm.xlu0 %1164, %v901
  %v1166 = vpop.permute.xlu0 %1165
  %1168 = vset.pattern.permute.xlu0 2
  %1169 = vperm.xlu0 %1168, %v902
  %v1170 = vpop.permute.xlu0 %1169
  %1172 = vset.pattern.permute.xlu0 2
  %1173 = vperm.xlu0 %1172, %v903
  %v1174 = vpop.permute.xlu0 %1173
  %1176 = vset.pattern.permute.xlu0 2
  %1177 = vperm.xlu0 %1176, %v904
  %v1178 = vpop.permute.xlu0 %1177
  %1180 = vset.pattern.permute.xlu0 2
  %1181 = vperm.xlu0 %1180, %v905
  %v1182 = vpop.permute.xlu0 %1181
  %1184 = vset.pattern.permute.xlu0 2
  %1185 = vperm.xlu0 %1184, %v906
  %v1186 = vpop.permute.xlu0 %1185
  %1188 = vset.pattern.permute.xlu0 2
  %1189 = vperm.xlu0 %1188, %v907
  %v1190 = vpop.permute.xlu0 %1189
  %1192 = vset.pattern.permute.xlu0 2
  %1193 = vperm.xlu0 %1192, %v908
  %v1194 = vpop.permute.xlu0 %1193
  %1196 = vset.pattern.permute.xlu0 2
  %1197 = vperm.xlu0 %1196, %v909
  %v1198 = vpop.permute.xlu0 %1197
  %v1201 = vlaneseq
  %v1202 = vshrl.u32 %v1201, 7
  %v1203 = vsub.s32 0, %v1202
  %v1204 = vrot.slane %v1135, %v1203
  %v1206 = vmul.f32 %v1138, %v1204
  %v1207 = vmul.f32 %v1142, %v1204
  %v1208 = vmul.f32 %v1146, %v1204
  %v1209 = vmul.f32 %v1150, %v1204
  %v1210 = vmul.f32 %v1154, %v1204
  %v1211 = vmul.f32 %v1158, %v1204
  %v1212 = vmul.f32 %v1162, %v1204
  %v1213 = vmul.f32 %v1166, %v1204
  %v1214 = vmul.f32 %v1170, %v1204
  %v1215 = vmul.f32 %v1174, %v1204
  %v1216 = vmul.f32 %v1178, %v1204
  %v1217 = vmul.f32 %v1182, %v1204
  %v1218 = vmul.f32 %v1186, %v1204
  %v1219 = vmul.f32 %v1190, %v1204
  %v1220 = vmul.f32 %v1194, %v1204
  %v1221 = vmul.f32 %v1198, %v1204
  %v1222 = vadd.f32 %v1118, %v1206
  %v1223 = vadd.f32 %v1119, %v1207
  %v1224 = vadd.f32 %v1120, %v1208
  %v1225 = vadd.f32 %v1121, %v1209
  %v1226 = vadd.f32 %v1122, %v1210
  %v1227 = vadd.f32 %v1123, %v1211
  %v1228 = vadd.f32 %v1124, %v1212
  %v1229 = vadd.f32 %v1125, %v1213
  %v1230 = vadd.f32 %v1126, %v1214
  %v1231 = vadd.f32 %v1127, %v1215
  %v1232 = vadd.f32 %v1128, %v1216
  %v1233 = vadd.f32 %v1129, %v1217
  %v1234 = vadd.f32 %v1130, %v1218
  %v1235 = vadd.f32 %v1131, %v1219
  %v1236 = vadd.f32 %v1132, %v1220
  %v1237 = vadd.f32 %v1133, %v1221
  %s1238 = scalar_lea.vmem %s1, 11
  %v1239 = vld [vmem:[%s1238] sm:$0x1]
  %1240 = vset.pattern.permute.xlu0 3
  %1241 = vperm.xlu0 %1240, %v894
  %v1242 = vpop.permute.xlu0 %1241
  %1244 = vset.pattern.permute.xlu0 3
  %1245 = vperm.xlu0 %1244, %v895
  %v1246 = vpop.permute.xlu0 %1245
  %1248 = vset.pattern.permute.xlu0 3
  %1249 = vperm.xlu0 %1248, %v896
  %v1250 = vpop.permute.xlu0 %1249
  %1252 = vset.pattern.permute.xlu0 3
  %1253 = vperm.xlu0 %1252, %v897
  %v1254 = vpop.permute.xlu0 %1253
  %1256 = vset.pattern.permute.xlu0 3
  %1257 = vperm.xlu0 %1256, %v898
  %v1258 = vpop.permute.xlu0 %1257
  %1260 = vset.pattern.permute.xlu0 3
  %1261 = vperm.xlu0 %1260, %v899
  %v1262 = vpop.permute.xlu0 %1261
  %1264 = vset.pattern.permute.xlu0 3
  %1265 = vperm.xlu0 %1264, %v900
  %v1266 = vpop.permute.xlu0 %1265
  %1268 = vset.pattern.permute.xlu0 3
  %1269 = vperm.xlu0 %1268, %v901
  %v1270 = vpop.permute.xlu0 %1269
  %1272 = vset.pattern.permute.xlu0 3
  %1273 = vperm.xlu0 %1272, %v902
  %v1274 = vpop.permute.xlu0 %1273
  %1276 = vset.pattern.permute.xlu0 3
  %1277 = vperm.xlu0 %1276, %v903
  %v1278 = vpop.permute.xlu0 %1277
  %1280 = vset.pattern.permute.xlu0 3
  %1281 = vperm.xlu0 %1280, %v904
  %v1282 = vpop.permute.xlu0 %1281
  %1284 = vset.pattern.permute.xlu0 3
  %1285 = vperm.xlu0 %1284, %v905
  %v1286 = vpop.permute.xlu0 %1285
  %1288 = vset.pattern.permute.xlu0 3
  %1289 = vperm.xlu0 %1288, %v906
  %v1290 = vpop.permute.xlu0 %1289
  %1292 = vset.pattern.permute.xlu0 3
  %1293 = vperm.xlu0 %1292, %v907
  %v1294 = vpop.permute.xlu0 %1293
  %1296 = vset.pattern.permute.xlu0 3
  %1297 = vperm.xlu0 %1296, %v908
  %v1298 = vpop.permute.xlu0 %1297
  %1300 = vset.pattern.permute.xlu0 3
  %1301 = vperm.xlu0 %1300, %v909
  %v1302 = vpop.permute.xlu0 %1301
  %v1305 = vlaneseq
  %v1306 = vshrl.u32 %v1305, 7
  %v1307 = vsub.s32 0, %v1306
  %v1308 = vrot.slane %v1239, %v1307
  %v1310 = vmul.f32 %v1242, %v1308
  %v1311 = vmul.f32 %v1246, %v1308
  %v1312 = vmul.f32 %v1250, %v1308
  %v1313 = vmul.f32 %v1254, %v1308
  %v1314 = vmul.f32 %v1258, %v1308
  %v1315 = vmul.f32 %v1262, %v1308
  %v1316 = vmul.f32 %v1266, %v1308
  %v1317 = vmul.f32 %v1270, %v1308
  %v1318 = vmul.f32 %v1274, %v1308
  %v1319 = vmul.f32 %v1278, %v1308
  %v1320 = vmul.f32 %v1282, %v1308
  %v1321 = vmul.f32 %v1286, %v1308
  %v1322 = vmul.f32 %v1290, %v1308
  %v1323 = vmul.f32 %v1294, %v1308
  %v1324 = vmul.f32 %v1298, %v1308
  %v1325 = vmul.f32 %v1302, %v1308
  %v1326 = vadd.f32 %v1222, %v1310
  %v1327 = vadd.f32 %v1223, %v1311
  %v1328 = vadd.f32 %v1224, %v1312
  %v1329 = vadd.f32 %v1225, %v1313
  %v1330 = vadd.f32 %v1226, %v1314
  %v1331 = vadd.f32 %v1227, %v1315
  %v1332 = vadd.f32 %v1228, %v1316
  %v1333 = vadd.f32 %v1229, %v1317
  %v1334 = vadd.f32 %v1230, %v1318
  %v1335 = vadd.f32 %v1231, %v1319
  %v1336 = vadd.f32 %v1232, %v1320
  %v1337 = vadd.f32 %v1233, %v1321
  %v1338 = vadd.f32 %v1234, %v1322
  %v1339 = vadd.f32 %v1235, %v1323
  %v1340 = vadd.f32 %v1236, %v1324
  %v1341 = vadd.f32 %v1237, %v1325
  %s1342 = scalar_lea.vmem %s0, 576
  %v1343 = vld [vmem:[%s1342] sm:$0xff]
  %v1344 = vld [vmem:[%s1342 + $0x10] sm:$0xff]
  %v1345 = vld [vmem:[%s1342 + $0x20] sm:$0xff]
  %v1346 = vld [vmem:[%s1342 + $0x30] sm:$0xff]
  %v1347 = vld [vmem:[%s1342 + $0x40] sm:$0xff]
  %v1348 = vld [vmem:[%s1342 + $0x50] sm:$0xff]
  %v1349 = vld [vmem:[%s1342 + $0x60] sm:$0xff]
  %v1350 = vld [vmem:[%s1342 + $0x70] sm:$0xff]
  %v1351 = vld [vmem:[%s1342 + $0x90] sm:$0xff]
  %v1352 = vld [vmem:[%s1342 + $0xa0] sm:$0xff]
  %v1353 = vld [vmem:[%s1342 + $0xb0] sm:$0xff]
  %v1354 = vld [vmem:[%s1342 + $0xc0] sm:$0xff]
  %v1355 = vld [vmem:[%s1342 + $0xd0] sm:$0xff]
  %v1356 = vld [vmem:[%s1342 + $0xe0] sm:$0xff]
  %v1357 = vld [vmem:[%s1342 + $0xf0] sm:$0xff]
  %v1358 = vld [vmem:[%s1342 + $0x100] sm:$0xff]
  %s1359 = scalar_lea.vmem %s1, 12
  %v1360 = vld [vmem:[%s1359] sm:$0x1]
  %1362 = vset.pattern.permute.xlu0 0
  %1363 = vperm.xlu0 %1362, %v1343
  %v1364 = vpop.permute.xlu0 %1363
  %1367 = vset.pattern.permute.xlu0 0
  %1368 = vperm.xlu0 %1367, %v1344
  %v1369 = vpop.permute.xlu0 %1368
  %1372 = vset.pattern.permute.xlu0 0
  %1373 = vperm.xlu0 %1372, %v1345
  %v1374 = vpop.permute.xlu0 %1373
  %1377 = vset.pattern.permute.xlu0 0
  %1378 = vperm.xlu0 %1377, %v1346
  %v1379 = vpop.permute.xlu0 %1378
  %1382 = vset.pattern.permute.xlu0 0
  %1383 = vperm.xlu0 %1382, %v1347
  %v1384 = vpop.permute.xlu0 %1383
  %1387 = vset.pattern.permute.xlu0 0
  %1388 = vperm.xlu0 %1387, %v1348
  %v1389 = vpop.permute.xlu0 %1388
  %1392 = vset.pattern.permute.xlu0 0
  %1393 = vperm.xlu0 %1392, %v1349
  %v1394 = vpop.permute.xlu0 %1393
  %1397 = vset.pattern.permute.xlu0 0
  %1398 = vperm.xlu0 %1397, %v1350
  %v1399 = vpop.permute.xlu0 %1398
  %1402 = vset.pattern.permute.xlu0 0
  %1403 = vperm.xlu0 %1402, %v1351
  %v1404 = vpop.permute.xlu0 %1403
  %1407 = vset.pattern.permute.xlu0 0
  %1408 = vperm.xlu0 %1407, %v1352
  %v1409 = vpop.permute.xlu0 %1408
  %1412 = vset.pattern.permute.xlu0 0
  %1413 = vperm.xlu0 %1412, %v1353
  %v1414 = vpop.permute.xlu0 %1413
  %1417 = vset.pattern.permute.xlu0 0
  %1418 = vperm.xlu0 %1417, %v1354
  %v1419 = vpop.permute.xlu0 %1418
  %1422 = vset.pattern.permute.xlu0 0
  %1423 = vperm.xlu0 %1422, %v1355
  %v1424 = vpop.permute.xlu0 %1423
  %1427 = vset.pattern.permute.xlu0 0
  %1428 = vperm.xlu0 %1427, %v1356
  %v1429 = vpop.permute.xlu0 %1428
  %1432 = vset.pattern.permute.xlu0 0
  %1433 = vperm.xlu0 %1432, %v1357
  %v1434 = vpop.permute.xlu0 %1433
  %1437 = vset.pattern.permute.xlu0 0
  %1438 = vperm.xlu0 %1437, %v1358
  %v1439 = vpop.permute.xlu0 %1438
  %v1442 = vlaneseq
  %v1443 = vshrl.u32 %v1442, 7
  %v1444 = vsub.s32 0, %v1443
  %v1445 = vrot.slane %v1360, %v1444
  %v1447 = vmul.f32 %v1364, %v1445
  %v1448 = vmul.f32 %v1369, %v1445
  %v1449 = vmul.f32 %v1374, %v1445
  %v1450 = vmul.f32 %v1379, %v1445
  %v1451 = vmul.f32 %v1384, %v1445
  %v1452 = vmul.f32 %v1389, %v1445
  %v1453 = vmul.f32 %v1394, %v1445
  %v1454 = vmul.f32 %v1399, %v1445
  %v1455 = vmul.f32 %v1404, %v1445
  %v1456 = vmul.f32 %v1409, %v1445
  %v1457 = vmul.f32 %v1414, %v1445
  %v1458 = vmul.f32 %v1419, %v1445
  %v1459 = vmul.f32 %v1424, %v1445
  %v1460 = vmul.f32 %v1429, %v1445
  %v1461 = vmul.f32 %v1434, %v1445
  %v1462 = vmul.f32 %v1439, %v1445
  %v1463 = vadd.f32 %v1326, %v1447
  %v1464 = vadd.f32 %v1327, %v1448
  %v1465 = vadd.f32 %v1328, %v1449
  %v1466 = vadd.f32 %v1329, %v1450
  %v1467 = vadd.f32 %v1330, %v1451
  %v1468 = vadd.f32 %v1331, %v1452
  %v1469 = vadd.f32 %v1332, %v1453
  %v1470 = vadd.f32 %v1333, %v1454
  %v1471 = vadd.f32 %v1334, %v1455
  %v1472 = vadd.f32 %v1335, %v1456
  %v1473 = vadd.f32 %v1336, %v1457
  %v1474 = vadd.f32 %v1337, %v1458
  %v1475 = vadd.f32 %v1338, %v1459
  %v1476 = vadd.f32 %v1339, %v1460
  %v1477 = vadd.f32 %v1340, %v1461
  %v1478 = vadd.f32 %v1341, %v1462
  %s1479 = scalar_lea.vmem %s1, 13
  %v1480 = vld [vmem:[%s1479] sm:$0x1]
  %1481 = vset.pattern.permute.xlu0 1
  %1482 = vperm.xlu0 %1481, %v1343
  %v1483 = vpop.permute.xlu0 %1482
  %1485 = vset.pattern.permute.xlu0 1
  %1486 = vperm.xlu0 %1485, %v1344
  %v1487 = vpop.permute.xlu0 %1486
  %1489 = vset.pattern.permute.xlu0 1
  %1490 = vperm.xlu0 %1489, %v1345
  %v1491 = vpop.permute.xlu0 %1490
  %1493 = vset.pattern.permute.xlu0 1
  %1494 = vperm.xlu0 %1493, %v1346
  %v1495 = vpop.permute.xlu0 %1494
  %1497 = vset.pattern.permute.xlu0 1
  %1498 = vperm.xlu0 %1497, %v1347
  %v1499 = vpop.permute.xlu0 %1498
  %1501 = vset.pattern.permute.xlu0 1
  %1502 = vperm.xlu0 %1501, %v1348
  %v1503 = vpop.permute.xlu0 %1502
  %1505 = vset.pattern.permute.xlu0 1
  %1506 = vperm.xlu0 %1505, %v1349
  %v1507 = vpop.permute.xlu0 %1506
  %1509 = vset.pattern.permute.xlu0 1
  %1510 = vperm.xlu0 %1509, %v1350
  %v1511 = vpop.permute.xlu0 %1510
  %1513 = vset.pattern.permute.xlu0 1
  %1514 = vperm.xlu0 %1513, %v1351
  %v1515 = vpop.permute.xlu0 %1514
  %1517 = vset.pattern.permute.xlu0 1
  %1518 = vperm.xlu0 %1517, %v1352
  %v1519 = vpop.permute.xlu0 %1518
  %1521 = vset.pattern.permute.xlu0 1
  %1522 = vperm.xlu0 %1521, %v1353
  %v1523 = vpop.permute.xlu0 %1522
  %1525 = vset.pattern.permute.xlu0 1
  %1526 = vperm.xlu0 %1525, %v1354
  %v1527 = vpop.permute.xlu0 %1526
  %1529 = vset.pattern.permute.xlu0 1
  %1530 = vperm.xlu0 %1529, %v1355
  %v1531 = vpop.permute.xlu0 %1530
  %1533 = vset.pattern.permute.xlu0 1
  %1534 = vperm.xlu0 %1533, %v1356
  %v1535 = vpop.permute.xlu0 %1534
  %1537 = vset.pattern.permute.xlu0 1
  %1538 = vperm.xlu0 %1537, %v1357
  %v1539 = vpop.permute.xlu0 %1538
  %1541 = vset.pattern.permute.xlu0 1
  %1542 = vperm.xlu0 %1541, %v1358
  %v1543 = vpop.permute.xlu0 %1542
  %v1546 = vlaneseq
  %v1547 = vshrl.u32 %v1546, 7
  %v1548 = vsub.s32 0, %v1547
  %v1549 = vrot.slane %v1480, %v1548
  %v1551 = vmul.f32 %v1483, %v1549
  %v1552 = vmul.f32 %v1487, %v1549
  %v1553 = vmul.f32 %v1491, %v1549
  %v1554 = vmul.f32 %v1495, %v1549
  %v1555 = vmul.f32 %v1499, %v1549
  %v1556 = vmul.f32 %v1503, %v1549
  %v1557 = vmul.f32 %v1507, %v1549
  %v1558 = vmul.f32 %v1511, %v1549
  %v1559 = vmul.f32 %v1515, %v1549
  %v1560 = vmul.f32 %v1519, %v1549
  %v1561 = vmul.f32 %v1523, %v1549
  %v1562 = vmul.f32 %v1527, %v1549
  %v1563 = vmul.f32 %v1531, %v1549
  %v1564 = vmul.f32 %v1535, %v1549
  %v1565 = vmul.f32 %v1539, %v1549
  %v1566 = vmul.f32 %v1543, %v1549
  %v1567 = vadd.f32 %v1463, %v1551
  %v1568 = vadd.f32 %v1464, %v1552
  %v1569 = vadd.f32 %v1465, %v1553
  %v1570 = vadd.f32 %v1466, %v1554
  %v1571 = vadd.f32 %v1467, %v1555
  %v1572 = vadd.f32 %v1468, %v1556
  %v1573 = vadd.f32 %v1469, %v1557
  %v1574 = vadd.f32 %v1470, %v1558
  %v1575 = vadd.f32 %v1471, %v1559
  %v1576 = vadd.f32 %v1472, %v1560
  %v1577 = vadd.f32 %v1473, %v1561
  %v1578 = vadd.f32 %v1474, %v1562
  %v1579 = vadd.f32 %v1475, %v1563
  %v1580 = vadd.f32 %v1476, %v1564
  %v1581 = vadd.f32 %v1477, %v1565
  %v1582 = vadd.f32 %v1478, %v1566
  %s1583 = scalar_lea.vmem %s1, 14
  %v1584 = vld [vmem:[%s1583] sm:$0x1]
  %1585 = vset.pattern.permute.xlu0 2
  %1586 = vperm.xlu0 %1585, %v1343
  %v1587 = vpop.permute.xlu0 %1586
  %1589 = vset.pattern.permute.xlu0 2
  %1590 = vperm.xlu0 %1589, %v1344
  %v1591 = vpop.permute.xlu0 %1590
  %1593 = vset.pattern.permute.xlu0 2
  %1594 = vperm.xlu0 %1593, %v1345
  %v1595 = vpop.permute.xlu0 %1594
  %1597 = vset.pattern.permute.xlu0 2
  %1598 = vperm.xlu0 %1597, %v1346
  %v1599 = vpop.permute.xlu0 %1598
  %1601 = vset.pattern.permute.xlu0 2
  %1602 = vperm.xlu0 %1601, %v1347
  %v1603 = vpop.permute.xlu0 %1602
  %1605 = vset.pattern.permute.xlu0 2
  %1606 = vperm.xlu0 %1605, %v1348
  %v1607 = vpop.permute.xlu0 %1606
  %1609 = vset.pattern.permute.xlu0 2
  %1610 = vperm.xlu0 %1609, %v1349
  %v1611 = vpop.permute.xlu0 %1610
  %1613 = vset.pattern.permute.xlu0 2
  %1614 = vperm.xlu0 %1613, %v1350
  %v1615 = vpop.permute.xlu0 %1614
  %1617 = vset.pattern.permute.xlu0 2
  %1618 = vperm.xlu0 %1617, %v1351
  %v1619 = vpop.permute.xlu0 %1618
  %1621 = vset.pattern.permute.xlu0 2
  %1622 = vperm.xlu0 %1621, %v1352
  %v1623 = vpop.permute.xlu0 %1622
  %1625 = vset.pattern.permute.xlu0 2
  %1626 = vperm.xlu0 %1625, %v1353
  %v1627 = vpop.permute.xlu0 %1626
  %1629 = vset.pattern.permute.xlu0 2
  %1630 = vperm.xlu0 %1629, %v1354
  %v1631 = vpop.permute.xlu0 %1630
  %1633 = vset.pattern.permute.xlu0 2
  %1634 = vperm.xlu0 %1633, %v1355
  %v1635 = vpop.permute.xlu0 %1634
  %1637 = vset.pattern.permute.xlu0 2
  %1638 = vperm.xlu0 %1637, %v1356
  %v1639 = vpop.permute.xlu0 %1638
  %1641 = vset.pattern.permute.xlu0 2
  %1642 = vperm.xlu0 %1641, %v1357
  %v1643 = vpop.permute.xlu0 %1642
  %1645 = vset.pattern.permute.xlu0 2
  %1646 = vperm.xlu0 %1645, %v1358
  %v1647 = vpop.permute.xlu0 %1646
  %v1650 = vlaneseq
  %v1651 = vshrl.u32 %v1650, 7
  %v1652 = vsub.s32 0, %v1651
  %v1653 = vrot.slane %v1584, %v1652
  %v1655 = vmul.f32 %v1587, %v1653
  %v1656 = vmul.f32 %v1591, %v1653
  %v1657 = vmul.f32 %v1595, %v1653
  %v1658 = vmul.f32 %v1599, %v1653
  %v1659 = vmul.f32 %v1603, %v1653
  %v1660 = vmul.f32 %v1607, %v1653
  %v1661 = vmul.f32 %v1611, %v1653
  %v1662 = vmul.f32 %v1615, %v1653
  %v1663 = vmul.f32 %v1619, %v1653
  %v1664 = vmul.f32 %v1623, %v1653
  %v1665 = vmul.f32 %v1627, %v1653
  %v1666 = vmul.f32 %v1631, %v1653
  %v1667 = vmul.f32 %v1635, %v1653
  %v1668 = vmul.f32 %v1639, %v1653
  %v1669 = vmul.f32 %v1643, %v1653
  %v1670 = vmul.f32 %v1647, %v1653
  %v1671 = vadd.f32 %v1567, %v1655
  %v1672 = vadd.f32 %v1568, %v1656
  %v1673 = vadd.f32 %v1569, %v1657
  %v1674 = vadd.f32 %v1570, %v1658
  %v1675 = vadd.f32 %v1571, %v1659
  %v1676 = vadd.f32 %v1572, %v1660
  %v1677 = vadd.f32 %v1573, %v1661
  %v1678 = vadd.f32 %v1574, %v1662
  %v1679 = vadd.f32 %v1575, %v1663
  %v1680 = vadd.f32 %v1576, %v1664
  %v1681 = vadd.f32 %v1577, %v1665
  %v1682 = vadd.f32 %v1578, %v1666
  %v1683 = vadd.f32 %v1579, %v1667
  %v1684 = vadd.f32 %v1580, %v1668
  %v1685 = vadd.f32 %v1581, %v1669
  %v1686 = vadd.f32 %v1582, %v1670
  %s1687 = scalar_lea.vmem %s1, 15
  %v1688 = vld [vmem:[%s1687] sm:$0x1]
  %1689 = vset.pattern.permute.xlu0 3
  %1690 = vperm.xlu0 %1689, %v1343
  %v1691 = vpop.permute.xlu0 %1690
  %1693 = vset.pattern.permute.xlu0 3
  %1694 = vperm.xlu0 %1693, %v1344
  %v1695 = vpop.permute.xlu0 %1694
  %1697 = vset.pattern.permute.xlu0 3
  %1698 = vperm.xlu0 %1697, %v1345
  %v1699 = vpop.permute.xlu0 %1698
  %1701 = vset.pattern.permute.xlu0 3
  %1702 = vperm.xlu0 %1701, %v1346
  %v1703 = vpop.permute.xlu0 %1702
  %1705 = vset.pattern.permute.xlu0 3
  %1706 = vperm.xlu0 %1705, %v1347
  %v1707 = vpop.permute.xlu0 %1706
  %1709 = vset.pattern.permute.xlu0 3
  %1710 = vperm.xlu0 %1709, %v1348
  %v1711 = vpop.permute.xlu0 %1710
  %1713 = vset.pattern.permute.xlu0 3
  %1714 = vperm.xlu0 %1713, %v1349
  %v1715 = vpop.permute.xlu0 %1714
  %1717 = vset.pattern.permute.xlu0 3
  %1718 = vperm.xlu0 %1717, %v1350
  %v1719 = vpop.permute.xlu0 %1718
  %1721 = vset.pattern.permute.xlu0 3
  %1722 = vperm.xlu0 %1721, %v1351
  %v1723 = vpop.permute.xlu0 %1722
  %1725 = vset.pattern.permute.xlu0 3
  %1726 = vperm.xlu0 %1725, %v1352
  %v1727 = vpop.permute.xlu0 %1726
  %1729 = vset.pattern.permute.xlu0 3
  %1730 = vperm.xlu0 %1729, %v1353
  %v1731 = vpop.permute.xlu0 %1730
  %1733 = vset.pattern.permute.xlu0 3
  %1734 = vperm.xlu0 %1733, %v1354
  %v1735 = vpop.permute.xlu0 %1734
  %1737 = vset.pattern.permute.xlu0 3
  %1738 = vperm.xlu0 %1737, %v1355
  %v1739 = vpop.permute.xlu0 %1738
  %1741 = vset.pattern.permute.xlu0 3
  %1742 = vperm.xlu0 %1741, %v1356
  %v1743 = vpop.permute.xlu0 %1742
  %1745 = vset.pattern.permute.xlu0 3
  %1746 = vperm.xlu0 %1745, %v1357
  %v1747 = vpop.permute.xlu0 %1746
  %1749 = vset.pattern.permute.xlu0 3
  %1750 = vperm.xlu0 %1749, %v1358
  %v1751 = vpop.permute.xlu0 %1750
  %v1754 = vlaneseq
  %v1755 = vshrl.u32 %v1754, 7
  %v1756 = vsub.s32 0, %v1755
  %v1757 = vrot.slane %v1688, %v1756
  %v1759 = vmul.f32 %v1691, %v1757
  %v1760 = vmul.f32 %v1695, %v1757
  %v1761 = vmul.f32 %v1699, %v1757
  %v1762 = vmul.f32 %v1703, %v1757
  %v1763 = vmul.f32 %v1707, %v1757
  %v1764 = vmul.f32 %v1711, %v1757
  %v1765 = vmul.f32 %v1715, %v1757
  %v1766 = vmul.f32 %v1719, %v1757
  %v1767 = vmul.f32 %v1723, %v1757
  %v1768 = vmul.f32 %v1727, %v1757
  %v1769 = vmul.f32 %v1731, %v1757
  %v1770 = vmul.f32 %v1735, %v1757
  %v1771 = vmul.f32 %v1739, %v1757
  %v1772 = vmul.f32 %v1743, %v1757
  %v1773 = vmul.f32 %v1747, %v1757
  %v1774 = vmul.f32 %v1751, %v1757
  %v1775 = vadd.f32 %v1671, %v1759
  %v1776 = vadd.f32 %v1672, %v1760
  %v1777 = vadd.f32 %v1673, %v1761
  %v1778 = vadd.f32 %v1674, %v1762
  %v1779 = vadd.f32 %v1675, %v1763
  %v1780 = vadd.f32 %v1676, %v1764
  %v1781 = vadd.f32 %v1677, %v1765
  %v1782 = vadd.f32 %v1678, %v1766
  %v1783 = vadd.f32 %v1679, %v1767
  %v1784 = vadd.f32 %v1680, %v1768
  %v1785 = vadd.f32 %v1681, %v1769
  %v1786 = vadd.f32 %v1682, %v1770
  %v1787 = vadd.f32 %v1683, %v1771
  %v1788 = vadd.f32 %v1684, %v1772
  %v1789 = vadd.f32 %v1685, %v1773
  %v1790 = vadd.f32 %v1686, %v1774
  %s1791 = scalar_lea.vmem %s0, 864
  %v1792 = vld [vmem:[%s1791] sm:$0xff]
  %v1793 = vld [vmem:[%s1791 + $0x10] sm:$0xff]
  %v1794 = vld [vmem:[%s1791 + $0x20] sm:$0xff]
  %v1795 = vld [vmem:[%s1791 + $0x30] sm:$0xff]
  %v1796 = vld [vmem:[%s1791 + $0x40] sm:$0xff]
  %v1797 = vld [vmem:[%s1791 + $0x50] sm:$0xff]
  %v1798 = vld [vmem:[%s1791 + $0x60] sm:$0xff]
  %v1799 = vld [vmem:[%s1791 + $0x70] sm:$0xff]
  %v1800 = vld [vmem:[%s1791 + $0x90] sm:$0xff]
  %v1801 = vld [vmem:[%s1791 + $0xa0] sm:$0xff]
  %v1802 = vld [vmem:[%s1791 + $0xb0] sm:$0xff]
  %v1803 = vld [vmem:[%s1791 + $0xc0] sm:$0xff]
  %v1804 = vld [vmem:[%s1791 + $0xd0] sm:$0xff]
  %v1805 = vld [vmem:[%s1791 + $0xe0] sm:$0xff]
  %v1806 = vld [vmem:[%s1791 + $0xf0] sm:$0xff]
  %v1807 = vld [vmem:[%s1791 + $0x100] sm:$0xff]
  %s1808 = scalar_lea.vmem %s1, 16
  %v1809 = vld [vmem:[%s1808] sm:$0x1]
  %1811 = vset.pattern.permute.xlu0 0
  %1812 = vperm.xlu0 %1811, %v1792
  %v1813 = vpop.permute.xlu0 %1812
  %1816 = vset.pattern.permute.xlu0 0
  %1817 = vperm.xlu0 %1816, %v1793
  %v1818 = vpop.permute.xlu0 %1817
  %1821 = vset.pattern.permute.xlu0 0
  %1822 = vperm.xlu0 %1821, %v1794
  %v1823 = vpop.permute.xlu0 %1822
  %1826 = vset.pattern.permute.xlu0 0
  %1827 = vperm.xlu0 %1826, %v1795
  %v1828 = vpop.permute.xlu0 %1827
  %1831 = vset.pattern.permute.xlu0 0
  %1832 = vperm.xlu0 %1831, %v1796
  %v1833 = vpop.permute.xlu0 %1832
  %1836 = vset.pattern.permute.xlu0 0
  %1837 = vperm.xlu0 %1836, %v1797
  %v1838 = vpop.permute.xlu0 %1837
  %1841 = vset.pattern.permute.xlu0 0
  %1842 = vperm.xlu0 %1841, %v1798
  %v1843 = vpop.permute.xlu0 %1842
  %1846 = vset.pattern.permute.xlu0 0
  %1847 = vperm.xlu0 %1846, %v1799
  %v1848 = vpop.permute.xlu0 %1847
  %1851 = vset.pattern.permute.xlu0 0
  %1852 = vperm.xlu0 %1851, %v1800
  %v1853 = vpop.permute.xlu0 %1852
  %1856 = vset.pattern.permute.xlu0 0
  %1857 = vperm.xlu0 %1856, %v1801
  %v1858 = vpop.permute.xlu0 %1857
  %1861 = vset.pattern.permute.xlu0 0
  %1862 = vperm.xlu0 %1861, %v1802
  %v1863 = vpop.permute.xlu0 %1862
  %1866 = vset.pattern.permute.xlu0 0
  %1867 = vperm.xlu0 %1866, %v1803
  %v1868 = vpop.permute.xlu0 %1867
  %1871 = vset.pattern.permute.xlu0 0
  %1872 = vperm.xlu0 %1871, %v1804
  %v1873 = vpop.permute.xlu0 %1872
  %1876 = vset.pattern.permute.xlu0 0
  %1877 = vperm.xlu0 %1876, %v1805
  %v1878 = vpop.permute.xlu0 %1877
  %1881 = vset.pattern.permute.xlu0 0
  %1882 = vperm.xlu0 %1881, %v1806
  %v1883 = vpop.permute.xlu0 %1882
  %1886 = vset.pattern.permute.xlu0 0
  %1887 = vperm.xlu0 %1886, %v1807
  %v1888 = vpop.permute.xlu0 %1887
  %v1891 = vlaneseq
  %v1892 = vshrl.u32 %v1891, 7
  %v1893 = vsub.s32 0, %v1892
  %v1894 = vrot.slane %v1809, %v1893
  %v1896 = vmul.f32 %v1813, %v1894
  %v1897 = vmul.f32 %v1818, %v1894
  %v1898 = vmul.f32 %v1823, %v1894
  %v1899 = vmul.f32 %v1828, %v1894
  %v1900 = vmul.f32 %v1833, %v1894
  %v1901 = vmul.f32 %v1838, %v1894
  %v1902 = vmul.f32 %v1843, %v1894
  %v1903 = vmul.f32 %v1848, %v1894
  %v1904 = vmul.f32 %v1853, %v1894
  %v1905 = vmul.f32 %v1858, %v1894
  %v1906 = vmul.f32 %v1863, %v1894
  %v1907 = vmul.f32 %v1868, %v1894
  %v1908 = vmul.f32 %v1873, %v1894
  %v1909 = vmul.f32 %v1878, %v1894
  %v1910 = vmul.f32 %v1883, %v1894
  %v1911 = vmul.f32 %v1888, %v1894
  %v1912 = vadd.f32 %v1775, %v1896
  %v1913 = vadd.f32 %v1776, %v1897
  %v1914 = vadd.f32 %v1777, %v1898
  %v1915 = vadd.f32 %v1778, %v1899
  %v1916 = vadd.f32 %v1779, %v1900
  %v1917 = vadd.f32 %v1780, %v1901
  %v1918 = vadd.f32 %v1781, %v1902
  %v1919 = vadd.f32 %v1782, %v1903
  %v1920 = vadd.f32 %v1783, %v1904
  %v1921 = vadd.f32 %v1784, %v1905
  %v1922 = vadd.f32 %v1785, %v1906
  %v1923 = vadd.f32 %v1786, %v1907
  %v1924 = vadd.f32 %v1787, %v1908
  %v1925 = vadd.f32 %v1788, %v1909
  %v1926 = vadd.f32 %v1789, %v1910
  %v1927 = vadd.f32 %v1790, %v1911
  %s1928 = scalar_lea.vmem %s1, 17
  %v1929 = vld [vmem:[%s1928] sm:$0x1]
  %1930 = vset.pattern.permute.xlu0 1
  %1931 = vperm.xlu0 %1930, %v1792
  %v1932 = vpop.permute.xlu0 %1931
  %1934 = vset.pattern.permute.xlu0 1
  %1935 = vperm.xlu0 %1934, %v1793
  %v1936 = vpop.permute.xlu0 %1935
  %1938 = vset.pattern.permute.xlu0 1
  %1939 = vperm.xlu0 %1938, %v1794
  %v1940 = vpop.permute.xlu0 %1939
  %1942 = vset.pattern.permute.xlu0 1
  %1943 = vperm.xlu0 %1942, %v1795
  %v1944 = vpop.permute.xlu0 %1943
  %1946 = vset.pattern.permute.xlu0 1
  %1947 = vperm.xlu0 %1946, %v1796
  %v1948 = vpop.permute.xlu0 %1947
  %1950 = vset.pattern.permute.xlu0 1
  %1951 = vperm.xlu0 %1950, %v1797
  %v1952 = vpop.permute.xlu0 %1951
  %1954 = vset.pattern.permute.xlu0 1
  %1955 = vperm.xlu0 %1954, %v1798
  %v1956 = vpop.permute.xlu0 %1955
  %1958 = vset.pattern.permute.xlu0 1
  %1959 = vperm.xlu0 %1958, %v1799
  %v1960 = vpop.permute.xlu0 %1959
  %1962 = vset.pattern.permute.xlu0 1
  %1963 = vperm.xlu0 %1962, %v1800
  %v1964 = vpop.permute.xlu0 %1963
  %1966 = vset.pattern.permute.xlu0 1
  %1967 = vperm.xlu0 %1966, %v1801
  %v1968 = vpop.permute.xlu0 %1967
  %1970 = vset.pattern.permute.xlu0 1
  %1971 = vperm.xlu0 %1970, %v1802
  %v1972 = vpop.permute.xlu0 %1971
  %1974 = vset.pattern.permute.xlu0 1
  %1975 = vperm.xlu0 %1974, %v1803
  %v1976 = vpop.permute.xlu0 %1975
  %1978 = vset.pattern.permute.xlu0 1
  %1979 = vperm.xlu0 %1978, %v1804
  %v1980 = vpop.permute.xlu0 %1979
  %1982 = vset.pattern.permute.xlu0 1
  %1983 = vperm.xlu0 %1982, %v1805
  %v1984 = vpop.permute.xlu0 %1983
  %1986 = vset.pattern.permute.xlu0 1
  %1987 = vperm.xlu0 %1986, %v1806
  %v1988 = vpop.permute.xlu0 %1987
  %1990 = vset.pattern.permute.xlu0 1
  %1991 = vperm.xlu0 %1990, %v1807
  %v1992 = vpop.permute.xlu0 %1991
  %v1995 = vlaneseq
  %v1996 = vshrl.u32 %v1995, 7
  %v1997 = vsub.s32 0, %v1996
  %v1998 = vrot.slane %v1929, %v1997
  %v2000 = vmul.f32 %v1932, %v1998
  %v2001 = vmul.f32 %v1936, %v1998
  %v2002 = vmul.f32 %v1940, %v1998
  %v2003 = vmul.f32 %v1944, %v1998
  %v2004 = vmul.f32 %v1948, %v1998
  %v2005 = vmul.f32 %v1952, %v1998
  %v2006 = vmul.f32 %v1956, %v1998
  %v2007 = vmul.f32 %v1960, %v1998
  %v2008 = vmul.f32 %v1964, %v1998
  %v2009 = vmul.f32 %v1968, %v1998
  %v2010 = vmul.f32 %v1972, %v1998
  %v2011 = vmul.f32 %v1976, %v1998
  %v2012 = vmul.f32 %v1980, %v1998
  %v2013 = vmul.f32 %v1984, %v1998
  %v2014 = vmul.f32 %v1988, %v1998
  %v2015 = vmul.f32 %v1992, %v1998
  %v2016 = vadd.f32 %v1912, %v2000
  %v2017 = vadd.f32 %v1913, %v2001
  %v2018 = vadd.f32 %v1914, %v2002
  %v2019 = vadd.f32 %v1915, %v2003
  %v2020 = vadd.f32 %v1916, %v2004
  %v2021 = vadd.f32 %v1917, %v2005
  %v2022 = vadd.f32 %v1918, %v2006
  %v2023 = vadd.f32 %v1919, %v2007
  %v2024 = vadd.f32 %v1920, %v2008
  %v2025 = vadd.f32 %v1921, %v2009
  %v2026 = vadd.f32 %v1922, %v2010
  %v2027 = vadd.f32 %v1923, %v2011
  %v2028 = vadd.f32 %v1924, %v2012
  %v2029 = vadd.f32 %v1925, %v2013
  %v2030 = vadd.f32 %v1926, %v2014
  %v2031 = vadd.f32 %v1927, %v2015
  %s2032 = scalar_lea.vmem %s1, 18
  %v2033 = vld [vmem:[%s2032] sm:$0x1]
  %2034 = vset.pattern.permute.xlu0 2
  %2035 = vperm.xlu0 %2034, %v1792
  %v2036 = vpop.permute.xlu0 %2035
  %2038 = vset.pattern.permute.xlu0 2
  %2039 = vperm.xlu0 %2038, %v1793
  %v2040 = vpop.permute.xlu0 %2039
  %2042 = vset.pattern.permute.xlu0 2
  %2043 = vperm.xlu0 %2042, %v1794
  %v2044 = vpop.permute.xlu0 %2043
  %2046 = vset.pattern.permute.xlu0 2
  %2047 = vperm.xlu0 %2046, %v1795
  %v2048 = vpop.permute.xlu0 %2047
  %2050 = vset.pattern.permute.xlu0 2
  %2051 = vperm.xlu0 %2050, %v1796
  %v2052 = vpop.permute.xlu0 %2051
  %2054 = vset.pattern.permute.xlu0 2
  %2055 = vperm.xlu0 %2054, %v1797
  %v2056 = vpop.permute.xlu0 %2055
  %2058 = vset.pattern.permute.xlu0 2
  %2059 = vperm.xlu0 %2058, %v1798
  %v2060 = vpop.permute.xlu0 %2059
  %2062 = vset.pattern.permute.xlu0 2
  %2063 = vperm.xlu0 %2062, %v1799
  %v2064 = vpop.permute.xlu0 %2063
  %2066 = vset.pattern.permute.xlu0 2
  %2067 = vperm.xlu0 %2066, %v1800
  %v2068 = vpop.permute.xlu0 %2067
  %2070 = vset.pattern.permute.xlu0 2
  %2071 = vperm.xlu0 %2070, %v1801
  %v2072 = vpop.permute.xlu0 %2071
  %2074 = vset.pattern.permute.xlu0 2
  %2075 = vperm.xlu0 %2074, %v1802
  %v2076 = vpop.permute.xlu0 %2075
  %2078 = vset.pattern.permute.xlu0 2
  %2079 = vperm.xlu0 %2078, %v1803
  %v2080 = vpop.permute.xlu0 %2079
  %2082 = vset.pattern.permute.xlu0 2
  %2083 = vperm.xlu0 %2082, %v1804
  %v2084 = vpop.permute.xlu0 %2083
  %2086 = vset.pattern.permute.xlu0 2
  %2087 = vperm.xlu0 %2086, %v1805
  %v2088 = vpop.permute.xlu0 %2087
  %2090 = vset.pattern.permute.xlu0 2
  %2091 = vperm.xlu0 %2090, %v1806
  %v2092 = vpop.permute.xlu0 %2091
  %2094 = vset.pattern.permute.xlu0 2
  %2095 = vperm.xlu0 %2094, %v1807
  %v2096 = vpop.permute.xlu0 %2095
  %v2099 = vlaneseq
  %v2100 = vshrl.u32 %v2099, 7
  %v2101 = vsub.s32 0, %v2100
  %v2102 = vrot.slane %v2033, %v2101
  %v2104 = vmul.f32 %v2036, %v2102
  %v2105 = vmul.f32 %v2040, %v2102
  %v2106 = vmul.f32 %v2044, %v2102
  %v2107 = vmul.f32 %v2048, %v2102
  %v2108 = vmul.f32 %v2052, %v2102
  %v2109 = vmul.f32 %v2056, %v2102
  %v2110 = vmul.f32 %v2060, %v2102
  %v2111 = vmul.f32 %v2064, %v2102
  %v2112 = vmul.f32 %v2068, %v2102
  %v2113 = vmul.f32 %v2072, %v2102
  %v2114 = vmul.f32 %v2076, %v2102
  %v2115 = vmul.f32 %v2080, %v2102
  %v2116 = vmul.f32 %v2084, %v2102
  %v2117 = vmul.f32 %v2088, %v2102
  %v2118 = vmul.f32 %v2092, %v2102
  %v2119 = vmul.f32 %v2096, %v2102
  %v2120 = vadd.f32 %v2016, %v2104
  %v2121 = vadd.f32 %v2017, %v2105
  %v2122 = vadd.f32 %v2018, %v2106
  %v2123 = vadd.f32 %v2019, %v2107
  %v2124 = vadd.f32 %v2020, %v2108
  %v2125 = vadd.f32 %v2021, %v2109
  %v2126 = vadd.f32 %v2022, %v2110
  %v2127 = vadd.f32 %v2023, %v2111
  %v2128 = vadd.f32 %v2024, %v2112
  %v2129 = vadd.f32 %v2025, %v2113
  %v2130 = vadd.f32 %v2026, %v2114
  %v2131 = vadd.f32 %v2027, %v2115
  %v2132 = vadd.f32 %v2028, %v2116
  %v2133 = vadd.f32 %v2029, %v2117
  %v2134 = vadd.f32 %v2030, %v2118
  %v2135 = vadd.f32 %v2031, %v2119
  %s2136 = scalar_lea.vmem %s1, 19
  %v2137 = vld [vmem:[%s2136] sm:$0x1]
  %2138 = vset.pattern.permute.xlu0 3
  %2139 = vperm.xlu0 %2138, %v1792
  %v2140 = vpop.permute.xlu0 %2139
  %2142 = vset.pattern.permute.xlu0 3
  %2143 = vperm.xlu0 %2142, %v1793
  %v2144 = vpop.permute.xlu0 %2143
  %2146 = vset.pattern.permute.xlu0 3
  %2147 = vperm.xlu0 %2146, %v1794
  %v2148 = vpop.permute.xlu0 %2147
  %2150 = vset.pattern.permute.xlu0 3
  %2151 = vperm.xlu0 %2150, %v1795
  %v2152 = vpop.permute.xlu0 %2151
  %2154 = vset.pattern.permute.xlu0 3
  %2155 = vperm.xlu0 %2154, %v1796
  %v2156 = vpop.permute.xlu0 %2155
  %2158 = vset.pattern.permute.xlu0 3
  %2159 = vperm.xlu0 %2158, %v1797
  %v2160 = vpop.permute.xlu0 %2159
  %2162 = vset.pattern.permute.xlu0 3
  %2163 = vperm.xlu0 %2162, %v1798
  %v2164 = vpop.permute.xlu0 %2163
  %2166 = vset.pattern.permute.xlu0 3
  %2167 = vperm.xlu0 %2166, %v1799
  %v2168 = vpop.permute.xlu0 %2167
  %2170 = vset.pattern.permute.xlu0 3
  %2171 = vperm.xlu0 %2170, %v1800
  %v2172 = vpop.permute.xlu0 %2171
  %2174 = vset.pattern.permute.xlu0 3
  %2175 = vperm.xlu0 %2174, %v1801
  %v2176 = vpop.permute.xlu0 %2175
  %2178 = vset.pattern.permute.xlu0 3
  %2179 = vperm.xlu0 %2178, %v1802
  %v2180 = vpop.permute.xlu0 %2179
  %2182 = vset.pattern.permute.xlu0 3
  %2183 = vperm.xlu0 %2182, %v1803
  %v2184 = vpop.permute.xlu0 %2183
  %2186 = vset.pattern.permute.xlu0 3
  %2187 = vperm.xlu0 %2186, %v1804
  %v2188 = vpop.permute.xlu0 %2187
  %2190 = vset.pattern.permute.xlu0 3
  %2191 = vperm.xlu0 %2190, %v1805
  %v2192 = vpop.permute.xlu0 %2191
  %2194 = vset.pattern.permute.xlu0 3
  %2195 = vperm.xlu0 %2194, %v1806
  %v2196 = vpop.permute.xlu0 %2195
  %2198 = vset.pattern.permute.xlu0 3
  %2199 = vperm.xlu0 %2198, %v1807
  %v2200 = vpop.permute.xlu0 %2199
  %v2203 = vlaneseq
  %v2204 = vshrl.u32 %v2203, 7
  %v2205 = vsub.s32 0, %v2204
  %v2206 = vrot.slane %v2137, %v2205
  %v2208 = vmul.f32 %v2140, %v2206
  %v2209 = vmul.f32 %v2144, %v2206
  %v2210 = vmul.f32 %v2148, %v2206
  %v2211 = vmul.f32 %v2152, %v2206
  %v2212 = vmul.f32 %v2156, %v2206
  %v2213 = vmul.f32 %v2160, %v2206
  %v2214 = vmul.f32 %v2164, %v2206
  %v2215 = vmul.f32 %v2168, %v2206
  %v2216 = vmul.f32 %v2172, %v2206
  %v2217 = vmul.f32 %v2176, %v2206
  %v2218 = vmul.f32 %v2180, %v2206
  %v2219 = vmul.f32 %v2184, %v2206
  %v2220 = vmul.f32 %v2188, %v2206
  %v2221 = vmul.f32 %v2192, %v2206
  %v2222 = vmul.f32 %v2196, %v2206
  %v2223 = vmul.f32 %v2200, %v2206
  %v2224 = vadd.f32 %v2120, %v2208
  %v2225 = vadd.f32 %v2121, %v2209
  %v2226 = vadd.f32 %v2122, %v2210
  %v2227 = vadd.f32 %v2123, %v2211
  %v2228 = vadd.f32 %v2124, %v2212
  %v2229 = vadd.f32 %v2125, %v2213
  %v2230 = vadd.f32 %v2126, %v2214
  %v2231 = vadd.f32 %v2127, %v2215
  %v2232 = vadd.f32 %v2128, %v2216
  %v2233 = vadd.f32 %v2129, %v2217
  %v2234 = vadd.f32 %v2130, %v2218
  %v2235 = vadd.f32 %v2131, %v2219
  %v2236 = vadd.f32 %v2132, %v2220
  %v2237 = vadd.f32 %v2133, %v2221
  %v2238 = vadd.f32 %v2134, %v2222
  %v2239 = vadd.f32 %v2135, %v2223
  %v2240 = vld [vmem:[%s1342 + $0x1] sm:$0xff]
  %v2241 = vld [vmem:[%s1342 + $0x11] sm:$0xff]
  %v2242 = vld [vmem:[%s1342 + $0x21] sm:$0xff]
  %v2243 = vld [vmem:[%s1342 + $0x31] sm:$0xff]
  %v2244 = vld [vmem:[%s1342 + $0x41] sm:$0xff]
  %v2245 = vld [vmem:[%s1342 + $0x51] sm:$0xff]
  %v2246 = vld [vmem:[%s1342 + $0x61] sm:$0xff]
  %v2247 = vld [vmem:[%s1342 + $0x71] sm:$0xff]
  %v2248 = vld [vmem:[%s1342 + $0x91] sm:$0xff]
  %v2249 = vld [vmem:[%s1342 + $0xa1] sm:$0xff]
  %v2250 = vld [vmem:[%s1342 + $0xb1] sm:$0xff]
  %v2251 = vld [vmem:[%s1342 + $0xc1] sm:$0xff]
  %v2252 = vld [vmem:[%s1342 + $0xd1] sm:$0xff]
  %v2253 = vld [vmem:[%s1342 + $0xe1] sm:$0xff]
  %v2254 = vld [vmem:[%s1342 + $0xf1] sm:$0xff]
  %v2255 = vld [vmem:[%s1342 + $0x101] sm:$0xff]
  %s2256 = scalar_lea.vmem %s1, 20
  %v2257 = vld [vmem:[%s2256] sm:$0x1]
  %2259 = vset.pattern.permute.xlu0 0
  %2260 = vperm.xlu0 %2259, %v2240
  %v2261 = vpop.permute.xlu0 %2260
  %2264 = vset.pattern.permute.xlu0 0
  %2265 = vperm.xlu0 %2264, %v2241
  %v2266 = vpop.permute.xlu0 %2265
  %2269 = vset.pattern.permute.xlu0 0
  %2270 = vperm.xlu0 %2269, %v2242
  %v2271 = vpop.permute.xlu0 %2270
  %2274 = vset.pattern.permute.xlu0 0
  %2275 = vperm.xlu0 %2274, %v2243
  %v2276 = vpop.permute.xlu0 %2275
  %2279 = vset.pattern.permute.xlu0 0
  %2280 = vperm.xlu0 %2279, %v2244
  %v2281 = vpop.permute.xlu0 %2280
  %2284 = vset.pattern.permute.xlu0 0
  %2285 = vperm.xlu0 %2284, %v2245
  %v2286 = vpop.permute.xlu0 %2285
  %2289 = vset.pattern.permute.xlu0 0
  %2290 = vperm.xlu0 %2289, %v2246
  %v2291 = vpop.permute.xlu0 %2290
  %2294 = vset.pattern.permute.xlu0 0
  %2295 = vperm.xlu0 %2294, %v2247
  %v2296 = vpop.permute.xlu0 %2295
  %2299 = vset.pattern.permute.xlu0 0
  %2300 = vperm.xlu0 %2299, %v2248
  %v2301 = vpop.permute.xlu0 %2300
  %2304 = vset.pattern.permute.xlu0 0
  %2305 = vperm.xlu0 %2304, %v2249
  %v2306 = vpop.permute.xlu0 %2305
  %2309 = vset.pattern.permute.xlu0 0
  %2310 = vperm.xlu0 %2309, %v2250
  %v2311 = vpop.permute.xlu0 %2310
  %2314 = vset.pattern.permute.xlu0 0
  %2315 = vperm.xlu0 %2314, %v2251
  %v2316 = vpop.permute.xlu0 %2315
  %2319 = vset.pattern.permute.xlu0 0
  %2320 = vperm.xlu0 %2319, %v2252
  %v2321 = vpop.permute.xlu0 %2320
  %2324 = vset.pattern.permute.xlu0 0
  %2325 = vperm.xlu0 %2324, %v2253
  %v2326 = vpop.permute.xlu0 %2325
  %2329 = vset.pattern.permute.xlu0 0
  %2330 = vperm.xlu0 %2329, %v2254
  %v2331 = vpop.permute.xlu0 %2330
  %2334 = vset.pattern.permute.xlu0 0
  %2335 = vperm.xlu0 %2334, %v2255
  %v2336 = vpop.permute.xlu0 %2335
  %v2339 = vlaneseq
  %v2340 = vshrl.u32 %v2339, 7
  %v2341 = vsub.s32 0, %v2340
  %v2342 = vrot.slane %v2257, %v2341
  %v2344 = vmul.f32 %v2261, %v2342
  %v2345 = vmul.f32 %v2266, %v2342
  %v2346 = vmul.f32 %v2271, %v2342
  %v2347 = vmul.f32 %v2276, %v2342
  %v2348 = vmul.f32 %v2281, %v2342
  %v2349 = vmul.f32 %v2286, %v2342
  %v2350 = vmul.f32 %v2291, %v2342
  %v2351 = vmul.f32 %v2296, %v2342
  %v2352 = vmul.f32 %v2301, %v2342
  %v2353 = vmul.f32 %v2306, %v2342
  %v2354 = vmul.f32 %v2311, %v2342
  %v2355 = vmul.f32 %v2316, %v2342
  %v2356 = vmul.f32 %v2321, %v2342
  %v2357 = vmul.f32 %v2326, %v2342
  %v2358 = vmul.f32 %v2331, %v2342
  %v2359 = vmul.f32 %v2336, %v2342
  %v2360 = vadd.f32 %v2224, %v2344
  %v2361 = vadd.f32 %v2225, %v2345
  %v2362 = vadd.f32 %v2226, %v2346
  %v2363 = vadd.f32 %v2227, %v2347
  %v2364 = vadd.f32 %v2228, %v2348
  %v2365 = vadd.f32 %v2229, %v2349
  %v2366 = vadd.f32 %v2230, %v2350
  %v2367 = vadd.f32 %v2231, %v2351
  %v2368 = vadd.f32 %v2232, %v2352
  %v2369 = vadd.f32 %v2233, %v2353
  %v2370 = vadd.f32 %v2234, %v2354
  %v2371 = vadd.f32 %v2235, %v2355
  %v2372 = vadd.f32 %v2236, %v2356
  %v2373 = vadd.f32 %v2237, %v2357
  %v2374 = vadd.f32 %v2238, %v2358
  %v2375 = vadd.f32 %v2239, %v2359
  %s2376 = scalar_lea.vmem %s1, 21
  %v2377 = vld [vmem:[%s2376] sm:$0x1]
  %2378 = vset.pattern.permute.xlu0 1
  %2379 = vperm.xlu0 %2378, %v2240
  %v2380 = vpop.permute.xlu0 %2379
  %2382 = vset.pattern.permute.xlu0 1
  %2383 = vperm.xlu0 %2382, %v2241
  %v2384 = vpop.permute.xlu0 %2383
  %2386 = vset.pattern.permute.xlu0 1
  %2387 = vperm.xlu0 %2386, %v2242
  %v2388 = vpop.permute.xlu0 %2387
  %2390 = vset.pattern.permute.xlu0 1
  %2391 = vperm.xlu0 %2390, %v2243
  %v2392 = vpop.permute.xlu0 %2391
  %2394 = vset.pattern.permute.xlu0 1
  %2395 = vperm.xlu0 %2394, %v2244
  %v2396 = vpop.permute.xlu0 %2395
  %2398 = vset.pattern.permute.xlu0 1
  %2399 = vperm.xlu0 %2398, %v2245
  %v2400 = vpop.permute.xlu0 %2399
  %2402 = vset.pattern.permute.xlu0 1
  %2403 = vperm.xlu0 %2402, %v2246
  %v2404 = vpop.permute.xlu0 %2403
  %2406 = vset.pattern.permute.xlu0 1
  %2407 = vperm.xlu0 %2406, %v2247
  %v2408 = vpop.permute.xlu0 %2407
  %2410 = vset.pattern.permute.xlu0 1
  %2411 = vperm.xlu0 %2410, %v2248
  %v2412 = vpop.permute.xlu0 %2411
  %2414 = vset.pattern.permute.xlu0 1
  %2415 = vperm.xlu0 %2414, %v2249
  %v2416 = vpop.permute.xlu0 %2415
  %2418 = vset.pattern.permute.xlu0 1
  %2419 = vperm.xlu0 %2418, %v2250
  %v2420 = vpop.permute.xlu0 %2419
  %2422 = vset.pattern.permute.xlu0 1
  %2423 = vperm.xlu0 %2422, %v2251
  %v2424 = vpop.permute.xlu0 %2423
  %2426 = vset.pattern.permute.xlu0 1
  %2427 = vperm.xlu0 %2426, %v2252
  %v2428 = vpop.permute.xlu0 %2427
  %2430 = vset.pattern.permute.xlu0 1
  %2431 = vperm.xlu0 %2430, %v2253
  %v2432 = vpop.permute.xlu0 %2431
  %2434 = vset.pattern.permute.xlu0 1
  %2435 = vperm.xlu0 %2434, %v2254
  %v2436 = vpop.permute.xlu0 %2435
  %2438 = vset.pattern.permute.xlu0 1
  %2439 = vperm.xlu0 %2438, %v2255
  %v2440 = vpop.permute.xlu0 %2439
  %v2443 = vlaneseq
  %v2444 = vshrl.u32 %v2443, 7
  %v2445 = vsub.s32 0, %v2444
  %v2446 = vrot.slane %v2377, %v2445
  %v2448 = vmul.f32 %v2380, %v2446
  %v2449 = vmul.f32 %v2384, %v2446
  %v2450 = vmul.f32 %v2388, %v2446
  %v2451 = vmul.f32 %v2392, %v2446
  %v2452 = vmul.f32 %v2396, %v2446
  %v2453 = vmul.f32 %v2400, %v2446
  %v2454 = vmul.f32 %v2404, %v2446
  %v2455 = vmul.f32 %v2408, %v2446
  %v2456 = vmul.f32 %v2412, %v2446
  %v2457 = vmul.f32 %v2416, %v2446
  %v2458 = vmul.f32 %v2420, %v2446
  %v2459 = vmul.f32 %v2424, %v2446
  %v2460 = vmul.f32 %v2428, %v2446
  %v2461 = vmul.f32 %v2432, %v2446
  %v2462 = vmul.f32 %v2436, %v2446
  %v2463 = vmul.f32 %v2440, %v2446
  %v2464 = vadd.f32 %v2360, %v2448
  %v2465 = vadd.f32 %v2361, %v2449
  %v2466 = vadd.f32 %v2362, %v2450
  %v2467 = vadd.f32 %v2363, %v2451
  %v2468 = vadd.f32 %v2364, %v2452
  %v2469 = vadd.f32 %v2365, %v2453
  %v2470 = vadd.f32 %v2366, %v2454
  %v2471 = vadd.f32 %v2367, %v2455
  %v2472 = vadd.f32 %v2368, %v2456
  %v2473 = vadd.f32 %v2369, %v2457
  %v2474 = vadd.f32 %v2370, %v2458
  %v2475 = vadd.f32 %v2371, %v2459
  %v2476 = vadd.f32 %v2372, %v2460
  %v2477 = vadd.f32 %v2373, %v2461
  %v2478 = vadd.f32 %v2374, %v2462
  %v2479 = vadd.f32 %v2375, %v2463
  %s2480 = scalar_lea.vmem %s1, 22
  %v2481 = vld [vmem:[%s2480] sm:$0x1]
  %2482 = vset.pattern.permute.xlu0 2
  %2483 = vperm.xlu0 %2482, %v2240
  %v2484 = vpop.permute.xlu0 %2483
  %2486 = vset.pattern.permute.xlu0 2
  %2487 = vperm.xlu0 %2486, %v2241
  %v2488 = vpop.permute.xlu0 %2487
  %2490 = vset.pattern.permute.xlu0 2
  %2491 = vperm.xlu0 %2490, %v2242
  %v2492 = vpop.permute.xlu0 %2491
  %2494 = vset.pattern.permute.xlu0 2
  %2495 = vperm.xlu0 %2494, %v2243
  %v2496 = vpop.permute.xlu0 %2495
  %2498 = vset.pattern.permute.xlu0 2
  %2499 = vperm.xlu0 %2498, %v2244
  %v2500 = vpop.permute.xlu0 %2499
  %2502 = vset.pattern.permute.xlu0 2
  %2503 = vperm.xlu0 %2502, %v2245
  %v2504 = vpop.permute.xlu0 %2503
  %2506 = vset.pattern.permute.xlu0 2
  %2507 = vperm.xlu0 %2506, %v2246
  %v2508 = vpop.permute.xlu0 %2507
  %2510 = vset.pattern.permute.xlu0 2
  %2511 = vperm.xlu0 %2510, %v2247
  %v2512 = vpop.permute.xlu0 %2511
  %2514 = vset.pattern.permute.xlu0 2
  %2515 = vperm.xlu0 %2514, %v2248
  %v2516 = vpop.permute.xlu0 %2515
  %2518 = vset.pattern.permute.xlu0 2
  %2519 = vperm.xlu0 %2518, %v2249
  %v2520 = vpop.permute.xlu0 %2519
  %2522 = vset.pattern.permute.xlu0 2
  %2523 = vperm.xlu0 %2522, %v2250
  %v2524 = vpop.permute.xlu0 %2523
  %2526 = vset.pattern.permute.xlu0 2
  %2527 = vperm.xlu0 %2526, %v2251
  %v2528 = vpop.permute.xlu0 %2527
  %2530 = vset.pattern.permute.xlu0 2
  %2531 = vperm.xlu0 %2530, %v2252
  %v2532 = vpop.permute.xlu0 %2531
  %2534 = vset.pattern.permute.xlu0 2
  %2535 = vperm.xlu0 %2534, %v2253
  %v2536 = vpop.permute.xlu0 %2535
  %2538 = vset.pattern.permute.xlu0 2
  %2539 = vperm.xlu0 %2538, %v2254
  %v2540 = vpop.permute.xlu0 %2539
  %2542 = vset.pattern.permute.xlu0 2
  %2543 = vperm.xlu0 %2542, %v2255
  %v2544 = vpop.permute.xlu0 %2543
  %v2547 = vlaneseq
  %v2548 = vshrl.u32 %v2547, 7
  %v2549 = vsub.s32 0, %v2548
  %v2550 = vrot.slane %v2481, %v2549
  %v2552 = vmul.f32 %v2484, %v2550
  %v2553 = vmul.f32 %v2488, %v2550
  %v2554 = vmul.f32 %v2492, %v2550
  %v2555 = vmul.f32 %v2496, %v2550
  %v2556 = vmul.f32 %v2500, %v2550
  %v2557 = vmul.f32 %v2504, %v2550
  %v2558 = vmul.f32 %v2508, %v2550
  %v2559 = vmul.f32 %v2512, %v2550
  %v2560 = vmul.f32 %v2516, %v2550
  %v2561 = vmul.f32 %v2520, %v2550
  %v2562 = vmul.f32 %v2524, %v2550
  %v2563 = vmul.f32 %v2528, %v2550
  %v2564 = vmul.f32 %v2532, %v2550
  %v2565 = vmul.f32 %v2536, %v2550
  %v2566 = vmul.f32 %v2540, %v2550
  %v2567 = vmul.f32 %v2544, %v2550
  %v2568 = vadd.f32 %v2464, %v2552
  %v2569 = vadd.f32 %v2465, %v2553
  %v2570 = vadd.f32 %v2466, %v2554
  %v2571 = vadd.f32 %v2467, %v2555
  %v2572 = vadd.f32 %v2468, %v2556
  %v2573 = vadd.f32 %v2469, %v2557
  %v2574 = vadd.f32 %v2470, %v2558
  %v2575 = vadd.f32 %v2471, %v2559
  %v2576 = vadd.f32 %v2472, %v2560
  %v2577 = vadd.f32 %v2473, %v2561
  %v2578 = vadd.f32 %v2474, %v2562
  %v2579 = vadd.f32 %v2475, %v2563
  %v2580 = vadd.f32 %v2476, %v2564
  %v2581 = vadd.f32 %v2477, %v2565
  %v2582 = vadd.f32 %v2478, %v2566
  %v2583 = vadd.f32 %v2479, %v2567
  %s2584 = scalar_lea.vmem %s1, 23
  %v2585 = vld [vmem:[%s2584] sm:$0x1]
  %2586 = vset.pattern.permute.xlu0 3
  %2587 = vperm.xlu0 %2586, %v2240
  %v2588 = vpop.permute.xlu0 %2587
  %2590 = vset.pattern.permute.xlu0 3
  %2591 = vperm.xlu0 %2590, %v2241
  %v2592 = vpop.permute.xlu0 %2591
  %2594 = vset.pattern.permute.xlu0 3
  %2595 = vperm.xlu0 %2594, %v2242
  %v2596 = vpop.permute.xlu0 %2595
  %2598 = vset.pattern.permute.xlu0 3
  %2599 = vperm.xlu0 %2598, %v2243
  %v2600 = vpop.permute.xlu0 %2599
  %2602 = vset.pattern.permute.xlu0 3
  %2603 = vperm.xlu0 %2602, %v2244
  %v2604 = vpop.permute.xlu0 %2603
  %2606 = vset.pattern.permute.xlu0 3
  %2607 = vperm.xlu0 %2606, %v2245
  %v2608 = vpop.permute.xlu0 %2607
  %2610 = vset.pattern.permute.xlu0 3
  %2611 = vperm.xlu0 %2610, %v2246
  %v2612 = vpop.permute.xlu0 %2611
  %2614 = vset.pattern.permute.xlu0 3
  %2615 = vperm.xlu0 %2614, %v2247
  %v2616 = vpop.permute.xlu0 %2615
  %2618 = vset.pattern.permute.xlu0 3
  %2619 = vperm.xlu0 %2618, %v2248
  %v2620 = vpop.permute.xlu0 %2619
  %2622 = vset.pattern.permute.xlu0 3
  %2623 = vperm.xlu0 %2622, %v2249
  %v2624 = vpop.permute.xlu0 %2623
  %2626 = vset.pattern.permute.xlu0 3
  %2627 = vperm.xlu0 %2626, %v2250
  %v2628 = vpop.permute.xlu0 %2627
  %2630 = vset.pattern.permute.xlu0 3
  %2631 = vperm.xlu0 %2630, %v2251
  %v2632 = vpop.permute.xlu0 %2631
  %2634 = vset.pattern.permute.xlu0 3
  %2635 = vperm.xlu0 %2634, %v2252
  %v2636 = vpop.permute.xlu0 %2635
  %2638 = vset.pattern.permute.xlu0 3
  %2639 = vperm.xlu0 %2638, %v2253
  %v2640 = vpop.permute.xlu0 %2639
  %2642 = vset.pattern.permute.xlu0 3
  %2643 = vperm.xlu0 %2642, %v2254
  %v2644 = vpop.permute.xlu0 %2643
  %2646 = vset.pattern.permute.xlu0 3
  %2647 = vperm.xlu0 %2646, %v2255
  %v2648 = vpop.permute.xlu0 %2647
  %v2651 = vlaneseq
  %v2652 = vshrl.u32 %v2651, 7
  %v2653 = vsub.s32 0, %v2652
  %v2654 = vrot.slane %v2585, %v2653
  %v2656 = vmul.f32 %v2588, %v2654
  %v2657 = vmul.f32 %v2592, %v2654
  %v2658 = vmul.f32 %v2596, %v2654
  %v2659 = vmul.f32 %v2600, %v2654
  %v2660 = vmul.f32 %v2604, %v2654
  %v2661 = vmul.f32 %v2608, %v2654
  %v2662 = vmul.f32 %v2612, %v2654
  %v2663 = vmul.f32 %v2616, %v2654
  %v2664 = vmul.f32 %v2620, %v2654
  %v2665 = vmul.f32 %v2624, %v2654
  %v2666 = vmul.f32 %v2628, %v2654
  %v2667 = vmul.f32 %v2632, %v2654
  %v2668 = vmul.f32 %v2636, %v2654
  %v2669 = vmul.f32 %v2640, %v2654
  %v2670 = vmul.f32 %v2644, %v2654
  %v2671 = vmul.f32 %v2648, %v2654
  %v2672 = vadd.f32 %v2568, %v2656
  %v2673 = vadd.f32 %v2569, %v2657
  %v2674 = vadd.f32 %v2570, %v2658
  %v2675 = vadd.f32 %v2571, %v2659
  %v2676 = vadd.f32 %v2572, %v2660
  %v2677 = vadd.f32 %v2573, %v2661
  %v2678 = vadd.f32 %v2574, %v2662
  %v2679 = vadd.f32 %v2575, %v2663
  %v2680 = vadd.f32 %v2576, %v2664
  %v2681 = vadd.f32 %v2577, %v2665
  %v2682 = vadd.f32 %v2578, %v2666
  %v2683 = vadd.f32 %v2579, %v2667
  %v2684 = vadd.f32 %v2580, %v2668
  %v2685 = vadd.f32 %v2581, %v2669
  %v2686 = vadd.f32 %v2582, %v2670
  %v2687 = vadd.f32 %v2583, %v2671
  %s2688 = scalar_lea.vmem %s0, 16
  %v2689 = vld [vmem:[%s2688] sm:$0xff]
  %v2690 = vld [vmem:[%s2688 + $0x10] sm:$0xff]
  %v2691 = vld [vmem:[%s2688 + $0x20] sm:$0xff]
  %v2692 = vld [vmem:[%s2688 + $0x30] sm:$0xff]
  %v2693 = vld [vmem:[%s2688 + $0x40] sm:$0xff]
  %v2694 = vld [vmem:[%s2688 + $0x50] sm:$0xff]
  %v2695 = vld [vmem:[%s2688 + $0x60] sm:$0xff]
  %v2696 = vld [vmem:[%s2688 + $0x70] sm:$0xff]
  %v2697 = vld [vmem:[%s2688 + $0x90] sm:$0xff]
  %v2698 = vld [vmem:[%s2688 + $0xa0] sm:$0xff]
  %v2699 = vld [vmem:[%s2688 + $0xb0] sm:$0xff]
  %v2700 = vld [vmem:[%s2688 + $0xc0] sm:$0xff]
  %v2701 = vld [vmem:[%s2688 + $0xd0] sm:$0xff]
  %v2702 = vld [vmem:[%s2688 + $0xe0] sm:$0xff]
  %v2703 = vld [vmem:[%s2688 + $0xf0] sm:$0xff]
  %v2704 = vld [vmem:[%s2688 + $0x100] sm:$0xff]
  %s2705 = scalar_lea.vmem %s1, 24
  %v2706 = vld [vmem:[%s2705] sm:$0x1]
  %2708 = vset.pattern.permute.xlu0 0
  %2709 = vperm.xlu0 %2708, %v2689
  %v2710 = vpop.permute.xlu0 %2709
  %2713 = vset.pattern.permute.xlu0 0
  %2714 = vperm.xlu0 %2713, %v2690
  %v2715 = vpop.permute.xlu0 %2714
  %2718 = vset.pattern.permute.xlu0 0
  %2719 = vperm.xlu0 %2718, %v2691
  %v2720 = vpop.permute.xlu0 %2719
  %2723 = vset.pattern.permute.xlu0 0
  %2724 = vperm.xlu0 %2723, %v2692
  %v2725 = vpop.permute.xlu0 %2724
  %2728 = vset.pattern.permute.xlu0 0
  %2729 = vperm.xlu0 %2728, %v2693
  %v2730 = vpop.permute.xlu0 %2729
  %2733 = vset.pattern.permute.xlu0 0
  %2734 = vperm.xlu0 %2733, %v2694
  %v2735 = vpop.permute.xlu0 %2734
  %2738 = vset.pattern.permute.xlu0 0
  %2739 = vperm.xlu0 %2738, %v2695
  %v2740 = vpop.permute.xlu0 %2739
  %2743 = vset.pattern.permute.xlu0 0
  %2744 = vperm.xlu0 %2743, %v2696
  %v2745 = vpop.permute.xlu0 %2744
  %2748 = vset.pattern.permute.xlu0 0
  %2749 = vperm.xlu0 %2748, %v2697
  %v2750 = vpop.permute.xlu0 %2749
  %2753 = vset.pattern.permute.xlu0 0
  %2754 = vperm.xlu0 %2753, %v2698
  %v2755 = vpop.permute.xlu0 %2754
  %2758 = vset.pattern.permute.xlu0 0
  %2759 = vperm.xlu0 %2758, %v2699
  %v2760 = vpop.permute.xlu0 %2759
  %2763 = vset.pattern.permute.xlu0 0
  %2764 = vperm.xlu0 %2763, %v2700
  %v2765 = vpop.permute.xlu0 %2764
  %2768 = vset.pattern.permute.xlu0 0
  %2769 = vperm.xlu0 %2768, %v2701
  %v2770 = vpop.permute.xlu0 %2769
  %2773 = vset.pattern.permute.xlu0 0
  %2774 = vperm.xlu0 %2773, %v2702
  %v2775 = vpop.permute.xlu0 %2774
  %2778 = vset.pattern.permute.xlu0 0
  %2779 = vperm.xlu0 %2778, %v2703
  %v2780 = vpop.permute.xlu0 %2779
  %2783 = vset.pattern.permute.xlu0 0
  %2784 = vperm.xlu0 %2783, %v2704
  %v2785 = vpop.permute.xlu0 %2784
  %v2788 = vlaneseq
  %v2789 = vshrl.u32 %v2788, 7
  %v2790 = vsub.s32 0, %v2789
  %v2791 = vrot.slane %v2706, %v2790
  %v2793 = vmul.f32 %v2710, %v2791
  %v2794 = vmul.f32 %v2715, %v2791
  %v2795 = vmul.f32 %v2720, %v2791
  %v2796 = vmul.f32 %v2725, %v2791
  %v2797 = vmul.f32 %v2730, %v2791
  %v2798 = vmul.f32 %v2735, %v2791
  %v2799 = vmul.f32 %v2740, %v2791
  %v2800 = vmul.f32 %v2745, %v2791
  %v2801 = vmul.f32 %v2750, %v2791
  %v2802 = vmul.f32 %v2755, %v2791
  %v2803 = vmul.f32 %v2760, %v2791
  %v2804 = vmul.f32 %v2765, %v2791
  %v2805 = vmul.f32 %v2770, %v2791
  %v2806 = vmul.f32 %v2775, %v2791
  %v2807 = vmul.f32 %v2780, %v2791
  %v2808 = vmul.f32 %v2785, %v2791
  %v2809 = vadd.f32 %v2672, %v2793
  %v2810 = vadd.f32 %v2673, %v2794
  %v2811 = vadd.f32 %v2674, %v2795
  %v2812 = vadd.f32 %v2675, %v2796
  %v2813 = vadd.f32 %v2676, %v2797
  %v2814 = vadd.f32 %v2677, %v2798
  %v2815 = vadd.f32 %v2678, %v2799
  %v2816 = vadd.f32 %v2679, %v2800
  %v2817 = vadd.f32 %v2680, %v2801
  %v2818 = vadd.f32 %v2681, %v2802
  %v2819 = vadd.f32 %v2682, %v2803
  %v2820 = vadd.f32 %v2683, %v2804
  %v2821 = vadd.f32 %v2684, %v2805
  %v2822 = vadd.f32 %v2685, %v2806
  %v2823 = vadd.f32 %v2686, %v2807
  %v2824 = vadd.f32 %v2687, %v2808
  %s2825 = scalar_lea.vmem %s1, 25
  %v2826 = vld [vmem:[%s2825] sm:$0x1]
  %2827 = vset.pattern.permute.xlu0 1
  %2828 = vperm.xlu0 %2827, %v2689
  %v2829 = vpop.permute.xlu0 %2828
  %2831 = vset.pattern.permute.xlu0 1
  %2832 = vperm.xlu0 %2831, %v2690
  %v2833 = vpop.permute.xlu0 %2832
  %2835 = vset.pattern.permute.xlu0 1
  %2836 = vperm.xlu0 %2835, %v2691
  %v2837 = vpop.permute.xlu0 %2836
  %2839 = vset.pattern.permute.xlu0 1
  %2840 = vperm.xlu0 %2839, %v2692
  %v2841 = vpop.permute.xlu0 %2840
  %2843 = vset.pattern.permute.xlu0 1
  %2844 = vperm.xlu0 %2843, %v2693
  %v2845 = vpop.permute.xlu0 %2844
  %2847 = vset.pattern.permute.xlu0 1
  %2848 = vperm.xlu0 %2847, %v2694
  %v2849 = vpop.permute.xlu0 %2848
  %2851 = vset.pattern.permute.xlu0 1
  %2852 = vperm.xlu0 %2851, %v2695
  %v2853 = vpop.permute.xlu0 %2852
  %2855 = vset.pattern.permute.xlu0 1
  %2856 = vperm.xlu0 %2855, %v2696
  %v2857 = vpop.permute.xlu0 %2856
  %2859 = vset.pattern.permute.xlu0 1
  %2860 = vperm.xlu0 %2859, %v2697
  %v2861 = vpop.permute.xlu0 %2860
  %2863 = vset.pattern.permute.xlu0 1
  %2864 = vperm.xlu0 %2863, %v2698
  %v2865 = vpop.permute.xlu0 %2864
  %2867 = vset.pattern.permute.xlu0 1
  %2868 = vperm.xlu0 %2867, %v2699
  %v2869 = vpop.permute.xlu0 %2868
  %2871 = vset.pattern.permute.xlu0 1
  %2872 = vperm.xlu0 %2871, %v2700
  %v2873 = vpop.permute.xlu0 %2872
  %2875 = vset.pattern.permute.xlu0 1
  %2876 = vperm.xlu0 %2875, %v2701
  %v2877 = vpop.permute.xlu0 %2876
  %2879 = vset.pattern.permute.xlu0 1
  %2880 = vperm.xlu0 %2879, %v2702
  %v2881 = vpop.permute.xlu0 %2880
  %2883 = vset.pattern.permute.xlu0 1
  %2884 = vperm.xlu0 %2883, %v2703
  %v2885 = vpop.permute.xlu0 %2884
  %2887 = vset.pattern.permute.xlu0 1
  %2888 = vperm.xlu0 %2887, %v2704
  %v2889 = vpop.permute.xlu0 %2888
  %v2892 = vlaneseq
  %v2893 = vshrl.u32 %v2892, 7
  %v2894 = vsub.s32 0, %v2893
  %v2895 = vrot.slane %v2826, %v2894
  %v2897 = vmul.f32 %v2829, %v2895
  %v2898 = vmul.f32 %v2833, %v2895
  %v2899 = vmul.f32 %v2837, %v2895
  %v2900 = vmul.f32 %v2841, %v2895
  %v2901 = vmul.f32 %v2845, %v2895
  %v2902 = vmul.f32 %v2849, %v2895
  %v2903 = vmul.f32 %v2853, %v2895
  %v2904 = vmul.f32 %v2857, %v2895
  %v2905 = vmul.f32 %v2861, %v2895
  %v2906 = vmul.f32 %v2865, %v2895
  %v2907 = vmul.f32 %v2869, %v2895
  %v2908 = vmul.f32 %v2873, %v2895
  %v2909 = vmul.f32 %v2877, %v2895
  %v2910 = vmul.f32 %v2881, %v2895
  %v2911 = vmul.f32 %v2885, %v2895
  %v2912 = vmul.f32 %v2889, %v2895
  %v2913 = vadd.f32 %v2809, %v2897
  %v2914 = vadd.f32 %v2810, %v2898
  %v2915 = vadd.f32 %v2811, %v2899
  %v2916 = vadd.f32 %v2812, %v2900
  %v2917 = vadd.f32 %v2813, %v2901
  %v2918 = vadd.f32 %v2814, %v2902
  %v2919 = vadd.f32 %v2815, %v2903
  %v2920 = vadd.f32 %v2816, %v2904
  %v2921 = vadd.f32 %v2817, %v2905
  %v2922 = vadd.f32 %v2818, %v2906
  %v2923 = vadd.f32 %v2819, %v2907
  %v2924 = vadd.f32 %v2820, %v2908
  %v2925 = vadd.f32 %v2821, %v2909
  %v2926 = vadd.f32 %v2822, %v2910
  %v2927 = vadd.f32 %v2823, %v2911
  %v2928 = vadd.f32 %v2824, %v2912
  %s2929 = scalar_lea.vmem %s1, 26
  %v2930 = vld [vmem:[%s2929] sm:$0x1]
  %2931 = vset.pattern.permute.xlu0 2
  %2932 = vperm.xlu0 %2931, %v2689
  %v2933 = vpop.permute.xlu0 %2932
  %2935 = vset.pattern.permute.xlu0 2
  %2936 = vperm.xlu0 %2935, %v2690
  %v2937 = vpop.permute.xlu0 %2936
  %2939 = vset.pattern.permute.xlu0 2
  %2940 = vperm.xlu0 %2939, %v2691
  %v2941 = vpop.permute.xlu0 %2940
  %2943 = vset.pattern.permute.xlu0 2
  %2944 = vperm.xlu0 %2943, %v2692
  %v2945 = vpop.permute.xlu0 %2944
  %2947 = vset.pattern.permute.xlu0 2
  %2948 = vperm.xlu0 %2947, %v2693
  %v2949 = vpop.permute.xlu0 %2948
  %2951 = vset.pattern.permute.xlu0 2
  %2952 = vperm.xlu0 %2951, %v2694
  %v2953 = vpop.permute.xlu0 %2952
  %2955 = vset.pattern.permute.xlu0 2
  %2956 = vperm.xlu0 %2955, %v2695
  %v2957 = vpop.permute.xlu0 %2956
  %2959 = vset.pattern.permute.xlu0 2
  %2960 = vperm.xlu0 %2959, %v2696
  %v2961 = vpop.permute.xlu0 %2960
  %2963 = vset.pattern.permute.xlu0 2
  %2964 = vperm.xlu0 %2963, %v2697
  %v2965 = vpop.permute.xlu0 %2964
  %2967 = vset.pattern.permute.xlu0 2
  %2968 = vperm.xlu0 %2967, %v2698
  %v2969 = vpop.permute.xlu0 %2968
  %2971 = vset.pattern.permute.xlu0 2
  %2972 = vperm.xlu0 %2971, %v2699
  %v2973 = vpop.permute.xlu0 %2972
  %2975 = vset.pattern.permute.xlu0 2
  %2976 = vperm.xlu0 %2975, %v2700
  %v2977 = vpop.permute.xlu0 %2976
  %2979 = vset.pattern.permute.xlu0 2
  %2980 = vperm.xlu0 %2979, %v2701
  %v2981 = vpop.permute.xlu0 %2980
  %2983 = vset.pattern.permute.xlu0 2
  %2984 = vperm.xlu0 %2983, %v2702
  %v2985 = vpop.permute.xlu0 %2984
  %2987 = vset.pattern.permute.xlu0 2
  %2988 = vperm.xlu0 %2987, %v2703
  %v2989 = vpop.permute.xlu0 %2988
  %2991 = vset.pattern.permute.xlu0 2
  %2992 = vperm.xlu0 %2991, %v2704
  %v2993 = vpop.permute.xlu0 %2992
  %v2996 = vlaneseq
  %v2997 = vshrl.u32 %v2996, 7
  %v2998 = vsub.s32 0, %v2997
  %v2999 = vrot.slane %v2930, %v2998
  %v3001 = vmul.f32 %v2933, %v2999
  %v3002 = vmul.f32 %v2937, %v2999
  %v3003 = vmul.f32 %v2941, %v2999
  %v3004 = vmul.f32 %v2945, %v2999
  %v3005 = vmul.f32 %v2949, %v2999
  %v3006 = vmul.f32 %v2953, %v2999
  %v3007 = vmul.f32 %v2957, %v2999
  %v3008 = vmul.f32 %v2961, %v2999
  %v3009 = vmul.f32 %v2965, %v2999
  %v3010 = vmul.f32 %v2969, %v2999
  %v3011 = vmul.f32 %v2973, %v2999
  %v3012 = vmul.f32 %v2977, %v2999
  %v3013 = vmul.f32 %v2981, %v2999
  %v3014 = vmul.f32 %v2985, %v2999
  %v3015 = vmul.f32 %v2989, %v2999
  %v3016 = vmul.f32 %v2993, %v2999
  %v3017 = vadd.f32 %v2913, %v3001
  %v3018 = vadd.f32 %v2914, %v3002
  %v3019 = vadd.f32 %v2915, %v3003
  %v3020 = vadd.f32 %v2916, %v3004
  %v3021 = vadd.f32 %v2917, %v3005
  %v3022 = vadd.f32 %v2918, %v3006
  %v3023 = vadd.f32 %v2919, %v3007
  %v3024 = vadd.f32 %v2920, %v3008
  %v3025 = vadd.f32 %v2921, %v3009
  %v3026 = vadd.f32 %v2922, %v3010
  %v3027 = vadd.f32 %v2923, %v3011
  %v3028 = vadd.f32 %v2924, %v3012
  %v3029 = vadd.f32 %v2925, %v3013
  %v3030 = vadd.f32 %v2926, %v3014
  %v3031 = vadd.f32 %v2927, %v3015
  %v3032 = vadd.f32 %v2928, %v3016
  %s3033 = scalar_lea.vmem %s1, 27
  %v3034 = vld [vmem:[%s3033] sm:$0x1]
  %3035 = vset.pattern.permute.xlu0 3
  %3036 = vperm.xlu0 %3035, %v2689
  %v3037 = vpop.permute.xlu0 %3036
  %3039 = vset.pattern.permute.xlu0 3
  %3040 = vperm.xlu0 %3039, %v2690
  %v3041 = vpop.permute.xlu0 %3040
  %3043 = vset.pattern.permute.xlu0 3
  %3044 = vperm.xlu0 %3043, %v2691
  %v3045 = vpop.permute.xlu0 %3044
  %3047 = vset.pattern.permute.xlu0 3
  %3048 = vperm.xlu0 %3047, %v2692
  %v3049 = vpop.permute.xlu0 %3048
  %3051 = vset.pattern.permute.xlu0 3
  %3052 = vperm.xlu0 %3051, %v2693
  %v3053 = vpop.permute.xlu0 %3052
  %3055 = vset.pattern.permute.xlu0 3
  %3056 = vperm.xlu0 %3055, %v2694
  %v3057 = vpop.permute.xlu0 %3056
  %3059 = vset.pattern.permute.xlu0 3
  %3060 = vperm.xlu0 %3059, %v2695
  %v3061 = vpop.permute.xlu0 %3060
  %3063 = vset.pattern.permute.xlu0 3
  %3064 = vperm.xlu0 %3063, %v2696
  %v3065 = vpop.permute.xlu0 %3064
  %3067 = vset.pattern.permute.xlu0 3
  %3068 = vperm.xlu0 %3067, %v2697
  %v3069 = vpop.permute.xlu0 %3068
  %3071 = vset.pattern.permute.xlu0 3
  %3072 = vperm.xlu0 %3071, %v2698
  %v3073 = vpop.permute.xlu0 %3072
  %3075 = vset.pattern.permute.xlu0 3
  %3076 = vperm.xlu0 %3075, %v2699
  %v3077 = vpop.permute.xlu0 %3076
  %3079 = vset.pattern.permute.xlu0 3
  %3080 = vperm.xlu0 %3079, %v2700
  %v3081 = vpop.permute.xlu0 %3080
  %3083 = vset.pattern.permute.xlu0 3
  %3084 = vperm.xlu0 %3083, %v2701
  %v3085 = vpop.permute.xlu0 %3084
  %3087 = vset.pattern.permute.xlu0 3
  %3088 = vperm.xlu0 %3087, %v2702
  %v3089 = vpop.permute.xlu0 %3088
  %3091 = vset.pattern.permute.xlu0 3
  %3092 = vperm.xlu0 %3091, %v2703
  %v3093 = vpop.permute.xlu0 %3092
  %3095 = vset.pattern.permute.xlu0 3
  %3096 = vperm.xlu0 %3095, %v2704
  %v3097 = vpop.permute.xlu0 %3096
  %v3100 = vlaneseq
  %v3101 = vshrl.u32 %v3100, 7
  %v3102 = vsub.s32 0, %v3101
  %v3103 = vrot.slane %v3034, %v3102
  %v3105 = vmul.f32 %v3037, %v3103
  %v3106 = vmul.f32 %v3041, %v3103
  %v3107 = vmul.f32 %v3045, %v3103
  %v3108 = vmul.f32 %v3049, %v3103
  %v3109 = vmul.f32 %v3053, %v3103
  %v3110 = vmul.f32 %v3057, %v3103
  %v3111 = vmul.f32 %v3061, %v3103
  %v3112 = vmul.f32 %v3065, %v3103
  %v3113 = vmul.f32 %v3069, %v3103
  %v3114 = vmul.f32 %v3073, %v3103
  %v3115 = vmul.f32 %v3077, %v3103
  %v3116 = vmul.f32 %v3081, %v3103
  %v3117 = vmul.f32 %v3085, %v3103
  %v3118 = vmul.f32 %v3089, %v3103
  %v3119 = vmul.f32 %v3093, %v3103
  %v3120 = vmul.f32 %v3097, %v3103
  %v3121 = vadd.f32 %v3017, %v3105
  %v3122 = vadd.f32 %v3018, %v3106
  %v3123 = vadd.f32 %v3019, %v3107
  %v3124 = vadd.f32 %v3020, %v3108
  %v3125 = vadd.f32 %v3021, %v3109
  %v3126 = vadd.f32 %v3022, %v3110
  %v3127 = vadd.f32 %v3023, %v3111
  %v3128 = vadd.f32 %v3024, %v3112
  %v3129 = vadd.f32 %v3025, %v3113
  %v3130 = vadd.f32 %v3026, %v3114
  %v3131 = vadd.f32 %v3027, %v3115
  %v3132 = vadd.f32 %v3028, %v3116
  %v3133 = vadd.f32 %v3029, %v3117
  %v3134 = vadd.f32 %v3030, %v3118
  %v3135 = vadd.f32 %v3031, %v3119
  %v3136 = vadd.f32 %v3032, %v3120
  %s3137 = scalar_lea.vmem %s0, 304
  %v3138 = vld [vmem:[%s3137] sm:$0xff]
  %v3139 = vld [vmem:[%s3137 + $0x10] sm:$0xff]
  %v3140 = vld [vmem:[%s3137 + $0x20] sm:$0xff]
  %v3141 = vld [vmem:[%s3137 + $0x30] sm:$0xff]
  %v3142 = vld [vmem:[%s3137 + $0x40] sm:$0xff]
  %v3143 = vld [vmem:[%s3137 + $0x50] sm:$0xff]
  %v3144 = vld [vmem:[%s3137 + $0x60] sm:$0xff]
  %v3145 = vld [vmem:[%s3137 + $0x70] sm:$0xff]
  %v3146 = vld [vmem:[%s3137 + $0x90] sm:$0xff]
  %v3147 = vld [vmem:[%s3137 + $0xa0] sm:$0xff]
  %v3148 = vld [vmem:[%s3137 + $0xb0] sm:$0xff]
  %v3149 = vld [vmem:[%s3137 + $0xc0] sm:$0xff]
  %v3150 = vld [vmem:[%s3137 + $0xd0] sm:$0xff]
  %v3151 = vld [vmem:[%s3137 + $0xe0] sm:$0xff]
  %v3152 = vld [vmem:[%s3137 + $0xf0] sm:$0xff]
  %v3153 = vld [vmem:[%s3137 + $0x100] sm:$0xff]
  %s3154 = scalar_lea.vmem %s1, 28
  %v3155 = vld [vmem:[%s3154] sm:$0x1]
  %3157 = vset.pattern.permute.xlu0 0
  %3158 = vperm.xlu0 %3157, %v3138
  %v3159 = vpop.permute.xlu0 %3158
  %3162 = vset.pattern.permute.xlu0 0
  %3163 = vperm.xlu0 %3162, %v3139
  %v3164 = vpop.permute.xlu0 %3163
  %3167 = vset.pattern.permute.xlu0 0
  %3168 = vperm.xlu0 %3167, %v3140
  %v3169 = vpop.permute.xlu0 %3168
  %3172 = vset.pattern.permute.xlu0 0
  %3173 = vperm.xlu0 %3172, %v3141
  %v3174 = vpop.permute.xlu0 %3173
  %3177 = vset.pattern.permute.xlu0 0
  %3178 = vperm.xlu0 %3177, %v3142
  %v3179 = vpop.permute.xlu0 %3178
  %3182 = vset.pattern.permute.xlu0 0
  %3183 = vperm.xlu0 %3182, %v3143
  %v3184 = vpop.permute.xlu0 %3183
  %3187 = vset.pattern.permute.xlu0 0
  %3188 = vperm.xlu0 %3187, %v3144
  %v3189 = vpop.permute.xlu0 %3188
  %3192 = vset.pattern.permute.xlu0 0
  %3193 = vperm.xlu0 %3192, %v3145
  %v3194 = vpop.permute.xlu0 %3193
  %3197 = vset.pattern.permute.xlu0 0
  %3198 = vperm.xlu0 %3197, %v3146
  %v3199 = vpop.permute.xlu0 %3198
  %3202 = vset.pattern.permute.xlu0 0
  %3203 = vperm.xlu0 %3202, %v3147
  %v3204 = vpop.permute.xlu0 %3203
  %3207 = vset.pattern.permute.xlu0 0
  %3208 = vperm.xlu0 %3207, %v3148
  %v3209 = vpop.permute.xlu0 %3208
  %3212 = vset.pattern.permute.xlu0 0
  %3213 = vperm.xlu0 %3212, %v3149
  %v3214 = vpop.permute.xlu0 %3213
  %3217 = vset.pattern.permute.xlu0 0
  %3218 = vperm.xlu0 %3217, %v3150
  %v3219 = vpop.permute.xlu0 %3218
  %3222 = vset.pattern.permute.xlu0 0
  %3223 = vperm.xlu0 %3222, %v3151
  %v3224 = vpop.permute.xlu0 %3223
  %3227 = vset.pattern.permute.xlu0 0
  %3228 = vperm.xlu0 %3227, %v3152
  %v3229 = vpop.permute.xlu0 %3228
  %3232 = vset.pattern.permute.xlu0 0
  %3233 = vperm.xlu0 %3232, %v3153
  %v3234 = vpop.permute.xlu0 %3233
  %v3237 = vlaneseq
  %v3238 = vshrl.u32 %v3237, 7
  %v3239 = vsub.s32 0, %v3238
  %v3240 = vrot.slane %v3155, %v3239
  %v3242 = vmul.f32 %v3159, %v3240
  %v3243 = vmul.f32 %v3164, %v3240
  %v3244 = vmul.f32 %v3169, %v3240
  %v3245 = vmul.f32 %v3174, %v3240
  %v3246 = vmul.f32 %v3179, %v3240
  %v3247 = vmul.f32 %v3184, %v3240
  %v3248 = vmul.f32 %v3189, %v3240
  %v3249 = vmul.f32 %v3194, %v3240
  %v3250 = vmul.f32 %v3199, %v3240
  %v3251 = vmul.f32 %v3204, %v3240
  %v3252 = vmul.f32 %v3209, %v3240
  %v3253 = vmul.f32 %v3214, %v3240
  %v3254 = vmul.f32 %v3219, %v3240
  %v3255 = vmul.f32 %v3224, %v3240
  %v3256 = vmul.f32 %v3229, %v3240
  %v3257 = vmul.f32 %v3234, %v3240
  %v3258 = vadd.f32 %v3121, %v3242
  %v3259 = vadd.f32 %v3122, %v3243
  %v3260 = vadd.f32 %v3123, %v3244
  %v3261 = vadd.f32 %v3124, %v3245
  %v3262 = vadd.f32 %v3125, %v3246
  %v3263 = vadd.f32 %v3126, %v3247
  %v3264 = vadd.f32 %v3127, %v3248
  %v3265 = vadd.f32 %v3128, %v3249
  %v3266 = vadd.f32 %v3129, %v3250
  %v3267 = vadd.f32 %v3130, %v3251
  %v3268 = vadd.f32 %v3131, %v3252
  %v3269 = vadd.f32 %v3132, %v3253
  %v3270 = vadd.f32 %v3133, %v3254
  %v3271 = vadd.f32 %v3134, %v3255
  %v3272 = vadd.f32 %v3135, %v3256
  %v3273 = vadd.f32 %v3136, %v3257
  %s3274 = scalar_lea.vmem %s1, 29
  %v3275 = vld [vmem:[%s3274] sm:$0x1]
  %3276 = vset.pattern.permute.xlu0 1
  %3277 = vperm.xlu0 %3276, %v3138
  %v3278 = vpop.permute.xlu0 %3277
  %3280 = vset.pattern.permute.xlu0 1
  %3281 = vperm.xlu0 %3280, %v3139
  %v3282 = vpop.permute.xlu0 %3281
  %3284 = vset.pattern.permute.xlu0 1
  %3285 = vperm.xlu0 %3284, %v3140
  %v3286 = vpop.permute.xlu0 %3285
  %3288 = vset.pattern.permute.xlu0 1
  %3289 = vperm.xlu0 %3288, %v3141
  %v3290 = vpop.permute.xlu0 %3289
  %3292 = vset.pattern.permute.xlu0 1
  %3293 = vperm.xlu0 %3292, %v3142
  %v3294 = vpop.permute.xlu0 %3293
  %3296 = vset.pattern.permute.xlu0 1
  %3297 = vperm.xlu0 %3296, %v3143
  %v3298 = vpop.permute.xlu0 %3297
  %3300 = vset.pattern.permute.xlu0 1
  %3301 = vperm.xlu0 %3300, %v3144
  %v3302 = vpop.permute.xlu0 %3301
  %3304 = vset.pattern.permute.xlu0 1
  %3305 = vperm.xlu0 %3304, %v3145
  %v3306 = vpop.permute.xlu0 %3305
  %3308 = vset.pattern.permute.xlu0 1
  %3309 = vperm.xlu0 %3308, %v3146
  %v3310 = vpop.permute.xlu0 %3309
  %3312 = vset.pattern.permute.xlu0 1
  %3313 = vperm.xlu0 %3312, %v3147
  %v3314 = vpop.permute.xlu0 %3313
  %3316 = vset.pattern.permute.xlu0 1
  %3317 = vperm.xlu0 %3316, %v3148
  %v3318 = vpop.permute.xlu0 %3317
  %3320 = vset.pattern.permute.xlu0 1
  %3321 = vperm.xlu0 %3320, %v3149
  %v3322 = vpop.permute.xlu0 %3321
  %3324 = vset.pattern.permute.xlu0 1
  %3325 = vperm.xlu0 %3324, %v3150
  %v3326 = vpop.permute.xlu0 %3325
  %3328 = vset.pattern.permute.xlu0 1
  %3329 = vperm.xlu0 %3328, %v3151
  %v3330 = vpop.permute.xlu0 %3329
  %3332 = vset.pattern.permute.xlu0 1
  %3333 = vperm.xlu0 %3332, %v3152
  %v3334 = vpop.permute.xlu0 %3333
  %3336 = vset.pattern.permute.xlu0 1
  %3337 = vperm.xlu0 %3336, %v3153
  %v3338 = vpop.permute.xlu0 %3337
  %v3341 = vlaneseq
  %v3342 = vshrl.u32 %v3341, 7
  %v3343 = vsub.s32 0, %v3342
  %v3344 = vrot.slane %v3275, %v3343
  %v3346 = vmul.f32 %v3278, %v3344
  %v3347 = vmul.f32 %v3282, %v3344
  %v3348 = vmul.f32 %v3286, %v3344
  %v3349 = vmul.f32 %v3290, %v3344
  %v3350 = vmul.f32 %v3294, %v3344
  %v3351 = vmul.f32 %v3298, %v3344
  %v3352 = vmul.f32 %v3302, %v3344
  %v3353 = vmul.f32 %v3306, %v3344
  %v3354 = vmul.f32 %v3310, %v3344
  %v3355 = vmul.f32 %v3314, %v3344
  %v3356 = vmul.f32 %v3318, %v3344
  %v3357 = vmul.f32 %v3322, %v3344
  %v3358 = vmul.f32 %v3326, %v3344
  %v3359 = vmul.f32 %v3330, %v3344
  %v3360 = vmul.f32 %v3334, %v3344
  %v3361 = vmul.f32 %v3338, %v3344
  %v3362 = vadd.f32 %v3258, %v3346
  %v3363 = vadd.f32 %v3259, %v3347
  %v3364 = vadd.f32 %v3260, %v3348
  %v3365 = vadd.f32 %v3261, %v3349
  %v3366 = vadd.f32 %v3262, %v3350
  %v3367 = vadd.f32 %v3263, %v3351
  %v3368 = vadd.f32 %v3264, %v3352
  %v3369 = vadd.f32 %v3265, %v3353
  %v3370 = vadd.f32 %v3266, %v3354
  %v3371 = vadd.f32 %v3267, %v3355
  %v3372 = vadd.f32 %v3268, %v3356
  %v3373 = vadd.f32 %v3269, %v3357
  %v3374 = vadd.f32 %v3270, %v3358
  %v3375 = vadd.f32 %v3271, %v3359
  %v3376 = vadd.f32 %v3272, %v3360
  %v3377 = vadd.f32 %v3273, %v3361
  %s3378 = scalar_lea.vmem %s1, 30
  %v3379 = vld [vmem:[%s3378] sm:$0x1]
  %3380 = vset.pattern.permute.xlu0 2
  %3381 = vperm.xlu0 %3380, %v3138
  %v3382 = vpop.permute.xlu0 %3381
  %3384 = vset.pattern.permute.xlu0 2
  %3385 = vperm.xlu0 %3384, %v3139
  %v3386 = vpop.permute.xlu0 %3385
  %3388 = vset.pattern.permute.xlu0 2
  %3389 = vperm.xlu0 %3388, %v3140
  %v3390 = vpop.permute.xlu0 %3389
  %3392 = vset.pattern.permute.xlu0 2
  %3393 = vperm.xlu0 %3392, %v3141
  %v3394 = vpop.permute.xlu0 %3393
  %3396 = vset.pattern.permute.xlu0 2
  %3397 = vperm.xlu0 %3396, %v3142
  %v3398 = vpop.permute.xlu0 %3397
  %3400 = vset.pattern.permute.xlu0 2
  %3401 = vperm.xlu0 %3400, %v3143
  %v3402 = vpop.permute.xlu0 %3401
  %3404 = vset.pattern.permute.xlu0 2
  %3405 = vperm.xlu0 %3404, %v3144
  %v3406 = vpop.permute.xlu0 %3405
  %3408 = vset.pattern.permute.xlu0 2
  %3409 = vperm.xlu0 %3408, %v3145
  %v3410 = vpop.permute.xlu0 %3409
  %3412 = vset.pattern.permute.xlu0 2
  %3413 = vperm.xlu0 %3412, %v3146
  %v3414 = vpop.permute.xlu0 %3413
  %3416 = vset.pattern.permute.xlu0 2
  %3417 = vperm.xlu0 %3416, %v3147
  %v3418 = vpop.permute.xlu0 %3417
  %3420 = vset.pattern.permute.xlu0 2
  %3421 = vperm.xlu0 %3420, %v3148
  %v3422 = vpop.permute.xlu0 %3421
  %3424 = vset.pattern.permute.xlu0 2
  %3425 = vperm.xlu0 %3424, %v3149
  %v3426 = vpop.permute.xlu0 %3425
  %3428 = vset.pattern.permute.xlu0 2
  %3429 = vperm.xlu0 %3428, %v3150
  %v3430 = vpop.permute.xlu0 %3429
  %3432 = vset.pattern.permute.xlu0 2
  %3433 = vperm.xlu0 %3432, %v3151
  %v3434 = vpop.permute.xlu0 %3433
  %3436 = vset.pattern.permute.xlu0 2
  %3437 = vperm.xlu0 %3436, %v3152
  %v3438 = vpop.permute.xlu0 %3437
  %3440 = vset.pattern.permute.xlu0 2
  %3441 = vperm.xlu0 %3440, %v3153
  %v3442 = vpop.permute.xlu0 %3441
  %v3445 = vlaneseq
  %v3446 = vshrl.u32 %v3445, 7
  %v3447 = vsub.s32 0, %v3446
  %v3448 = vrot.slane %v3379, %v3447
  %v3450 = vmul.f32 %v3382, %v3448
  %v3451 = vmul.f32 %v3386, %v3448
  %v3452 = vmul.f32 %v3390, %v3448
  %v3453 = vmul.f32 %v3394, %v3448
  %v3454 = vmul.f32 %v3398, %v3448
  %v3455 = vmul.f32 %v3402, %v3448
  %v3456 = vmul.f32 %v3406, %v3448
  %v3457 = vmul.f32 %v3410, %v3448
  %v3458 = vmul.f32 %v3414, %v3448
  %v3459 = vmul.f32 %v3418, %v3448
  %v3460 = vmul.f32 %v3422, %v3448
  %v3461 = vmul.f32 %v3426, %v3448
  %v3462 = vmul.f32 %v3430, %v3448
  %v3463 = vmul.f32 %v3434, %v3448
  %v3464 = vmul.f32 %v3438, %v3448
  %v3465 = vmul.f32 %v3442, %v3448
  %v3466 = vadd.f32 %v3362, %v3450
  %v3467 = vadd.f32 %v3363, %v3451
  %v3468 = vadd.f32 %v3364, %v3452
  %v3469 = vadd.f32 %v3365, %v3453
  %v3470 = vadd.f32 %v3366, %v3454
  %v3471 = vadd.f32 %v3367, %v3455
  %v3472 = vadd.f32 %v3368, %v3456
  %v3473 = vadd.f32 %v3369, %v3457
  %v3474 = vadd.f32 %v3370, %v3458
  %v3475 = vadd.f32 %v3371, %v3459
  %v3476 = vadd.f32 %v3372, %v3460
  %v3477 = vadd.f32 %v3373, %v3461
  %v3478 = vadd.f32 %v3374, %v3462
  %v3479 = vadd.f32 %v3375, %v3463
  %v3480 = vadd.f32 %v3376, %v3464
  %v3481 = vadd.f32 %v3377, %v3465
  %s3482 = scalar_lea.vmem %s1, 31
  %v3483 = vld [vmem:[%s3482] sm:$0x1]
  %3484 = vset.pattern.permute.xlu0 3
  %3485 = vperm.xlu0 %3484, %v3138
  %v3486 = vpop.permute.xlu0 %3485
  %3488 = vset.pattern.permute.xlu0 3
  %3489 = vperm.xlu0 %3488, %v3139
  %v3490 = vpop.permute.xlu0 %3489
  %3492 = vset.pattern.permute.xlu0 3
  %3493 = vperm.xlu0 %3492, %v3140
  %v3494 = vpop.permute.xlu0 %3493
  %3496 = vset.pattern.permute.xlu0 3
  %3497 = vperm.xlu0 %3496, %v3141
  %v3498 = vpop.permute.xlu0 %3497
  %3500 = vset.pattern.permute.xlu0 3
  %3501 = vperm.xlu0 %3500, %v3142
  %v3502 = vpop.permute.xlu0 %3501
  %3504 = vset.pattern.permute.xlu0 3
  %3505 = vperm.xlu0 %3504, %v3143
  %v3506 = vpop.permute.xlu0 %3505
  %3508 = vset.pattern.permute.xlu0 3
  %3509 = vperm.xlu0 %3508, %v3144
  %v3510 = vpop.permute.xlu0 %3509
  %3512 = vset.pattern.permute.xlu0 3
  %3513 = vperm.xlu0 %3512, %v3145
  %v3514 = vpop.permute.xlu0 %3513
  %3516 = vset.pattern.permute.xlu0 3
  %3517 = vperm.xlu0 %3516, %v3146
  %v3518 = vpop.permute.xlu0 %3517
  %3520 = vset.pattern.permute.xlu0 3
  %3521 = vperm.xlu0 %3520, %v3147
  %v3522 = vpop.permute.xlu0 %3521
  %3524 = vset.pattern.permute.xlu0 3
  %3525 = vperm.xlu0 %3524, %v3148
  %v3526 = vpop.permute.xlu0 %3525
  %3528 = vset.pattern.permute.xlu0 3
  %3529 = vperm.xlu0 %3528, %v3149
  %v3530 = vpop.permute.xlu0 %3529
  %3532 = vset.pattern.permute.xlu0 3
  %3533 = vperm.xlu0 %3532, %v3150
  %v3534 = vpop.permute.xlu0 %3533
  %3536 = vset.pattern.permute.xlu0 3
  %3537 = vperm.xlu0 %3536, %v3151
  %v3538 = vpop.permute.xlu0 %3537
  %3540 = vset.pattern.permute.xlu0 3
  %3541 = vperm.xlu0 %3540, %v3152
  %v3542 = vpop.permute.xlu0 %3541
  %3544 = vset.pattern.permute.xlu0 3
  %3545 = vperm.xlu0 %3544, %v3153
  %v3546 = vpop.permute.xlu0 %3545
  %v3549 = vlaneseq
  %v3550 = vshrl.u32 %v3549, 7
  %v3551 = vsub.s32 0, %v3550
  %v3552 = vrot.slane %v3483, %v3551
  %v3554 = vmul.f32 %v3486, %v3552
  %v3555 = vmul.f32 %v3490, %v3552
  %v3556 = vmul.f32 %v3494, %v3552
  %v3557 = vmul.f32 %v3498, %v3552
  %v3558 = vmul.f32 %v3502, %v3552
  %v3559 = vmul.f32 %v3506, %v3552
  %v3560 = vmul.f32 %v3510, %v3552
  %v3561 = vmul.f32 %v3514, %v3552
  %v3562 = vmul.f32 %v3518, %v3552
  %v3563 = vmul.f32 %v3522, %v3552
  %v3564 = vmul.f32 %v3526, %v3552
  %v3565 = vmul.f32 %v3530, %v3552
  %v3566 = vmul.f32 %v3534, %v3552
  %v3567 = vmul.f32 %v3538, %v3552
  %v3568 = vmul.f32 %v3542, %v3552
  %v3569 = vmul.f32 %v3546, %v3552
  %v3570 = vadd.f32 %v3466, %v3554
  %v3571 = vadd.f32 %v3467, %v3555
  %v3572 = vadd.f32 %v3468, %v3556
  %v3573 = vadd.f32 %v3469, %v3557
  %v3574 = vadd.f32 %v3470, %v3558
  %v3575 = vadd.f32 %v3471, %v3559
  %v3576 = vadd.f32 %v3472, %v3560
  %v3577 = vadd.f32 %v3473, %v3561
  %v3578 = vadd.f32 %v3474, %v3562
  %v3579 = vadd.f32 %v3475, %v3563
  %v3580 = vadd.f32 %v3476, %v3564
  %v3581 = vadd.f32 %v3477, %v3565
  %v3582 = vadd.f32 %v3478, %v3566
  %v3583 = vadd.f32 %v3479, %v3567
  %v3584 = vadd.f32 %v3480, %v3568
  %v3585 = vadd.f32 %v3481, %v3569
  %v3586 = vld [vmem:[%s2688 + $0x1] sm:$0xff]
  %v3587 = vld [vmem:[%s2688 + $0x11] sm:$0xff]
  %v3588 = vld [vmem:[%s2688 + $0x21] sm:$0xff]
  %v3589 = vld [vmem:[%s2688 + $0x31] sm:$0xff]
  %v3590 = vld [vmem:[%s2688 + $0x41] sm:$0xff]
  %v3591 = vld [vmem:[%s2688 + $0x51] sm:$0xff]
  %v3592 = vld [vmem:[%s2688 + $0x61] sm:$0xff]
  %v3593 = vld [vmem:[%s2688 + $0x71] sm:$0xff]
  %v3594 = vld [vmem:[%s2688 + $0x91] sm:$0xff]
  %v3595 = vld [vmem:[%s2688 + $0xa1] sm:$0xff]
  %v3596 = vld [vmem:[%s2688 + $0xb1] sm:$0xff]
  %v3597 = vld [vmem:[%s2688 + $0xc1] sm:$0xff]
  %v3598 = vld [vmem:[%s2688 + $0xd1] sm:$0xff]
  %v3599 = vld [vmem:[%s2688 + $0xe1] sm:$0xff]
  %v3600 = vld [vmem:[%s2688 + $0xf1] sm:$0xff]
  %v3601 = vld [vmem:[%s2688 + $0x101] sm:$0xff]
  %s3602 = scalar_lea.vmem %s1, 32
  %v3603 = vld [vmem:[%s3602] sm:$0x1]
  %3605 = vset.pattern.permute.xlu0 0
  %3606 = vperm.xlu0 %3605, %v3586
  %v3607 = vpop.permute.xlu0 %3606
  %3610 = vset.pattern.permute.xlu0 0
  %3611 = vperm.xlu0 %3610, %v3587
  %v3612 = vpop.permute.xlu0 %3611
  %3615 = vset.pattern.permute.xlu0 0
  %3616 = vperm.xlu0 %3615, %v3588
  %v3617 = vpop.permute.xlu0 %3616
  %3620 = vset.pattern.permute.xlu0 0
  %3621 = vperm.xlu0 %3620, %v3589
  %v3622 = vpop.permute.xlu0 %3621
  %3625 = vset.pattern.permute.xlu0 0
  %3626 = vperm.xlu0 %3625, %v3590
  %v3627 = vpop.permute.xlu0 %3626
  %3630 = vset.pattern.permute.xlu0 0
  %3631 = vperm.xlu0 %3630, %v3591
  %v3632 = vpop.permute.xlu0 %3631
  %3635 = vset.pattern.permute.xlu0 0
  %3636 = vperm.xlu0 %3635, %v3592
  %v3637 = vpop.permute.xlu0 %3636
  %3640 = vset.pattern.permute.xlu0 0
  %3641 = vperm.xlu0 %3640, %v3593
  %v3642 = vpop.permute.xlu0 %3641
  %3645 = vset.pattern.permute.xlu0 0
  %3646 = vperm.xlu0 %3645, %v3594
  %v3647 = vpop.permute.xlu0 %3646
  %3650 = vset.pattern.permute.xlu0 0
  %3651 = vperm.xlu0 %3650, %v3595
  %v3652 = vpop.permute.xlu0 %3651
  %3655 = vset.pattern.permute.xlu0 0
  %3656 = vperm.xlu0 %3655, %v3596
  %v3657 = vpop.permute.xlu0 %3656
  %3660 = vset.pattern.permute.xlu0 0
  %3661 = vperm.xlu0 %3660, %v3597
  %v3662 = vpop.permute.xlu0 %3661
  %3665 = vset.pattern.permute.xlu0 0
  %3666 = vperm.xlu0 %3665, %v3598
  %v3667 = vpop.permute.xlu0 %3666
  %3670 = vset.pattern.permute.xlu0 0
  %3671 = vperm.xlu0 %3670, %v3599
  %v3672 = vpop.permute.xlu0 %3671
  %3675 = vset.pattern.permute.xlu0 0
  %3676 = vperm.xlu0 %3675, %v3600
  %v3677 = vpop.permute.xlu0 %3676
  %3680 = vset.pattern.permute.xlu0 0
  %3681 = vperm.xlu0 %3680, %v3601
  %v3682 = vpop.permute.xlu0 %3681
  %v3685 = vlaneseq
  %v3686 = vshrl.u32 %v3685, 7
  %v3687 = vsub.s32 0, %v3686
  %v3688 = vrot.slane %v3603, %v3687
  %v3690 = vmul.f32 %v3607, %v3688
  %v3691 = vmul.f32 %v3612, %v3688
  %v3692 = vmul.f32 %v3617, %v3688
  %v3693 = vmul.f32 %v3622, %v3688
  %v3694 = vmul.f32 %v3627, %v3688
  %v3695 = vmul.f32 %v3632, %v3688
  %v3696 = vmul.f32 %v3637, %v3688
  %v3697 = vmul.f32 %v3642, %v3688
  %v3698 = vmul.f32 %v3647, %v3688
  %v3699 = vmul.f32 %v3652, %v3688
  %v3700 = vmul.f32 %v3657, %v3688
  %v3701 = vmul.f32 %v3662, %v3688
  %v3702 = vmul.f32 %v3667, %v3688
  %v3703 = vmul.f32 %v3672, %v3688
  %v3704 = vmul.f32 %v3677, %v3688
  %v3705 = vmul.f32 %v3682, %v3688
  %v3706 = vadd.f32 %v3570, %v3690
  %v3707 = vadd.f32 %v3571, %v3691
  %v3708 = vadd.f32 %v3572, %v3692
  %v3709 = vadd.f32 %v3573, %v3693
  %v3710 = vadd.f32 %v3574, %v3694
  %v3711 = vadd.f32 %v3575, %v3695
  %v3712 = vadd.f32 %v3576, %v3696
  %v3713 = vadd.f32 %v3577, %v3697
  %v3714 = vadd.f32 %v3578, %v3698
  %v3715 = vadd.f32 %v3579, %v3699
  %v3716 = vadd.f32 %v3580, %v3700
  %v3717 = vadd.f32 %v3581, %v3701
  %v3718 = vadd.f32 %v3582, %v3702
  %v3719 = vadd.f32 %v3583, %v3703
  %v3720 = vadd.f32 %v3584, %v3704
  %v3721 = vadd.f32 %v3585, %v3705
  %s3722 = scalar_lea.vmem %s1, 33
  %v3723 = vld [vmem:[%s3722] sm:$0x1]
  %3724 = vset.pattern.permute.xlu0 1
  %3725 = vperm.xlu0 %3724, %v3586
  %v3726 = vpop.permute.xlu0 %3725
  %3728 = vset.pattern.permute.xlu0 1
  %3729 = vperm.xlu0 %3728, %v3587
  %v3730 = vpop.permute.xlu0 %3729
  %3732 = vset.pattern.permute.xlu0 1
  %3733 = vperm.xlu0 %3732, %v3588
  %v3734 = vpop.permute.xlu0 %3733
  %3736 = vset.pattern.permute.xlu0 1
  %3737 = vperm.xlu0 %3736, %v3589
  %v3738 = vpop.permute.xlu0 %3737
  %3740 = vset.pattern.permute.xlu0 1
  %3741 = vperm.xlu0 %3740, %v3590
  %v3742 = vpop.permute.xlu0 %3741
  %3744 = vset.pattern.permute.xlu0 1
  %3745 = vperm.xlu0 %3744, %v3591
  %v3746 = vpop.permute.xlu0 %3745
  %3748 = vset.pattern.permute.xlu0 1
  %3749 = vperm.xlu0 %3748, %v3592
  %v3750 = vpop.permute.xlu0 %3749
  %3752 = vset.pattern.permute.xlu0 1
  %3753 = vperm.xlu0 %3752, %v3593
  %v3754 = vpop.permute.xlu0 %3753
  %3756 = vset.pattern.permute.xlu0 1
  %3757 = vperm.xlu0 %3756, %v3594
  %v3758 = vpop.permute.xlu0 %3757
  %3760 = vset.pattern.permute.xlu0 1
  %3761 = vperm.xlu0 %3760, %v3595
  %v3762 = vpop.permute.xlu0 %3761
  %3764 = vset.pattern.permute.xlu0 1
  %3765 = vperm.xlu0 %3764, %v3596
  %v3766 = vpop.permute.xlu0 %3765
  %3768 = vset.pattern.permute.xlu0 1
  %3769 = vperm.xlu0 %3768, %v3597
  %v3770 = vpop.permute.xlu0 %3769
  %3772 = vset.pattern.permute.xlu0 1
  %3773 = vperm.xlu0 %3772, %v3598
  %v3774 = vpop.permute.xlu0 %3773
  %3776 = vset.pattern.permute.xlu0 1
  %3777 = vperm.xlu0 %3776, %v3599
  %v3778 = vpop.permute.xlu0 %3777
  %3780 = vset.pattern.permute.xlu0 1
  %3781 = vperm.xlu0 %3780, %v3600
  %v3782 = vpop.permute.xlu0 %3781
  %3784 = vset.pattern.permute.xlu0 1
  %3785 = vperm.xlu0 %3784, %v3601
  %v3786 = vpop.permute.xlu0 %3785
  %v3789 = vlaneseq
  %v3790 = vshrl.u32 %v3789, 7
  %v3791 = vsub.s32 0, %v3790
  %v3792 = vrot.slane %v3723, %v3791
  %v3794 = vmul.f32 %v3726, %v3792
  %v3795 = vmul.f32 %v3730, %v3792
  %v3796 = vmul.f32 %v3734, %v3792
  %v3797 = vmul.f32 %v3738, %v3792
  %v3798 = vmul.f32 %v3742, %v3792
  %v3799 = vmul.f32 %v3746, %v3792
  %v3800 = vmul.f32 %v3750, %v3792
  %v3801 = vmul.f32 %v3754, %v3792
  %v3802 = vmul.f32 %v3758, %v3792
  %v3803 = vmul.f32 %v3762, %v3792
  %v3804 = vmul.f32 %v3766, %v3792
  %v3805 = vmul.f32 %v3770, %v3792
  %v3806 = vmul.f32 %v3774, %v3792
  %v3807 = vmul.f32 %v3778, %v3792
  %v3808 = vmul.f32 %v3782, %v3792
  %v3809 = vmul.f32 %v3786, %v3792
  %v3810 = vadd.f32 %v3706, %v3794
  %v3811 = vadd.f32 %v3707, %v3795
  %v3812 = vadd.f32 %v3708, %v3796
  %v3813 = vadd.f32 %v3709, %v3797
  %v3814 = vadd.f32 %v3710, %v3798
  %v3815 = vadd.f32 %v3711, %v3799
  %v3816 = vadd.f32 %v3712, %v3800
  %v3817 = vadd.f32 %v3713, %v3801
  %v3818 = vadd.f32 %v3714, %v3802
  %v3819 = vadd.f32 %v3715, %v3803
  %v3820 = vadd.f32 %v3716, %v3804
  %v3821 = vadd.f32 %v3717, %v3805
  %v3822 = vadd.f32 %v3718, %v3806
  %v3823 = vadd.f32 %v3719, %v3807
  %v3824 = vadd.f32 %v3720, %v3808
  %v3825 = vadd.f32 %v3721, %v3809
  %s3826 = scalar_lea.vmem %s1, 34
  %v3827 = vld [vmem:[%s3826] sm:$0x1]
  %3828 = vset.pattern.permute.xlu0 2
  %3829 = vperm.xlu0 %3828, %v3586
  %v3830 = vpop.permute.xlu0 %3829
  %3832 = vset.pattern.permute.xlu0 2
  %3833 = vperm.xlu0 %3832, %v3587
  %v3834 = vpop.permute.xlu0 %3833
  %3836 = vset.pattern.permute.xlu0 2
  %3837 = vperm.xlu0 %3836, %v3588
  %v3838 = vpop.permute.xlu0 %3837
  %3840 = vset.pattern.permute.xlu0 2
  %3841 = vperm.xlu0 %3840, %v3589
  %v3842 = vpop.permute.xlu0 %3841
  %3844 = vset.pattern.permute.xlu0 2
  %3845 = vperm.xlu0 %3844, %v3590
  %v3846 = vpop.permute.xlu0 %3845
  %3848 = vset.pattern.permute.xlu0 2
  %3849 = vperm.xlu0 %3848, %v3591
  %v3850 = vpop.permute.xlu0 %3849
  %3852 = vset.pattern.permute.xlu0 2
  %3853 = vperm.xlu0 %3852, %v3592
  %v3854 = vpop.permute.xlu0 %3853
  %3856 = vset.pattern.permute.xlu0 2
  %3857 = vperm.xlu0 %3856, %v3593
  %v3858 = vpop.permute.xlu0 %3857
  %3860 = vset.pattern.permute.xlu0 2
  %3861 = vperm.xlu0 %3860, %v3594
  %v3862 = vpop.permute.xlu0 %3861
  %3864 = vset.pattern.permute.xlu0 2
  %3865 = vperm.xlu0 %3864, %v3595
  %v3866 = vpop.permute.xlu0 %3865
  %3868 = vset.pattern.permute.xlu0 2
  %3869 = vperm.xlu0 %3868, %v3596
  %v3870 = vpop.permute.xlu0 %3869
  %3872 = vset.pattern.permute.xlu0 2
  %3873 = vperm.xlu0 %3872, %v3597
  %v3874 = vpop.permute.xlu0 %3873
  %3876 = vset.pattern.permute.xlu0 2
  %3877 = vperm.xlu0 %3876, %v3598
  %v3878 = vpop.permute.xlu0 %3877
  %3880 = vset.pattern.permute.xlu0 2
  %3881 = vperm.xlu0 %3880, %v3599
  %v3882 = vpop.permute.xlu0 %3881
  %3884 = vset.pattern.permute.xlu0 2
  %3885 = vperm.xlu0 %3884, %v3600
  %v3886 = vpop.permute.xlu0 %3885
  %3888 = vset.pattern.permute.xlu0 2
  %3889 = vperm.xlu0 %3888, %v3601
  %v3890 = vpop.permute.xlu0 %3889
  %v3893 = vlaneseq
  %v3894 = vshrl.u32 %v3893, 7
  %v3895 = vsub.s32 0, %v3894
  %v3896 = vrot.slane %v3827, %v3895
  %v3898 = vmul.f32 %v3830, %v3896
  %v3899 = vmul.f32 %v3834, %v3896
  %v3900 = vmul.f32 %v3838, %v3896
  %v3901 = vmul.f32 %v3842, %v3896
  %v3902 = vmul.f32 %v3846, %v3896
  %v3903 = vmul.f32 %v3850, %v3896
  %v3904 = vmul.f32 %v3854, %v3896
  %v3905 = vmul.f32 %v3858, %v3896
  %v3906 = vmul.f32 %v3862, %v3896
  %v3907 = vmul.f32 %v3866, %v3896
  %v3908 = vmul.f32 %v3870, %v3896
  %v3909 = vmul.f32 %v3874, %v3896
  %v3910 = vmul.f32 %v3878, %v3896
  %v3911 = vmul.f32 %v3882, %v3896
  %v3912 = vmul.f32 %v3886, %v3896
  %v3913 = vmul.f32 %v3890, %v3896
  %v3914 = vadd.f32 %v3810, %v3898
  %v3915 = vadd.f32 %v3811, %v3899
  %v3916 = vadd.f32 %v3812, %v3900
  %v3917 = vadd.f32 %v3813, %v3901
  %v3918 = vadd.f32 %v3814, %v3902
  %v3919 = vadd.f32 %v3815, %v3903
  %v3920 = vadd.f32 %v3816, %v3904
  %v3921 = vadd.f32 %v3817, %v3905
  %v3922 = vadd.f32 %v3818, %v3906
  %v3923 = vadd.f32 %v3819, %v3907
  %v3924 = vadd.f32 %v3820, %v3908
  %v3925 = vadd.f32 %v3821, %v3909
  %v3926 = vadd.f32 %v3822, %v3910
  %v3927 = vadd.f32 %v3823, %v3911
  %v3928 = vadd.f32 %v3824, %v3912
  %v3929 = vadd.f32 %v3825, %v3913
  %s3930 = scalar_lea.vmem %s1, 35
  %v3931 = vld [vmem:[%s3930] sm:$0x1]
  %3932 = vset.pattern.permute.xlu0 3
  %3933 = vperm.xlu0 %3932, %v3586
  %v3934 = vpop.permute.xlu0 %3933
  %3936 = vset.pattern.permute.xlu0 3
  %3937 = vperm.xlu0 %3936, %v3587
  %v3938 = vpop.permute.xlu0 %3937
  %3940 = vset.pattern.permute.xlu0 3
  %3941 = vperm.xlu0 %3940, %v3588
  %v3942 = vpop.permute.xlu0 %3941
  %3944 = vset.pattern.permute.xlu0 3
  %3945 = vperm.xlu0 %3944, %v3589
  %v3946 = vpop.permute.xlu0 %3945
  %3948 = vset.pattern.permute.xlu0 3
  %3949 = vperm.xlu0 %3948, %v3590
  %v3950 = vpop.permute.xlu0 %3949
  %3952 = vset.pattern.permute.xlu0 3
  %3953 = vperm.xlu0 %3952, %v3591
  %v3954 = vpop.permute.xlu0 %3953
  %3956 = vset.pattern.permute.xlu0 3
  %3957 = vperm.xlu0 %3956, %v3592
  %v3958 = vpop.permute.xlu0 %3957
  %3960 = vset.pattern.permute.xlu0 3
  %3961 = vperm.xlu0 %3960, %v3593
  %v3962 = vpop.permute.xlu0 %3961
  %3964 = vset.pattern.permute.xlu0 3
  %3965 = vperm.xlu0 %3964, %v3594
  %v3966 = vpop.permute.xlu0 %3965
  %3968 = vset.pattern.permute.xlu0 3
  %3969 = vperm.xlu0 %3968, %v3595
  %v3970 = vpop.permute.xlu0 %3969
  %3972 = vset.pattern.permute.xlu0 3
  %3973 = vperm.xlu0 %3972, %v3596
  %v3974 = vpop.permute.xlu0 %3973
  %3976 = vset.pattern.permute.xlu0 3
  %3977 = vperm.xlu0 %3976, %v3597
  %v3978 = vpop.permute.xlu0 %3977
  %3980 = vset.pattern.permute.xlu0 3
  %3981 = vperm.xlu0 %3980, %v3598
  %v3982 = vpop.permute.xlu0 %3981
  %3984 = vset.pattern.permute.xlu0 3
  %3985 = vperm.xlu0 %3984, %v3599
  %v3986 = vpop.permute.xlu0 %3985
  %3988 = vset.pattern.permute.xlu0 3
  %3989 = vperm.xlu0 %3988, %v3600
  %v3990 = vpop.permute.xlu0 %3989
  %3992 = vset.pattern.permute.xlu0 3
  %3993 = vperm.xlu0 %3992, %v3601
  %v3994 = vpop.permute.xlu0 %3993
  %v3997 = vlaneseq
  %v3998 = vshrl.u32 %v3997, 7
  %v3999 = vsub.s32 0, %v3998
  %v4000 = vrot.slane %v3931, %v3999
  %v4002 = vmul.f32 %v3934, %v4000
  %v4003 = vmul.f32 %v3938, %v4000
  %v4004 = vmul.f32 %v3942, %v4000
  %v4005 = vmul.f32 %v3946, %v4000
  %v4006 = vmul.f32 %v3950, %v4000
  %v4007 = vmul.f32 %v3954, %v4000
  %v4008 = vmul.f32 %v3958, %v4000
  %v4009 = vmul.f32 %v3962, %v4000
  %v4010 = vmul.f32 %v3966, %v4000
  %v4011 = vmul.f32 %v3970, %v4000
  %v4012 = vmul.f32 %v3974, %v4000
  %v4013 = vmul.f32 %v3978, %v4000
  %v4014 = vmul.f32 %v3982, %v4000
  %v4015 = vmul.f32 %v3986, %v4000
  %v4016 = vmul.f32 %v3990, %v4000
  %v4017 = vmul.f32 %v3994, %v4000
  %v4018 = vadd.f32 %v3914, %v4002
  %v4019 = vadd.f32 %v3915, %v4003
  %v4020 = vadd.f32 %v3916, %v4004
  %v4021 = vadd.f32 %v3917, %v4005
  %v4022 = vadd.f32 %v3918, %v4006
  %v4023 = vadd.f32 %v3919, %v4007
  %v4024 = vadd.f32 %v3920, %v4008
  %v4025 = vadd.f32 %v3921, %v4009
  %v4026 = vadd.f32 %v3922, %v4010
  %v4027 = vadd.f32 %v3923, %v4011
  %v4028 = vadd.f32 %v3924, %v4012
  %v4029 = vadd.f32 %v3925, %v4013
  %v4030 = vadd.f32 %v3926, %v4014
  %v4031 = vadd.f32 %v3927, %v4015
  %v4032 = vadd.f32 %v3928, %v4016
  %v4033 = vadd.f32 %v3929, %v4017
  %v4034 = vld [vmem:[%s2] sm:$0x1]
  %v4036 = vlaneseq
  %v4037 = vshrl.u32 %v4036, 7
  %v4038 = vsub.s32 0, %v4037
  %v4039 = vrot.slane %v4034, %v4038
  %v4041 = vadd.f32 %v4018, %v4039
  %v4042 = vadd.f32 %v4019, %v4039
  %v4043 = vadd.f32 %v4020, %v4039
  %v4044 = vadd.f32 %v4021, %v4039
  %v4045 = vadd.f32 %v4022, %v4039
  %v4046 = vadd.f32 %v4023, %v4039
  %v4047 = vadd.f32 %v4024, %v4039
  %v4048 = vadd.f32 %v4025, %v4039
  %v4049 = vadd.f32 %v4026, %v4039
  %v4050 = vadd.f32 %v4027, %v4039
  %v4051 = vadd.f32 %v4028, %v4039
  %v4052 = vadd.f32 %v4029, %v4039
  %v4053 = vadd.f32 %v4030, %v4039
  %v4054 = vadd.f32 %v4031, %v4039
  %v4055 = vadd.f32 %v4032, %v4039
  %v4056 = vadd.f32 %v4033, %v4039
  %v4057 = vxor.u32 %v4041, 2147483648
  %v4058 = vxor.u32 %v4042, 2147483648
  %v4059 = vxor.u32 %v4043, 2147483648
  %v4060 = vxor.u32 %v4044, 2147483648
  %v4061 = vxor.u32 %v4045, 2147483648
  %v4062 = vxor.u32 %v4046, 2147483648
  %v4063 = vxor.u32 %v4047, 2147483648
  %v4064 = vxor.u32 %v4048, 2147483648
  %v4065 = vxor.u32 %v4049, 2147483648
  %v4066 = vxor.u32 %v4050, 2147483648
  %v4067 = vxor.u32 %v4051, 2147483648
  %v4068 = vxor.u32 %v4052, 2147483648
  %v4069 = vxor.u32 %v4053, 2147483648
  %v4070 = vxor.u32 %v4054, 2147483648
  %v4071 = vxor.u32 %v4055, 2147483648
  %v4072 = vxor.u32 %v4056, 2147483648
  %v4073 = vmul.f32 %v4057, 1.442695
  %v4074 = vpow.pop %v4073
  %v4075 = vmul.f32 %v4058, 1.442695
  %v4076 = vpow.pop %v4075
  %v4077 = vmul.f32 %v4059, 1.442695
  %v4078 = vpow.pop %v4077
  %v4079 = vmul.f32 %v4060, 1.442695
  %v4080 = vpow.pop %v4079
  %v4081 = vmul.f32 %v4061, 1.442695
  %v4082 = vpow.pop %v4081
  %v4083 = vmul.f32 %v4062, 1.442695
  %v4084 = vpow.pop %v4083
  %v4085 = vmul.f32 %v4063, 1.442695
  %v4086 = vpow.pop %v4085
  %v4087 = vmul.f32 %v4064, 1.442695
  %v4088 = vpow.pop %v4087
  %v4089 = vmul.f32 %v4065, 1.442695
  %v4090 = vpow.pop %v4089
  %v4091 = vmul.f32 %v4066, 1.442695
  %v4092 = vpow.pop %v4091
  %v4093 = vmul.f32 %v4067, 1.442695
  %v4094 = vpow.pop %v4093
  %v4095 = vmul.f32 %v4068, 1.442695
  %v4096 = vpow.pop %v4095
  %v4097 = vmul.f32 %v4069, 1.442695
  %v4098 = vpow.pop %v4097
  %v4099 = vmul.f32 %v4070, 1.442695
  %v4100 = vpow.pop %v4099
  %v4101 = vmul.f32 %v4071, 1.442695
  %v4102 = vpow.pop %v4101
  %v4103 = vmul.f32 %v4072, 1.442695
  %v4104 = vpow.pop %v4103
  %v4105 = vadd.f32 %v4074, 1.0
  %v4106 = vadd.f32 %v4076, 1.0
  %v4107 = vadd.f32 %v4078, 1.0
  %v4108 = vadd.f32 %v4080, 1.0
  %v4109 = vadd.f32 %v4082, 1.0
  %v4110 = vadd.f32 %v4084, 1.0
  %v4111 = vadd.f32 %v4086, 1.0
  %v4112 = vadd.f32 %v4088, 1.0
  %v4113 = vadd.f32 %v4090, 1.0
  %v4114 = vadd.f32 %v4092, 1.0
  %v4115 = vadd.f32 %v4094, 1.0
  %v4116 = vadd.f32 %v4096, 1.0
  %v4117 = vadd.f32 %v4098, 1.0
  %v4118 = vadd.f32 %v4100, 1.0
  %v4119 = vadd.f32 %v4102, 1.0
  %v4120 = vadd.f32 %v4104, 1.0
  %v4121 = vrcp.pop %v4105
  %v4122 = vmul.f32 1.0, %v4121
  %v4123 = vrcp.pop %v4106
  %v4124 = vmul.f32 1.0, %v4123
  %v4125 = vrcp.pop %v4107
  %v4126 = vmul.f32 1.0, %v4125
  %v4127 = vrcp.pop %v4108
  %v4128 = vmul.f32 1.0, %v4127
  %v4129 = vrcp.pop %v4109
  %v4130 = vmul.f32 1.0, %v4129
  %v4131 = vrcp.pop %v4110
  %v4132 = vmul.f32 1.0, %v4131
  %v4133 = vrcp.pop %v4111
  %v4134 = vmul.f32 1.0, %v4133
  %v4135 = vrcp.pop %v4112
  %v4136 = vmul.f32 1.0, %v4135
  %v4137 = vrcp.pop %v4113
  %v4138 = vmul.f32 1.0, %v4137
  %v4139 = vrcp.pop %v4114
  %v4140 = vmul.f32 1.0, %v4139
  %v4141 = vrcp.pop %v4115
  %v4142 = vmul.f32 1.0, %v4141
  %v4143 = vrcp.pop %v4116
  %v4144 = vmul.f32 1.0, %v4143
  %v4145 = vrcp.pop %v4117
  %v4146 = vmul.f32 1.0, %v4145
  %v4147 = vrcp.pop %v4118
  %v4148 = vmul.f32 1.0, %v4147
  %v4149 = vrcp.pop %v4119
  %v4150 = vmul.f32 1.0, %v4149
  %v4151 = vrcp.pop %v4120
  %v4152 = vmul.f32 1.0, %v4151
  %v4153 = vmul.f32 %v4041, %v4122
  %v4154 = vmul.f32 %v4042, %v4124
  %v4155 = vmul.f32 %v4043, %v4126
  %v4156 = vmul.f32 %v4044, %v4128
  %v4157 = vmul.f32 %v4045, %v4130
  %v4158 = vmul.f32 %v4046, %v4132
  %v4159 = vmul.f32 %v4047, %v4134
  %v4160 = vmul.f32 %v4048, %v4136
  %v4161 = vmul.f32 %v4049, %v4138
  %v4162 = vmul.f32 %v4050, %v4140
  %v4163 = vmul.f32 %v4051, %v4142
  %v4164 = vmul.f32 %v4052, %v4144
  %v4165 = vmul.f32 %v4053, %v4146
  %v4166 = vmul.f32 %v4054, %v4148
  %v4167 = vmul.f32 %v4055, %v4150
  %v4168 = vmul.f32 %v4056, %v4152
  %vm4169 = vcmask 130048
  %4170 = vst.msk [vmem:[%s3] sm:$0xff] %vm4169, %v4153
  %4171 = vst.msk [vmem:[%s3 + $0x8] sm:$0xff] %vm4169, %v4154
  %4172 = vst.msk [vmem:[%s3 + $0x10] sm:$0xff] %vm4169, %v4155
  %4173 = vst.msk [vmem:[%s3 + $0x18] sm:$0xff] %vm4169, %v4156
  %4174 = vst.msk [vmem:[%s3 + $0x20] sm:$0xff] %vm4169, %v4157
  %4175 = vst.msk [vmem:[%s3 + $0x28] sm:$0xff] %vm4169, %v4158
  %4176 = vst.msk [vmem:[%s3 + $0x30] sm:$0xff] %vm4169, %v4159
  %4177 = vst.msk [vmem:[%s3 + $0x38] sm:$0xff] %vm4169, %v4160
  %4178 = vst.msk [vmem:[%s3 + $0x40] sm:$0xff] %vm4169, %v4161
  %4179 = vst.msk [vmem:[%s3 + $0x48] sm:$0xff] %vm4169, %v4162
  %4180 = vst.msk [vmem:[%s3 + $0x50] sm:$0xff] %vm4169, %v4163
  %4181 = vst.msk [vmem:[%s3 + $0x58] sm:$0xff] %vm4169, %v4164
  %4182 = vst.msk [vmem:[%s3 + $0x60] sm:$0xff] %vm4169, %v4165
  %4183 = vst.msk [vmem:[%s3 + $0x68] sm:$0xff] %vm4169, %v4166
  %4184 = vst.msk [vmem:[%s3 + $0x70] sm:$0xff] %vm4169, %v4167
  %4185 = vst.msk [vmem:[%s3 + $0x78] sm:$0xff] %vm4169, %v4168
  // Predicated region
  $region14: #{net_forward.10} parent=0 // pred_check
    _
  $region15: #{net_forward.10} parent=0 // pred_check_branch
    %4187 = sbr.rel (0) target = $region17
  $region16: #{net_forward.10} parent=0 // pred_region
    _
  $region17: #{net_forward.10} parent=0 // pred_fallthru
    _
  // Predicated region
  $region18: #{net_forward.10} parent=0 // pred_check
    _
  $region19: #{net_forward.10} parent=0 // pred_check_branch
    %4189 = sbr.rel (0) target = $region21
  $region20: #{net_forward.10} parent=0 // pred_region
    _
  $region21: #{net_forward.10} parent=0 // pred_fallthru
    _

// kernel: net_forward.14
$region0: #{net_forward.14}
  #allocation0 [shape = 'u32[]', space=smem, size = 0x4, offset = 0x4, fixed_abs, tag = 'smem constant byte address 0x4 - core index']
  #allocation1 [shape = 'u32[144,128]{1,0:T(1,128)}', space=vmem, size = 0x12000, scoped, tag = 'internal scratch']
  %s0 = inlined_call_operand.vmem [shape: f32[4,2,5,5,96], index: 0, kind: input, shape index: {}]
  %s1 = inlined_call_operand.vmem [shape: f32[9,1,96], index: 1, kind: input, shape index: {}]
  %s2 = inlined_call_operand.vmem [shape: f32[1,96], index: 2, kind: input, shape index: {}]
  %s3 = inlined_call_operand.vmem [shape: f32[2,4,4,96], index: 3, kind: output, shape index: {0}]
  %s4 = inlined_call_operand.vmem [shape: f32[2,96], index: 4, kind: output, shape index: {1}]
  %5 = xla_tuple %s3, %s4
  %s6 = sld [smem:[#allocation0]]
  $region30: #{net_forward.14} parent=0
    _
  %s8 = ssub.s32 1, %s6
  %s9 = scalar_select 0, %s8, %s6
  // Predicated region
  $region2: #{net_forward.14} parent=0 // pred_check
    _
  $region3: #{net_forward.14} parent=0 // pred_check_branch
    %11 = sbr.rel (0) target = $region5
  $region4: #{net_forward.14} parent=0 // pred_region
    _
  $region5: #{net_forward.14} parent=0 // pred_fallthru
    _
  // Predicated region
  $region6: #{net_forward.14} parent=0 // pred_check
    _
  $region7: #{net_forward.14} parent=0 // pred_check_branch
    %13 = sbr.rel (0) target = $region9
  $region8: #{net_forward.14} parent=0 // pred_region
    _
  $region9: #{net_forward.14} parent=0 // pred_fallthru
    _
  // Predicated region
  $region10: #{net_forward.14} parent=0 // pred_check
    _
  $region11: #{net_forward.14} parent=0 // pred_check_branch
    %15 = sbr.rel (0) target = $region13
  $region12: #{net_forward.14} parent=0 // pred_region
    _
  $region13: #{net_forward.14} parent=0 // pred_fallthru
    _
  %v16 = vld [vmem:[%s0] sm:$0xf]
  %v17 = vld [vmem:[%s0 + $0x8] sm:$0xf]
  %v18 = vld [vmem:[%s0 + $0x10] sm:$0xf]
  %v19 = vld [vmem:[%s0 + $0x18] sm:$0xf]
  %v20 = vld [vmem:[%s0 + $0x28] sm:$0xf]
  %v21 = vld [vmem:[%s0 + $0x30] sm:$0xf]
  %v22 = vld [vmem:[%s0 + $0x38] sm:$0xf]
  %v23 = vld [vmem:[%s0 + $0x40] sm:$0xf]
  %v24 = vld [vmem:[%s1] sm:$0x1]
  %v26 = vlaneseq
  %v27 = vshrl.u32 %v26, 7
  %v28 = vsub.s32 0, %v27
  %v29 = vrot.slane %v24, %v28
  %v31 = vmul.f32 %v16, %v29
  %v32 = vmul.f32 %v17, %v29
  %v33 = vmul.f32 %v18, %v29
  %v34 = vmul.f32 %v19, %v29
  %v35 = vmul.f32 %v20, %v29
  %v36 = vmul.f32 %v21, %v29
  %v37 = vmul.f32 %v22, %v29
  %v38 = vmul.f32 %v23, %v29
  %s39 = scalar_lea.vmem %s0, 80
  %v40 = vld [vmem:[%s39] sm:$0xf]
  %v41 = vld [vmem:[%s39 + $0x8] sm:$0xf]
  %v42 = vld [vmem:[%s39 + $0x10] sm:$0xf]
  %v43 = vld [vmem:[%s39 + $0x18] sm:$0xf]
  %v44 = vld [vmem:[%s39 + $0x28] sm:$0xf]
  %v45 = vld [vmem:[%s39 + $0x30] sm:$0xf]
  %v46 = vld [vmem:[%s39 + $0x38] sm:$0xf]
  %v47 = vld [vmem:[%s39 + $0x40] sm:$0xf]
  %s48 = scalar_lea.vmem %s1, 1
  %v49 = vld [vmem:[%s48] sm:$0x1]
  %v51 = vlaneseq
  %v52 = vshrl.u32 %v51, 7
  %v53 = vsub.s32 0, %v52
  %v54 = vrot.slane %v49, %v53
  %v56 = vmul.f32 %v40, %v54
  %v57 = vmul.f32 %v41, %v54
  %v58 = vmul.f32 %v42, %v54
  %v59 = vmul.f32 %v43, %v54
  %v60 = vmul.f32 %v44, %v54
  %v61 = vmul.f32 %v45, %v54
  %v62 = vmul.f32 %v46, %v54
  %v63 = vmul.f32 %v47, %v54
  %v64 = vadd.f32 %v31, %v56
  %v65 = vadd.f32 %v32, %v57
  %v66 = vadd.f32 %v33, %v58
  %v67 = vadd.f32 %v34, %v59
  %v68 = vadd.f32 %v35, %v60
  %v69 = vadd.f32 %v36, %v61
  %v70 = vadd.f32 %v37, %v62
  %v71 = vadd.f32 %v38, %v63
  %v72 = vld [vmem:[%s0 + $0x1] sm:$0xf]
  %v73 = vld [vmem:[%s0 + $0x9] sm:$0xf]
  %v74 = vld [vmem:[%s0 + $0x11] sm:$0xf]
  %v75 = vld [vmem:[%s0 + $0x19] sm:$0xf]
  %v76 = vld [vmem:[%s0 + $0x29] sm:$0xf]
  %v77 = vld [vmem:[%s0 + $0x31] sm:$0xf]
  %v78 = vld [vmem:[%s0 + $0x39] sm:$0xf]
  %v79 = vld [vmem:[%s0 + $0x41] sm:$0xf]
  %s80 = scalar_lea.vmem %s1, 2
  %v81 = vld [vmem:[%s80] sm:$0x1]
  %v83 = vlaneseq
  %v84 = vshrl.u32 %v83, 7
  %v85 = vsub.s32 0, %v84
  %v86 = vrot.slane %v81, %v85
  %v88 = vmul.f32 %v72, %v86
  %v89 = vmul.f32 %v73, %v86
  %v90 = vmul.f32 %v74, %v86
  %v91 = vmul.f32 %v75, %v86
  %v92 = vmul.f32 %v76, %v86
  %v93 = vmul.f32 %v77, %v86
  %v94 = vmul.f32 %v78, %v86
  %v95 = vmul.f32 %v79, %v86
  %v96 = vadd.f32 %v64, %v88
  %v97 = vadd.f32 %v65, %v89
  %v98 = vadd.f32 %v66, %v90
  %v99 = vadd.f32 %v67, %v91
  %v100 = vadd.f32 %v68, %v92
  %v101 = vadd.f32 %v69, %v93
  %v102 = vadd.f32 %v70, %v94
  %v103 = vadd.f32 %v71, %v95
  %s104 = scalar_lea.vmem %s0, 160
  %v105 = vld [vmem:[%s104] sm:$0xf]
  %v106 = vld [vmem:[%s104 + $0x8] sm:$0xf]
  %v107 = vld [vmem:[%s104 + $0x10] sm:$0xf]
  %v108 = vld [vmem:[%s104 + $0x18] sm:$0xf]
  %v109 = vld [vmem:[%s104 + $0x28] sm:$0xf]
  %v110 = vld [vmem:[%s104 + $0x30] sm:$0xf]
  %v111 = vld [vmem:[%s104 + $0x38] sm:$0xf]
  %v112 = vld [vmem:[%s104 + $0x40] sm:$0xf]
  %s113 = scalar_lea.vmem %s1, 3
  %v114 = vld [vmem:[%s113] sm:$0x1]
  %v116 = vlaneseq
  %v117 = vshrl.u32 %v116, 7
  %v118 = vsub.s32 0, %v117
  %v119 = vrot.slane %v114, %v118
  %v121 = vmul.f32 %v105, %v119
  %v122 = vmul.f32 %v106, %v119
  %v123 = vmul.f32 %v107, %v119
  %v124 = vmul.f32 %v108, %v119
  %v125 = vmul.f32 %v109, %v119
  %v126 = vmul.f32 %v110, %v119
  %v127 = vmul.f32 %v111, %v119
  %v128 = vmul.f32 %v112, %v119
  %v129 = vadd.f32 %v96, %v121
  %v130 = vadd.f32 %v97, %v122
  %v131 = vadd.f32 %v98, %v123
  %v132 = vadd.f32 %v99, %v124
  %v133 = vadd.f32 %v100, %v125
  %v134 = vadd.f32 %v101, %v126
  %v135 = vadd.f32 %v102, %v127
  %v136 = vadd.f32 %v103, %v128
  %s137 = scalar_lea.vmem %s0, 240
  %v138 = vld [vmem:[%s137] sm:$0xf]
  %v139 = vld [vmem:[%s137 + $0x8] sm:$0xf]
  %v140 = vld [vmem:[%s137 + $0x10] sm:$0xf]
  %v141 = vld [vmem:[%s137 + $0x18] sm:$0xf]
  %v142 = vld [vmem:[%s137 + $0x28] sm:$0xf]
  %v143 = vld [vmem:[%s137 + $0x30] sm:$0xf]
  %v144 = vld [vmem:[%s137 + $0x38] sm:$0xf]
  %v145 = vld [vmem:[%s137 + $0x40] sm:$0xf]
  %s146 = scalar_lea.vmem %s1, 4
  %v147 = vld [vmem:[%s146] sm:$0x1]
  %v149 = vlaneseq
  %v150 = vshrl.u32 %v149, 7
  %v151 = vsub.s32 0, %v150
  %v152 = vrot.slane %v147, %v151
  %v154 = vmul.f32 %v138, %v152
  %v155 = vmul.f32 %v139, %v152
  %v156 = vmul.f32 %v140, %v152
  %v157 = vmul.f32 %v141, %v152
  %v158 = vmul.f32 %v142, %v152
  %v159 = vmul.f32 %v143, %v152
  %v160 = vmul.f32 %v144, %v152
  %v161 = vmul.f32 %v145, %v152
  %v162 = vadd.f32 %v129, %v154
  %v163 = vadd.f32 %v130, %v155
  %v164 = vadd.f32 %v131, %v156
  %v165 = vadd.f32 %v132, %v157
  %v166 = vadd.f32 %v133, %v158
  %v167 = vadd.f32 %v134, %v159
  %v168 = vadd.f32 %v135, %v160
  %v169 = vadd.f32 %v136, %v161
  %v170 = vld [vmem:[%s104 + $0x1] sm:$0xf]
  %v171 = vld [vmem:[%s104 + $0x9] sm:$0xf]
  %v172 = vld [vmem:[%s104 + $0x11] sm:$0xf]
  %v173 = vld [vmem:[%s104 + $0x19] sm:$0xf]
  %v174 = vld [vmem:[%s104 + $0x29] sm:$0xf]
  %v175 = vld [vmem:[%s104 + $0x31] sm:$0xf]
  %v176 = vld [vmem:[%s104 + $0x39] sm:$0xf]
  %v177 = vld [vmem:[%s104 + $0x41] sm:$0xf]
  %s178 = scalar_lea.vmem %s1, 5
  %v179 = vld [vmem:[%s178] sm:$0x1]
  %v181 = vlaneseq
  %v182 = vshrl.u32 %v181, 7
  %v183 = vsub.s32 0, %v182
  %v184 = vrot.slane %v179, %v183
  %v186 = vmul.f32 %v170, %v184
  %v187 = vmul.f32 %v171, %v184
  %v188 = vmul.f32 %v172, %v184
  %v189 = vmul.f32 %v173, %v184
  %v190 = vmul.f32 %v174, %v184
  %v191 = vmul.f32 %v175, %v184
  %v192 = vmul.f32 %v176, %v184
  %v193 = vmul.f32 %v177, %v184
  %v194 = vadd.f32 %v162, %v186
  %v195 = vadd.f32 %v163, %v187
  %v196 = vadd.f32 %v164, %v188
  %v197 = vadd.f32 %v165, %v189
  %v198 = vadd.f32 %v166, %v190
  %v199 = vadd.f32 %v167, %v191
  %v200 = vadd.f32 %v168, %v192
  %v201 = vadd.f32 %v169, %v193
  %s202 = scalar_lea.vmem %s0, 8
  %v203 = vld [vmem:[%s202] sm:$0xf]
  %v204 = vld [vmem:[%s202 + $0x8] sm:$0xf]
  %v205 = vld [vmem:[%s202 + $0x10] sm:$0xf]
  %v206 = vld [vmem:[%s202 + $0x18] sm:$0xf]
  %v207 = vld [vmem:[%s202 + $0x28] sm:$0xf]
  %v208 = vld [vmem:[%s202 + $0x30] sm:$0xf]
  %v209 = vld [vmem:[%s202 + $0x38] sm:$0xf]
  %v210 = vld [vmem:[%s202 + $0x40] sm:$0xf]
  %s211 = scalar_lea.vmem %s1, 6
  %v212 = vld [vmem:[%s211] sm:$0x1]
  %v214 = vlaneseq
  %v215 = vshrl.u32 %v214, 7
  %v216 = vsub.s32 0, %v215
  %v217 = vrot.slane %v212, %v216
  %v219 = vmul.f32 %v203, %v217
  %v220 = vmul.f32 %v204, %v217
  %v221 = vmul.f32 %v205, %v217
  %v222 = vmul.f32 %v206, %v217
  %v223 = vmul.f32 %v207, %v217
  %v224 = vmul.f32 %v208, %v217
  %v225 = vmul.f32 %v209, %v217
  %v226 = vmul.f32 %v210, %v217
  %v227 = vadd.f32 %v194, %v219
  %v228 = vadd.f32 %v195, %v220
  %v229 = vadd.f32 %v196, %v221
  %v230 = vadd.f32 %v197, %v222
  %v231 = vadd.f32 %v198, %v223
  %v232 = vadd.f32 %v199, %v224
  %v233 = vadd.f32 %v200, %v225
  %v234 = vadd.f32 %v201, %v226
  %s235 = scalar_lea.vmem %s0, 88
  %v236 = vld [vmem:[%s235] sm:$0xf]
  %v237 = vld [vmem:[%s235 + $0x8] sm:$0xf]
  %v238 = vld [vmem:[%s235 + $0x10] sm:$0xf]
  %v239 = vld [vmem:[%s235 + $0x18] sm:$0xf]
  %v240 = vld [vmem:[%s235 + $0x28] sm:$0xf]
  %v241 = vld [vmem:[%s235 + $0x30] sm:$0xf]
  %v242 = vld [vmem:[%s235 + $0x38] sm:$0xf]
  %v243 = vld [vmem:[%s235 + $0x40] sm:$0xf]
  %s244 = scalar_lea.vmem %s1, 7
  %v245 = vld [vmem:[%s244] sm:$0x1]
  %v247 = vlaneseq
  %v248 = vshrl.u32 %v247, 7
  %v249 = vsub.s32 0, %v248
  %v250 = vrot.slane %v245, %v249
  %v252 = vmul.f32 %v236, %v250
  %v253 = vmul.f32 %v237, %v250
  %v254 = vmul.f32 %v238, %v250
  %v255 = vmul.f32 %v239, %v250
  %v256 = vmul.f32 %v240, %v250
  %v257 = vmul.f32 %v241, %v250
  %v258 = vmul.f32 %v242, %v250
  %v259 = vmul.f32 %v243, %v250
  %v260 = vadd.f32 %v227, %v252
  %v261 = vadd.f32 %v228, %v253
  %v262 = vadd.f32 %v229, %v254
  %v263 = vadd.f32 %v230, %v255
  %v264 = vadd.f32 %v231, %v256
  %v265 = vadd.f32 %v232, %v257
  %v266 = vadd.f32 %v233, %v258
  %v267 = vadd.f32 %v234, %v259
  %v268 = vld [vmem:[%s202 + $0x1] sm:$0xf]
  %v269 = vld [vmem:[%s202 + $0x9] sm:$0xf]
  %v270 = vld [vmem:[%s202 + $0x11] sm:$0xf]
  %v271 = vld [vmem:[%s202 + $0x19] sm:$0xf]
  %v272 = vld [vmem:[%s202 + $0x29] sm:$0xf]
  %v273 = vld [vmem:[%s202 + $0x31] sm:$0xf]
  %v274 = vld [vmem:[%s202 + $0x39] sm:$0xf]
  %v275 = vld [vmem:[%s202 + $0x41] sm:$0xf]
  %s276 = scalar_lea.vmem %s1, 8
  %v277 = vld [vmem:[%s276] sm:$0x1]
  %v279 = vlaneseq
  %v280 = vshrl.u32 %v279, 7
  %v281 = vsub.s32 0, %v280
  %v282 = vrot.slane %v277, %v281
  %v284 = vmul.f32 %v268, %v282
  %v285 = vmul.f32 %v269, %v282
  %v286 = vmul.f32 %v270, %v282
  %v287 = vmul.f32 %v271, %v282
  %v288 = vmul.f32 %v272, %v282
  %v289 = vmul.f32 %v273, %v282
  %v290 = vmul.f32 %v274, %v282
  %v291 = vmul.f32 %v275, %v282
  %v292 = vadd.f32 %v260, %v284
  %v293 = vadd.f32 %v261, %v285
  %v294 = vadd.f32 %v262, %v286
  %v295 = vadd.f32 %v263, %v287
  %v296 = vadd.f32 %v264, %v288
  %v297 = vadd.f32 %v265, %v289
  %v298 = vadd.f32 %v266, %v290
  %v299 = vadd.f32 %v267, %v291
  %v300 = vld [vmem:[%s2] sm:$0x1]
  %v302 = vlaneseq
  %v303 = vshrl.u32 %v302, 7
  %v304 = vsub.s32 0, %v303
  %v305 = vrot.slane %v300, %v304
  %v307 = vadd.f32 %v292, %v305
  %v308 = vadd.f32 %v293, %v305
  %v309 = vadd.f32 %v294, %v305
  %v310 = vadd.f32 %v295, %v305
  %v311 = vadd.f32 %v296, %v305
  %v312 = vadd.f32 %v297, %v305
  %v313 = vadd.f32 %v298, %v305
  %v314 = vadd.f32 %v299, %v305
  %v315 = vxor.u32 %v307, 2147483648
  %v316 = vxor.u32 %v308, 2147483648
  %v317 = vxor.u32 %v309, 2147483648
  %v318 = vxor.u32 %v310, 2147483648
  %v319 = vxor.u32 %v311, 2147483648
  %v320 = vxor.u32 %v312, 2147483648
  %v321 = vxor.u32 %v313, 2147483648
  %v322 = vxor.u32 %v314, 2147483648
  %v323 = vmul.f32 %v315, 1.442695
  %v324 = vpow.pop %v323
  %v325 = vmul.f32 %v316, 1.442695
  %v326 = vpow.pop %v325
  %v327 = vmul.f32 %v317, 1.442695
  %v328 = vpow.pop %v327
  %v329 = vmul.f32 %v318, 1.442695
  %v330 = vpow.pop %v329
  %v331 = vmul.f32 %v319, 1.442695
  %v332 = vpow.pop %v331
  %v333 = vmul.f32 %v320, 1.442695
  %v334 = vpow.pop %v333
  %v335 = vmul.f32 %v321, 1.442695
  %v336 = vpow.pop %v335
  %v337 = vmul.f32 %v322, 1.442695
  %v338 = vpow.pop %v337
  %v339 = vadd.f32 %v324, 1.0
  %v340 = vadd.f32 %v326, 1.0
  %v341 = vadd.f32 %v328, 1.0
  %v342 = vadd.f32 %v330, 1.0
  %v343 = vadd.f32 %v332, 1.0
  %v344 = vadd.f32 %v334, 1.0
  %v345 = vadd.f32 %v336, 1.0
  %v346 = vadd.f32 %v338, 1.0
  %v347 = vrcp.pop %v339
  %v348 = vmul.f32 1.0, %v347
  %v349 = vrcp.pop %v340
  %v350 = vmul.f32 1.0, %v349
  %v351 = vrcp.pop %v341
  %v352 = vmul.f32 1.0, %v351
  %v353 = vrcp.pop %v342
  %v354 = vmul.f32 1.0, %v353
  %v355 = vrcp.pop %v343
  %v356 = vmul.f32 1.0, %v355
  %v357 = vrcp.pop %v344
  %v358 = vmul.f32 1.0, %v357
  %v359 = vrcp.pop %v345
  %v360 = vmul.f32 1.0, %v359
  %v361 = vrcp.pop %v346
  %v362 = vmul.f32 1.0, %v361
  %v363 = vmul.f32 %v307, %v348
  %v364 = vmul.f32 %v308, %v350
  %v365 = vmul.f32 %v309, %v352
  %v366 = vmul.f32 %v310, %v354
  %v367 = vmul.f32 %v311, %v356
  %v368 = vmul.f32 %v312, %v358
  %v369 = vmul.f32 %v313, %v360
  %v370 = vmul.f32 %v314, %v362
  %vm371 = vcmask 781312
  %372 = vst.msk [vmem:[%s3] sm:$0xf] %vm371, %v363
  %373 = vst.msk [vmem:[%s3 + $0x4] sm:$0xf] %vm371, %v364
  %374 = vst.msk [vmem:[%s3 + $0x8] sm:$0xf] %vm371, %v365
  %375 = vst.msk [vmem:[%s3 + $0xc] sm:$0xf] %vm371, %v366
  %376 = vst.msk [vmem:[%s3 + $0x10] sm:$0xf] %vm371, %v367
  %377 = vst.msk [vmem:[%s3 + $0x14] sm:$0xf] %vm371, %v368
  %378 = vst.msk [vmem:[%s3 + $0x18] sm:$0xf] %vm371, %v369
  %379 = vst.msk [vmem:[%s3 + $0x1c] sm:$0xf] %vm371, %v370
  %v380 = vsel %vm371, %v363, 0.0
  %v381 = vsel %vm371, %v364, 0.0
  %v382 = vadd.f32 %v380, %v381
  %v383 = vsel %vm371, %v365, 0.0
  %v384 = vadd.f32 %v382, %v383
  %v385 = vsel %vm371, %v366, 0.0
  %v386 = vadd.f32 %v384, %v385
  %v387 = vrot.slane %v386, 4
  %v388 = vadd.f32 %v386, %v387
  %v389 = vrot.slane %v388, 2
  %v390 = vadd.f32 %v388, %v389
  %v391 = vrot.slane %v390, 1
  %v392 = vadd.f32 %v390, %v391
  %v393 = vsel %vm371, %v367, 0.0
  %v394 = vsel %vm371, %v368, 0.0
  %v395 = vadd.f32 %v393, %v394
  %v396 = vsel %vm371, %v369, 0.0
  %v397 = vadd.f32 %v395, %v396
  %v398 = vsel %vm371, %v370, 0.0
  %v399 = vadd.f32 %v397, %v398
  %v400 = vrot.slane %v399, 4
  %v401 = vadd.f32 %v399, %v400
  %v402 = vrot.slane %v401, 2
  %v403 = vadd.f32 %v401, %v402
  %v404 = vrot.slane %v403, 1
  %v405 = vadd.f32 %v403, %v404
  %v406 = vrcp.pop 16.0
  %v407 = vmul.f32 %v392, %v406
  %v408 = vmul.f32 %v405, %v406
  %vm411 = vcmask 1041409
  %v412 = vsel %vm411, %v408, %v407
  %vm414 = vcmask 779264
  %415 = vst.msk [vmem:[%s4] sm:$0x3] %vm414, %v412
  // Predicated region
  $region14: #{net_forward.14} parent=0 // pred_check
    _
  $region15: #{net_forward.14} parent=0 // pred_check_branch
    %417 = sbr.rel (0) target = $region17
  $region16: #{net_forward.14} parent=0 // pred_region
    _
  $region17: #{net_forward.14} parent=0 // pred_fallthru
    _
  // Predicated region
  $region18: #{net_forward.14} parent=0 // pred_check
    _
  $region19: #{net_forward.14} parent=0 // pred_check_branch
    %419 = sbr.rel (0) target = $region21
  $region20: #{net_forward.14} parent=0 // pred_region
    _
  $region21: #{net_forward.14} parent=0 // pred_fallthru
    _
  // Predicated region
  $region22: #{net_forward.14} parent=0 // pred_check
    _
  $region23: #{net_forward.14} parent=0 // pred_check_branch
    %421 = sbr.rel (0) target = $region25
  $region24: #{net_forward.14} parent=0 // pred_region
    _
  $region25: #{net_forward.14} parent=0 // pred_fallthru
    _
  // Predicated region
  $region26: #{net_forward.14} parent=0 // pred_check
    _
  $region27: #{net_forward.14} parent=0 // pred_check_branch
    %423 = sbr.rel (0) target = $region29
  $region28: #{net_forward.14} parent=0 // pred_region
    _
  $region29: #{net_forward.14} parent=0 // pred_fallthru
    _

// kernel: net_forward.15
$region0: #{net_forward.15}
  #allocation0 [shape = 'u32[]', space=smem, size = 0x4, offset = 0x4, fixed_abs, tag = 'smem constant byte address 0x4 - core index']
  #allocation1 [shape = 'u32[144,128]{1,0:T(1,128)}', space=vmem, size = 0x12000, scoped, tag = 'internal scratch']
  %s0 = inlined_call_operand.vmem [shape: f32[2,16,96], index: 0, kind: input, shape index: {}]
  %s1 = inlined_call_operand.vmem [shape: f32[2,96], index: 1, kind: input, shape index: {}]
  %s2 = inlined_call_operand.vmem [shape: bf16[96,4], index: 2, kind: input, shape index: {}]
  %s3 = inlined_call_operand.vmem [shape: f32[1,4], index: 3, kind: input, shape index: {}]
  %s4 = inlined_call_operand.vmem [shape: bf16[4,96], index: 4, kind: input, shape index: {}]
  %s5 = inlined_call_operand.vmem [shape: f32[1,96], index: 5, kind: input, shape index: {}]
  %s6 = inlined_call_operand.vmem [shape: bf16[96,24], index: 6, kind: input, shape index: {}]
  %s7 = inlined_call_operand.vmem [shape: f32[1,24], index: 7, kind: input, shape index: {}]
  %s8 = inlined_call_operand.vmem [shape: f32[2,16,24], index: 8, kind: output, shape index: {}]
  %s9 = sld [smem:[#allocation0]]
  $region42: #{net_forward.15} parent=0
    _
  %s11 = ssub.s32 1, %s9
  %s12 = scalar_select 0, %s11, %s9
  // Predicated region
  $region2: #{net_forward.15} parent=0 // pred_check
    _
  $region3: #{net_forward.15} parent=0 // pred_check_branch
    %14 = sbr.rel (0) target = $region5
  $region4: #{net_forward.15} parent=0 // pred_region
    _
  $region5: #{net_forward.15} parent=0 // pred_fallthru
    _
  // Predicated region
  $region6: #{net_forward.15} parent=0 // pred_check
    _
  $region7: #{net_forward.15} parent=0 // pred_check_branch
    %16 = sbr.rel (0) target = $region9
  $region8: #{net_forward.15} parent=0 // pred_region
    _
  $region9: #{net_forward.15} parent=0 // pred_fallthru
    _
  // Predicated region
  $region10: #{net_forward.15} parent=0 // pred_check
    _
  $region11: #{net_forward.15} parent=0 // pred_check_branch
    %18 = sbr.rel (0) target = $region13
  $region12: #{net_forward.15} parent=0 // pred_region
    _
  $region13: #{net_forward.15} parent=0 // pred_fallthru
    _
  // Predicated region
  $region14: #{net_forward.15} parent=0 // pred_check
    _
  $region15: #{net_forward.15} parent=0 // pred_check_branch
    %20 = sbr.rel (0) target = $region17
  $region16: #{net_forward.15} parent=0 // pred_region
    _
  $region17: #{net_forward.15} parent=0 // pred_fallthru
    _
  // Predicated region
  $region18: #{net_forward.15} parent=0 // pred_check
    _
  $region19: #{net_forward.15} parent=0 // pred_check_branch
    %22 = sbr.rel (0) target = $region21
  $region20: #{net_forward.15} parent=0 // pred_region
    _
  $region21: #{net_forward.15} parent=0 // pred_fallthru
    _
  // Predicated region
  $region22: #{net_forward.15} parent=0 // pred_check
    _
  $region23: #{net_forward.15} parent=0 // pred_check_branch
    %24 = sbr.rel (0) target = $region25
  $region24: #{net_forward.15} parent=0 // pred_region
    _
  $region25: #{net_forward.15} parent=0 // pred_fallthru
    _
  // Predicated region
  $region26: #{net_forward.15} parent=0 // pred_check
    _
  $region27: #{net_forward.15} parent=0 // pred_check_branch
    %26 = sbr.rel (0) target = $region29
  $region28: #{net_forward.15} parent=0 // pred_region
    _
  $region29: #{net_forward.15} parent=0 // pred_fallthru
    _
  // Predicated region
  $region30: #{net_forward.15} parent=0 // pred_check
    _
  $region31: #{net_forward.15} parent=0 // pred_check_branch
    %28 = sbr.rel (0) target = $region33
  $region32: #{net_forward.15} parent=0 // pred_region
    _
  $region33: #{net_forward.15} parent=0 // pred_fallthru
    _
  %v30 = vld [vmem:[%s1] sm:$0x3]
  %v31 = vpack.c.bf16 %v30, %v30
  %v32 = vld [vmem:[%s2] sm:$0xf]
  %v33 = vld [vmem:[%s2 + $0x4] sm:$0xf]
  %v34 = vld [vmem:[%s2 + $0x8] sm:$0xf]
  %v35 = vld [vmem:[%s2 + $0xc] sm:$0xf]
  %v36 = vld [vmem:[%s2 + $0x10] sm:$0xf]
  %v37 = vld [vmem:[%s2 + $0x14] sm:$0xf]
  %v38 = vld [vmem:[%s2 + $0x18] sm:$0xf]
  %v39 = vld [vmem:[%s2 + $0x1c] sm:$0xf]
  %v40 = vld [vmem:[%s2 + $0x20] sm:$0xf]
  %v41 = vld [vmem:[%s2 + $0x24] sm:$0xf]
  %v42 = vld [vmem:[%s2 + $0x28] sm:$0xf]
  %v43 = vld [vmem:[%s2 + $0x2c] sm:$0xf]
  %v44 = vld [vmem:[%s3] sm:$0x1]
  %v46 = vlaneseq
  %v47 = vshrl.u32 %v46, 7
  %v48 = vsub.s32 0, %v47
  %v49 = vrot.slane %v44, %v48
  %v63 = vunpack.c.l.b16 %v32
  %v64 = vunpack.c.l.b16 %v33
  %v65 = vunpack.c.l.b16 %v34
  %v66 = vunpack.c.l.b16 %v35
  %v67 = vunpack.c.l.b16 %v36
  %v68 = vunpack.c.l.b16 %v37
  %v69 = vunpack.c.l.b16 %v38
  %v70 = vunpack.c.l.b16 %v39
  %v71 = vunpack.c.l.b16 %v40
  %v72 = vunpack.c.l.b16 %v41
  %v73 = vunpack.c.l.b16 %v42
  %v74 = vunpack.c.l.b16 %v43
  %v75 = vpack.c.b16 %v64, %v63
  %v76 = vpack.c.b16 %v66, %v65
  %v77 = vpack.c.b16 %v68, %v67
  %v78 = vpack.c.b16 %v70, %v69
  %v79 = vpack.c.b16 %v72, %v71
  %v80 = vpack.c.b16 %v74, %v73
  %vm87 = vcmask 785408
  %v89 = vsel %vm87, %v31, 0
  %91 = vmatprep.subr.bf16.mxu0 0
  %92 = vmatpush1.bf16.msra.mxu0 %v75
  %93 = vmatprep.subr.bf16.mxu0 0
  %94 = vmatpush1.bf16.msra.mxu0 %v76
  %95 = vmatprep.subr.bf16.mxu0 0
  %96 = vmatpush1.bf16.msra.mxu0 %v77
  %97 = vmatprep.subr.bf16.mxu0 0
  %98 = vmatpush1.bf16.msra.mxu0 %v78
  %99 = vmatprep.subr.bf16.mxu0 0
  %100 = vmatpush1.bf16.msra.mxu0 %v79
  %101 = vmatprep.subr.bf16.mxu0 0
  %102 = vmatpush1.bf16.msra.mxu0 %v80
  %103 = vmatprep.subr.bf16.mxu0 0
  %104 = vmatpush1.bf16.msra.mxu0 0
  %105 = vmatprep.subr.bf16.mxu0 0
  %106 = vmatpush1.bf16.msra.mxu0 0
  %107 = vmatprep.subr.bf16.mxu0 0
  %108 = vmatpush1.bf16.msra.mxu0 0
  %109 = vmatprep.subr.bf16.mxu0 0
  %110 = vmatpush1.bf16.msra.mxu0 0
  %111 = vmatprep.subr.bf16.mxu0 0
  %112 = vmatpush1.bf16.msra.mxu0 0
  %113 = vmatprep.subr.bf16.mxu0 0
  %114 = vmatpush1.bf16.msra.mxu0 0
  %115 = vmatprep.subr.bf16.mxu0 0
  %116 = vmatpush1.bf16.msra.mxu0 0
  %117 = vmatprep.subr.bf16.mxu0 0
  %118 = vmatpush1.bf16.msra.mxu0 0
  %119 = vmatprep.subr.bf16.mxu0 0
  %120 = vmatpush1.bf16.msra.mxu0 0
  %121 = vmatprep.subr.bf16.mxu0 0
  %122 = vmatpush1.bf16.msra.mxu0 0
  %123 = vmatprep.mubr.bf16.mxu0 0
  %124 = vmatmul.mubr.bf16.gmra.mrb[0].mxu0 %v89
  %v125 = vpop.f32.mrb[0].mxu0
  %v126 = vadd.f32 %v49, %v125
  %v127 = vpop.f32.mrb[0].mxu0
  %v128 = vpop.f32.mrb[0].mxu0
  %v129 = vpop.f32.mrb[0].mxu0
  %130 = vdwg.mxu0
  %v131 = vxor.u32 %v126, 2147483648
  %v132 = vmul.f32 %v131, 1.442695
  %v133 = vpow.pop %v132
  %v134 = vadd.f32 %v133, 1.0
  %v135 = vrcp.pop %v134
  %v136 = vmul.f32 1.0, %v135
  %v137 = vmul.f32 %v126, %v136
  %v138 = vpack.c.bf16 %v137, %v137
  %v139 = vld [vmem:[%s4] sm:$0x3]
  %v140 = vld [vmem:[%s5] sm:$0x1]
  %v142 = vlaneseq
  %v143 = vshrl.u32 %v142, 7
  %v144 = vsub.s32 0, %v143
  %v145 = vrot.slane %v140, %v144
  %vm147 = vcmask 31744
  %v149 = vsel %vm147, %v138, 0
  %vm151 = vcmask 1041408
  %v153 = vsel %vm151, %v139, 0
  %155 = vmatprep.subr.bf16.mxu0 0
  %156 = vmatpush1.bf16.msra.mxu0 %v153
  %157 = vmatprep.subr.bf16.mxu0 0
  %158 = vmatpush1.bf16.msra.mxu0 0
  %159 = vmatprep.subr.bf16.mxu0 0
  %160 = vmatpush1.bf16.msra.mxu0 0
  %161 = vmatprep.subr.bf16.mxu0 0
  %162 = vmatpush1.bf16.msra.mxu0 0
  %163 = vmatprep.subr.bf16.mxu0 0
  %164 = vmatpush1.bf16.msra.mxu0 0
  %165 = vmatprep.subr.bf16.mxu0 0
  %166 = vmatpush1.bf16.msra.mxu0 0
  %167 = vmatprep.subr.bf16.mxu0 0
  %168 = vmatpush1.bf16.msra.mxu0 0
  %169 = vmatprep.subr.bf16.mxu0 0
  %170 = vmatpush1.bf16.msra.mxu0 0
  %171 = vmatprep.subr.bf16.mxu0 0
  %172 = vmatpush1.bf16.msra.mxu0 0
  %173 = vmatprep.subr.bf16.mxu0 0
  %174 = vmatpush1.bf16.msra.mxu0 0
  %175 = vmatprep.subr.bf16.mxu0 0
  %176 = vmatpush1.bf16.msra.mxu0 0
  %177 = vmatprep.subr.bf16.mxu0 0
  %178 = vmatpush1.bf16.msra.mxu0 0
  %179 = vmatprep.subr.bf16.mxu0 0
  %180 = vmatpush1.bf16.msra.mxu0 0
  %181 = vmatprep.subr.bf16.mxu0 0
  %182 = vmatpush1.bf16.msra.mxu0 0
  %183 = vmatprep.subr.bf16.mxu0 0
  %184 = vmatpush1.bf16.msra.mxu0 0
  %185 = vmatprep.subr.bf16.mxu0 0
  %186 = vmatpush1.bf16.msra.mxu0 0
  %187 = vmatprep.mubr.bf16.mxu0 0
  %188 = vmatmul.mubr.bf16.gmra.mrb[0].mxu0 %v149
  %v189 = vpop.f32.mrb[0].mxu0
  %v190 = vadd.f32 %v145, %v189
  %v191 = vpop.f32.mrb[0].mxu0
  %v192 = vpop.f32.mrb[0].mxu0
  %v193 = vpop.f32.mrb[0].mxu0
  %194 = vdwg.mxu0
  %v195 = vxor.u32 %v190, 2147483648
  %v196 = vmul.f32 %v195, 1.442695
  %v197 = vpow.pop %v196
  %v198 = vadd.f32 %v197, 1.0
  %v199 = vrcp.pop %v198
  %v200 = vmul.f32 1.0, %v199
  %v201 = vld [vmem:[%s0] sm:$0xff]
  %v202 = vld [vmem:[%s0 + $0x8] sm:$0xff]
  %v203 = vlaneseq
  %v204 = vshrl.u32 %v203, 7
  %v205 = vsub.s32 0, %v204
  %v206 = vrot.slane %v200, %v205
  %v207 = vmul.f32 %v201, %v206
  %v208 = vmul.f32 %v202, %v206
  %v209 = vpack.c.bf16 %v208, %v207
  %v210 = vld [vmem:[%s6] sm:$0xf]
  %v211 = vld [vmem:[%s6 + $0x4] sm:$0xf]
  %v212 = vld [vmem:[%s6 + $0x8] sm:$0xf]
  %v213 = vld [vmem:[%s6 + $0xc] sm:$0xf]
  %v214 = vld [vmem:[%s6 + $0x10] sm:$0xf]
  %v215 = vld [vmem:[%s6 + $0x14] sm:$0xf]
  %v216 = vld [vmem:[%s6 + $0x18] sm:$0xf]
  %v217 = vld [vmem:[%s6 + $0x1c] sm:$0xf]
  %v218 = vld [vmem:[%s6 + $0x20] sm:$0xf]
  %v219 = vld [vmem:[%s6 + $0x24] sm:$0xf]
  %v220 = vld [vmem:[%s6 + $0x28] sm:$0xf]
  %v221 = vld [vmem:[%s6 + $0x2c] sm:$0xf]
  %v222 = vld [vmem:[%s7] sm:$0x1]
  %v224 = vlaneseq
  %v225 = vshrl.u32 %v224, 7
  %v226 = vsub.s32 0, %v225
  %v227 = vrot.slane %v222, %v226
  %v241 = vunpack.c.l.b16 %v210
  %v242 = vunpack.c.l.b16 %v211
  %v243 = vunpack.c.l.b16 %v212
  %v244 = vunpack.c.l.b16 %v213
  %v245 = vunpack.c.l.b16 %v214
  %v246 = vunpack.c.l.b16 %v215
  %v247 = vunpack.c.l.b16 %v216
  %v248 = vunpack.c.l.b16 %v217
  %v249 = vunpack.c.l.b16 %v218
  %v250 = vunpack.c.l.b16 %v219
  %v251 = vunpack.c.l.b16 %v220
  %v252 = vunpack.c.l.b16 %v221
  %v253 = vpack.c.b16 %v242, %v241
  %v254 = vpack.c.b16 %v244, %v243
  %v255 = vpack.c.b16 %v246, %v245
  %v256 = vpack.c.b16 %v248, %v247
  %v257 = vpack.c.b16 %v250, %v249
  %v258 = vpack.c.b16 %v252, %v251
  %v266 = vsel %vm87, %v209, 0
  %268 = vmatprep.subr.bf16.mxu0 0
  %269 = vmatpush1.bf16.msra.mxu0 %v253
  %270 = vmatprep.subr.bf16.mxu0 0
  %271 = vmatpush1.bf16.msra.mxu0 %v254
  %272 = vmatprep.subr.bf16.mxu0 0
  %273 = vmatpush1.bf16.msra.mxu0 %v255
  %274 = vmatprep.subr.bf16.mxu0 0
  %275 = vmatpush1.bf16.msra.mxu0 %v256
  %276 = vmatprep.subr.bf16.mxu0 0
  %277 = vmatpush1.bf16.msra.mxu0 %v257
  %278 = vmatprep.subr.bf16.mxu0 0
  %279 = vmatpush1.bf16.msra.mxu0 %v258
  %280 = vmatprep.subr.bf16.mxu0 0
  %281 = vmatpush1.bf16.msra.mxu0 0
  %282 = vmatprep.subr.bf16.mxu0 0
  %283 = vmatpush1.bf16.msra.mxu0 0
  %284 = vmatprep.subr.bf16.mxu0 0
  %285 = vmatpush1.bf16.msra.mxu0 0
  %286 = vmatprep.subr.bf16.mxu0 0
  %287 = vmatpush1.bf16.msra.mxu0 0
  %288 = vmatprep.subr.bf16.mxu0 0
  %289 = vmatpush1.bf16.msra.mxu0 0
  %290 = vmatprep.subr.bf16.mxu0 0
  %291 = vmatpush1.bf16.msra.mxu0 0
  %292 = vmatprep.subr.bf16.mxu0 0
  %293 = vmatpush1.bf16.msra.mxu0 0
  %294 = vmatprep.subr.bf16.mxu0 0
  %295 = vmatpush1.bf16.msra.mxu0 0
  %296 = vmatprep.subr.bf16.mxu0 0
  %297 = vmatpush1.bf16.msra.mxu0 0
  %298 = vmatprep.subr.bf16.mxu0 0
  %299 = vmatpush1.bf16.msra.mxu0 0
  %300 = vmatprep.mubr.bf16.mxu0 0
  %301 = vmatmul.mubr.bf16.gmra.mrb[0].mxu0 %v266
  %v302 = vpop.f32.mrb[0].mxu0
  %v303 = vadd.f32 %v227, %v302
  %v304 = vpop.f32.mrb[0].mxu0
  %v305 = vpop.f32.mrb[0].mxu0
  %v306 = vadd.f32 %v227, %v305
  %v307 = vpop.f32.mrb[0].mxu0
  %308 = vdwg.mxu0
  %vm309 = vcmask 195584
  %310 = vst.msk [vmem:[%s8] sm:$0xff] %vm309, %v303
  %311 = vst.msk [vmem:[%s8 + $0x8] sm:$0xff] %vm309, %v306
  %s312 = scalar_lea.vmem %s0, 16
  %v313 = vld [vmem:[%s312] sm:$0xff]
  %v314 = vld [vmem:[%s312 + $0x8] sm:$0xff]
  %v315 = vlaneseq
  %v316 = vshrl.u32 %v315, 7
  %v317 = vsub.s32 1, %v316
  %v318 = vrot.slane %v200, %v317
  %v319 = vmul.f32 %v313, %v318
  %v320 = vmul.f32 %v314, %v318
  %v321 = vpack.c.bf16 %v320, %v319
  %v322 = vld [vmem:[%s6] sm:$0xf]
  %v323 = vld [vmem:[%s6 + $0x4] sm:$0xf]
  %v324 = vld [vmem:[%s6 + $0x8] sm:$0xf]
  %v325 = vld [vmem:[%s6 + $0xc] sm:$0xf]
  %v326 = vld [vmem:[%s6 + $0x10] sm:$0xf]
  %v327 = vld [vmem:[%s6 + $0x14] sm:$0xf]
  %v328 = vld [vmem:[%s6 + $0x18] sm:$0xf]
  %v329 = vld [vmem:[%s6 + $0x1c] sm:$0xf]
  %v330 = vld [vmem:[%s6 + $0x20] sm:$0xf]
  %v331 = vld [vmem:[%s6 + $0x24] sm:$0xf]
  %v332 = vld [vmem:[%s6 + $0x28] sm:$0xf]
  %v333 = vld [vmem:[%s6 + $0x2c] sm:$0xf]
  %v334 = vld [vmem:[%s7] sm:$0x1]
  %v336 = vlaneseq
  %v337 = vshrl.u32 %v336, 7
  %v338 = vsub.s32 0, %v337
  %v339 = vrot.slane %v334, %v338
  %v353 = vunpack.c.l.b16 %v322
  %v354 = vunpack.c.l.b16 %v323
  %v355 = vunpack.c.l.b16 %v324
  %v356 = vunpack.c.l.b16 %v325
  %v357 = vunpack.c.l.b16 %v326
  %v358 = vunpack.c.l.b16 %v327
  %v359 = vunpack.c.l.b16 %v328
  %v360 = vunpack.c.l.b16 %v329
  %v361 = vunpack.c.l.b16 %v330
  %v362 = vunpack.c.l.b16 %v331
  %v363 = vunpack.c.l.b16 %v332
  %v364 = vunpack.c.l.b16 %v333
  %v365 = vpack.c.b16 %v354, %v353
  %v366 = vpack.c.b16 %v356, %v355
  %v367 = vpack.c.b16 %v358, %v357
  %v368 = vpack.c.b16 %v360, %v359
  %v369 = vpack.c.b16 %v362, %v361
  %v370 = vpack.c.b16 %v364, %v363
  %v378 = vsel %vm87, %v321, 0
  %380 = vmatprep.subr.bf16.mxu0 0
  %381 = vmatpush1.bf16.msra.mxu0 %v365
  %382 = vmatprep.subr.bf16.mxu0 0
  %383 = vmatpush1.bf16.msra.mxu0 %v366
  %384 = vmatprep.subr.bf16.mxu0 0
  %385 = vmatpush1.bf16.msra.mxu0 %v367
  %386 = vmatprep.subr.bf16.mxu0 0
  %387 = vmatpush1.bf16.msra.mxu0 %v368
  %388 = vmatprep.subr.bf16.mxu0 0
  %389 = vmatpush1.bf16.msra.mxu0 %v369
  %390 = vmatprep.subr.bf16.mxu0 0
  %391 = vmatpush1.bf16.msra.mxu0 %v370
  %392 = vmatprep.subr.bf16.mxu0 0
  %393 = vmatpush1.bf16.msra.mxu0 0
  %394 = vmatprep.subr.bf16.mxu0 0
  %395 = vmatpush1.bf16.msra.mxu0 0
  %396 = vmatprep.subr.bf16.mxu0 0
  %397 = vmatpush1.bf16.msra.mxu0 0
  %398 = vmatprep.subr.bf16.mxu0 0
  %399 = vmatpush1.bf16.msra.mxu0 0
  %400 = vmatprep.subr.bf16.mxu0 0
  %401 = vmatpush1.bf16.msra.mxu0 0
  %402 = vmatprep.subr.bf16.mxu0 0
  %403 = vmatpush1.bf16.msra.mxu0 0
  %404 = vmatprep.subr.bf16.mxu0 0
  %405 = vmatpush1.bf16.msra.mxu0 0
  %406 = vmatprep.subr.bf16.mxu0 0
  %407 = vmatpush1.bf16.msra.mxu0 0
  %408 = vmatprep.subr.bf16.mxu0 0
  %409 = vmatpush1.bf16.msra.mxu0 0
  %410 = vmatprep.subr.bf16.mxu0 0
  %411 = vmatpush1.bf16.msra.mxu0 0
  %412 = vmatprep.mubr.bf16.mxu0 0
  %413 = vmatmul.mubr.bf16.gmra.mrb[0].mxu0 %v378
  %v414 = vpop.f32.mrb[0].mxu0
  %v415 = vadd.f32 %v339, %v414
  %v416 = vpop.f32.mrb[0].mxu0
  %v417 = vpop.f32.mrb[0].mxu0
  %v418 = vadd.f32 %v339, %v417
  %v419 = vpop.f32.mrb[0].mxu0
  %420 = vdwg.mxu0
  %s421 = scalar_lea.vmem %s8, 16
  %422 = vst.msk [vmem:[%s421] sm:$0xff] %vm309, %v415
  %423 = vst.msk [vmem:[%s421 + $0x8] sm:$0xff] %vm309, %v418
  // Predicated region
  $region34: #{net_forward.15} parent=0 // pred_check
    _
  $region35: #{net_forward.15} parent=0 // pred_check_branch
    %425 = sbr.rel (0) target = $region37
  $region36: #{net_forward.15} parent=0 // pred_region
    _
  $region37: #{net_forward.15} parent=0 // pred_fallthru
    _
  // Predicated region
  $region38: #{net_forward.15} parent=0 // pred_check
    _
  $region39: #{net_forward.15} parent=0 // pred_check_branch
    %427 = sbr.rel (0) target = $region41
  $region40: #{net_forward.15} parent=0 // pred_region
    _
  $region41: #{net_forward.15} parent=0 // pred_fallthru
    _

// kernel: net_forward.17
$region0: #{net_forward.17}
  #allocation0 [shape = 'u32[]', space=smem, size = 0x4, offset = 0x4, fixed_abs, tag = 'smem constant byte address 0x4 - core index']
  #allocation1 [shape = 'u32[144,128]{1,0:T(1,128)}', space=vmem, size = 0x12000, scoped, tag = 'internal scratch']
  %s0 = inlined_call_operand.vmem [shape: f32[4,2,3,3,144], index: 0, kind: input, shape index: {}]
  %s1 = inlined_call_operand.vmem [shape: f32[9,1,144], index: 1, kind: input, shape index: {}]
  %s2 = inlined_call_operand.vmem [shape: f32[1,144], index: 2, kind: input, shape index: {}]
  %s3 = inlined_call_operand.vmem [shape: f32[2,2,2,144], index: 3, kind: output, shape index: {0}]
  %s4 = inlined_call_operand.vmem [shape: f32[2,144], index: 4, kind: output, shape index: {1}]
  %5 = xla_tuple %s3, %s4
  %s6 = sld [smem:[#allocation0]]
  $region30: #{net_forward.17} parent=0
    _
  %s8 = ssub.s32 1, %s6
  %s9 = scalar_select 0, %s8, %s6
  // Predicated region
  $region2: #{net_forward.17} parent=0 // pred_check
    _
  $region3: #{net_forward.17} parent=0 // pred_check_branch
    %11 = sbr.rel (0) target = $region5
  $region4: #{net_forward.17} parent=0 // pred_region
    _
  $region5: #{net_forward.17} parent=0 // pred_fallthru
    _
  // Predicated region
  $region6: #{net_forward.17} parent=0 // pred_check
    _
  $region7: #{net_forward.17} parent=0 // pred_check_branch
    %13 = sbr.rel (0) target = $region9
  $region8: #{net_forward.17} parent=0 // pred_region
    _
  $region9: #{net_forward.17} parent=0 // pred_fallthru
    _
  // Predicated region
  $region10: #{net_forward.17} parent=0 // pred_check
    _
  $region11: #{net_forward.17} parent=0 // pred_check_branch
    %15 = sbr.rel (0) target = $region13
  $region12: #{net_forward.17} parent=0 // pred_region
    _
  $region13: #{net_forward.17} parent=0 // pred_fallthru
    _
  %v16 = vld [vmem:[%s0] sm:$0x33]
  %v17 = vld [vmem:[%s0 + $0x8] sm:$0x33]
  %v18 = vld [vmem:[%s0 + $0x18] sm:$0x33]
  %v19 = vld [vmem:[%s0 + $0x20] sm:$0x33]
  %v20 = vld [vmem:[%s1] sm:$0x3]
  %v22 = vlaneseq
  %v23 = vshrl.u32 %v22, 7
  %v24 = vsub.s32 0, %v23
  %v25 = vrot.slane %v20, %v24
  %v26 = vlaneseq
  %v27 = vshrl.u32 %v26, 7
  %v28 = vsub.s32 1, %v27
  %v29 = vrot.slane %v20, %v28
  %v30 = vcombine.low %v25, %v29
  %v32 = vmul.f32 %v16, %v30
  %v33 = vmul.f32 %v17, %v30
  %v34 = vmul.f32 %v18, %v30
  %v35 = vmul.f32 %v19, %v30
  %s36 = scalar_lea.vmem %s0, 48
  %v37 = vld [vmem:[%s36] sm:$0x33]
  %v38 = vld [vmem:[%s36 + $0x8] sm:$0x33]
  %v39 = vld [vmem:[%s36 + $0x18] sm:$0x33]
  %v40 = vld [vmem:[%s36 + $0x20] sm:$0x33]
  %s41 = scalar_lea.vmem %s1, 2
  %v42 = vld [vmem:[%s41] sm:$0x3]
  %v44 = vlaneseq
  %v45 = vshrl.u32 %v44, 7
  %v46 = vsub.s32 0, %v45
  %v47 = vrot.slane %v42, %v46
  %v48 = vlaneseq
  %v49 = vshrl.u32 %v48, 7
  %v50 = vsub.s32 1, %v49
  %v51 = vrot.slane %v42, %v50
  %v52 = vcombine.low %v47, %v51
  %v54 = vmul.f32 %v37, %v52
  %v55 = vmul.f32 %v38, %v52
  %v56 = vmul.f32 %v39, %v52
  %v57 = vmul.f32 %v40, %v52
  %v58 = vadd.f32 %v32, %v54
  %v59 = vadd.f32 %v33, %v55
  %v60 = vadd.f32 %v34, %v56
  %v61 = vadd.f32 %v35, %v57
  %v62 = vld [vmem:[%s0] sm:$0x66]
  %v63 = vld [vmem:[%s0 + $0x8] sm:$0x66]
  %v64 = vld [vmem:[%s0 + $0x18] sm:$0x66]
  %v65 = vld [vmem:[%s0 + $0x20] sm:$0x66]
  %s66 = scalar_lea.vmem %s1, 4
  %v67 = vld [vmem:[%s66] sm:$0x3]
  %v69 = vlaneseq
  %v70 = vshrl.u32 %v69, 7
  %v71 = vsub.s32 0, %v70
  %v72 = vrot.slane %v67, %v71
  %v73 = vlaneseq
  %v74 = vshrl.u32 %v73, 7
  %v75 = vsub.s32 1, %v74
  %v76 = vrot.slane %v67, %v75
  %v77 = vcombine.low %v72, %v76
  %v78 = vrot.slane %v77, 7
  %v80 = vmul.f32 %v62, %v78
  %v81 = vmul.f32 %v63, %v78
  %v82 = vmul.f32 %v64, %v78
  %v83 = vmul.f32 %v65, %v78
  %v88 = vrot.slane %v80, 5
  %v89 = vrot.slane %v88, 4
  %v90 = vrot.slane %v81, 5
  %v91 = vrot.slane %v90, 4
  %v92 = vrot.slane %v82, 5
  %v93 = vrot.slane %v92, 4
  %v94 = vrot.slane %v83, 5
  %v95 = vrot.slane %v94, 4
  %v100 = vadd.f32 %v58, %v89
  %v101 = vadd.f32 %v59, %v91
  %v102 = vadd.f32 %v60, %v93
  %v103 = vadd.f32 %v61, %v95
  %s104 = scalar_lea.vmem %s0, 96
  %v105 = vld [vmem:[%s104] sm:$0x33]
  %v106 = vld [vmem:[%s104 + $0x8] sm:$0x33]
  %v107 = vld [vmem:[%s104 + $0x18] sm:$0x33]
  %v108 = vld [vmem:[%s104 + $0x20] sm:$0x33]
  %s109 = scalar_lea.vmem %s1, 6
  %v110 = vld [vmem:[%s109] sm:$0x3]
  %v112 = vlaneseq
  %v113 = vshrl.u32 %v112, 7
  %v114 = vsub.s32 0, %v113
  %v115 = vrot.slane %v110, %v114
  %v116 = vlaneseq
  %v117 = vshrl.u32 %v116, 7
  %v118 = vsub.s32 1, %v117
  %v119 = vrot.slane %v110, %v118
  %v120 = vcombine.low %v115, %v119
  %v122 = vmul.f32 %v105, %v120
  %v123 = vmul.f32 %v106, %v120
  %v124 = vmul.f32 %v107, %v120
  %v125 = vmul.f32 %v108, %v120
  %v126 = vadd.f32 %v100, %v122
  %v127 = vadd.f32 %v101, %v123
  %v128 = vadd.f32 %v102, %v124
  %v129 = vadd.f32 %v103, %v125
  %s130 = scalar_lea.vmem %s0, 144
  %v131 = vld [vmem:[%s130] sm:$0x33]
  %v132 = vld [vmem:[%s130 + $0x8] sm:$0x33]
  %v133 = vld [vmem:[%s130 + $0x18] sm:$0x33]
  %v134 = vld [vmem:[%s130 + $0x20] sm:$0x33]
  %s135 = scalar_lea.vmem %s1, 8
  %v136 = vld [vmem:[%s135] sm:$0x3]
  %v138 = vlaneseq
  %v139 = vshrl.u32 %v138, 7
  %v140 = vsub.s32 0, %v139
  %v141 = vrot.slane %v136, %v140
  %v142 = vlaneseq
  %v143 = vshrl.u32 %v142, 7
  %v144 = vsub.s32 1, %v143
  %v145 = vrot.slane %v136, %v144
  %v146 = vcombine.low %v141, %v145
  %v148 = vmul.f32 %v131, %v146
  %v149 = vmul.f32 %v132, %v146
  %v150 = vmul.f32 %v133, %v146
  %v151 = vmul.f32 %v134, %v146
  %v152 = vadd.f32 %v126, %v148
  %v153 = vadd.f32 %v127, %v149
  %v154 = vadd.f32 %v128, %v150
  %v155 = vadd.f32 %v129, %v151
  %v156 = vld [vmem:[%s104] sm:$0x66]
  %v157 = vld [vmem:[%s104 + $0x8] sm:$0x66]
  %v158 = vld [vmem:[%s104 + $0x18] sm:$0x66]
  %v159 = vld [vmem:[%s104 + $0x20] sm:$0x66]
  %s160 = scalar_lea.vmem %s1, 10
  %v161 = vld [vmem:[%s160] sm:$0x3]
  %v163 = vlaneseq
  %v164 = vshrl.u32 %v163, 7
  %v165 = vsub.s32 0, %v164
  %v166 = vrot.slane %v161, %v165
  %v167 = vlaneseq
  %v168 = vshrl.u32 %v167, 7
  %v169 = vsub.s32 1, %v168
  %v170 = vrot.slane %v161, %v169
  %v171 = vcombine.low %v166, %v170
  %v172 = vrot.slane %v171, 7
  %v174 = vmul.f32 %v156, %v172
  %v175 = vmul.f32 %v157, %v172
  %v176 = vmul.f32 %v158, %v172
  %v177 = vmul.f32 %v159, %v172
  %v182 = vrot.slane %v174, 5
  %v183 = vrot.slane %v182, 4
  %v184 = vrot.slane %v175, 5
  %v185 = vrot.slane %v184, 4
  %v186 = vrot.slane %v176, 5
  %v187 = vrot.slane %v186, 4
  %v188 = vrot.slane %v177, 5
  %v189 = vrot.slane %v188, 4
  %v194 = vadd.f32 %v152, %v183
  %v195 = vadd.f32 %v153, %v185
  %v196 = vadd.f32 %v154, %v187
  %v197 = vadd.f32 %v155, %v189
  %s198 = scalar_lea.vmem %s0, 8
  %v199 = vld [vmem:[%s198] sm:$0x33]
  %v200 = vld [vmem:[%s198 + $0x8] sm:$0x33]
  %v201 = vld [vmem:[%s198 + $0x18] sm:$0x33]
  %v202 = vld [vmem:[%s198 + $0x20] sm:$0x33]
  %s203 = scalar_lea.vmem %s1, 12
  %v204 = vld [vmem:[%s203] sm:$0x3]
  %v206 = vlaneseq
  %v207 = vshrl.u32 %v206, 7
  %v208 = vsub.s32 0, %v207
  %v209 = vrot.slane %v204, %v208
  %v210 = vlaneseq
  %v211 = vshrl.u32 %v210, 7
  %v212 = vsub.s32 1, %v211
  %v213 = vrot.slane %v204, %v212
  %v214 = vcombine.low %v209, %v213
  %v216 = vmul.f32 %v199, %v214
  %v217 = vmul.f32 %v200, %v214
  %v218 = vmul.f32 %v201, %v214
  %v219 = vmul.f32 %v202, %v214
  %v220 = vadd.f32 %v194, %v216
  %v221 = vadd.f32 %v195, %v217
  %v222 = vadd.f32 %v196, %v218
  %v223 = vadd.f32 %v197, %v219
  %s224 = scalar_lea.vmem %s0, 56
  %v225 = vld [vmem:[%s224] sm:$0x33]
  %v226 = vld [vmem:[%s224 + $0x8] sm:$0x33]
  %v227 = vld [vmem:[%s224 + $0x18] sm:$0x33]
  %v228 = vld [vmem:[%s224 + $0x20] sm:$0x33]
  %s229 = scalar_lea.vmem %s1, 14
  %v230 = vld [vmem:[%s229] sm:$0x3]
  %v232 = vlaneseq
  %v233 = vshrl.u32 %v232, 7
  %v234 = vsub.s32 0, %v233
  %v235 = vrot.slane %v230, %v234
  %v236 = vlaneseq
  %v237 = vshrl.u32 %v236, 7
  %v238 = vsub.s32 1, %v237
  %v239 = vrot.slane %v230, %v238
  %v240 = vcombine.low %v235, %v239
  %v242 = vmul.f32 %v225, %v240
  %v243 = vmul.f32 %v226, %v240
  %v244 = vmul.f32 %v227, %v240
  %v245 = vmul.f32 %v228, %v240
  %v246 = vadd.f32 %v220, %v242
  %v247 = vadd.f32 %v221, %v243
  %v248 = vadd.f32 %v222, %v244
  %v249 = vadd.f32 %v223, %v245
  %v250 = vld [vmem:[%s198] sm:$0x66]
  %v251 = vld [vmem:[%s198 + $0x8] sm:$0x66]
  %v252 = vld [vmem:[%s198 + $0x18] sm:$0x66]
  %v253 = vld [vmem:[%s198 + $0x20] sm:$0x66]
  %s254 = scalar_lea.vmem %s1, 16
  %v255 = vld [vmem:[%s254] sm:$0x3]
  %v257 = vlaneseq
  %v258 = vshrl.u32 %v257, 7
  %v259 = vsub.s32 0, %v258
  %v260 = vrot.slane %v255, %v259
  %v261 = vlaneseq
  %v262 = vshrl.u32 %v261, 7
  %v263 = vsub.s32 1, %v262
  %v264 = vrot.slane %v255, %v263
  %v265 = vcombine.low %v260, %v264
  %v266 = vrot.slane %v265, 7
  %v268 = vmul.f32 %v250, %v266
  %v269 = vmul.f32 %v251, %v266
  %v270 = vmul.f32 %v252, %v266
  %v271 = vmul.f32 %v253, %v266
  %v276 = vrot.slane %v268, 5
  %v277 = vrot.slane %v276, 4
  %v278 = vrot.slane %v269, 5
  %v279 = vrot.slane %v278, 4
  %v280 = vrot.slane %v270, 5
  %v281 = vrot.slane %v280, 4
  %v282 = vrot.slane %v271, 5
  %v283 = vrot.slane %v282, 4
  %v288 = vadd.f32 %v246, %v277
  %v289 = vadd.f32 %v247, %v279
  %v290 = vadd.f32 %v248, %v281
  %v291 = vadd.f32 %v249, %v283
  %v292 = vld [vmem:[%s2] sm:$0x3]
  %v294 = vlaneseq
  %v295 = vshrl.u32 %v294, 7
  %v296 = vsub.s32 0, %v295
  %v297 = vrot.slane %v292, %v296
  %v298 = vlaneseq
  %v299 = vshrl.u32 %v298, 7
  %v300 = vsub.s32 1, %v299
  %v301 = vrot.slane %v292, %v300
  %v302 = vcombine.low %v297, %v301
  %v304 = vadd.f32 %v288, %v302
  %v305 = vadd.f32 %v289, %v302
  %v306 = vadd.f32 %v290, %v302
  %v307 = vadd.f32 %v291, %v302
  %v308 = vxor.u32 %v304, 2147483648
  %v309 = vxor.u32 %v305, 2147483648
  %v310 = vxor.u32 %v306, 2147483648
  %v311 = vxor.u32 %v307, 2147483648
  %v312 = vmul.f32 %v308, 1.442695
  %v313 = vpow.pop %v312
  %v314 = vmul.f32 %v309, 1.442695
  %v315 = vpow.pop %v314
  %v316 = vmul.f32 %v310, 1.442695
  %v317 = vpow.pop %v316
  %v318 = vmul.f32 %v311, 1.442695
  %v319 = vpow.pop %v318
  %v320 = vadd.f32 %v313, 1.0
  %v321 = vadd.f32 %v315, 1.0
  %v322 = vadd.f32 %v317, 1.0
  %v323 = vadd.f32 %v319, 1.0
  %v324 = vrcp.pop %v320
  %v325 = vmul.f32 1.0, %v324
  %v326 = vrcp.pop %v321
  %v327 = vmul.f32 1.0, %v326
  %v328 = vrcp.pop %v322
  %v329 = vmul.f32 1.0, %v328
  %v330 = vrcp.pop %v323
  %v331 = vmul.f32 1.0, %v330
  %v332 = vmul.f32 %v304, %v325
  %v333 = vmul.f32 %v305, %v327
  %v334 = vmul.f32 %v306, %v329
  %v335 = vmul.f32 %v307, %v331
  %v341 = vunpack.c.l.s4 1983009808
  %v342 = vunpack.c.0.s8 %v341
  %v343 = vlaneseq
  %v344 = vshrl.u32 %v343, 7
  %v345 = vsub.s32 %v342, %v344
  %v346 = vrot.slane %v332, %v345
  %v348 = vunpack.c.l.s4 1983009808
  %v349 = vunpack.c.0.s8 %v348
  %v350 = vlaneseq
  %v351 = vshrl.u32 %v350, 7
  %v352 = vsub.s32 %v349, %v351
  %v353 = vrot.slane %v333, %v352
  %v355 = vunpack.c.l.s4 1983009808
  %v356 = vunpack.c.0.s8 %v355
  %v357 = vlaneseq
  %v358 = vshrl.u32 %v357, 7
  %v359 = vsub.s32 %v356, %v358
  %v360 = vrot.slane %v334, %v359
  %v362 = vunpack.c.l.s4 1983009808
  %v363 = vunpack.c.0.s8 %v362
  %v364 = vlaneseq
  %v365 = vshrl.u32 %v364, 7
  %v366 = vsub.s32 %v363, %v365
  %v367 = vrot.slane %v335, %v366
  %vm372 = vcmask 1041408
  %vm373 = vcmask 125954
  %vm374 = vmor %vm373, %vm372
  %375 = vst.msk [vmem:[%s3] sm:$0xf] %vm374, %v346
  %376 = vst.msk [vmem:[%s3 + $0x4] sm:$0xf] %vm374, %v353
  %377 = vst.msk [vmem:[%s3 + $0x8] sm:$0xf] %vm374, %v360
  %378 = vst.msk [vmem:[%s3 + $0xc] sm:$0xf] %vm374, %v367
  %v379 = vcombine.high %v332, %v332
  %v380 = vcombine.high %v333, %v333
  %v381 = vcombine.high %v334, %v334
  %v382 = vcombine.high %v335, %v335
  %v387 = vsel %vm372, %v332, 0.0
  %v388 = vsel %vm372, %v333, 0.0
  %v389 = vadd.f32 %v387, %v388
  %v390 = vrot.slane %v389, 4
  %v391 = vadd.f32 %v389, %v390
  %v392 = vrot.slane %v391, 2
  %v393 = vadd.f32 %v391, %v392
  %v394 = vrot.slane %v393, 1
  %v395 = vadd.f32 %v393, %v394
  %vm396 = vcmask 123904
  %v397 = vsel %vm396, %v379, 0.0
  %v398 = vsel %vm396, %v380, 0.0
  %v399 = vadd.f32 %v397, %v398
  %v400 = vrot.slane %v399, 4
  %v401 = vadd.f32 %v399, %v400
  %v402 = vrot.slane %v401, 2
  %v403 = vadd.f32 %v401, %v402
  %v404 = vrot.slane %v403, 1
  %v405 = vadd.f32 %v403, %v404
  %v406 = vsel %vm372, %v334, 0.0
  %v407 = vsel %vm372, %v335, 0.0
  %v408 = vadd.f32 %v406, %v407
  %v409 = vrot.slane %v408, 4
  %v410 = vadd.f32 %v408, %v409
  %v411 = vrot.slane %v410, 2
  %v412 = vadd.f32 %v410, %v411
  %v413 = vrot.slane %v412, 1
  %v414 = vadd.f32 %v412, %v413
  %v415 = vsel %vm396, %v381, 0.0
  %v416 = vsel %vm396, %v382, 0.0
  %v417 = vadd.f32 %v415, %v416
  %v418 = vrot.slane %v417, 4
  %v419 = vadd.f32 %v417, %v418
  %v420 = vrot.slane %v419, 2
  %v421 = vadd.f32 %v419, %v420
  %v422 = vrot.slane %v421, 1
  %v423 = vadd.f32 %v421, %v422
  %v424 = vrcp.pop 4.0
  %v425 = vmul.f32 %v395, %v424
  %v426 = vmul.f32 %v405, %v424
  %v427 = vmul.f32 %v414, %v424
  %v428 = vmul.f32 %v423, %v424
  %v433 = vcombine.low %v425, %v426
  %v435 = vunpack.c.l.s4 1983009808
  %v436 = vunpack.c.0.s8 %v435
  %v437 = vlaneseq
  %v438 = vshrl.u32 %v437, 7
  %v439 = vsub.s32 %v436, %v438
  %v440 = vrot.slane %v433, %v439
  %v441 = vcombine.low %v427, %v428
  %v443 = vunpack.c.l.s4 1983009808
  %v444 = vunpack.c.0.s8 %v443
  %v445 = vlaneseq
  %v446 = vshrl.u32 %v445, 7
  %v447 = vsub.s32 %v444, %v446
  %v448 = vrot.slane %v441, %v447
  %vm449 = vcmask 1044484
  %v450 = vsel %vm449, %v440, %v440
  %vm451 = vcmask 1046534
  %v452 = vsel %vm451, %v440, %v450
  %v453 = vrot.slane %v448, 7
  %vm454 = vcmask 1041409
  %v455 = vsel %vm454, %v453, %v452
  %vm456 = vcmask 1043459
  %v457 = vsel %vm456, %v453, %v455
  %vm458 = vcmask 1045509
  %v459 = vsel %vm458, %v453, %v457
  %vm460 = vcmask 1047559
  %v461 = vsel %vm460, %v453, %v459
  %463 = vst.msk [vmem:[%s4] sm:$0xf] %vm374, %v461
  // Predicated region
  $region14: #{net_forward.17} parent=0 // pred_check
    _
  $region15: #{net_forward.17} parent=0 // pred_check_branch
    %465 = sbr.rel (0) target = $region17
  $region16: #{net_forward.17} parent=0 // pred_region
    _
  $region17: #{net_forward.17} parent=0 // pred_fallthru
    _
  // Predicated region
  $region18: #{net_forward.17} parent=0 // pred_check
    _
  $region19: #{net_forward.17} parent=0 // pred_check_branch
    %467 = sbr.rel (0) target = $region21
  $region20: #{net_forward.17} parent=0 // pred_region
    _
  $region21: #{net_forward.17} parent=0 // pred_fallthru
    _
  // Predicated region
  $region22: #{net_forward.17} parent=0 // pred_check
    _
  $region23: #{net_forward.17} parent=0 // pred_check_branch
    %469 = sbr.rel (0) target = $region25
  $region24: #{net_forward.17} parent=0 // pred_region
    _
  $region25: #{net_forward.17} parent=0 // pred_fallthru
    _
  // Predicated region
  $region26: #{net_forward.17} parent=0 // pred_check
    _
  $region27: #{net_forward.17} parent=0 // pred_check_branch
    %471 = sbr.rel (0) target = $region29
  $region28: #{net_forward.17} parent=0 // pred_region
    _
  $region29: #{net_forward.17} parent=0 // pred_fallthru
    _

// kernel: net_forward.19
$region0: #{net_forward.19}
  #allocation0 [shape = 'u32[]', space=smem, size = 0x4, offset = 0x4, fixed_abs, tag = 'smem constant byte address 0x4 - core index']
  #allocation1 [shape = 'u32[144,128]{1,0:T(1,128)}', space=vmem, size = 0x12000, scoped, tag = 'internal scratch']
  %s0 = inlined_call_operand.vmem [shape: f32[2,4,40], index: 0, kind: input, shape index: {}]
  %s1 = inlined_call_operand.vmem [shape: bf16[40,128], index: 1, kind: input, shape index: {}]
  %s2 = inlined_call_operand.vmem [shape: f32[1,128], index: 2, kind: input, shape index: {}]
  %s3 = inlined_call_operand.vmem [shape: f32[2,8], index: 3, kind: input, shape index: {}]
  %s4 = inlined_call_operand.vmem [shape: bf16[128,2], index: 4, kind: input, shape index: {}]
  %s5 = inlined_call_operand.vmem [shape: bf16[8,2], index: 5, kind: input, shape index: {}]
  %s6 = inlined_call_operand.vmem [shape: f32[1,2], index: 6, kind: input, shape index: {}]
  %s7 = inlined_call_operand.hbm [shape: f32[2,2], index: 7, kind: output, shape index: {}]
  %s8 = sld [smem:[#allocation0]]
  $region38: #{net_forward.19} parent=0
    _
  %s10 = ssub.s32 1, %s8
  %s11 = scalar_select 0, %s10, %s8
  $region1: #{net_forward.19} parent=0
    #allocation2 [shape = 'u8[1024]{0}', space=vmem, size = 0x400, scoped, tag = 'output window, operand 0, single buffered']
    #allocation3 [shape = 's32[1]{0}', space=sflag, size = 0x4, scoped, tag = 'scoped memory for net_forward.19']
    %12 = vsyncpa [#allocation3], 0
    // Predicated region
    $region2: #{net_forward.19} parent=1 // pred_check
      _
    $region3: #{net_forward.19} parent=1 // pred_check_branch
      %14 = sbr.rel (0) target = $region5
    $region4: #{net_forward.19} parent=1 // pred_region
      _
    $region5: #{net_forward.19} parent=1 // pred_fallthru
      _
    // Predicated region
    $region6: #{net_forward.19} parent=1 // pred_check
      _
    $region7: #{net_forward.19} parent=1 // pred_check_branch
      %16 = sbr.rel (0) target = $region9
    $region8: #{net_forward.19} parent=1 // pred_region
      _
    $region9: #{net_forward.19} parent=1 // pred_fallthru
      _
    // Predicated region
    $region10: #{net_forward.19} parent=1 // pred_check
      _
    $region11: #{net_forward.19} parent=1 // pred_check_branch
      %18 = sbr.rel (0) target = $region13
    $region12: #{net_forward.19} parent=1 // pred_region
      _
    $region13: #{net_forward.19} parent=1 // pred_fallthru
      _
    // Predicated region
    $region14: #{net_forward.19} parent=1 // pred_check
      _
    $region15: #{net_forward.19} parent=1 // pred_check_branch
      %20 = sbr.rel (0) target = $region17
    $region16: #{net_forward.19} parent=1 // pred_region
      _
    $region17: #{net_forward.19} parent=1 // pred_fallthru
      _
    // Predicated region
    $region18: #{net_forward.19} parent=1 // pred_check
      _
    $region19: #{net_forward.19} parent=1 // pred_check_branch
      %22 = sbr.rel (0) target = $region21
    $region20: #{net_forward.19} parent=1 // pred_region
      _
    $region21: #{net_forward.19} parent=1 // pred_fallthru
      _
    // Predicated region
    $region22: #{net_forward.19} parent=1 // pred_check
      _
    $region23: #{net_forward.19} parent=1 // pred_check_branch
      %24 = sbr.rel (0) target = $region25
    $region24: #{net_forward.19} parent=1 // pred_region
      _
    $region25: #{net_forward.19} parent=1 // pred_fallthru
      _
    // Predicated region
    $region26: #{net_forward.19} parent=1 // pred_check
      _
    $region27: #{net_forward.19} parent=1 // pred_check_branch
      %26 = sbr.rel (0) target = $region29
    $region28: #{net_forward.19} parent=1 // pred_region
      _
    $region29: #{net_forward.19} parent=1 // pred_fallthru
      _
    %v28 = vld [vmem:[%s0] sm:$0xf]
    %v29 = vpack.c.bf16 %v28, %v28
    %v30 = vld [vmem:[%s1] sm:$0xf]
    %v31 = vld [vmem:[%s1 + $0x4] sm:$0xf]
    %v32 = vld [vmem:[%s1 + $0x8] sm:$0xf]
    %v33 = vld [vmem:[%s1 + $0xc] sm:$0xf]
    %v34 = vld [vmem:[%s1 + $0x10] sm:$0xf]
    %v35 = vld [vmem:[%s2] sm:$0x1]
    %v37 = vlaneseq
    %v38 = vshrl.u32 %v37, 7
    %v39 = vsub.s32 0, %v38
    %v40 = vrot.slane %v35, %v39
    %v47 = vunpack.c.l.b16 %v30
    %v48 = vunpack.c.l.b16 %v31
    %v49 = vunpack.c.l.b16 %v32
    %v50 = vunpack.c.l.b16 %v33
    %v51 = vunpack.c.l.b16 %v34
    %v52 = vpack.c.b16 %v48, %v47
    %v53 = vpack.c.b16 %v50, %v49
    %v54 = vpack.c.b16 %v51, %v51
    %vm57 = vcmask 326656
    %v59 = vsel %vm57, %v29, 0
    %vm61 = vcmask 1043456
    %v63 = vsel %vm61, %v54, 0
    %65 = vmatprep.subr.bf16.mxu0 0
    %66 = vmatpush1.bf16.msra.mxu0 %v52
    %67 = vmatprep.subr.bf16.mxu0 0
    %68 = vmatpush1.bf16.msra.mxu0 %v53
    %69 = vmatprep.subr.bf16.mxu0 0
    %70 = vmatpush1.bf16.msra.mxu0 %v63
    %71 = vmatprep.subr.bf16.mxu0 0
    %72 = vmatpush1.bf16.msra.mxu0 0
    %73 = vmatprep.subr.bf16.mxu0 0
    %74 = vmatpush1.bf16.msra.mxu0 0
    %75 = vmatprep.subr.bf16.mxu0 0
    %76 = vmatpush1.bf16.msra.mxu0 0
    %77 = vmatprep.subr.bf16.mxu0 0
    %78 = vmatpush1.bf16.msra.mxu0 0
    %79 = vmatprep.subr.bf16.mxu0 0
    %80 = vmatpush1.bf16.msra.mxu0 0
    %81 = vmatprep.subr.bf16.mxu0 0
    %82 = vmatpush1.bf16.msra.mxu0 0
    %83 = vmatprep.subr.bf16.mxu0 0
    %84 = vmatpush1.bf16.msra.mxu0 0
    %85 = vmatprep.subr.bf16.mxu0 0
    %86 = vmatpush1.bf16.msra.mxu0 0
    %87 = vmatprep.subr.bf16.mxu0 0
    %88 = vmatpush1.bf16.msra.mxu0 0
    %89 = vmatprep.subr.bf16.mxu0 0
    %90 = vmatpush1.bf16.msra.mxu0 0
    %91 = vmatprep.subr.bf16.mxu0 0
    %92 = vmatpush1.bf16.msra.mxu0 0
    %93 = vmatprep.subr.bf16.mxu0 0
    %94 = vmatpush1.bf16.msra.mxu0 0
    %95 = vmatprep.subr.bf16.mxu0 0
    %96 = vmatpush1.bf16.msra.mxu0 0
    %97 = vmatprep.mubr.bf16.mxu0 0
    %98 = vmatmul.mubr.bf16.gmra.mrb[0].mxu0 %v59
    %v99 = vpop.f32.mrb[0].mxu0
    %v100 = vadd.f32 %v40, %v99
    %v101 = vpop.f32.mrb[0].mxu0
    %v102 = vpop.f32.mrb[0].mxu0
    %v103 = vpop.f32.mrb[0].mxu0
    %104 = vdwg.mxu0
    %v105 = vxor.u32 %v100, 2147483648
    %v106 = vmul.f32 %v105, 1.442695
    %v107 = vpow.pop %v106
    %v108 = vadd.f32 %v107, 1.0
    %v109 = vrcp.pop %v108
    %v110 = vmul.f32 1.0, %v109
    %v111 = vmul.f32 %v100, %v110
    %v112 = vsel %vm61, %v111, 0.0
    %v113 = vrot.slane %v112, 4
    %v114 = vadd.f32 %v112, %v113
    %v115 = vrot.slane %v114, 2
    %v116 = vadd.f32 %v114, %v115
    %v117 = vrot.slane %v116, 1
    %v118 = vadd.f32 %v116, %v117
    %v119 = vrcp.pop 4.0
    %v120 = vmul.f32 %v118, %v119
    %s121 = scalar_lea.vmem %s0, 4
    %v122 = vld [vmem:[%s121] sm:$0xf]
    %v123 = vpack.c.bf16 %v122, %v122
    %v125 = vsel %vm57, %v123, 0
    %127 = vmatprep.subr.bf16.mxu0 0
    %128 = vmatpush1.bf16.msra.mxu0 %v52
    %129 = vmatprep.subr.bf16.mxu0 0
    %130 = vmatpush1.bf16.msra.mxu0 %v53
    %131 = vmatprep.subr.bf16.mxu0 0
    %132 = vmatpush1.bf16.msra.mxu0 %v63
    %133 = vmatprep.subr.bf16.mxu0 0
    %134 = vmatpush1.bf16.msra.mxu0 0
    %135 = vmatprep.subr.bf16.mxu0 0
    %136 = vmatpush1.bf16.msra.mxu0 0
    %137 = vmatprep.subr.bf16.mxu0 0
    %138 = vmatpush1.bf16.msra.mxu0 0
    %139 = vmatprep.subr.bf16.mxu0 0
    %140 = vmatpush1.bf16.msra.mxu0 0
    %141 = vmatprep.subr.bf16.mxu0 0
    %142 = vmatpush1.bf16.msra.mxu0 0
    %143 = vmatprep.subr.bf16.mxu0 0
    %144 = vmatpush1.bf16.msra.mxu0 0
    %145 = vmatprep.subr.bf16.mxu0 0
    %146 = vmatpush1.bf16.msra.mxu0 0
    %147 = vmatprep.subr.bf16.mxu0 0
    %148 = vmatpush1.bf16.msra.mxu0 0
    %149 = vmatprep.subr.bf16.mxu0 0
    %150 = vmatpush1.bf16.msra.mxu0 0
    %151 = vmatprep.subr.bf16.mxu0 0
    %152 = vmatpush1.bf16.msra.mxu0 0
    %153 = vmatprep.subr.bf16.mxu0 0
    %154 = vmatpush1.bf16.msra.mxu0 0
    %155 = vmatprep.subr.bf16.mxu0 0
    %156 = vmatpush1.bf16.msra.mxu0 0
    %157 = vmatprep.subr.bf16.mxu0 0
    %158 = vmatpush1.bf16.msra.mxu0 0
    %159 = vmatprep.mubr.bf16.mxu0 0
    %160 = vmatmul.mubr.bf16.gmra.mrb[0].mxu0 %v125
    %v161 = vpop.f32.mrb[0].mxu0
    %v162 = vadd.f32 %v40, %v161
    %v163 = vpop.f32.mrb[0].mxu0
    %v164 = vpop.f32.mrb[0].mxu0
    %v165 = vpop.f32.mrb[0].mxu0
    %166 = vdwg.mxu0
    %v167 = vxor.u32 %v162, 2147483648
    %v168 = vmul.f32 %v167, 1.442695
    %v169 = vpow.pop %v168
    %v170 = vadd.f32 %v169, 1.0
    %v171 = vrcp.pop %v170
    %v172 = vmul.f32 1.0, %v171
    %v173 = vmul.f32 %v162, %v172
    %v174 = vsel %vm61, %v173, 0.0
    %v175 = vrot.slane %v174, 4
    %v176 = vadd.f32 %v174, %v175
    %v177 = vrot.slane %v176, 2
    %v178 = vadd.f32 %v176, %v177
    %v179 = vrot.slane %v178, 1
    %v180 = vadd.f32 %v178, %v179
    %v181 = vmul.f32 %v180, %v119
    %vm182 = vcmask 1040384
    %v183 = vsel %vm182, %v120, %v181
    %v184 = vpack.c.bf16 %v183, %v183
    %v185 = vld [vmem:[%s4] sm:$0xf]
    %v186 = vld [vmem:[%s4 + $0x4] sm:$0xf]
    %v187 = vld [vmem:[%s4 + $0x8] sm:$0xf]
    %v188 = vld [vmem:[%s4 + $0xc] sm:$0xf]
    %v189 = vld [vmem:[%s4 + $0x10] sm:$0xf]
    %v190 = vld [vmem:[%s4 + $0x14] sm:$0xf]
    %v191 = vld [vmem:[%s4 + $0x18] sm:$0xf]
    %v192 = vld [vmem:[%s4 + $0x1c] sm:$0xf]
    %v193 = vld [vmem:[%s4 + $0x20] sm:$0xf]
    %v194 = vld [vmem:[%s4 + $0x24] sm:$0xf]
    %v195 = vld [vmem:[%s4 + $0x28] sm:$0xf]
    %v196 = vld [vmem:[%s4 + $0x2c] sm:$0xf]
    %v197 = vld [vmem:[%s4 + $0x30] sm:$0xf]
    %v198 = vld [vmem:[%s4 + $0x34] sm:$0xf]
    %v199 = vld [vmem:[%s4 + $0x38] sm:$0xf]
    %v200 = vld [vmem:[%s4 + $0x3c] sm:$0xf]
    %v201 = vld [vmem:[%s3] sm:$0x3]
    %v202 = vpack.c.bf16 %v201, %v201
    %v203 = vld [vmem:[%s5] sm:$0xf]
    %vm204 = vcmask 64512
    %v206 = vsel %vm204, %v202, 0
    %v209 = vsel %vm61, %v203, 0
    %211 = vmatprep.subr.bf16.mxu0 0
    %212 = vmatpush1.bf16.msra.mxu0 %v209
    %213 = vmatprep.subr.bf16.mxu0 0
    %214 = vmatpush1.bf16.msra.mxu0 0
    %215 = vmatprep.subr.bf16.mxu0 0
    %216 = vmatpush1.bf16.msra.mxu0 0
    %217 = vmatprep.subr.bf16.mxu0 0
    %218 = vmatpush1.bf16.msra.mxu0 0
    %219 = vmatprep.subr.bf16.mxu0 0
    %220 = vmatpush1.bf16.msra.mxu0 0
    %221 = vmatprep.subr.bf16.mxu0 0
    %222 = vmatpush1.bf16.msra.mxu0 0
    %223 = vmatprep.subr.bf16.mxu0 0
    %224 = vmatpush1.bf16.msra.mxu0 0
    %225 = vmatprep.subr.bf16.mxu0 0
    %226 = vmatpush1.bf16.msra.mxu0 0
    %227 = vmatprep.subr.bf16.mxu0 0
    %228 = vmatpush1.bf16.msra.mxu0 0
    %229 = vmatprep.subr.bf16.mxu0 0
    %230 = vmatpush1.bf16.msra.mxu0 0
    %231 = vmatprep.subr.bf16.mxu0 0
    %232 = vmatpush1.bf16.msra.mxu0 0
    %233 = vmatprep.subr.bf16.mxu0 0
    %234 = vmatpush1.bf16.msra.mxu0 0
    %235 = vmatprep.subr.bf16.mxu0 0
    %236 = vmatpush1.bf16.msra.mxu0 0
    %237 = vmatprep.subr.bf16.mxu0 0
    %238 = vmatpush1.bf16.msra.mxu0 0
    %239 = vmatprep.subr.bf16.mxu0 0
    %240 = vmatpush1.bf16.msra.mxu0 0
    %241 = vmatprep.subr.bf16.mxu0 0
    %242 = vmatpush1.bf16.msra.mxu0 0
    %243 = vmatprep.mubr.bf16.mxu0 0
    %244 = vmatmul.mubr.bf16.gmra.mrb[0].mxu0 %v206
    %v245 = vpop.f32.mrb[0].mxu0
    %v246 = vadd.f32 0.0, %v245
    %v247 = vpop.f32.mrb[0].mxu0
    %v248 = vpop.f32.mrb[0].mxu0
    %v249 = vpop.f32.mrb[0].mxu0
    %250 = vdwg.mxu0
    %v267 = vunpack.c.l.b16 %v185
    %v268 = vunpack.c.l.b16 %v186
    %v269 = vunpack.c.l.b16 %v187
    %v270 = vunpack.c.l.b16 %v188
    %v271 = vunpack.c.l.b16 %v189
    %v272 = vunpack.c.l.b16 %v190
    %v273 = vunpack.c.l.b16 %v191
    %v274 = vunpack.c.l.b16 %v192
    %v275 = vunpack.c.l.b16 %v193
    %v276 = vunpack.c.l.b16 %v194
    %v277 = vunpack.c.l.b16 %v195
    %v278 = vunpack.c.l.b16 %v196
    %v279 = vunpack.c.l.b16 %v197
    %v280 = vunpack.c.l.b16 %v198
    %v281 = vunpack.c.l.b16 %v199
    %v282 = vunpack.c.l.b16 %v200
    %v283 = vpack.c.b16 %v268, %v267
    %v284 = vpack.c.b16 %v270, %v269
    %v285 = vpack.c.b16 %v272, %v271
    %v286 = vpack.c.b16 %v274, %v273
    %v287 = vpack.c.b16 %v276, %v275
    %v288 = vpack.c.b16 %v278, %v277
    %v289 = vpack.c.b16 %v280, %v279
    %v290 = vpack.c.b16 %v282, %v281
    %299 = vmatprep.subr.bf16.mxu0 0
    %300 = vmatpush1.bf16.msra.mxu0 %v283
    %301 = vmatprep.subr.bf16.mxu0 0
    %302 = vmatpush1.bf16.msra.mxu0 %v284
    %303 = vmatprep.subr.bf16.mxu0 0
    %304 = vmatpush1.bf16.msra.mxu0 %v285
    %305 = vmatprep.subr.bf16.mxu0 0
    %306 = vmatpush1.bf16.msra.mxu0 %v286
    %307 = vmatprep.subr.bf16.mxu0 0
    %308 = vmatpush1.bf16.msra.mxu0 %v287
    %309 = vmatprep.subr.bf16.mxu0 0
    %310 = vmatpush1.bf16.msra.mxu0 %v288
    %311 = vmatprep.subr.bf16.mxu0 0
    %312 = vmatpush1.bf16.msra.mxu0 %v289
    %313 = vmatprep.subr.bf16.mxu0 0
    %314 = vmatpush1.bf16.msra.mxu0 %v290
    %315 = vmatprep.subr.bf16.mxu0 0
    %316 = vmatpush1.bf16.msra.mxu0 0
    %317 = vmatprep.subr.bf16.mxu0 0
    %318 = vmatpush1.bf16.msra.mxu0 0
    %319 = vmatprep.subr.bf16.mxu0 0
    %320 = vmatpush1.bf16.msra.mxu0 0
    %321 = vmatprep.subr.bf16.mxu0 0
    %322 = vmatpush1.bf16.msra.mxu0 0
    %323 = vmatprep.subr.bf16.mxu0 0
    %324 = vmatpush1.bf16.msra.mxu0 0
    %325 = vmatprep.subr.bf16.mxu0 0
    %326 = vmatpush1.bf16.msra.mxu0 0
    %327 = vmatprep.subr.bf16.mxu0 0
    %328 = vmatpush1.bf16.msra.mxu0 0
    %329 = vmatprep.subr.bf16.mxu0 0
    %330 = vmatpush1.bf16.msra.mxu0 0
    %331 = vmatprep.mubr.bf16.mxu0 0
    %332 = vmatmul.mubr.bf16.gmra.mrb[0].mxu0 %v184
    %v333 = vpop.f32.mrb[0].mxu0
    %v334 = vadd.f32 %v246, %v333
    %v335 = vpop.f32.mrb[0].mxu0
    %v336 = vpop.f32.mrb[0].mxu0
    %v337 = vpop.f32.mrb[0].mxu0
    %338 = vdwg.mxu0
    %v339 = vld [vmem:[%s6] sm:$0x1]
    %v341 = vlaneseq
    %v342 = vshrl.u32 %v341, 7
    %v343 = vsub.s32 0, %v342
    %v344 = vrot.slane %v339, %v343
    %v346 = vadd.f32 %v334, %v344
    %vm347 = vcmask 9216
    %348 = vst.msk [vmem:[#allocation2] sm:$0x3] %vm347, %v346
    // Predicated region
    $region30: #{net_forward.19} parent=1 // pred_check
      _
    $region31: #{net_forward.19} parent=1 // pred_check_branch
      %350 = sbr.rel (0) target = $region33
    $region32: #{net_forward.19} parent=1 // pred_region
      %s352 = ssub.s32 32, 32
      %353 = vsyncadd [#allocation3], %s352
      %s355 = sshll.u32 [#allocation2], 4
      %s356 = int_to_ptr.vmem [resolvable:$true] %s355
      %358 = dma.vmem_to_hbm [thread:$0]  %s356, 32, %s7, [#allocation3]
    $region33: #{net_forward.19} parent=1 // pred_fallthru
      _
    // Predicated region
    $region34: #{net_forward.19} parent=1 // pred_check
      _
    $region35: #{net_forward.19} parent=1 // pred_check_branch
      %360 = sbr.rel (0) target = $region37
    $region36: #{net_forward.19} parent=1 // pred_region
      %361 = dma.done [#allocation3], 32
    $region37: #{net_forward.19} parent=1 // pred_fallthru
      _
    %362 = vsyncpa [#allocation3], 1

// kernel: net_forward.18
$region0: #{net_forward.18}
  #allocation0 [shape = 'u32[]', space=smem, size = 0x4, offset = 0x4, fixed_abs, tag = 'smem constant byte address 0x4 - core index']
  #allocation1 [shape = 'u32[144,128]{1,0:T(1,128)}', space=vmem, size = 0x12000, scoped, tag = 'internal scratch']
  %s0 = inlined_call_operand.vmem [shape: f32[2,4,144], index: 0, kind: input, shape index: {}]
  %s1 = inlined_call_operand.vmem [shape: f32[2,144], index: 1, kind: input, shape index: {}]
  %s2 = inlined_call_operand.vmem [shape: bf16[144,6], index: 2, kind: input, shape index: {}]
  %s3 = inlined_call_operand.vmem [shape: f32[1,6], index: 3, kind: input, shape index: {}]
  %s4 = inlined_call_operand.vmem [shape: bf16[6,144], index: 4, kind: input, shape index: {}]
  %s5 = inlined_call_operand.vmem [shape: f32[1,144], index: 5, kind: input, shape index: {}]
  %s6 = inlined_call_operand.vmem [shape: bf16[144,40], index: 6, kind: input, shape index: {}]
  %s7 = inlined_call_operand.vmem [shape: f32[1,40], index: 7, kind: input, shape index: {}]
  %s8 = inlined_call_operand.vmem [shape: f32[2,4,40], index: 8, kind: output, shape index: {}]
  %s9 = sld [smem:[#allocation0]]
  $region42: #{net_forward.18} parent=0
    _
  %s11 = ssub.s32 1, %s9
  %s12 = scalar_select 0, %s11, %s9
  // Predicated region
  $region2: #{net_forward.18} parent=0 // pred_check
    _
  $region3: #{net_forward.18} parent=0 // pred_check_branch
    %14 = sbr.rel (0) target = $region5
  $region4: #{net_forward.18} parent=0 // pred_region
    _
  $region5: #{net_forward.18} parent=0 // pred_fallthru
    _
  // Predicated region
  $region6: #{net_forward.18} parent=0 // pred_check
    _
  $region7: #{net_forward.18} parent=0 // pred_check_branch
    %16 = sbr.rel (0) target = $region9
  $region8: #{net_forward.18} parent=0 // pred_region
    _
  $region9: #{net_forward.18} parent=0 // pred_fallthru
    _
  // Predicated region
  $region10: #{net_forward.18} parent=0 // pred_check
    _
  $region11: #{net_forward.18} parent=0 // pred_check_branch
    %18 = sbr.rel (0) target = $region13
  $region12: #{net_forward.18} parent=0 // pred_region
    _
  $region13: #{net_forward.18} parent=0 // pred_fallthru
    _
  // Predicated region
  $region14: #{net_forward.18} parent=0 // pred_check
    _
  $region15: #{net_forward.18} parent=0 // pred_check_branch
    %20 = sbr.rel (0) target = $region17
  $region16: #{net_forward.18} parent=0 // pred_region
    _
  $region17: #{net_forward.18} parent=0 // pred_fallthru
    _
  // Predicated region
  $region18: #{net_forward.18} parent=0 // pred_check
    _
  $region19: #{net_forward.18} parent=0 // pred_check_branch
    %22 = sbr.rel (0) target = $region21
  $region20: #{net_forward.18} parent=0 // pred_region
    _
  $region21: #{net_forward.18} parent=0 // pred_fallthru
    _
  // Predicated region
  $region22: #{net_forward.18} parent=0 // pred_check
    _
  $region23: #{net_forward.18} parent=0 // pred_check_branch
    %24 = sbr.rel (0) target = $region25
  $region24: #{net_forward.18} parent=0 // pred_region
    _
  $region25: #{net_forward.18} parent=0 // pred_fallthru
    _
  // Predicated region
  $region26: #{net_forward.18} parent=0 // pred_check
    _
  $region27: #{net_forward.18} parent=0 // pred_check_branch
    %26 = sbr.rel (0) target = $region29
  $region28: #{net_forward.18} parent=0 // pred_region
    _
  $region29: #{net_forward.18} parent=0 // pred_fallthru
    _
  // Predicated region
  $region30: #{net_forward.18} parent=0 // pred_check
    _
  $region31: #{net_forward.18} parent=0 // pred_check_branch
    %28 = sbr.rel (0) target = $region33
  $region32: #{net_forward.18} parent=0 // pred_region
    _
  $region33: #{net_forward.18} parent=0 // pred_fallthru
    _
  %v30 = vld [vmem:[%s1] sm:$0xf]
  %v33 = vunpack.c.l.s4 1983009808
  %v34 = vunpack.c.0.s8 %v33
  %v35 = vlaneseq
  %v36 = vshrl.u32 %v35, 7
  %v37 = vsub.s32 %v34, %v36
  %v38 = vrot.slane %v30, %v37
  %v39 = vcombine.high %v38, %v38
  %v42 = vpack.c.bf16 %v38, %v38
  %v43 = vpack.c.bf16 %v39, %v39
  %v44 = vld [vmem:[%s2] sm:$0xf]
  %v45 = vld [vmem:[%s2 + $0x4] sm:$0xf]
  %v46 = vld [vmem:[%s2 + $0x8] sm:$0xf]
  %v47 = vld [vmem:[%s2 + $0xc] sm:$0xf]
  %v48 = vld [vmem:[%s2 + $0x10] sm:$0xf]
  %v49 = vld [vmem:[%s2 + $0x14] sm:$0xf]
  %v50 = vld [vmem:[%s2 + $0x18] sm:$0xf]
  %v51 = vld [vmem:[%s2 + $0x1c] sm:$0xf]
  %v52 = vld [vmem:[%s2 + $0x20] sm:$0xf]
  %v53 = vld [vmem:[%s2 + $0x24] sm:$0xf]
  %v54 = vld [vmem:[%s2 + $0x28] sm:$0xf]
  %v55 = vld [vmem:[%s2 + $0x2c] sm:$0xf]
  %v56 = vld [vmem:[%s2 + $0x30] sm:$0xf]
  %v57 = vld [vmem:[%s2 + $0x34] sm:$0xf]
  %v58 = vld [vmem:[%s2 + $0x38] sm:$0xf]
  %v59 = vld [vmem:[%s2 + $0x3c] sm:$0xf]
  %v60 = vld [vmem:[%s2 + $0x40] sm:$0xf]
  %v61 = vld [vmem:[%s2 + $0x44] sm:$0xf]
  %v62 = vld [vmem:[%s3] sm:$0x1]
  %v64 = vlaneseq
  %v65 = vshrl.u32 %v64, 7
  %v66 = vsub.s32 0, %v65
  %v67 = vrot.slane %v62, %v66
  %v87 = vunpack.c.l.b16 %v44
  %v88 = vunpack.c.l.b16 %v45
  %v89 = vunpack.c.l.b16 %v46
  %v90 = vunpack.c.l.b16 %v47
  %v91 = vunpack.c.l.b16 %v48
  %v92 = vunpack.c.l.b16 %v49
  %v93 = vunpack.c.l.b16 %v50
  %v94 = vunpack.c.l.b16 %v51
  %v95 = vunpack.c.l.b16 %v52
  %v96 = vunpack.c.l.b16 %v53
  %v97 = vunpack.c.l.b16 %v54
  %v98 = vunpack.c.l.b16 %v55
  %v99 = vunpack.c.l.b16 %v56
  %v100 = vunpack.c.l.b16 %v57
  %v101 = vunpack.c.l.b16 %v58
  %v102 = vunpack.c.l.b16 %v59
  %v103 = vunpack.c.l.b16 %v60
  %v104 = vunpack.c.l.b16 %v61
  %v105 = vpack.c.b16 %v88, %v87
  %v106 = vpack.c.b16 %v90, %v89
  %v107 = vpack.c.b16 %v92, %v91
  %v108 = vpack.c.b16 %v94, %v93
  %v109 = vpack.c.b16 %v96, %v95
  %v110 = vpack.c.b16 %v98, %v97
  %v111 = vpack.c.b16 %v100, %v99
  %v112 = vpack.c.b16 %v102, %v101
  %v113 = vpack.c.b16 %v104, %v103
  %vm123 = vcmask 130048
  %v125 = vsel %vm123, %v43, 0
  %127 = vmatprep.subr.bf16.mxu0 0
  %128 = vmatpush1.bf16.msra.mxu0 %v105
  %129 = vmatprep.subr.bf16.mxu0 0
  %130 = vmatpush1.bf16.msra.mxu0 %v106
  %131 = vmatprep.subr.bf16.mxu0 0
  %132 = vmatpush1.bf16.msra.mxu0 %v107
  %133 = vmatprep.subr.bf16.mxu0 0
  %134 = vmatpush1.bf16.msra.mxu0 %v108
  %135 = vmatprep.subr.bf16.mxu0 0
  %136 = vmatpush1.bf16.msra.mxu0 %v109
  %137 = vmatprep.subr.bf16.mxu0 0
  %138 = vmatpush1.bf16.msra.mxu0 %v110
  %139 = vmatprep.subr.bf16.mxu0 0
  %140 = vmatpush1.bf16.msra.mxu0 %v111
  %141 = vmatprep.subr.bf16.mxu0 0
  %142 = vmatpush1.bf16.msra.mxu0 %v112
  %143 = vmatprep.subr.bf16.mxu0 0
  %144 = vmatpush1.bf16.msra.mxu0 %v113
  %145 = vmatprep.subr.bf16.mxu0 0
  %146 = vmatpush1.bf16.msra.mxu0 0
  %147 = vmatprep.subr.bf16.mxu0 0
  %148 = vmatpush1.bf16.msra.mxu0 0
  %149 = vmatprep.subr.bf16.mxu0 0
  %150 = vmatpush1.bf16.msra.mxu0 0
  %151 = vmatprep.subr.bf16.mxu0 0
  %152 = vmatpush1.bf16.msra.mxu0 0
  %153 = vmatprep.subr.bf16.mxu0 0
  %154 = vmatpush1.bf16.msra.mxu0 0
  %155 = vmatprep.subr.bf16.mxu0 0
  %156 = vmatpush1.bf16.msra.mxu0 0
  %157 = vmatprep.subr.bf16.mxu0 0
  %158 = vmatpush1.bf16.msra.mxu0 0
  %159 = vmatprep.mubr.bf16.mxu0 %v125
  %160 = vmatmul.mubr.bf16.gmra.mrb[0].mxu0 %v42
  %v161 = vpop.f32.mrb[0].mxu0
  %v162 = vadd.f32 %v67, %v161
  %v163 = vpop.f32.mrb[0].mxu0
  %v164 = vpop.f32.mrb[0].mxu0
  %v165 = vpop.f32.mrb[0].mxu0
  %166 = vdwg.mxu0
  %v167 = vxor.u32 %v162, 2147483648
  %v168 = vmul.f32 %v167, 1.442695
  %v169 = vpow.pop %v168
  %v170 = vadd.f32 %v169, 1.0
  %v171 = vrcp.pop %v170
  %v172 = vmul.f32 1.0, %v171
  %v173 = vmul.f32 %v162, %v172
  %v174 = vpack.c.bf16 %v173, %v173
  %v175 = vld [vmem:[%s4] sm:$0x77]
  %v176 = vld [vmem:[%s5] sm:$0x3]
  %v178 = vlaneseq
  %v179 = vshrl.u32 %v178, 7
  %v180 = vsub.s32 0, %v179
  %v181 = vrot.slane %v176, %v180
  %v182 = vlaneseq
  %v183 = vshrl.u32 %v182, 7
  %v184 = vsub.s32 1, %v183
  %v185 = vrot.slane %v176, %v184
  %v189 = vunpack.c.l.b16 %v175
  %v190 = vunpack.c.h.b16 %v175
  %v191 = vpack.c.b16 %v189, %v189
  %v192 = vpack.c.b16 %v190, %v190
  %vm193 = vcmask 48128
  %v195 = vsel %vm193, %v174, 0
  %vm197 = vcmask 1042432
  %v199 = vsel %vm197, %v191, 0
  %v202 = vsel %vm197, %v192, 0
  %204 = vmatprep.subr.bf16.mxu0 %v202
  %205 = vmatpush1.bf16.msra.mxu0 %v199
  %206 = vmatprep.subr.bf16.mxu0 0
  %207 = vmatpush1.bf16.msra.mxu0 0
  %208 = vmatprep.subr.bf16.mxu0 0
  %209 = vmatpush1.bf16.msra.mxu0 0
  %210 = vmatprep.subr.bf16.mxu0 0
  %211 = vmatpush1.bf16.msra.mxu0 0
  %212 = vmatprep.subr.bf16.mxu0 0
  %213 = vmatpush1.bf16.msra.mxu0 0
  %214 = vmatprep.subr.bf16.mxu0 0
  %215 = vmatpush1.bf16.msra.mxu0 0
  %216 = vmatprep.subr.bf16.mxu0 0
  %217 = vmatpush1.bf16.msra.mxu0 0
  %218 = vmatprep.subr.bf16.mxu0 0
  %219 = vmatpush1.bf16.msra.mxu0 0
  %220 = vmatprep.subr.bf16.mxu0 0
  %221 = vmatpush1.bf16.msra.mxu0 0
  %222 = vmatprep.subr.bf16.mxu0 0
  %223 = vmatpush1.bf16.msra.mxu0 0
  %224 = vmatprep.subr.bf16.mxu0 0
  %225 = vmatpush1.bf16.msra.mxu0 0
  %226 = vmatprep.subr.bf16.mxu0 0
  %227 = vmatpush1.bf16.msra.mxu0 0
  %228 = vmatprep.subr.bf16.mxu0 0
  %229 = vmatpush1.bf16.msra.mxu0 0
  %230 = vmatprep.subr.bf16.mxu0 0
  %231 = vmatpush1.bf16.msra.mxu0 0
  %232 = vmatprep.subr.bf16.mxu0 0
  %233 = vmatpush1.bf16.msra.mxu0 0
  %234 = vmatprep.subr.bf16.mxu0 0
  %235 = vmatpush1.bf16.msra.mxu0 0
  %236 = vmatprep.mubr.bf16.mxu0 0
  %237 = vmatmul.mubr.bf16.gmra.mrb[0].mxu0 %v195
  %v238 = vpop.f32.mrb[0].mxu0
  %v239 = vadd.f32 %v181, %v238
  %v240 = vpop.f32.mrb[0].mxu0
  %v241 = vadd.f32 %v185, %v240
  %v242 = vpop.f32.mrb[0].mxu0
  %v243 = vpop.f32.mrb[0].mxu0
  %244 = vdwg.mxu0
  %v245 = vxor.u32 %v239, 2147483648
  %v246 = vxor.u32 %v241, 2147483648
  %v247 = vmul.f32 %v245, 1.442695
  %v248 = vpow.pop %v247
  %v249 = vmul.f32 %v246, 1.442695
  %v250 = vpow.pop %v249
  %v251 = vadd.f32 %v248, 1.0
  %v252 = vadd.f32 %v250, 1.0
  %v253 = vrcp.pop %v251
  %v254 = vmul.f32 1.0, %v253
  %v255 = vrcp.pop %v252
  %v256 = vmul.f32 1.0, %v255
  %v257 = vld [vmem:[%s0] sm:$0xff]
  %v258 = vlaneseq
  %v259 = vshrl.u32 %v258, 7
  %v260 = vsub.s32 0, %v259
  %v261 = vrot.slane %v254, %v260
  %v262 = vlaneseq
  %v263 = vshrl.u32 %v262, 7
  %v264 = vsub.s32 0, %v263
  %v265 = vrot.slane %v256, %v264
  %v268 = vcombine.low %v261, %v265
  %v270 = vmul.f32 %v257, %v268
  %v272 = vcombine.high %v270, %v270
  %v274 = vpack.c.bf16 %v270, %v270
  %v275 = vpack.c.bf16 %v272, %v272
  %v276 = vld [vmem:[%s6] sm:$0xf]
  %v277 = vld [vmem:[%s6 + $0x4] sm:$0xf]
  %v278 = vld [vmem:[%s6 + $0x8] sm:$0xf]
  %v279 = vld [vmem:[%s6 + $0xc] sm:$0xf]
  %v280 = vld [vmem:[%s6 + $0x10] sm:$0xf]
  %v281 = vld [vmem:[%s6 + $0x14] sm:$0xf]
  %v282 = vld [vmem:[%s6 + $0x18] sm:$0xf]
  %v283 = vld [vmem:[%s6 + $0x1c] sm:$0xf]
  %v284 = vld [vmem:[%s6 + $0x20] sm:$0xf]
  %v285 = vld [vmem:[%s6 + $0x24] sm:$0xf]
  %v286 = vld [vmem:[%s6 + $0x28] sm:$0xf]
  %v287 = vld [vmem:[%s6 + $0x2c] sm:$0xf]
  %v288 = vld [vmem:[%s6 + $0x30] sm:$0xf]
  %v289 = vld [vmem:[%s6 + $0x34] sm:$0xf]
  %v290 = vld [vmem:[%s6 + $0x38] sm:$0xf]
  %v291 = vld [vmem:[%s6 + $0x3c] sm:$0xf]
  %v292 = vld [vmem:[%s6 + $0x40] sm:$0xf]
  %v293 = vld [vmem:[%s6 + $0x44] sm:$0xf]
  %v294 = vld [vmem:[%s7] sm:$0x1]
  %v296 = vlaneseq
  %v297 = vshrl.u32 %v296, 7
  %v298 = vsub.s32 0, %v297
  %v299 = vrot.slane %v294, %v298
  %v319 = vunpack.c.l.b16 %v276
  %v320 = vunpack.c.l.b16 %v277
  %v321 = vunpack.c.l.b16 %v278
  %v322 = vunpack.c.l.b16 %v279
  %v323 = vunpack.c.l.b16 %v280
  %v324 = vunpack.c.l.b16 %v281
  %v325 = vunpack.c.l.b16 %v282
  %v326 = vunpack.c.l.b16 %v283
  %v327 = vunpack.c.l.b16 %v284
  %v328 = vunpack.c.l.b16 %v285
  %v329 = vunpack.c.l.b16 %v286
  %v330 = vunpack.c.l.b16 %v287
  %v331 = vunpack.c.l.b16 %v288
  %v332 = vunpack.c.l.b16 %v289
  %v333 = vunpack.c.l.b16 %v290
  %v334 = vunpack.c.l.b16 %v291
  %v335 = vunpack.c.l.b16 %v292
  %v336 = vunpack.c.l.b16 %v293
  %v337 = vpack.c.b16 %v320, %v319
  %v338 = vpack.c.b16 %v322, %v321
  %v339 = vpack.c.b16 %v324, %v323
  %v340 = vpack.c.b16 %v326, %v325
  %v341 = vpack.c.b16 %v328, %v327
  %v342 = vpack.c.b16 %v330, %v329
  %v343 = vpack.c.b16 %v332, %v331
  %v344 = vpack.c.b16 %v334, %v333
  %v345 = vpack.c.b16 %v336, %v335
  %v356 = vsel %vm123, %v275, 0
  %358 = vmatprep.subr.bf16.mxu0 0
  %359 = vmatpush1.bf16.msra.mxu0 %v337
  %360 = vmatprep.subr.bf16.mxu0 0
  %361 = vmatpush1.bf16.msra.mxu0 %v338
  %362 = vmatprep.subr.bf16.mxu0 0
  %363 = vmatpush1.bf16.msra.mxu0 %v339
  %364 = vmatprep.subr.bf16.mxu0 0
  %365 = vmatpush1.bf16.msra.mxu0 %v340
  %366 = vmatprep.subr.bf16.mxu0 0
  %367 = vmatpush1.bf16.msra.mxu0 %v341
  %368 = vmatprep.subr.bf16.mxu0 0
  %369 = vmatpush1.bf16.msra.mxu0 %v342
  %370 = vmatprep.subr.bf16.mxu0 0
  %371 = vmatpush1.bf16.msra.mxu0 %v343
  %372 = vmatprep.subr.bf16.mxu0 0
  %373 = vmatpush1.bf16.msra.mxu0 %v344
  %374 = vmatprep.subr.bf16.mxu0 0
  %375 = vmatpush1.bf16.msra.mxu0 %v345
  %376 = vmatprep.subr.bf16.mxu0 0
  %377 = vmatpush1.bf16.msra.mxu0 0
  %378 = vmatprep.subr.bf16.mxu0 0
  %379 = vmatpush1.bf16.msra.mxu0 0
  %380 = vmatprep.subr.bf16.mxu0 0
  %381 = vmatpush1.bf16.msra.mxu0 0
  %382 = vmatprep.subr.bf16.mxu0 0
  %383 = vmatpush1.bf16.msra.mxu0 0
  %384 = vmatprep.subr.bf16.mxu0 0
  %385 = vmatpush1.bf16.msra.mxu0 0
  %386 = vmatprep.subr.bf16.mxu0 0
  %387 = vmatpush1.bf16.msra.mxu0 0
  %388 = vmatprep.subr.bf16.mxu0 0
  %389 = vmatpush1.bf16.msra.mxu0 0
  %390 = vmatprep.mubr.bf16.mxu0 %v356
  %391 = vmatmul.mubr.bf16.gmra.mrb[0].mxu0 %v274
  %v392 = vpop.f32.mrb[0].mxu0
  %v393 = vadd.f32 %v299, %v392
  %v394 = vpop.f32.mrb[0].mxu0
  %v395 = vpop.f32.mrb[0].mxu0
  %v396 = vpop.f32.mrb[0].mxu0
  %397 = vdwg.mxu0
  %vm398 = vcmask 322560
  %399 = vst.msk [vmem:[%s8] sm:$0xf] %vm398, %v393
  %s400 = scalar_lea.vmem %s0, 8
  %v401 = vld [vmem:[%s400] sm:$0xff]
  %v402 = vlaneseq
  %v403 = vshrl.u32 %v402, 7
  %v404 = vsub.s32 1, %v403
  %v405 = vrot.slane %v254, %v404
  %v406 = vlaneseq
  %v407 = vshrl.u32 %v406, 7
  %v408 = vsub.s32 1, %v407
  %v409 = vrot.slane %v256, %v408
  %v412 = vcombine.low %v405, %v409
  %v414 = vmul.f32 %v401, %v412
  %v416 = vcombine.high %v414, %v414
  %v418 = vpack.c.bf16 %v414, %v414
  %v419 = vpack.c.bf16 %v416, %v416
  %v420 = vld [vmem:[%s6] sm:$0xf]
  %v421 = vld [vmem:[%s6 + $0x4] sm:$0xf]
  %v422 = vld [vmem:[%s6 + $0x8] sm:$0xf]
  %v423 = vld [vmem:[%s6 + $0xc] sm:$0xf]
  %v424 = vld [vmem:[%s6 + $0x10] sm:$0xf]
  %v425 = vld [vmem:[%s6 + $0x14] sm:$0xf]
  %v426 = vld [vmem:[%s6 + $0x18] sm:$0xf]
  %v427 = vld [vmem:[%s6 + $0x1c] sm:$0xf]
  %v428 = vld [vmem:[%s6 + $0x20] sm:$0xf]
  %v429 = vld [vmem:[%s6 + $0x24] sm:$0xf]
  %v430 = vld [vmem:[%s6 + $0x28] sm:$0xf]
  %v431 = vld [vmem:[%s6 + $0x2c] sm:$0xf]
  %v432 = vld [vmem:[%s6 + $0x30] sm:$0xf]
  %v433 = vld [vmem:[%s6 + $0x34] sm:$0xf]
  %v434 = vld [vmem:[%s6 + $0x38] sm:$0xf]
  %v435 = vld [vmem:[%s6 + $0x3c] sm:$0xf]
  %v436 = vld [vmem:[%s6 + $0x40] sm:$0xf]
  %v437 = vld [vmem:[%s6 + $0x44] sm:$0xf]
  %v438 = vld [vmem:[%s7] sm:$0x1]
  %v440 = vlaneseq
  %v441 = vshrl.u32 %v440, 7
  %v442 = vsub.s32 0, %v441
  %v443 = vrot.slane %v438, %v442
  %v463 = vunpack.c.l.b16 %v420
  %v464 = vunpack.c.l.b16 %v421
  %v465 = vunpack.c.l.b16 %v422
  %v466 = vunpack.c.l.b16 %v423
  %v467 = vunpack.c.l.b16 %v424
  %v468 = vunpack.c.l.b16 %v425
  %v469 = vunpack.c.l.b16 %v426
  %v470 = vunpack.c.l.b16 %v427
  %v471 = vunpack.c.l.b16 %v428
  %v472 = vunpack.c.l.b16 %v429
  %v473 = vunpack.c.l.b16 %v430
  %v474 = vunpack.c.l.b16 %v431
  %v475 = vunpack.c.l.b16 %v432
  %v476 = vunpack.c.l.b16 %v433
  %v477 = vunpack.c.l.b16 %v434
  %v478 = vunpack.c.l.b16 %v435
  %v479 = vunpack.c.l.b16 %v436
  %v480 = vunpack.c.l.b16 %v437
  %v481 = vpack.c.b16 %v464, %v463
  %v482 = vpack.c.b16 %v466, %v465
  %v483 = vpack.c.b16 %v468, %v467
  %v484 = vpack.c.b16 %v470, %v469
  %v485 = vpack.c.b16 %v472, %v471
  %v486 = vpack.c.b16 %v474, %v473
  %v487 = vpack.c.b16 %v476, %v475
  %v488 = vpack.c.b16 %v478, %v477
  %v489 = vpack.c.b16 %v480, %v479
  %v500 = vsel %vm123, %v419, 0
  %502 = vmatprep.subr.bf16.mxu0 0
  %503 = vmatpush1.bf16.msra.mxu0 %v481
  %504 = vmatprep.subr.bf16.mxu0 0
  %505 = vmatpush1.bf16.msra.mxu0 %v482
  %506 = vmatprep.subr.bf16.mxu0 0
  %507 = vmatpush1.bf16.msra.mxu0 %v483
  %508 = vmatprep.subr.bf16.mxu0 0
  %509 = vmatpush1.bf16.msra.mxu0 %v484
  %510 = vmatprep.subr.bf16.mxu0 0
  %511 = vmatpush1.bf16.msra.mxu0 %v485
  %512 = vmatprep.subr.bf16.mxu0 0
  %513 = vmatpush1.bf16.msra.mxu0 %v486
  %514 = vmatprep.subr.bf16.mxu0 0
  %515 = vmatpush1.bf16.msra.mxu0 %v487
  %516 = vmatprep.subr.bf16.mxu0 0
  %517 = vmatpush1.bf16.msra.mxu0 %v488
  %518 = vmatprep.subr.bf16.mxu0 0
  %519 = vmatpush1.bf16.msra.mxu0 %v489
  %520 = vmatprep.subr.bf16.mxu0 0
  %521 = vmatpush1.bf16.msra.mxu0 0
  %522 = vmatprep.subr.bf16.mxu0 0
  %523 = vmatpush1.bf16.msra.mxu0 0
  %524 = vmatprep.subr.bf16.mxu0 0
  %525 = vmatpush1.bf16.msra.mxu0 0
  %526 = vmatprep.subr.bf16.mxu0 0
  %527 = vmatpush1.bf16.msra.mxu0 0
  %528 = vmatprep.subr.bf16.mxu0 0
  %529 = vmatpush1.bf16.msra.mxu0 0
  %530 = vmatprep.subr.bf16.mxu0 0
  %531 = vmatpush1.bf16.msra.mxu0 0
  %532 = vmatprep.subr.bf16.mxu0 0
  %533 = vmatpush1.bf16.msra.mxu0 0
  %534 = vmatprep.mubr.bf16.mxu0 %v500
  %535 = vmatmul.mubr.bf16.gmra.mrb[0].mxu0 %v418
  %v536 = vpop.f32.mrb[0].mxu0
  %v537 = vadd.f32 %v443, %v536
  %v538 = vpop.f32.mrb[0].mxu0
  %v539 = vpop.f32.mrb[0].mxu0
  %v540 = vpop.f32.mrb[0].mxu0
  %541 = vdwg.mxu0
  %s542 = scalar_lea.vmem %s8, 4
  %543 = vst.msk [vmem:[%s542] sm:$0xf] %vm398, %v537
  // Predicated region
  $region34: #{net_forward.18} parent=0 // pred_check
    _
  $region35: #{net_forward.18} parent=0 // pred_check_branch
    %545 = sbr.rel (0) target = $region37
  $region36: #{net_forward.18} parent=0 // pred_region
    _
  $region37: #{net_forward.18} parent=0 // pred_fallthru
    _
  // Predicated region
  $region38: #{net_forward.18} parent=0 // pred_check
    _
  $region39: #{net_forward.18} parent=0 // pred_check_branch
    %547 = sbr.rel (0) target = $region41
  $region40: #{net_forward.18} parent=0 // pred_region
    _
  $region41: #{net_forward.18} parent=0 // pred_fallthru
    _

</llo_original>
